<compile_context>
chip_gen: v6e
topology: v6e:2x2x1
jax: 0.10.0
libtpu: 0.0.40
codegen_flags: <defaults>
</compile_context>

<pallas_src>
import jax
import jax.numpy as jnp
from jax import lax
from jax.experimental import pallas as pl
from jax.experimental.pallas import tpu as pltpu


def _round_up(x, m):
    return ((x + m - 1) // m) * m


_VMEM_BUDGET = 36 << 20   # conservative per-step budget: fits v7x's 64 MiB physical VMEM


# ---------------------------------------------------------------------------
# Fused kernel: all LSTM layers (both directions) + classifier
# ---------------------------------------------------------------------------

def _make_fused_kernel(T, TB, H, Cp, L, D, unroll):
    """Ref layout (positional):
      x_ref                (T, TB, E_pad)   bf16  time-major embedded tokens
      wih[l*D+d]           (F_in_l, 4H)     bf16  hoisted input->gates weights
      bias[l*D+d]          (1, 4H)          f32   combined b_ih + b_hh
      whh[l*D+d]           (H, 4H)          bf16  per-direction recurrent weights
      wclf                 (D*H, Cp)        bf16  classifier weight
      bclf                 (1, Cp)          f32   classifier bias
      out_ref              (T, TB, Cp)      bf16  logits (lane-dense Cp block)
      act[d], gx[d], h[d], c[d]             VMEM scratch (per direction)
    Gate order matches PyTorch: [i, f, g, o], packed contiguously at H granularity.
    """
    n_wd = L * D

    def kernel(*refs):
        pos = 0
        x_ref = refs[pos]; pos += 1
        wih = refs[pos:pos + n_wd]; pos += n_wd
        bias = refs[pos:pos + n_wd]; pos += n_wd
        whh = refs[pos:pos + n_wd]; pos += n_wd
        wclf_ref = refs[pos]; pos += 1
        bclf_ref = refs[pos]; pos += 1
        out_ref = refs[pos]; pos += 1
        act = refs[pos:pos + D]; pos += D
        gx = refs[pos:pos + D]; pos += D
        h_sc = refs[pos:pos + D]; pos += D
        c_sc = refs[pos:pos + D]; pos += D

        for l in range(L):                       # static layer loop (L small)
            # ---- hoisted input projection: one big MXU matmul per direction ----
            if l == 0:
                srcs = [x_ref[...].reshape(T * TB, x_ref.shape[-1])]
            else:
                srcs = [act[d][...].reshape(T * TB, H) for d in range(D)]
            for d in range(D):
                w = wih[l * D + d][...]                      # (F_in, 4H) bf16
                if l == 0:
                    proj = jnp.dot(srcs[0], w, preferred_element_type=jnp.float32)
                else:
                    proj = jnp.dot(srcs[0], w[0:H, :],
                                   preferred_element_type=jnp.float32)
                    for dd in range(1, D):
                        proj = proj + jnp.dot(srcs[dd], w[dd * H:(dd + 1) * H, :],
                                              preferred_element_type=jnp.float32)
                # bias folded in f32, stored bf16 (halves the largest scratch buffer)
                gx[d][...] = (proj + bias[l * D + d][...]
                              ).astype(jnp.bfloat16).reshape(T, TB, 4 * H)

            for d in range(D):
                h_sc[d][...] = jnp.zeros((TB, H), jnp.bfloat16)
                c_sc[d][...] = jnp.zeros((TB, H), jnp.float32)

            # ---- serial recurrence: only h @ W_hh per direction per step ----
            def step(t, carry):
                for d in range(D):
                    td = t if d == 0 else T - 1 - t          # bwd runs time-reversed
                    gr = jnp.dot(h_sc[d][...], whh[l * D + d][...],
                                 preferred_element_type=jnp.float32)  # (TB, 4H)
                    g = gr + gx[d][td].astype(jnp.float32)
                    i_g = jax.nn.sigmoid(g[:, 0 * H:1 * H])
                    f_g = jax.nn.sigmoid(g[:, 1 * H:2 * H])
                    g_g = jnp.tanh(g[:, 2 * H:3 * H])
                    o_g = jax.nn.sigmoid(g[:, 3 * H:4 * H])
                    c_new = f_g * c_sc[d][...] + i_g * g_g
                    h_new = o_g * jnp.tanh(c_new)
                    h16 = h_new.astype(jnp.bfloat16)
                    h_sc[d][...] = h16
                    c_sc[d][...] = c_new
                    act[d][td] = h16
                return carry

            lax.fori_loop(0, T, step, 0, unroll=unroll)

        # ---- fused classifier: per-direction row-split matmuls, lane-dense output ----
        wc = wclf_ref[...]                                   # (D*H, Cp)
        logits = jnp.dot(act[0][...].reshape(T * TB, H), wc[0:H, :],
                         preferred_element_type=jnp.float32)
        for d in range(1, D):
            logits = logits + jnp.dot(act[d][...].reshape(T * TB, H),
                                      wc[d * H:(d + 1) * H, :],
                                      preferred_element_type=jnp.float32)
        logits = logits + bclf_ref[...]
        out_ref[...] = logits.astype(out_ref.dtype).reshape(T, TB, Cp)

    return kernel


# ---------------------------------------------------------------------------
# VMEM accounting + batch-tile selection
# ---------------------------------------------------------------------------

def _vmem_bytes_estimate(T, TB, E_pad, H, D, Cp, L):
    bf, f32 = 2, 4
    lane = lambda n: _round_up(n, 128)
    sub = lambda n: _round_up(n, 8)
    # pipeline blocks (input + output, double-buffered)
    blk = 2 * T * sub(TB) * lane(E_pad) * bf
    blk += 2 * T * sub(TB) * lane(Cp) * bf
    # weights (default pipeline double-buffers even constant-index blocks)
    wb = 0
    for l in range(L):
        fin = E_pad if l == 0 else D * H
        wb += D * (sub(fin) * lane(4 * H) * bf     # wih
                   + sub(1) * lane(4 * H) * f32    # bias
                   + sub(H) * lane(4 * H) * bf)    # whh
    wb += sub(D * H) * lane(Cp) * bf + sub(1) * lane(Cp) * f32
    wb *= 2
    # scratch
    sc = D * (T * sub(TB) * lane(H) * bf           # act
              + T * sub(TB) * lane(4 * H) * bf     # gx (bf16)
              + sub(TB) * (lane(H) * bf + lane(H) * f32))   # h + c
    return blk + wb + sc


def _choose_batch_tile(B, T, E_pad, H, D, Cp, L, budget=_VMEM_BUDGET):
    B8 = _round_up(B, 8)
    tb_cap = min(B8, 256)
    TB = 8
    for cand in range(tb_cap, 7, -8):              # largest multiple of 8 that fits
        if _vmem_bytes_estimate(T, cand, E_pad, H, D, Cp, L) <= budget:
            TB = cand
            break
    B_pad = _round_up(B, TB)
    # Aim for >= 2 grid steps when the batch allows, so v7x's second TC gets work.
    if B_pad // TB < 2 and B_pad >= 16:
        TB = _round_up(B_pad // 2, 8)
        B_pad = _round_up(B, TB)
    return TB, B_pad


# ---------------------------------------------------------------------------
# pallas_call wrapper
# ---------------------------------------------------------------------------

def _fused_forward_call(x_pad, packed, *, T, B_pad, TB):
    H, Cp, D, L, E_pad = (packed["H"], packed["Cp"], packed["D"],
                          packed["L"], packed["E_pad"])

    in_specs = [pl.BlockSpec((T, TB, E_pad), lambda i: (0, i, 0))]
    args = [x_pad]
    # Constant-index weight/bias blocks.  (pipeline_mode=pl.Buffered(1) would drop the
    # second VMEM copy; left at default for portability — Pallas already skips the
    # redundant re-DMA across grid steps since the block index never changes.)
    for w in packed["wih"]:
        in_specs.append(pl.BlockSpec(w.shape, lambda i: (0, 0)))
        args.append(w)
    for b in packed["bias"]:
        in_specs.append(pl.BlockSpec(b.shape, lambda i: (0, 0)))
        args.append(b)
    for w in packed["whh"]:
        in_specs.append(pl.BlockSpec(w.shape, lambda i: (0, 0)))
        args.append(w)
    in_specs.append(pl.BlockSpec(packed["wclf"].shape, lambda i: (0, 0)))
    args.append(packed["wclf"])
    in_specs.append(pl.BlockSpec(packed["bclf"].shape, lambda i: (0, 0)))
    args.append(packed["bclf"])

    unroll = T if T <= 16 else 4                    # partial unroll at production T
    kernel = _make_fused_kernel(T, TB, H, Cp, L, D, unroll)

    scratch = []
    scratch += [pltpu.VMEM((T, TB, H), jnp.bfloat16) for _ in range(D)]       # act
    scratch += [pltpu.VMEM((T, TB, 4 * H), jnp.bfloat16) for _ in range(D)]   # gx
    scratch += [pltpu.VMEM((TB, H), jnp.bfloat16) for _ in range(D)]          # h
    scratch += [pltpu.VMEM((TB, H), jnp.float32) for _ in range(D)]           # c

    est = _vmem_bytes_estimate(T, TB, E_pad, H, D, Cp, L)
    vmem_limit = int(max(min(2 * est, 60 << 20), 32 << 20))

    return pl.pallas_call(
        kernel,
        out_shape=jax.ShapeDtypeStruct((T, B_pad, Cp), jnp.bfloat16),
        grid=(B_pad // TB,),
        in_specs=in_specs,
        out_specs=pl.BlockSpec((T, TB, Cp), lambda i: (0, i, 0)),
        scratch_shapes=scratch,
        compiler_params=pltpu.CompilerParams(
            dimension_semantics=("parallel",),
            vmem_limit_bytes=vmem_limit),
    )(*args)


# ---------------------------------------------------------------------------
# Parameter init (PyTorch-native layout) + packing into kernel operands
# ---------------------------------------------------------------------------

def init_params(key, vocab_size, embed_dim, hidden_size, num_layers,
                bidirectional, num_class):
    D = 2 if bidirectional else 1
    k = float(1.0 / (hidden_size ** 0.5))
    key, sub = jax.random.split(key)
    params = {
        "embedding": jax.random.normal(sub, (vocab_size, embed_dim), jnp.float32)
    }
    lstm = []
    for layer in range(num_layers):
        in_size = embed_dim if layer == 0 else hidden_size * D
        dirs = []
        for _ in range(D):
            key, k1, k2, k3, k4 = jax.random.split(key, 5)
            w_ih = jax.random.uniform(k1, (4 * hidden_size, in_size),
                                      jnp.float32, -k, k)
            w_hh = jax.random.uniform(k2, (4 * hidden_size, hidden_size),
                                      jnp.float32, -k, k)
            b_ih = jax.random.uniform(k3, (4 * hidden_size,), jnp.float32, -k, k)
            b_hh = jax.random.uniform(k4, (4 * hidden_size,), jnp.float32, -k, k)
            dirs.append((w_ih, w_hh, b_ih, b_hh))
        lstm.append(dirs)
    params["lstm"] = lstm
    d_in = hidden_size * D
    kc = float(1.0 / (d_in ** 0.5))
    key, k1, k2 = jax.random.split(key, 3)
    params["clf_w"] = jax.random.uniform(k1, (num_class, d_in), jnp.float32, -kc, kc)
    params["clf_b"] = jax.random.uniform(k2, (num_class,), jnp.float32, -kc, kc)
    return params


def pack_params(params, *, hidden_size, num_layers, bidirectional, num_class,
                embed_dim):
    """Transpose PyTorch-layout weights into kernel operands (gates packed at H
    granularity, no per-gate lane padding)."""
    H = hidden_size
    D = 2 if bidirectional else 1
    E_pad = _round_up(embed_dim, 128)
    Cp = _round_up(num_class, 128)

    wih_p, bias_p, whh_p = [], [], []
    for l in range(num_layers):
        fin_real = embed_dim if l == 0 else D * H
        fin_pad = E_pad if l == 0 else D * H        # layers >= 1 need no row padding
        for d in range(D):
            w_ih, w_hh, b_ih, b_hh = params["lstm"][l][d]
            wt = w_ih.T                             # (fin_real, 4H), gate order [i,f,g,o]
            if fin_pad != fin_real:
                wt = jnp.pad(wt, ((0, fin_pad - fin_real), (0, 0)))
            wih_p.append(wt.astype(jnp.bfloat16))
            bias_p.append((b_ih + b_hh)[None, :].astype(jnp.float32))   # (1, 4H)
            whh_p.append(w_hh.T.astype(jnp.bfloat16))                   # (H, 4H)

    wt = params["clf_w"].T                           # (D*H, C)
    wclf = jnp.pad(wt, ((0, 0), (0, Cp - num_class))).astype(jnp.bfloat16)
    bclf = jnp.pad(params["clf_b"][None, :],
                   ((0, 0), (0, Cp - num_class))).astype(jnp.float32)

    return {"wih": wih_p, "bias": bias_p, "whh": whh_p,
            "wclf": wclf, "bclf": bclf,
            "H": H, "E_pad": E_pad, "Cp": Cp, "D": D, "L": num_layers}


# ---------------------------------------------------------------------------
# Forward pass (embedding gather + unpad/permute are XLA glue; everything else fused)
# ---------------------------------------------------------------------------

def slot_classifier_forward(params, packed, batch):
    B, T = batch.shape
    E = params["embedding"].shape[1]
    C = params["clf_b"].shape[0]
    H, E_pad, Cp, D, L = (packed["H"], packed["E_pad"], packed["Cp"],
                          packed["D"], packed["L"])

    TB, B_pad = _choose_batch_tile(B, T, E_pad, H, D, Cp, L)

    # TODO(synk): the data-dependent embedding gather stays in XLA; a production-scale
    # version would DMA-gather embedding rows inside the kernel via scalar prefetch.
    emb = jnp.take(params["embedding"], batch, axis=0)          # (B, T, E)
    x = jnp.transpose(emb, (1, 0, 2))                           # (T, B, E) time-major
    x = jnp.pad(x, ((0, 0), (0, B_pad - B), (0, E_pad - E))).astype(jnp.bfloat16)

    out = _fused_forward_call(x, packed, T=T, B_pad=B_pad, TB=TB)  # (T, B_pad, Cp) bf16
    logits = out[:, :B, :C].astype(jnp.float32)                 # strip padding
    return jnp.transpose(logits, (1, 2, 0))                     # (B, C, T)


# ---------------------------------------------------------------------------
# Demo
# ---------------------------------------------------------------------------

if __name__ == "__main__":
    VOCAB, EMBED, HIDDEN = 50, 32, 32
    NUM_LAYERS, BIDIR, NUM_CLASS = 2, True, 9
    B, T = 2, 8

    key = jax.random.PRNGKey(0)
    key, pkey, bkey = jax.random.split(key, 3)
    params = init_params(pkey, VOCAB, EMBED, HIDDEN, NUM_LAYERS, BIDIR, NUM_CLASS)
    packed = pack_params(params, hidden_size=HIDDEN, num_layers=NUM_LAYERS,
                         bidirectional=BIDIR, num_class=NUM_CLASS, embed_dim=EMBED)
    batch = jax.random.randint(bkey, (B, T), 0, VOCAB, dtype=jnp.int32)

    out = slot_classifier_forward(params, packed, batch)
    out = jax.block_until_ready(out)

    assert out.shape == (B, NUM_CLASS, T), out.shape
    assert bool(jnp.all(jnp.isfinite(out)))
    print("KERNEL_OK")
</pallas_src>

<mosaic_0001>
module attributes {stable_mosaic.version = 11 : i64} {
  func.func @kernel(%arg0: i32, %arg1: memref<8x8x128xbf16, #tpu.memory_space<vmem>>, %arg2: memref<128x128xbf16, #tpu.memory_space<vmem>>, %arg3: memref<128x128xbf16, #tpu.memory_space<vmem>>, %arg4: memref<64x128xbf16, #tpu.memory_space<vmem>>, %arg5: memref<64x128xbf16, #tpu.memory_space<vmem>>, %arg6: memref<1x128xf32, #tpu.memory_space<vmem>>, %arg7: memref<1x128xf32, #tpu.memory_space<vmem>>, %arg8: memref<1x128xf32, #tpu.memory_space<vmem>>, %arg9: memref<1x128xf32, #tpu.memory_space<vmem>>, %arg10: memref<32x128xbf16, #tpu.memory_space<vmem>>, %arg11: memref<32x128xbf16, #tpu.memory_space<vmem>>, %arg12: memref<32x128xbf16, #tpu.memory_space<vmem>>, %arg13: memref<32x128xbf16, #tpu.memory_space<vmem>>, %arg14: memref<64x128xbf16, #tpu.memory_space<vmem>>, %arg15: memref<1x128xf32, #tpu.memory_space<vmem>>, %arg16: memref<8x8x128xbf16, #tpu.memory_space<vmem>>, %arg17: memref<8x8x32xbf16, #tpu.memory_space<vmem>>, %arg18: memref<8x8x32xbf16, #tpu.memory_space<vmem>>, %arg19: memref<8x8x128xbf16, #tpu.memory_space<vmem>>, %arg20: memref<8x8x128xbf16, #tpu.memory_space<vmem>>, %arg21: memref<8x32xbf16, #tpu.memory_space<vmem>>, %arg22: memref<8x32xbf16, #tpu.memory_space<vmem>>, %arg23: memref<8x32xf32, #tpu.memory_space<vmem>>, %arg24: memref<8x32xf32, #tpu.memory_space<vmem>>) attributes {dimension_semantics = [#tpu.dimension_semantics<parallel>], iteration_bounds = array<i64: 1>, scalar_prefetch = 0 : i64, scratch_operands = 8 : i64, tpu.core_type = #tpu.core_type<tc>, window_params = [{transform_indices = @transform_0, window_bounds = array<i64: 8, 8, 128>}, {pipeline_mode = #tpu.pipeline_mode<synchronous>, transform_indices = @transform_1, window_bounds = array<i64: 128, 128>}, {pipeline_mode = #tpu.pipeline_mode<synchronous>, transform_indices = @transform_2, window_bounds = array<i64: 128, 128>}, {pipeline_mode = #tpu.pipeline_mode<synchronous>, transform_indices = @transform_3, window_bounds = array<i64: 64, 128>}, {pipeline_mode = #tpu.pipeline_mode<synchronous>, transform_indices = @transform_4, window_bounds = array<i64: 64, 128>}, {pipeline_mode = #tpu.pipeline_mode<synchronous>, transform_indices = @transform_5, window_bounds = array<i64: 1, 128>}, {pipeline_mode = #tpu.pipeline_mode<synchronous>, transform_indices = @transform_6, window_bounds = array<i64: 1, 128>}, {pipeline_mode = #tpu.pipeline_mode<synchronous>, transform_indices = @transform_7, window_bounds = array<i64: 1, 128>}, {pipeline_mode = #tpu.pipeline_mode<synchronous>, transform_indices = @transform_8, window_bounds = array<i64: 1, 128>}, {pipeline_mode = #tpu.pipeline_mode<synchronous>, transform_indices = @transform_9, window_bounds = array<i64: 32, 128>}, {pipeline_mode = #tpu.pipeline_mode<synchronous>, transform_indices = @transform_10, window_bounds = array<i64: 32, 128>}, {pipeline_mode = #tpu.pipeline_mode<synchronous>, transform_indices = @transform_11, window_bounds = array<i64: 32, 128>}, {pipeline_mode = #tpu.pipeline_mode<synchronous>, transform_indices = @transform_12, window_bounds = array<i64: 32, 128>}, {pipeline_mode = #tpu.pipeline_mode<synchronous>, transform_indices = @transform_13, window_bounds = array<i64: 64, 128>}, {pipeline_mode = #tpu.pipeline_mode<synchronous>, transform_indices = @transform_14, window_bounds = array<i64: 1, 128>}, {transform_indices = @transform_15, window_bounds = array<i64: 8, 8, 128>}]} {
    %c0 = arith.constant 0 : index
    %c0_0 = arith.constant 0 : index
    %c0_1 = arith.constant 0 : index
    %0 = vector.load %arg1[%c0, %c0_0, %c0_1] : memref<8x8x128xbf16, #tpu.memory_space<vmem>>, vector<8x8x128xbf16>
    %1 = vector.shape_cast %0 : vector<8x8x128xbf16> to vector<64x128xbf16>
    %c0_2 = arith.constant 0 : index
    %c0_3 = arith.constant 0 : index
    %2 = vector.load %arg2[%c0_2, %c0_3] : memref<128x128xbf16, #tpu.memory_space<vmem>>, vector<128x128xbf16>
    %cst = arith.constant dense<0.000000e+00> : vector<64x128xf32>
    %3 = tpu.matmul %1, %2, %cst {dimension_numbers = #tpu.dot_dimension_numbers<[1], [0], [0], [1], [0, 0, 1, 1], [], []>} : vector<64x128xbf16>, vector<128x128xbf16>, vector<64x128xf32> -> vector<64x128xf32>
    %c0_4 = arith.constant 0 : index
    %c0_5 = arith.constant 0 : index
    %4 = vector.load %arg6[%c0_4, %c0_5] : memref<1x128xf32, #tpu.memory_space<vmem>>, vector<1x128xf32>
    %5 = vector.broadcast %4 : vector<1x128xf32> to vector<64x128xf32>
    %6 = arith.addf %3, %5 : vector<64x128xf32>
    %7 = arith.truncf %6 : vector<64x128xf32> to vector<64x128xbf16>
    %8 = vector.shape_cast %7 : vector<64x128xbf16> to vector<8x8x128xbf16>
    %c0_6 = arith.constant 0 : index
    %c0_7 = arith.constant 0 : index
    %c0_8 = arith.constant 0 : index
    %9 = vector.load %arg19[%c0_6, %c0_7, %c0_8] : memref<8x8x128xbf16, #tpu.memory_space<vmem>>, vector<8x8x128xbf16>
    tpu.vector_store %arg19[%c0_6, %c0_7, %c0_8], %8 {strides = array<i32>} : memref<8x8x128xbf16, #tpu.memory_space<vmem>>, vector<8x8x128xbf16>,
    %c0_9 = arith.constant 0 : index
    %c0_10 = arith.constant 0 : index
    %10 = vector.load %arg3[%c0_9, %c0_10] : memref<128x128xbf16, #tpu.memory_space<vmem>>, vector<128x128xbf16>
    %cst_11 = arith.constant dense<0.000000e+00> : vector<64x128xf32>
    %11 = tpu.matmul %1, %10, %cst_11 {dimension_numbers = #tpu.dot_dimension_numbers<[1], [0], [0], [1], [0, 0, 1, 1], [], []>} : vector<64x128xbf16>, vector<128x128xbf16>, vector<64x128xf32> -> vector<64x128xf32>
    %c0_12 = arith.constant 0 : index
    %c0_13 = arith.constant 0 : index
    %12 = vector.load %arg7[%c0_12, %c0_13] : memref<1x128xf32, #tpu.memory_space<vmem>>, vector<1x128xf32>
    %13 = vector.broadcast %12 : vector<1x128xf32> to vector<64x128xf32>
    %14 = arith.addf %11, %13 : vector<64x128xf32>
    %15 = arith.truncf %14 : vector<64x128xf32> to vector<64x128xbf16>
    %16 = vector.shape_cast %15 : vector<64x128xbf16> to vector<8x8x128xbf16>
    %c0_14 = arith.constant 0 : index
    %c0_15 = arith.constant 0 : index
    %c0_16 = arith.constant 0 : index
    %17 = vector.load %arg20[%c0_14, %c0_15, %c0_16] : memref<8x8x128xbf16, #tpu.memory_space<vmem>>, vector<8x8x128xbf16>
    tpu.vector_store %arg20[%c0_14, %c0_15, %c0_16], %16 {strides = array<i32>} : memref<8x8x128xbf16, #tpu.memory_space<vmem>>, vector<8x8x128xbf16>,
    %cst_17 = arith.constant 0.000000e+00 : bf16
    %18 = vector.broadcast %cst_17 : bf16 to vector<8x32xbf16>
    %c0_18 = arith.constant 0 : index
    %c0_19 = arith.constant 0 : index
    %19 = vector.load %arg21[%c0_18, %c0_19] : memref<8x32xbf16, #tpu.memory_space<vmem>>, vector<8x32xbf16>
    tpu.vector_store %arg21[%c0_18, %c0_19], %18 {strides = array<i32>} : memref<8x32xbf16, #tpu.memory_space<vmem>>, vector<8x32xbf16>,
    %cst_20 = arith.constant 0.000000e+00 : f32
    %20 = vector.broadcast %cst_20 : f32 to vector<8x32xf32>
    %c0_21 = arith.constant 0 : index
    %c0_22 = arith.constant 0 : index
    %21 = vector.load %arg23[%c0_21, %c0_22] : memref<8x32xf32, #tpu.memory_space<vmem>>, vector<8x32xf32>
    tpu.vector_store %arg23[%c0_21, %c0_22], %20 {strides = array<i32>} : memref<8x32xf32, #tpu.memory_space<vmem>>, vector<8x32xf32>,
    %cst_23 = arith.constant 0.000000e+00 : bf16
    %22 = vector.broadcast %cst_23 : bf16 to vector<8x32xbf16>
    %c0_24 = arith.constant 0 : index
    %c0_25 = arith.constant 0 : index
    %23 = vector.load %arg22[%c0_24, %c0_25] : memref<8x32xbf16, #tpu.memory_space<vmem>>, vector<8x32xbf16>
    tpu.vector_store %arg22[%c0_24, %c0_25], %22 {strides = array<i32>} : memref<8x32xbf16, #tpu.memory_space<vmem>>, vector<8x32xbf16>,
    %cst_26 = arith.constant 0.000000e+00 : f32
    %24 = vector.broadcast %cst_26 : f32 to vector<8x32xf32>
    %c0_27 = arith.constant 0 : index
    %c0_28 = arith.constant 0 : index
    %25 = vector.load %arg24[%c0_27, %c0_28] : memref<8x32xf32, #tpu.memory_space<vmem>>, vector<8x32xf32>
    tpu.vector_store %arg24[%c0_27, %c0_28], %24 {strides = array<i32>} : memref<8x32xf32, #tpu.memory_space<vmem>>, vector<8x32xf32>,
    %c0_i32 = arith.constant 0 : i32
    %c0_29 = arith.constant 0 : index
    %c0_30 = arith.constant 0 : index
    %26 = vector.load %arg21[%c0_29, %c0_30] : memref<8x32xbf16, #tpu.memory_space<vmem>>, vector<8x32xbf16>
    %c0_31 = arith.constant 0 : index
    %c0_32 = arith.constant 0 : index
    %27 = vector.load %arg10[%c0_31, %c0_32] : memref<32x128xbf16, #tpu.memory_space<vmem>>, vector<32x128xbf16>
    %cst_33 = arith.constant dense<0.000000e+00> : vector<8x128xf32>
    %28 = tpu.matmul %26, %27, %cst_33 {dimension_numbers = #tpu.dot_dimension_numbers<[1], [0], [0], [1], [0, 0, 1, 1], [], []>} : vector<8x32xbf16>, vector<32x128xbf16>, vector<8x128xf32> -> vector<8x128xf32>
    %29 = arith.index_cast %c0_i32 : i32 to index
    %c0_34 = arith.constant 0 : index
    %c0_35 = arith.constant 0 : index
    %30 = vector.load %arg19[%29, %c0_34, %c0_35] : memref<8x8x128xbf16, #tpu.memory_space<vmem>>, vector<1x8x128xbf16>
    %31 = vector.shape_cast %30 : vector<1x8x128xbf16> to vector<8x128xbf16>
    %32 = arith.extf %31 : vector<8x128xbf16> to vector<8x128xf32>
    %33 = arith.addf %28, %32 : vector<8x128xf32>
    %34 = vector.extract_strided_slice %33 {offsets = [0, 0], sizes = [8, 32], strides = [1, 1]} : vector<8x128xf32> to vector<8x32xf32>
    %35 = arith.negf %34 : vector<8x32xf32>
    %36 = math.exp %35 : vector<8x32xf32>
    %cst_36 = arith.constant 1.000000e+00 : f32
    %37 = vector.broadcast %cst_36 : f32 to vector<8x32xf32>
    %38 = arith.addf %37, %36 : vector<8x32xf32>
    %39 = arith.divf %37, %38 : vector<8x32xf32>
    %40 = vector.extract_strided_slice %33 {offsets = [0, 32], sizes = [8, 32], strides = [1, 1]} : vector<8x128xf32> to vector<8x32xf32>
    %41 = arith.negf %40 : vector<8x32xf32>
    %42 = math.exp %41 : vector<8x32xf32>
    %cst_37 = arith.constant 1.000000e+00 : f32
    %43 = vector.broadcast %cst_37 : f32 to vector<8x32xf32>
    %44 = arith.addf %43, %42 : vector<8x32xf32>
    %45 = arith.divf %43, %44 : vector<8x32xf32>
    %46 = vector.extract_strided_slice %33 {offsets = [0, 64], sizes = [8, 32], strides = [1, 1]} : vector<8x128xf32> to vector<8x32xf32>
    %47 = math.tanh %46 : vector<8x32xf32>
    %48 = vector.extract_strided_slice %33 {offsets = [0, 96], sizes = [8, 32], strides = [1, 1]} : vector<8x128xf32> to vector<8x32xf32>
    %49 = arith.negf %48 : vector<8x32xf32>
    %50 = math.exp %49 : vector<8x32xf32>
    %cst_38 = arith.constant 1.000000e+00 : f32
    %51 = vector.broadcast %cst_38 : f32 to vector<8x32xf32>
    %52 = arith.addf %51, %50 : vector<8x32xf32>
    %53 = arith.divf %51, %52 : vector<8x32xf32>
    %c0_39 = arith.constant 0 : index
    %c0_40 = arith.constant 0 : index
    %54 = vector.load %arg23[%c0_39, %c0_40] : memref<8x32xf32, #tpu.memory_space<vmem>>, vector<8x32xf32>
    %55 = arith.mulf %45, %54 : vector<8x32xf32>
    %56 = arith.mulf %39, %47 : vector<8x32xf32>
    %57 = arith.addf %55, %56 : vector<8x32xf32>
    %58 = math.tanh %57 : vector<8x32xf32>
    %59 = arith.mulf %53, %58 : vector<8x32xf32>
    %60 = arith.truncf %59 : vector<8x32xf32> to vector<8x32xbf16>
    %c0_41 = arith.constant 0 : index
    %c0_42 = arith.constant 0 : index
    %61 = vector.load %arg21[%c0_41, %c0_42] : memref<8x32xbf16, #tpu.memory_space<vmem>>, vector<8x32xbf16>
    tpu.vector_store %arg21[%c0_41, %c0_42], %60 {strides = array<i32>} : memref<8x32xbf16, #tpu.memory_space<vmem>>, vector<8x32xbf16>,
    %c0_43 = arith.constant 0 : index
    %c0_44 = arith.constant 0 : index
    %62 = vector.load %arg23[%c0_43, %c0_44] : memref<8x32xf32, #tpu.memory_space<vmem>>, vector<8x32xf32>
    tpu.vector_store %arg23[%c0_43, %c0_44], %57 {strides = array<i32>} : memref<8x32xf32, #tpu.memory_space<vmem>>, vector<8x32xf32>,
    %63 = arith.index_cast %c0_i32 : i32 to index
    %c0_45 = arith.constant 0 : index
    %c0_46 = arith.constant 0 : index
    %64 = vector.load %arg17[%63, %c0_45, %c0_46] : memref<8x8x32xbf16, #tpu.memory_space<vmem>>, vector<1x8x32xbf16>
    %65 = vector.shape_cast %64 : vector<1x8x32xbf16> to vector<8x32xbf16>
    %66 = vector.shape_cast %60 : vector<8x32xbf16> to vector<1x8x32xbf16>
    tpu.vector_store %arg17[%63, %c0_45, %c0_46], %66 {strides = array<i32>} : memref<8x8x32xbf16, #tpu.memory_space<vmem>>, vector<1x8x32xbf16>,
    %c7_i32 = arith.constant 7 : i32
    %67 = arith.subi %c7_i32, %c0_i32 : i32
    %c0_47 = arith.constant 0 : index
    %c0_48 = arith.constant 0 : index
    %68 = vector.load %arg22[%c0_47, %c0_48] : memref<8x32xbf16, #tpu.memory_space<vmem>>, vector<8x32xbf16>
    %c0_49 = arith.constant 0 : index
    %c0_50 = arith.constant 0 : index
    %69 = vector.load %arg11[%c0_49, %c0_50] : memref<32x128xbf16, #tpu.memory_space<vmem>>, vector<32x128xbf16>
    %cst_51 = arith.constant dense<0.000000e+00> : vector<8x128xf32>
    %70 = tpu.matmul %68, %69, %cst_51 {dimension_numbers = #tpu.dot_dimension_numbers<[1], [0], [0], [1], [0, 0, 1, 1], [], []>} : vector<8x32xbf16>, vector<32x128xbf16>, vector<8x128xf32> -> vector<8x128xf32>
    %71 = arith.index_cast %67 : i32 to index
    %c0_52 = arith.constant 0 : index
    %c0_53 = arith.constant 0 : index
    %72 = vector.load %arg20[%71, %c0_52, %c0_53] : memref<8x8x128xbf16, #tpu.memory_space<vmem>>, vector<1x8x128xbf16>
    %73 = vector.shape_cast %72 : vector<1x8x128xbf16> to vector<8x128xbf16>
    %74 = arith.extf %73 : vector<8x128xbf16> to vector<8x128xf32>
    %75 = arith.addf %70, %74 : vector<8x128xf32>
    %76 = vector.extract_strided_slice %75 {offsets = [0, 0], sizes = [8, 32], strides = [1, 1]} : vector<8x128xf32> to vector<8x32xf32>
    %77 = arith.negf %76 : vector<8x32xf32>
    %78 = math.exp %77 : vector<8x32xf32>
    %cst_54 = arith.constant 1.000000e+00 : f32
    %79 = vector.broadcast %cst_54 : f32 to vector<8x32xf32>
    %80 = arith.addf %79, %78 : vector<8x32xf32>
    %81 = arith.divf %79, %80 : vector<8x32xf32>
    %82 = vector.extract_strided_slice %75 {offsets = [0, 32], sizes = [8, 32], strides = [1, 1]} : vector<8x128xf32> to vector<8x32xf32>
    %83 = arith.negf %82 : vector<8x32xf32>
    %84 = math.exp %83 : vector<8x32xf32>
    %cst_55 = arith.constant 1.000000e+00 : f32
    %85 = vector.broadcast %cst_55 : f32 to vector<8x32xf32>
    %86 = arith.addf %85, %84 : vector<8x32xf32>
    %87 = arith.divf %85, %86 : vector<8x32xf32>
    %88 = vector.extract_strided_slice %75 {offsets = [0, 64], sizes = [8, 32], strides = [1, 1]} : vector<8x128xf32> to vector<8x32xf32>
    %89 = math.tanh %88 : vector<8x32xf32>
    %90 = vector.extract_strided_slice %75 {offsets = [0, 96], sizes = [8, 32], strides = [1, 1]} : vector<8x128xf32> to vector<8x32xf32>
    %91 = arith.negf %90 : vector<8x32xf32>
    %92 = math.exp %91 : vector<8x32xf32>
    %cst_56 = arith.constant 1.000000e+00 : f32
    %93 = vector.broadcast %cst_56 : f32 to vector<8x32xf32>
    %94 = arith.addf %93, %92 : vector<8x32xf32>
    %95 = arith.divf %93, %94 : vector<8x32xf32>
    %c0_57 = arith.constant 0 : index
    %c0_58 = arith.constant 0 : index
    %96 = vector.load %arg24[%c0_57, %c0_58] : memref<8x32xf32, #tpu.memory_space<vmem>>, vector<8x32xf32>
    %97 = arith.mulf %87, %96 : vector<8x32xf32>
    %98 = arith.mulf %81, %89 : vector<8x32xf32>
    %99 = arith.addf %97, %98 : vector<8x32xf32>
    %100 = math.tanh %99 : vector<8x32xf32>
    %101 = arith.mulf %95, %100 : vector<8x32xf32>
    %102 = arith.truncf %101 : vector<8x32xf32> to vector<8x32xbf16>
    %c0_59 = arith.constant 0 : index
    %c0_60 = arith.constant 0 : index
    %103 = vector.load %arg22[%c0_59, %c0_60] : memref<8x32xbf16, #tpu.memory_space<vmem>>, vector<8x32xbf16>
    tpu.vector_store %arg22[%c0_59, %c0_60], %102 {strides = array<i32>} : memref<8x32xbf16, #tpu.memory_space<vmem>>, vector<8x32xbf16>,
    %c0_61 = arith.constant 0 : index
    %c0_62 = arith.constant 0 : index
    %104 = vector.load %arg24[%c0_61, %c0_62] : memref<8x32xf32, #tpu.memory_space<vmem>>, vector<8x32xf32>
    tpu.vector_store %arg24[%c0_61, %c0_62], %99 {strides = array<i32>} : memref<8x32xf32, #tpu.memory_space<vmem>>, vector<8x32xf32>,
    %105 = arith.index_cast %67 : i32 to index
    %c0_63 = arith.constant 0 : index
    %c0_64 = arith.constant 0 : index
    %106 = vector.load %arg18[%105, %c0_63, %c0_64] : memref<8x8x32xbf16, #tpu.memory_space<vmem>>, vector<1x8x32xbf16>
    %107 = vector.shape_cast %106 : vector<1x8x32xbf16> to vector<8x32xbf16>
    %108 = vector.shape_cast %102 : vector<8x32xbf16> to vector<1x8x32xbf16>
    tpu.vector_store %arg18[%105, %c0_63, %c0_64], %108 {strides = array<i32>} : memref<8x8x32xbf16, #tpu.memory_space<vmem>>, vector<1x8x32xbf16>,
    %c1_i32 = arith.constant 1 : i32
    %c0_65 = arith.constant 0 : index
    %c0_66 = arith.constant 0 : index
    %109 = vector.load %arg21[%c0_65, %c0_66] : memref<8x32xbf16, #tpu.memory_space<vmem>>, vector<8x32xbf16>
    %c0_67 = arith.constant 0 : index
    %c0_68 = arith.constant 0 : index
    %110 = vector.load %arg10[%c0_67, %c0_68] : memref<32x128xbf16, #tpu.memory_space<vmem>>, vector<32x128xbf16>
    %cst_69 = arith.constant dense<0.000000e+00> : vector<8x128xf32>
    %111 = tpu.matmul %109, %110, %cst_69 {dimension_numbers = #tpu.dot_dimension_numbers<[1], [0], [0], [1], [0, 0, 1, 1], [], []>} : vector<8x32xbf16>, vector<32x128xbf16>, vector<8x128xf32> -> vector<8x128xf32>
    %112 = arith.index_cast %c1_i32 : i32 to index
    %c0_70 = arith.constant 0 : index
    %c0_71 = arith.constant 0 : index
    %113 = vector.load %arg19[%112, %c0_70, %c0_71] : memref<8x8x128xbf16, #tpu.memory_space<vmem>>, vector<1x8x128xbf16>
    %114 = vector.shape_cast %113 : vector<1x8x128xbf16> to vector<8x128xbf16>
    %115 = arith.extf %114 : vector<8x128xbf16> to vector<8x128xf32>
    %116 = arith.addf %111, %115 : vector<8x128xf32>
    %117 = vector.extract_strided_slice %116 {offsets = [0, 0], sizes = [8, 32], strides = [1, 1]} : vector<8x128xf32> to vector<8x32xf32>
    %118 = arith.negf %117 : vector<8x32xf32>
    %119 = math.exp %118 : vector<8x32xf32>
    %cst_72 = arith.constant 1.000000e+00 : f32
    %120 = vector.broadcast %cst_72 : f32 to vector<8x32xf32>
    %121 = arith.addf %120, %119 : vector<8x32xf32>
    %122 = arith.divf %120, %121 : vector<8x32xf32>
    %123 = vector.extract_strided_slice %116 {offsets = [0, 32], sizes = [8, 32], strides = [1, 1]} : vector<8x128xf32> to vector<8x32xf32>
    %124 = arith.negf %123 : vector<8x32xf32>
    %125 = math.exp %124 : vector<8x32xf32>
    %cst_73 = arith.constant 1.000000e+00 : f32
    %126 = vector.broadcast %cst_73 : f32 to vector<8x32xf32>
    %127 = arith.addf %126, %125 : vector<8x32xf32>
    %128 = arith.divf %126, %127 : vector<8x32xf32>
    %129 = vector.extract_strided_slice %116 {offsets = [0, 64], sizes = [8, 32], strides = [1, 1]} : vector<8x128xf32> to vector<8x32xf32>
    %130 = math.tanh %129 : vector<8x32xf32>
    %131 = vector.extract_strided_slice %116 {offsets = [0, 96], sizes = [8, 32], strides = [1, 1]} : vector<8x128xf32> to vector<8x32xf32>
    %132 = arith.negf %131 : vector<8x32xf32>
    %133 = math.exp %132 : vector<8x32xf32>
    %cst_74 = arith.constant 1.000000e+00 : f32
    %134 = vector.broadcast %cst_74 : f32 to vector<8x32xf32>
    %135 = arith.addf %134, %133 : vector<8x32xf32>
    %136 = arith.divf %134, %135 : vector<8x32xf32>
    %c0_75 = arith.constant 0 : index
    %c0_76 = arith.constant 0 : index
    %137 = vector.load %arg23[%c0_75, %c0_76] : memref<8x32xf32, #tpu.memory_space<vmem>>, vector<8x32xf32>
    %138 = arith.mulf %128, %137 : vector<8x32xf32>
    %139 = arith.mulf %122, %130 : vector<8x32xf32>
    %140 = arith.addf %138, %139 : vector<8x32xf32>
    %141 = math.tanh %140 : vector<8x32xf32>
    %142 = arith.mulf %136, %141 : vector<8x32xf32>
    %143 = arith.truncf %142 : vector<8x32xf32> to vector<8x32xbf16>
    %c0_77 = arith.constant 0 : index
    %c0_78 = arith.constant 0 : index
    %144 = vector.load %arg21[%c0_77, %c0_78] : memref<8x32xbf16, #tpu.memory_space<vmem>>, vector<8x32xbf16>
    tpu.vector_store %arg21[%c0_77, %c0_78], %143 {strides = array<i32>} : memref<8x32xbf16, #tpu.memory_space<vmem>>, vector<8x32xbf16>,
    %c0_79 = arith.constant 0 : index
    %c0_80 = arith.constant 0 : index
    %145 = vector.load %arg23[%c0_79, %c0_80] : memref<8x32xf32, #tpu.memory_space<vmem>>, vector<8x32xf32>
    tpu.vector_store %arg23[%c0_79, %c0_80], %140 {strides = array<i32>} : memref<8x32xf32, #tpu.memory_space<vmem>>, vector<8x32xf32>,
    %146 = arith.index_cast %c1_i32 : i32 to index
    %c0_81 = arith.constant 0 : index
    %c0_82 = arith.constant 0 : index
    %147 = vector.load %arg17[%146, %c0_81, %c0_82] : memref<8x8x32xbf16, #tpu.memory_space<vmem>>, vector<1x8x32xbf16>
    %148 = vector.shape_cast %147 : vector<1x8x32xbf16> to vector<8x32xbf16>
    %149 = vector.shape_cast %143 : vector<8x32xbf16> to vector<1x8x32xbf16>
    tpu.vector_store %arg17[%146, %c0_81, %c0_82], %149 {strides = array<i32>} : memref<8x8x32xbf16, #tpu.memory_space<vmem>>, vector<1x8x32xbf16>,
    %c7_i32_83 = arith.constant 7 : i32
    %150 = arith.subi %c7_i32_83, %c1_i32 : i32
    %c0_84 = arith.constant 0 : index
    %c0_85 = arith.constant 0 : index
    %151 = vector.load %arg22[%c0_84, %c0_85] : memref<8x32xbf16, #tpu.memory_space<vmem>>, vector<8x32xbf16>
    %c0_86 = arith.constant 0 : index
    %c0_87 = arith.constant 0 : index
    %152 = vector.load %arg11[%c0_86, %c0_87] : memref<32x128xbf16, #tpu.memory_space<vmem>>, vector<32x128xbf16>
    %cst_88 = arith.constant dense<0.000000e+00> : vector<8x128xf32>
    %153 = tpu.matmul %151, %152, %cst_88 {dimension_numbers = #tpu.dot_dimension_numbers<[1], [0], [0], [1], [0, 0, 1, 1], [], []>} : vector<8x32xbf16>, vector<32x128xbf16>, vector<8x128xf32> -> vector<8x128xf32>
    %154 = arith.index_cast %150 : i32 to index
    %c0_89 = arith.constant 0 : index
    %c0_90 = arith.constant 0 : index
    %155 = vector.load %arg20[%154, %c0_89, %c0_90] : memref<8x8x128xbf16, #tpu.memory_space<vmem>>, vector<1x8x128xbf16>
    %156 = vector.shape_cast %155 : vector<1x8x128xbf16> to vector<8x128xbf16>
    %157 = arith.extf %156 : vector<8x128xbf16> to vector<8x128xf32>
    %158 = arith.addf %153, %157 : vector<8x128xf32>
    %159 = vector.extract_strided_slice %158 {offsets = [0, 0], sizes = [8, 32], strides = [1, 1]} : vector<8x128xf32> to vector<8x32xf32>
    %160 = arith.negf %159 : vector<8x32xf32>
    %161 = math.exp %160 : vector<8x32xf32>
    %cst_91 = arith.constant 1.000000e+00 : f32
    %162 = vector.broadcast %cst_91 : f32 to vector<8x32xf32>
    %163 = arith.addf %162, %161 : vector<8x32xf32>
    %164 = arith.divf %162, %163 : vector<8x32xf32>
    %165 = vector.extract_strided_slice %158 {offsets = [0, 32], sizes = [8, 32], strides = [1, 1]} : vector<8x128xf32> to vector<8x32xf32>
    %166 = arith.negf %165 : vector<8x32xf32>
    %167 = math.exp %166 : vector<8x32xf32>
    %cst_92 = arith.constant 1.000000e+00 : f32
    %168 = vector.broadcast %cst_92 : f32 to vector<8x32xf32>
    %169 = arith.addf %168, %167 : vector<8x32xf32>
    %170 = arith.divf %168, %169 : vector<8x32xf32>
    %171 = vector.extract_strided_slice %158 {offsets = [0, 64], sizes = [8, 32], strides = [1, 1]} : vector<8x128xf32> to vector<8x32xf32>
    %172 = math.tanh %171 : vector<8x32xf32>
    %173 = vector.extract_strided_slice %158 {offsets = [0, 96], sizes = [8, 32], strides = [1, 1]} : vector<8x128xf32> to vector<8x32xf32>
    %174 = arith.negf %173 : vector<8x32xf32>
    %175 = math.exp %174 : vector<8x32xf32>
    %cst_93 = arith.constant 1.000000e+00 : f32
    %176 = vector.broadcast %cst_93 : f32 to vector<8x32xf32>
    %177 = arith.addf %176, %175 : vector<8x32xf32>
    %178 = arith.divf %176, %177 : vector<8x32xf32>
    %c0_94 = arith.constant 0 : index
    %c0_95 = arith.constant 0 : index
    %179 = vector.load %arg24[%c0_94, %c0_95] : memref<8x32xf32, #tpu.memory_space<vmem>>, vector<8x32xf32>
    %180 = arith.mulf %170, %179 : vector<8x32xf32>
    %181 = arith.mulf %164, %172 : vector<8x32xf32>
    %182 = arith.addf %180, %181 : vector<8x32xf32>
    %183 = math.tanh %182 : vector<8x32xf32>
    %184 = arith.mulf %178, %183 : vector<8x32xf32>
    %185 = arith.truncf %184 : vector<8x32xf32> to vector<8x32xbf16>
    %c0_96 = arith.constant 0 : index
    %c0_97 = arith.constant 0 : index
    %186 = vector.load %arg22[%c0_96, %c0_97] : memref<8x32xbf16, #tpu.memory_space<vmem>>, vector<8x32xbf16>
    tpu.vector_store %arg22[%c0_96, %c0_97], %185 {strides = array<i32>} : memref<8x32xbf16, #tpu.memory_space<vmem>>, vector<8x32xbf16>,
    %c0_98 = arith.constant 0 : index
    %c0_99 = arith.constant 0 : index
    %187 = vector.load %arg24[%c0_98, %c0_99] : memref<8x32xf32, #tpu.memory_space<vmem>>, vector<8x32xf32>
    tpu.vector_store %arg24[%c0_98, %c0_99], %182 {strides = array<i32>} : memref<8x32xf32, #tpu.memory_space<vmem>>, vector<8x32xf32>,
    %188 = arith.index_cast %150 : i32 to index
    %c0_100 = arith.constant 0 : index
    %c0_101 = arith.constant 0 : index
    %189 = vector.load %arg18[%188, %c0_100, %c0_101] : memref<8x8x32xbf16, #tpu.memory_space<vmem>>, vector<1x8x32xbf16>
    %190 = vector.shape_cast %189 : vector<1x8x32xbf16> to vector<8x32xbf16>
    %191 = vector.shape_cast %185 : vector<8x32xbf16> to vector<1x8x32xbf16>
    tpu.vector_store %arg18[%188, %c0_100, %c0_101], %191 {strides = array<i32>} : memref<8x8x32xbf16, #tpu.memory_space<vmem>>, vector<1x8x32xbf16>,
    %c2_i32 = arith.constant 2 : i32
    %c0_102 = arith.constant 0 : index
    %c0_103 = arith.constant 0 : index
    %192 = vector.load %arg21[%c0_102, %c0_103] : memref<8x32xbf16, #tpu.memory_space<vmem>>, vector<8x32xbf16>
    %c0_104 = arith.constant 0 : index
    %c0_105 = arith.constant 0 : index
    %193 = vector.load %arg10[%c0_104, %c0_105] : memref<32x128xbf16, #tpu.memory_space<vmem>>, vector<32x128xbf16>
    %cst_106 = arith.constant dense<0.000000e+00> : vector<8x128xf32>
    %194 = tpu.matmul %192, %193, %cst_106 {dimension_numbers = #tpu.dot_dimension_numbers<[1], [0], [0], [1], [0, 0, 1, 1], [], []>} : vector<8x32xbf16>, vector<32x128xbf16>, vector<8x128xf32> -> vector<8x128xf32>
    %195 = arith.index_cast %c2_i32 : i32 to index
    %c0_107 = arith.constant 0 : index
    %c0_108 = arith.constant 0 : index
    %196 = vector.load %arg19[%195, %c0_107, %c0_108] : memref<8x8x128xbf16, #tpu.memory_space<vmem>>, vector<1x8x128xbf16>
    %197 = vector.shape_cast %196 : vector<1x8x128xbf16> to vector<8x128xbf16>
    %198 = arith.extf %197 : vector<8x128xbf16> to vector<8x128xf32>
    %199 = arith.addf %194, %198 : vector<8x128xf32>
    %200 = vector.extract_strided_slice %199 {offsets = [0, 0], sizes = [8, 32], strides = [1, 1]} : vector<8x128xf32> to vector<8x32xf32>
    %201 = arith.negf %200 : vector<8x32xf32>
    %202 = math.exp %201 : vector<8x32xf32>
    %cst_109 = arith.constant 1.000000e+00 : f32
    %203 = vector.broadcast %cst_109 : f32 to vector<8x32xf32>
    %204 = arith.addf %203, %202 : vector<8x32xf32>
    %205 = arith.divf %203, %204 : vector<8x32xf32>
    %206 = vector.extract_strided_slice %199 {offsets = [0, 32], sizes = [8, 32], strides = [1, 1]} : vector<8x128xf32> to vector<8x32xf32>
    %207 = arith.negf %206 : vector<8x32xf32>
    %208 = math.exp %207 : vector<8x32xf32>
    %cst_110 = arith.constant 1.000000e+00 : f32
    %209 = vector.broadcast %cst_110 : f32 to vector<8x32xf32>
    %210 = arith.addf %209, %208 : vector<8x32xf32>
    %211 = arith.divf %209, %210 : vector<8x32xf32>
    %212 = vector.extract_strided_slice %199 {offsets = [0, 64], sizes = [8, 32], strides = [1, 1]} : vector<8x128xf32> to vector<8x32xf32>
    %213 = math.tanh %212 : vector<8x32xf32>
    %214 = vector.extract_strided_slice %199 {offsets = [0, 96], sizes = [8, 32], strides = [1, 1]} : vector<8x128xf32> to vector<8x32xf32>
    %215 = arith.negf %214 : vector<8x32xf32>
    %216 = math.exp %215 : vector<8x32xf32>
    %cst_111 = arith.constant 1.000000e+00 : f32
    %217 = vector.broadcast %cst_111 : f32 to vector<8x32xf32>
    %218 = arith.addf %217, %216 : vector<8x32xf32>
    %219 = arith.divf %217, %218 : vector<8x32xf32>
    %c0_112 = arith.constant 0 : index
    %c0_113 = arith.constant 0 : index
    %220 = vector.load %arg23[%c0_112, %c0_113] : memref<8x32xf32, #tpu.memory_space<vmem>>, vector<8x32xf32>
    %221 = arith.mulf %211, %220 : vector<8x32xf32>
    %222 = arith.mulf %205, %213 : vector<8x32xf32>
    %223 = arith.addf %221, %222 : vector<8x32xf32>
    %224 = math.tanh %223 : vector<8x32xf32>
    %225 = arith.mulf %219, %224 : vector<8x32xf32>
    %226 = arith.truncf %225 : vector<8x32xf32> to vector<8x32xbf16>
    %c0_114 = arith.constant 0 : index
    %c0_115 = arith.constant 0 : index
    %227 = vector.load %arg21[%c0_114, %c0_115] : memref<8x32xbf16, #tpu.memory_space<vmem>>, vector<8x32xbf16>
    tpu.vector_store %arg21[%c0_114, %c0_115], %226 {strides = array<i32>} : memref<8x32xbf16, #tpu.memory_space<vmem>>, vector<8x32xbf16>,
    %c0_116 = arith.constant 0 : index
    %c0_117 = arith.constant 0 : index
    %228 = vector.load %arg23[%c0_116, %c0_117] : memref<8x32xf32, #tpu.memory_space<vmem>>, vector<8x32xf32>
    tpu.vector_store %arg23[%c0_116, %c0_117], %223 {strides = array<i32>} : memref<8x32xf32, #tpu.memory_space<vmem>>, vector<8x32xf32>,
    %229 = arith.index_cast %c2_i32 : i32 to index
    %c0_118 = arith.constant 0 : index
    %c0_119 = arith.constant 0 : index
    %230 = vector.load %arg17[%229, %c0_118, %c0_119] : memref<8x8x32xbf16, #tpu.memory_space<vmem>>, vector<1x8x32xbf16>
    %231 = vector.shape_cast %230 : vector<1x8x32xbf16> to vector<8x32xbf16>
    %232 = vector.shape_cast %226 : vector<8x32xbf16> to vector<1x8x32xbf16>
    tpu.vector_store %arg17[%229, %c0_118, %c0_119], %232 {strides = array<i32>} : memref<8x8x32xbf16, #tpu.memory_space<vmem>>, vector<1x8x32xbf16>,
    %c7_i32_120 = arith.constant 7 : i32
    %233 = arith.subi %c7_i32_120, %c2_i32 : i32
    %c0_121 = arith.constant 0 : index
    %c0_122 = arith.constant 0 : index
    %234 = vector.load %arg22[%c0_121, %c0_122] : memref<8x32xbf16, #tpu.memory_space<vmem>>, vector<8x32xbf16>
    %c0_123 = arith.constant 0 : index
    %c0_124 = arith.constant 0 : index
    %235 = vector.load %arg11[%c0_123, %c0_124] : memref<32x128xbf16, #tpu.memory_space<vmem>>, vector<32x128xbf16>
    %cst_125 = arith.constant dense<0.000000e+00> : vector<8x128xf32>
    %236 = tpu.matmul %234, %235, %cst_125 {dimension_numbers = #tpu.dot_dimension_numbers<[1], [0], [0], [1], [0, 0, 1, 1], [], []>} : vector<8x32xbf16>, vector<32x128xbf16>, vector<8x128xf32> -> vector<8x128xf32>
    %237 = arith.index_cast %233 : i32 to index
    %c0_126 = arith.constant 0 : index
    %c0_127 = arith.constant 0 : index
    %238 = vector.load %arg20[%237, %c0_126, %c0_127] : memref<8x8x128xbf16, #tpu.memory_space<vmem>>, vector<1x8x128xbf16>
    %239 = vector.shape_cast %238 : vector<1x8x128xbf16> to vector<8x128xbf16>
    %240 = arith.extf %239 : vector<8x128xbf16> to vector<8x128xf32>
    %241 = arith.addf %236, %240 : vector<8x128xf32>
    %242 = vector.extract_strided_slice %241 {offsets = [0, 0], sizes = [8, 32], strides = [1, 1]} : vector<8x128xf32> to vector<8x32xf32>
    %243 = arith.negf %242 : vector<8x32xf32>
    %244 = math.exp %243 : vector<8x32xf32>
    %cst_128 = arith.constant 1.000000e+00 : f32
    %245 = vector.broadcast %cst_128 : f32 to vector<8x32xf32>
    %246 = arith.addf %245, %244 : vector<8x32xf32>
    %247 = arith.divf %245, %246 : vector<8x32xf32>
    %248 = vector.extract_strided_slice %241 {offsets = [0, 32], sizes = [8, 32], strides = [1, 1]} : vector<8x128xf32> to vector<8x32xf32>
    %249 = arith.negf %248 : vector<8x32xf32>
    %250 = math.exp %249 : vector<8x32xf32>
    %cst_129 = arith.constant 1.000000e+00 : f32
    %251 = vector.broadcast %cst_129 : f32 to vector<8x32xf32>
    %252 = arith.addf %251, %250 : vector<8x32xf32>
    %253 = arith.divf %251, %252 : vector<8x32xf32>
    %254 = vector.extract_strided_slice %241 {offsets = [0, 64], sizes = [8, 32], strides = [1, 1]} : vector<8x128xf32> to vector<8x32xf32>
    %255 = math.tanh %254 : vector<8x32xf32>
    %256 = vector.extract_strided_slice %241 {offsets = [0, 96], sizes = [8, 32], strides = [1, 1]} : vector<8x128xf32> to vector<8x32xf32>
    %257 = arith.negf %256 : vector<8x32xf32>
    %258 = math.exp %257 : vector<8x32xf32>
    %cst_130 = arith.constant 1.000000e+00 : f32
    %259 = vector.broadcast %cst_130 : f32 to vector<8x32xf32>
    %260 = arith.addf %259, %258 : vector<8x32xf32>
    %261 = arith.divf %259, %260 : vector<8x32xf32>
    %c0_131 = arith.constant 0 : index
    %c0_132 = arith.constant 0 : index
    %262 = vector.load %arg24[%c0_131, %c0_132] : memref<8x32xf32, #tpu.memory_space<vmem>>, vector<8x32xf32>
    %263 = arith.mulf %253, %262 : vector<8x32xf32>
    %264 = arith.mulf %247, %255 : vector<8x32xf32>
    %265 = arith.addf %263, %264 : vector<8x32xf32>
    %266 = math.tanh %265 : vector<8x32xf32>
    %267 = arith.mulf %261, %266 : vector<8x32xf32>
    %268 = arith.truncf %267 : vector<8x32xf32> to vector<8x32xbf16>
    %c0_133 = arith.constant 0 : index
    %c0_134 = arith.constant 0 : index
    %269 = vector.load %arg22[%c0_133, %c0_134] : memref<8x32xbf16, #tpu.memory_space<vmem>>, vector<8x32xbf16>
    tpu.vector_store %arg22[%c0_133, %c0_134], %268 {strides = array<i32>} : memref<8x32xbf16, #tpu.memory_space<vmem>>, vector<8x32xbf16>,
    %c0_135 = arith.constant 0 : index
    %c0_136 = arith.constant 0 : index
    %270 = vector.load %arg24[%c0_135, %c0_136] : memref<8x32xf32, #tpu.memory_space<vmem>>, vector<8x32xf32>
    tpu.vector_store %arg24[%c0_135, %c0_136], %265 {strides = array<i32>} : memref<8x32xf32, #tpu.memory_space<vmem>>, vector<8x32xf32>,
    %271 = arith.index_cast %233 : i32 to index
    %c0_137 = arith.constant 0 : index
    %c0_138 = arith.constant 0 : index
    %272 = vector.load %arg18[%271, %c0_137, %c0_138] : memref<8x8x32xbf16, #tpu.memory_space<vmem>>, vector<1x8x32xbf16>
    %273 = vector.shape_cast %272 : vector<1x8x32xbf16> to vector<8x32xbf16>
    %274 = vector.shape_cast %268 : vector<8x32xbf16> to vector<1x8x32xbf16>
    tpu.vector_store %arg18[%271, %c0_137, %c0_138], %274 {strides = array<i32>} : memref<8x8x32xbf16, #tpu.memory_space<vmem>>, vector<1x8x32xbf16>,
    %c3_i32 = arith.constant 3 : i32
    %c0_139 = arith.constant 0 : index
    %c0_140 = arith.constant 0 : index
    %275 = vector.load %arg21[%c0_139, %c0_140] : memref<8x32xbf16, #tpu.memory_space<vmem>>, vector<8x32xbf16>
    %c0_141 = arith.constant 0 : index
    %c0_142 = arith.constant 0 : index
    %276 = vector.load %arg10[%c0_141, %c0_142] : memref<32x128xbf16, #tpu.memory_space<vmem>>, vector<32x128xbf16>
    %cst_143 = arith.constant dense<0.000000e+00> : vector<8x128xf32>
    %277 = tpu.matmul %275, %276, %cst_143 {dimension_numbers = #tpu.dot_dimension_numbers<[1], [0], [0], [1], [0, 0, 1, 1], [], []>} : vector<8x32xbf16>, vector<32x128xbf16>, vector<8x128xf32> -> vector<8x128xf32>
    %278 = arith.index_cast %c3_i32 : i32 to index
    %c0_144 = arith.constant 0 : index
    %c0_145 = arith.constant 0 : index
    %279 = vector.load %arg19[%278, %c0_144, %c0_145] : memref<8x8x128xbf16, #tpu.memory_space<vmem>>, vector<1x8x128xbf16>
    %280 = vector.shape_cast %279 : vector<1x8x128xbf16> to vector<8x128xbf16>
    %281 = arith.extf %280 : vector<8x128xbf16> to vector<8x128xf32>
    %282 = arith.addf %277, %281 : vector<8x128xf32>
    %283 = vector.extract_strided_slice %282 {offsets = [0, 0], sizes = [8, 32], strides = [1, 1]} : vector<8x128xf32> to vector<8x32xf32>
    %284 = arith.negf %283 : vector<8x32xf32>
    %285 = math.exp %284 : vector<8x32xf32>
    %cst_146 = arith.constant 1.000000e+00 : f32
    %286 = vector.broadcast %cst_146 : f32 to vector<8x32xf32>
    %287 = arith.addf %286, %285 : vector<8x32xf32>
    %288 = arith.divf %286, %287 : vector<8x32xf32>
    %289 = vector.extract_strided_slice %282 {offsets = [0, 32], sizes = [8, 32], strides = [1, 1]} : vector<8x128xf32> to vector<8x32xf32>
    %290 = arith.negf %289 : vector<8x32xf32>
    %291 = math.exp %290 : vector<8x32xf32>
    %cst_147 = arith.constant 1.000000e+00 : f32
    %292 = vector.broadcast %cst_147 : f32 to vector<8x32xf32>
    %293 = arith.addf %292, %291 : vector<8x32xf32>
    %294 = arith.divf %292, %293 : vector<8x32xf32>
    %295 = vector.extract_strided_slice %282 {offsets = [0, 64], sizes = [8, 32], strides = [1, 1]} : vector<8x128xf32> to vector<8x32xf32>
    %296 = math.tanh %295 : vector<8x32xf32>
    %297 = vector.extract_strided_slice %282 {offsets = [0, 96], sizes = [8, 32], strides = [1, 1]} : vector<8x128xf32> to vector<8x32xf32>
    %298 = arith.negf %297 : vector<8x32xf32>
    %299 = math.exp %298 : vector<8x32xf32>
    %cst_148 = arith.constant 1.000000e+00 : f32
    %300 = vector.broadcast %cst_148 : f32 to vector<8x32xf32>
    %301 = arith.addf %300, %299 : vector<8x32xf32>
    %302 = arith.divf %300, %301 : vector<8x32xf32>
    %c0_149 = arith.constant 0 : index
    %c0_150 = arith.constant 0 : index
    %303 = vector.load %arg23[%c0_149, %c0_150] : memref<8x32xf32, #tpu.memory_space<vmem>>, vector<8x32xf32>
    %304 = arith.mulf %294, %303 : vector<8x32xf32>
    %305 = arith.mulf %288, %296 : vector<8x32xf32>
    %306 = arith.addf %304, %305 : vector<8x32xf32>
    %307 = math.tanh %306 : vector<8x32xf32>
    %308 = arith.mulf %302, %307 : vector<8x32xf32>
    %309 = arith.truncf %308 : vector<8x32xf32> to vector<8x32xbf16>
    %c0_151 = arith.constant 0 : index
    %c0_152 = arith.constant 0 : index
    %310 = vector.load %arg21[%c0_151, %c0_152] : memref<8x32xbf16, #tpu.memory_space<vmem>>, vector<8x32xbf16>
    tpu.vector_store %arg21[%c0_151, %c0_152], %309 {strides = array<i32>} : memref<8x32xbf16, #tpu.memory_space<vmem>>, vector<8x32xbf16>,
    %c0_153 = arith.constant 0 : index
    %c0_154 = arith.constant 0 : index
    %311 = vector.load %arg23[%c0_153, %c0_154] : memref<8x32xf32, #tpu.memory_space<vmem>>, vector<8x32xf32>
    tpu.vector_store %arg23[%c0_153, %c0_154], %306 {strides = array<i32>} : memref<8x32xf32, #tpu.memory_space<vmem>>, vector<8x32xf32>,
    %312 = arith.index_cast %c3_i32 : i32 to index
    %c0_155 = arith.constant 0 : index
    %c0_156 = arith.constant 0 : index
    %313 = vector.load %arg17[%312, %c0_155, %c0_156] : memref<8x8x32xbf16, #tpu.memory_space<vmem>>, vector<1x8x32xbf16>
    %314 = vector.shape_cast %313 : vector<1x8x32xbf16> to vector<8x32xbf16>
    %315 = vector.shape_cast %309 : vector<8x32xbf16> to vector<1x8x32xbf16>
    tpu.vector_store %arg17[%312, %c0_155, %c0_156], %315 {strides = array<i32>} : memref<8x8x32xbf16, #tpu.memory_space<vmem>>, vector<1x8x32xbf16>,
    %c7_i32_157 = arith.constant 7 : i32
    %316 = arith.subi %c7_i32_157, %c3_i32 : i32
    %c0_158 = arith.constant 0 : index
    %c0_159 = arith.constant 0 : index
    %317 = vector.load %arg22[%c0_158, %c0_159] : memref<8x32xbf16, #tpu.memory_space<vmem>>, vector<8x32xbf16>
    %c0_160 = arith.constant 0 : index
    %c0_161 = arith.constant 0 : index
    %318 = vector.load %arg11[%c0_160, %c0_161] : memref<32x128xbf16, #tpu.memory_space<vmem>>, vector<32x128xbf16>
    %cst_162 = arith.constant dense<0.000000e+00> : vector<8x128xf32>
    %319 = tpu.matmul %317, %318, %cst_162 {dimension_numbers = #tpu.dot_dimension_numbers<[1], [0], [0], [1], [0, 0, 1, 1], [], []>} : vector<8x32xbf16>, vector<32x128xbf16>, vector<8x128xf32> -> vector<8x128xf32>
    %320 = arith.index_cast %316 : i32 to index
    %c0_163 = arith.constant 0 : index
    %c0_164 = arith.constant 0 : index
    %321 = vector.load %arg20[%320, %c0_163, %c0_164] : memref<8x8x128xbf16, #tpu.memory_space<vmem>>, vector<1x8x128xbf16>
    %322 = vector.shape_cast %321 : vector<1x8x128xbf16> to vector<8x128xbf16>
    %323 = arith.extf %322 : vector<8x128xbf16> to vector<8x128xf32>
    %324 = arith.addf %319, %323 : vector<8x128xf32>
    %325 = vector.extract_strided_slice %324 {offsets = [0, 0], sizes = [8, 32], strides = [1, 1]} : vector<8x128xf32> to vector<8x32xf32>
    %326 = arith.negf %325 : vector<8x32xf32>
    %327 = math.exp %326 : vector<8x32xf32>
    %cst_165 = arith.constant 1.000000e+00 : f32
    %328 = vector.broadcast %cst_165 : f32 to vector<8x32xf32>
    %329 = arith.addf %328, %327 : vector<8x32xf32>
    %330 = arith.divf %328, %329 : vector<8x32xf32>
    %331 = vector.extract_strided_slice %324 {offsets = [0, 32], sizes = [8, 32], strides = [1, 1]} : vector<8x128xf32> to vector<8x32xf32>
    %332 = arith.negf %331 : vector<8x32xf32>
    %333 = math.exp %332 : vector<8x32xf32>
    %cst_166 = arith.constant 1.000000e+00 : f32
    %334 = vector.broadcast %cst_166 : f32 to vector<8x32xf32>
    %335 = arith.addf %334, %333 : vector<8x32xf32>
    %336 = arith.divf %334, %335 : vector<8x32xf32>
    %337 = vector.extract_strided_slice %324 {offsets = [0, 64], sizes = [8, 32], strides = [1, 1]} : vector<8x128xf32> to vector<8x32xf32>
    %338 = math.tanh %337 : vector<8x32xf32>
    %339 = vector.extract_strided_slice %324 {offsets = [0, 96], sizes = [8, 32], strides = [1, 1]} : vector<8x128xf32> to vector<8x32xf32>
    %340 = arith.negf %339 : vector<8x32xf32>
    %341 = math.exp %340 : vector<8x32xf32>
    %cst_167 = arith.constant 1.000000e+00 : f32
    %342 = vector.broadcast %cst_167 : f32 to vector<8x32xf32>
    %343 = arith.addf %342, %341 : vector<8x32xf32>
    %344 = arith.divf %342, %343 : vector<8x32xf32>
    %c0_168 = arith.constant 0 : index
    %c0_169 = arith.constant 0 : index
    %345 = vector.load %arg24[%c0_168, %c0_169] : memref<8x32xf32, #tpu.memory_space<vmem>>, vector<8x32xf32>
    %346 = arith.mulf %336, %345 : vector<8x32xf32>
    %347 = arith.mulf %330, %338 : vector<8x32xf32>
    %348 = arith.addf %346, %347 : vector<8x32xf32>
    %349 = math.tanh %348 : vector<8x32xf32>
    %350 = arith.mulf %344, %349 : vector<8x32xf32>
    %351 = arith.truncf %350 : vector<8x32xf32> to vector<8x32xbf16>
    %c0_170 = arith.constant 0 : index
    %c0_171 = arith.constant 0 : index
    %352 = vector.load %arg22[%c0_170, %c0_171] : memref<8x32xbf16, #tpu.memory_space<vmem>>, vector<8x32xbf16>
    tpu.vector_store %arg22[%c0_170, %c0_171], %351 {strides = array<i32>} : memref<8x32xbf16, #tpu.memory_space<vmem>>, vector<8x32xbf16>,
    %c0_172 = arith.constant 0 : index
    %c0_173 = arith.constant 0 : index
    %353 = vector.load %arg24[%c0_172, %c0_173] : memref<8x32xf32, #tpu.memory_space<vmem>>, vector<8x32xf32>
    tpu.vector_store %arg24[%c0_172, %c0_173], %348 {strides = array<i32>} : memref<8x32xf32, #tpu.memory_space<vmem>>, vector<8x32xf32>,
    %354 = arith.index_cast %316 : i32 to index
    %c0_174 = arith.constant 0 : index
    %c0_175 = arith.constant 0 : index
    %355 = vector.load %arg18[%354, %c0_174, %c0_175] : memref<8x8x32xbf16, #tpu.memory_space<vmem>>, vector<1x8x32xbf16>
    %356 = vector.shape_cast %355 : vector<1x8x32xbf16> to vector<8x32xbf16>
    %357 = vector.shape_cast %351 : vector<8x32xbf16> to vector<1x8x32xbf16>
    tpu.vector_store %arg18[%354, %c0_174, %c0_175], %357 {strides = array<i32>} : memref<8x8x32xbf16, #tpu.memory_space<vmem>>, vector<1x8x32xbf16>,
    %c4_i32 = arith.constant 4 : i32
    %c0_176 = arith.constant 0 : index
    %c0_177 = arith.constant 0 : index
    %358 = vector.load %arg21[%c0_176, %c0_177] : memref<8x32xbf16, #tpu.memory_space<vmem>>, vector<8x32xbf16>
    %c0_178 = arith.constant 0 : index
    %c0_179 = arith.constant 0 : index
    %359 = vector.load %arg10[%c0_178, %c0_179] : memref<32x128xbf16, #tpu.memory_space<vmem>>, vector<32x128xbf16>
    %cst_180 = arith.constant dense<0.000000e+00> : vector<8x128xf32>
    %360 = tpu.matmul %358, %359, %cst_180 {dimension_numbers = #tpu.dot_dimension_numbers<[1], [0], [0], [1], [0, 0, 1, 1], [], []>} : vector<8x32xbf16>, vector<32x128xbf16>, vector<8x128xf32> -> vector<8x128xf32>
    %361 = arith.index_cast %c4_i32 : i32 to index
    %c0_181 = arith.constant 0 : index
    %c0_182 = arith.constant 0 : index
    %362 = vector.load %arg19[%361, %c0_181, %c0_182] : memref<8x8x128xbf16, #tpu.memory_space<vmem>>, vector<1x8x128xbf16>
    %363 = vector.shape_cast %362 : vector<1x8x128xbf16> to vector<8x128xbf16>
    %364 = arith.extf %363 : vector<8x128xbf16> to vector<8x128xf32>
    %365 = arith.addf %360, %364 : vector<8x128xf32>
    %366 = vector.extract_strided_slice %365 {offsets = [0, 0], sizes = [8, 32], strides = [1, 1]} : vector<8x128xf32> to vector<8x32xf32>
    %367 = arith.negf %366 : vector<8x32xf32>
    %368 = math.exp %367 : vector<8x32xf32>
    %cst_183 = arith.constant 1.000000e+00 : f32
    %369 = vector.broadcast %cst_183 : f32 to vector<8x32xf32>
    %370 = arith.addf %369, %368 : vector<8x32xf32>
    %371 = arith.divf %369, %370 : vector<8x32xf32>
    %372 = vector.extract_strided_slice %365 {offsets = [0, 32], sizes = [8, 32], strides = [1, 1]} : vector<8x128xf32> to vector<8x32xf32>
    %373 = arith.negf %372 : vector<8x32xf32>
    %374 = math.exp %373 : vector<8x32xf32>
    %cst_184 = arith.constant 1.000000e+00 : f32
    %375 = vector.broadcast %cst_184 : f32 to vector<8x32xf32>
    %376 = arith.addf %375, %374 : vector<8x32xf32>
    %377 = arith.divf %375, %376 : vector<8x32xf32>
    %378 = vector.extract_strided_slice %365 {offsets = [0, 64], sizes = [8, 32], strides = [1, 1]} : vector<8x128xf32> to vector<8x32xf32>
    %379 = math.tanh %378 : vector<8x32xf32>
    %380 = vector.extract_strided_slice %365 {offsets = [0, 96], sizes = [8, 32], strides = [1, 1]} : vector<8x128xf32> to vector<8x32xf32>
    %381 = arith.negf %380 : vector<8x32xf32>
    %382 = math.exp %381 : vector<8x32xf32>
    %cst_185 = arith.constant 1.000000e+00 : f32
    %383 = vector.broadcast %cst_185 : f32 to vector<8x32xf32>
    %384 = arith.addf %383, %382 : vector<8x32xf32>
    %385 = arith.divf %383, %384 : vector<8x32xf32>
    %c0_186 = arith.constant 0 : index
    %c0_187 = arith.constant 0 : index
    %386 = vector.load %arg23[%c0_186, %c0_187] : memref<8x32xf32, #tpu.memory_space<vmem>>, vector<8x32xf32>
    %387 = arith.mulf %377, %386 : vector<8x32xf32>
    %388 = arith.mulf %371, %379 : vector<8x32xf32>
    %389 = arith.addf %387, %388 : vector<8x32xf32>
    %390 = math.tanh %389 : vector<8x32xf32>
    %391 = arith.mulf %385, %390 : vector<8x32xf32>
    %392 = arith.truncf %391 : vector<8x32xf32> to vector<8x32xbf16>
    %c0_188 = arith.constant 0 : index
    %c0_189 = arith.constant 0 : index
    %393 = vector.load %arg21[%c0_188, %c0_189] : memref<8x32xbf16, #tpu.memory_space<vmem>>, vector<8x32xbf16>
    tpu.vector_store %arg21[%c0_188, %c0_189], %392 {strides = array<i32>} : memref<8x32xbf16, #tpu.memory_space<vmem>>, vector<8x32xbf16>,
    %c0_190 = arith.constant 0 : index
    %c0_191 = arith.constant 0 : index
    %394 = vector.load %arg23[%c0_190, %c0_191] : memref<8x32xf32, #tpu.memory_space<vmem>>, vector<8x32xf32>
    tpu.vector_store %arg23[%c0_190, %c0_191], %389 {strides = array<i32>} : memref<8x32xf32, #tpu.memory_space<vmem>>, vector<8x32xf32>,
    %395 = arith.index_cast %c4_i32 : i32 to index
    %c0_192 = arith.constant 0 : index
    %c0_193 = arith.constant 0 : index
    %396 = vector.load %arg17[%395, %c0_192, %c0_193] : memref<8x8x32xbf16, #tpu.memory_space<vmem>>, vector<1x8x32xbf16>
    %397 = vector.shape_cast %396 : vector<1x8x32xbf16> to vector<8x32xbf16>
    %398 = vector.shape_cast %392 : vector<8x32xbf16> to vector<1x8x32xbf16>
    tpu.vector_store %arg17[%395, %c0_192, %c0_193], %398 {strides = array<i32>} : memref<8x8x32xbf16, #tpu.memory_space<vmem>>, vector<1x8x32xbf16>,
    %c7_i32_194 = arith.constant 7 : i32
    %399 = arith.subi %c7_i32_194, %c4_i32 : i32
    %c0_195 = arith.constant 0 : index
    %c0_196 = arith.constant 0 : index
    %400 = vector.load %arg22[%c0_195, %c0_196] : memref<8x32xbf16, #tpu.memory_space<vmem>>, vector<8x32xbf16>
    %c0_197 = arith.constant 0 : index
    %c0_198 = arith.constant 0 : index
    %401 = vector.load %arg11[%c0_197, %c0_198] : memref<32x128xbf16, #tpu.memory_space<vmem>>, vector<32x128xbf16>
    %cst_199 = arith.constant dense<0.000000e+00> : vector<8x128xf32>
    %402 = tpu.matmul %400, %401, %cst_199 {dimension_numbers = #tpu.dot_dimension_numbers<[1], [0], [0], [1], [0, 0, 1, 1], [], []>} : vector<8x32xbf16>, vector<32x128xbf16>, vector<8x128xf32> -> vector<8x128xf32>
    %403 = arith.index_cast %399 : i32 to index
    %c0_200 = arith.constant 0 : index
    %c0_201 = arith.constant 0 : index
    %404 = vector.load %arg20[%403, %c0_200, %c0_201] : memref<8x8x128xbf16, #tpu.memory_space<vmem>>, vector<1x8x128xbf16>
    %405 = vector.shape_cast %404 : vector<1x8x128xbf16> to vector<8x128xbf16>
    %406 = arith.extf %405 : vector<8x128xbf16> to vector<8x128xf32>
    %407 = arith.addf %402, %406 : vector<8x128xf32>
    %408 = vector.extract_strided_slice %407 {offsets = [0, 0], sizes = [8, 32], strides = [1, 1]} : vector<8x128xf32> to vector<8x32xf32>
    %409 = arith.negf %408 : vector<8x32xf32>
    %410 = math.exp %409 : vector<8x32xf32>
    %cst_202 = arith.constant 1.000000e+00 : f32
    %411 = vector.broadcast %cst_202 : f32 to vector<8x32xf32>
    %412 = arith.addf %411, %410 : vector<8x32xf32>
    %413 = arith.divf %411, %412 : vector<8x32xf32>
    %414 = vector.extract_strided_slice %407 {offsets = [0, 32], sizes = [8, 32], strides = [1, 1]} : vector<8x128xf32> to vector<8x32xf32>
    %415 = arith.negf %414 : vector<8x32xf32>
    %416 = math.exp %415 : vector<8x32xf32>
    %cst_203 = arith.constant 1.000000e+00 : f32
    %417 = vector.broadcast %cst_203 : f32 to vector<8x32xf32>
    %418 = arith.addf %417, %416 : vector<8x32xf32>
    %419 = arith.divf %417, %418 : vector<8x32xf32>
    %420 = vector.extract_strided_slice %407 {offsets = [0, 64], sizes = [8, 32], strides = [1, 1]} : vector<8x128xf32> to vector<8x32xf32>
    %421 = math.tanh %420 : vector<8x32xf32>
    %422 = vector.extract_strided_slice %407 {offsets = [0, 96], sizes = [8, 32], strides = [1, 1]} : vector<8x128xf32> to vector<8x32xf32>
    %423 = arith.negf %422 : vector<8x32xf32>
    %424 = math.exp %423 : vector<8x32xf32>
    %cst_204 = arith.constant 1.000000e+00 : f32
    %425 = vector.broadcast %cst_204 : f32 to vector<8x32xf32>
    %426 = arith.addf %425, %424 : vector<8x32xf32>
    %427 = arith.divf %425, %426 : vector<8x32xf32>
    %c0_205 = arith.constant 0 : index
    %c0_206 = arith.constant 0 : index
    %428 = vector.load %arg24[%c0_205, %c0_206] : memref<8x32xf32, #tpu.memory_space<vmem>>, vector<8x32xf32>
    %429 = arith.mulf %419, %428 : vector<8x32xf32>
    %430 = arith.mulf %413, %421 : vector<8x32xf32>
    %431 = arith.addf %429, %430 : vector<8x32xf32>
    %432 = math.tanh %431 : vector<8x32xf32>
    %433 = arith.mulf %427, %432 : vector<8x32xf32>
    %434 = arith.truncf %433 : vector<8x32xf32> to vector<8x32xbf16>
    %c0_207 = arith.constant 0 : index
    %c0_208 = arith.constant 0 : index
    %435 = vector.load %arg22[%c0_207, %c0_208] : memref<8x32xbf16, #tpu.memory_space<vmem>>, vector<8x32xbf16>
    tpu.vector_store %arg22[%c0_207, %c0_208], %434 {strides = array<i32>} : memref<8x32xbf16, #tpu.memory_space<vmem>>, vector<8x32xbf16>,
    %c0_209 = arith.constant 0 : index
    %c0_210 = arith.constant 0 : index
    %436 = vector.load %arg24[%c0_209, %c0_210] : memref<8x32xf32, #tpu.memory_space<vmem>>, vector<8x32xf32>
    tpu.vector_store %arg24[%c0_209, %c0_210], %431 {strides = array<i32>} : memref<8x32xf32, #tpu.memory_space<vmem>>, vector<8x32xf32>,
    %437 = arith.index_cast %399 : i32 to index
    %c0_211 = arith.constant 0 : index
    %c0_212 = arith.constant 0 : index
    %438 = vector.load %arg18[%437, %c0_211, %c0_212] : memref<8x8x32xbf16, #tpu.memory_space<vmem>>, vector<1x8x32xbf16>
    %439 = vector.shape_cast %438 : vector<1x8x32xbf16> to vector<8x32xbf16>
    %440 = vector.shape_cast %434 : vector<8x32xbf16> to vector<1x8x32xbf16>
    tpu.vector_store %arg18[%437, %c0_211, %c0_212], %440 {strides = array<i32>} : memref<8x8x32xbf16, #tpu.memory_space<vmem>>, vector<1x8x32xbf16>,
    %c5_i32 = arith.constant 5 : i32
    %c0_213 = arith.constant 0 : index
    %c0_214 = arith.constant 0 : index
    %441 = vector.load %arg21[%c0_213, %c0_214] : memref<8x32xbf16, #tpu.memory_space<vmem>>, vector<8x32xbf16>
    %c0_215 = arith.constant 0 : index
    %c0_216 = arith.constant 0 : index
    %442 = vector.load %arg10[%c0_215, %c0_216] : memref<32x128xbf16, #tpu.memory_space<vmem>>, vector<32x128xbf16>
    %cst_217 = arith.constant dense<0.000000e+00> : vector<8x128xf32>
    %443 = tpu.matmul %441, %442, %cst_217 {dimension_numbers = #tpu.dot_dimension_numbers<[1], [0], [0], [1], [0, 0, 1, 1], [], []>} : vector<8x32xbf16>, vector<32x128xbf16>, vector<8x128xf32> -> vector<8x128xf32>
    %444 = arith.index_cast %c5_i32 : i32 to index
    %c0_218 = arith.constant 0 : index
    %c0_219 = arith.constant 0 : index
    %445 = vector.load %arg19[%444, %c0_218, %c0_219] : memref<8x8x128xbf16, #tpu.memory_space<vmem>>, vector<1x8x128xbf16>
    %446 = vector.shape_cast %445 : vector<1x8x128xbf16> to vector<8x128xbf16>
    %447 = arith.extf %446 : vector<8x128xbf16> to vector<8x128xf32>
    %448 = arith.addf %443, %447 : vector<8x128xf32>
    %449 = vector.extract_strided_slice %448 {offsets = [0, 0], sizes = [8, 32], strides = [1, 1]} : vector<8x128xf32> to vector<8x32xf32>
    %450 = arith.negf %449 : vector<8x32xf32>
    %451 = math.exp %450 : vector<8x32xf32>
    %cst_220 = arith.constant 1.000000e+00 : f32
    %452 = vector.broadcast %cst_220 : f32 to vector<8x32xf32>
    %453 = arith.addf %452, %451 : vector<8x32xf32>
    %454 = arith.divf %452, %453 : vector<8x32xf32>
    %455 = vector.extract_strided_slice %448 {offsets = [0, 32], sizes = [8, 32], strides = [1, 1]} : vector<8x128xf32> to vector<8x32xf32>
    %456 = arith.negf %455 : vector<8x32xf32>
    %457 = math.exp %456 : vector<8x32xf32>
    %cst_221 = arith.constant 1.000000e+00 : f32
    %458 = vector.broadcast %cst_221 : f32 to vector<8x32xf32>
    %459 = arith.addf %458, %457 : vector<8x32xf32>
    %460 = arith.divf %458, %459 : vector<8x32xf32>
    %461 = vector.extract_strided_slice %448 {offsets = [0, 64], sizes = [8, 32], strides = [1, 1]} : vector<8x128xf32> to vector<8x32xf32>
    %462 = math.tanh %461 : vector<8x32xf32>
    %463 = vector.extract_strided_slice %448 {offsets = [0, 96], sizes = [8, 32], strides = [1, 1]} : vector<8x128xf32> to vector<8x32xf32>
    %464 = arith.negf %463 : vector<8x32xf32>
    %465 = math.exp %464 : vector<8x32xf32>
    %cst_222 = arith.constant 1.000000e+00 : f32
    %466 = vector.broadcast %cst_222 : f32 to vector<8x32xf32>
    %467 = arith.addf %466, %465 : vector<8x32xf32>
    %468 = arith.divf %466, %467 : vector<8x32xf32>
    %c0_223 = arith.constant 0 : index
    %c0_224 = arith.constant 0 : index
    %469 = vector.load %arg23[%c0_223, %c0_224] : memref<8x32xf32, #tpu.memory_space<vmem>>, vector<8x32xf32>
    %470 = arith.mulf %460, %469 : vector<8x32xf32>
    %471 = arith.mulf %454, %462 : vector<8x32xf32>
    %472 = arith.addf %470, %471 : vector<8x32xf32>
    %473 = math.tanh %472 : vector<8x32xf32>
    %474 = arith.mulf %468, %473 : vector<8x32xf32>
    %475 = arith.truncf %474 : vector<8x32xf32> to vector<8x32xbf16>
    %c0_225 = arith.constant 0 : index
    %c0_226 = arith.constant 0 : index
    %476 = vector.load %arg21[%c0_225, %c0_226] : memref<8x32xbf16, #tpu.memory_space<vmem>>, vector<8x32xbf16>
    tpu.vector_store %arg21[%c0_225, %c0_226], %475 {strides = array<i32>} : memref<8x32xbf16, #tpu.memory_space<vmem>>, vector<8x32xbf16>,
    %c0_227 = arith.constant 0 : index
    %c0_228 = arith.constant 0 : index
    %477 = vector.load %arg23[%c0_227, %c0_228] : memref<8x32xf32, #tpu.memory_space<vmem>>, vector<8x32xf32>
    tpu.vector_store %arg23[%c0_227, %c0_228], %472 {strides = array<i32>} : memref<8x32xf32, #tpu.memory_space<vmem>>, vector<8x32xf32>,
    %478 = arith.index_cast %c5_i32 : i32 to index
    %c0_229 = arith.constant 0 : index
    %c0_230 = arith.constant 0 : index
    %479 = vector.load %arg17[%478, %c0_229, %c0_230] : memref<8x8x32xbf16, #tpu.memory_space<vmem>>, vector<1x8x32xbf16>
    %480 = vector.shape_cast %479 : vector<1x8x32xbf16> to vector<8x32xbf16>
    %481 = vector.shape_cast %475 : vector<8x32xbf16> to vector<1x8x32xbf16>
    tpu.vector_store %arg17[%478, %c0_229, %c0_230], %481 {strides = array<i32>} : memref<8x8x32xbf16, #tpu.memory_space<vmem>>, vector<1x8x32xbf16>,
    %c7_i32_231 = arith.constant 7 : i32
    %482 = arith.subi %c7_i32_231, %c5_i32 : i32
    %c0_232 = arith.constant 0 : index
    %c0_233 = arith.constant 0 : index
    %483 = vector.load %arg22[%c0_232, %c0_233] : memref<8x32xbf16, #tpu.memory_space<vmem>>, vector<8x32xbf16>
    %c0_234 = arith.constant 0 : index
    %c0_235 = arith.constant 0 : index
    %484 = vector.load %arg11[%c0_234, %c0_235] : memref<32x128xbf16, #tpu.memory_space<vmem>>, vector<32x128xbf16>
    %cst_236 = arith.constant dense<0.000000e+00> : vector<8x128xf32>
    %485 = tpu.matmul %483, %484, %cst_236 {dimension_numbers = #tpu.dot_dimension_numbers<[1], [0], [0], [1], [0, 0, 1, 1], [], []>} : vector<8x32xbf16>, vector<32x128xbf16>, vector<8x128xf32> -> vector<8x128xf32>
    %486 = arith.index_cast %482 : i32 to index
    %c0_237 = arith.constant 0 : index
    %c0_238 = arith.constant 0 : index
    %487 = vector.load %arg20[%486, %c0_237, %c0_238] : memref<8x8x128xbf16, #tpu.memory_space<vmem>>, vector<1x8x128xbf16>
    %488 = vector.shape_cast %487 : vector<1x8x128xbf16> to vector<8x128xbf16>
    %489 = arith.extf %488 : vector<8x128xbf16> to vector<8x128xf32>
    %490 = arith.addf %485, %489 : vector<8x128xf32>
    %491 = vector.extract_strided_slice %490 {offsets = [0, 0], sizes = [8, 32], strides = [1, 1]} : vector<8x128xf32> to vector<8x32xf32>
    %492 = arith.negf %491 : vector<8x32xf32>
    %493 = math.exp %492 : vector<8x32xf32>
    %cst_239 = arith.constant 1.000000e+00 : f32
    %494 = vector.broadcast %cst_239 : f32 to vector<8x32xf32>
    %495 = arith.addf %494, %493 : vector<8x32xf32>
    %496 = arith.divf %494, %495 : vector<8x32xf32>
    %497 = vector.extract_strided_slice %490 {offsets = [0, 32], sizes = [8, 32], strides = [1, 1]} : vector<8x128xf32> to vector<8x32xf32>
    %498 = arith.negf %497 : vector<8x32xf32>
    %499 = math.exp %498 : vector<8x32xf32>
    %cst_240 = arith.constant 1.000000e+00 : f32
    %500 = vector.broadcast %cst_240 : f32 to vector<8x32xf32>
    %501 = arith.addf %500, %499 : vector<8x32xf32>
    %502 = arith.divf %500, %501 : vector<8x32xf32>
    %503 = vector.extract_strided_slice %490 {offsets = [0, 64], sizes = [8, 32], strides = [1, 1]} : vector<8x128xf32> to vector<8x32xf32>
    %504 = math.tanh %503 : vector<8x32xf32>
    %505 = vector.extract_strided_slice %490 {offsets = [0, 96], sizes = [8, 32], strides = [1, 1]} : vector<8x128xf32> to vector<8x32xf32>
    %506 = arith.negf %505 : vector<8x32xf32>
    %507 = math.exp %506 : vector<8x32xf32>
    %cst_241 = arith.constant 1.000000e+00 : f32
    %508 = vector.broadcast %cst_241 : f32 to vector<8x32xf32>
    %509 = arith.addf %508, %507 : vector<8x32xf32>
    %510 = arith.divf %508, %509 : vector<8x32xf32>
    %c0_242 = arith.constant 0 : index
    %c0_243 = arith.constant 0 : index
    %511 = vector.load %arg24[%c0_242, %c0_243] : memref<8x32xf32, #tpu.memory_space<vmem>>, vector<8x32xf32>
    %512 = arith.mulf %502, %511 : vector<8x32xf32>
    %513 = arith.mulf %496, %504 : vector<8x32xf32>
    %514 = arith.addf %512, %513 : vector<8x32xf32>
    %515 = math.tanh %514 : vector<8x32xf32>
    %516 = arith.mulf %510, %515 : vector<8x32xf32>
    %517 = arith.truncf %516 : vector<8x32xf32> to vector<8x32xbf16>
    %c0_244 = arith.constant 0 : index
    %c0_245 = arith.constant 0 : index
    %518 = vector.load %arg22[%c0_244, %c0_245] : memref<8x32xbf16, #tpu.memory_space<vmem>>, vector<8x32xbf16>
    tpu.vector_store %arg22[%c0_244, %c0_245], %517 {strides = array<i32>} : memref<8x32xbf16, #tpu.memory_space<vmem>>, vector<8x32xbf16>,
    %c0_246 = arith.constant 0 : index
    %c0_247 = arith.constant 0 : index
    %519 = vector.load %arg24[%c0_246, %c0_247] : memref<8x32xf32, #tpu.memory_space<vmem>>, vector<8x32xf32>
    tpu.vector_store %arg24[%c0_246, %c0_247], %514 {strides = array<i32>} : memref<8x32xf32, #tpu.memory_space<vmem>>, vector<8x32xf32>,
    %520 = arith.index_cast %482 : i32 to index
    %c0_248 = arith.constant 0 : index
    %c0_249 = arith.constant 0 : index
    %521 = vector.load %arg18[%520, %c0_248, %c0_249] : memref<8x8x32xbf16, #tpu.memory_space<vmem>>, vector<1x8x32xbf16>
    %522 = vector.shape_cast %521 : vector<1x8x32xbf16> to vector<8x32xbf16>
    %523 = vector.shape_cast %517 : vector<8x32xbf16> to vector<1x8x32xbf16>
    tpu.vector_store %arg18[%520, %c0_248, %c0_249], %523 {strides = array<i32>} : memref<8x8x32xbf16, #tpu.memory_space<vmem>>, vector<1x8x32xbf16>,
    %c6_i32 = arith.constant 6 : i32
    %c0_250 = arith.constant 0 : index
    %c0_251 = arith.constant 0 : index
    %524 = vector.load %arg21[%c0_250, %c0_251] : memref<8x32xbf16, #tpu.memory_space<vmem>>, vector<8x32xbf16>
    %c0_252 = arith.constant 0 : index
    %c0_253 = arith.constant 0 : index
    %525 = vector.load %arg10[%c0_252, %c0_253] : memref<32x128xbf16, #tpu.memory_space<vmem>>, vector<32x128xbf16>
    %cst_254 = arith.constant dense<0.000000e+00> : vector<8x128xf32>
    %526 = tpu.matmul %524, %525, %cst_254 {dimension_numbers = #tpu.dot_dimension_numbers<[1], [0], [0], [1], [0, 0, 1, 1], [], []>} : vector<8x32xbf16>, vector<32x128xbf16>, vector<8x128xf32> -> vector<8x128xf32>
    %527 = arith.index_cast %c6_i32 : i32 to index
    %c0_255 = arith.constant 0 : index
    %c0_256 = arith.constant 0 : index
    %528 = vector.load %arg19[%527, %c0_255, %c0_256] : memref<8x8x128xbf16, #tpu.memory_space<vmem>>, vector<1x8x128xbf16>
    %529 = vector.shape_cast %528 : vector<1x8x128xbf16> to vector<8x128xbf16>
    %530 = arith.extf %529 : vector<8x128xbf16> to vector<8x128xf32>
    %531 = arith.addf %526, %530 : vector<8x128xf32>
    %532 = vector.extract_strided_slice %531 {offsets = [0, 0], sizes = [8, 32], strides = [1, 1]} : vector<8x128xf32> to vector<8x32xf32>
    %533 = arith.negf %532 : vector<8x32xf32>
    %534 = math.exp %533 : vector<8x32xf32>
    %cst_257 = arith.constant 1.000000e+00 : f32
    %535 = vector.broadcast %cst_257 : f32 to vector<8x32xf32>
    %536 = arith.addf %535, %534 : vector<8x32xf32>
    %537 = arith.divf %535, %536 : vector<8x32xf32>
    %538 = vector.extract_strided_slice %531 {offsets = [0, 32], sizes = [8, 32], strides = [1, 1]} : vector<8x128xf32> to vector<8x32xf32>
    %539 = arith.negf %538 : vector<8x32xf32>
    %540 = math.exp %539 : vector<8x32xf32>
    %cst_258 = arith.constant 1.000000e+00 : f32
    %541 = vector.broadcast %cst_258 : f32 to vector<8x32xf32>
    %542 = arith.addf %541, %540 : vector<8x32xf32>
    %543 = arith.divf %541, %542 : vector<8x32xf32>
    %544 = vector.extract_strided_slice %531 {offsets = [0, 64], sizes = [8, 32], strides = [1, 1]} : vector<8x128xf32> to vector<8x32xf32>
    %545 = math.tanh %544 : vector<8x32xf32>
    %546 = vector.extract_strided_slice %531 {offsets = [0, 96], sizes = [8, 32], strides = [1, 1]} : vector<8x128xf32> to vector<8x32xf32>
    %547 = arith.negf %546 : vector<8x32xf32>
    %548 = math.exp %547 : vector<8x32xf32>
    %cst_259 = arith.constant 1.000000e+00 : f32
    %549 = vector.broadcast %cst_259 : f32 to vector<8x32xf32>
    %550 = arith.addf %549, %548 : vector<8x32xf32>
    %551 = arith.divf %549, %550 : vector<8x32xf32>
    %c0_260 = arith.constant 0 : index
    %c0_261 = arith.constant 0 : index
    %552 = vector.load %arg23[%c0_260, %c0_261] : memref<8x32xf32, #tpu.memory_space<vmem>>, vector<8x32xf32>
    %553 = arith.mulf %543, %552 : vector<8x32xf32>
    %554 = arith.mulf %537, %545 : vector<8x32xf32>
    %555 = arith.addf %553, %554 : vector<8x32xf32>
    %556 = math.tanh %555 : vector<8x32xf32>
    %557 = arith.mulf %551, %556 : vector<8x32xf32>
    %558 = arith.truncf %557 : vector<8x32xf32> to vector<8x32xbf16>
    %c0_262 = arith.constant 0 : index
    %c0_263 = arith.constant 0 : index
    %559 = vector.load %arg21[%c0_262, %c0_263] : memref<8x32xbf16, #tpu.memory_space<vmem>>, vector<8x32xbf16>
    tpu.vector_store %arg21[%c0_262, %c0_263], %558 {strides = array<i32>} : memref<8x32xbf16, #tpu.memory_space<vmem>>, vector<8x32xbf16>,
    %c0_264 = arith.constant 0 : index
    %c0_265 = arith.constant 0 : index
    %560 = vector.load %arg23[%c0_264, %c0_265] : memref<8x32xf32, #tpu.memory_space<vmem>>, vector<8x32xf32>
    tpu.vector_store %arg23[%c0_264, %c0_265], %555 {strides = array<i32>} : memref<8x32xf32, #tpu.memory_space<vmem>>, vector<8x32xf32>,
    %561 = arith.index_cast %c6_i32 : i32 to index
    %c0_266 = arith.constant 0 : index
    %c0_267 = arith.constant 0 : index
    %562 = vector.load %arg17[%561, %c0_266, %c0_267] : memref<8x8x32xbf16, #tpu.memory_space<vmem>>, vector<1x8x32xbf16>
    %563 = vector.shape_cast %562 : vector<1x8x32xbf16> to vector<8x32xbf16>
    %564 = vector.shape_cast %558 : vector<8x32xbf16> to vector<1x8x32xbf16>
    tpu.vector_store %arg17[%561, %c0_266, %c0_267], %564 {strides = array<i32>} : memref<8x8x32xbf16, #tpu.memory_space<vmem>>, vector<1x8x32xbf16>,
    %c7_i32_268 = arith.constant 7 : i32
    %565 = arith.subi %c7_i32_268, %c6_i32 : i32
    %c0_269 = arith.constant 0 : index
    %c0_270 = arith.constant 0 : index
    %566 = vector.load %arg22[%c0_269, %c0_270] : memref<8x32xbf16, #tpu.memory_space<vmem>>, vector<8x32xbf16>
    %c0_271 = arith.constant 0 : index
    %c0_272 = arith.constant 0 : index
    %567 = vector.load %arg11[%c0_271, %c0_272] : memref<32x128xbf16, #tpu.memory_space<vmem>>, vector<32x128xbf16>
    %cst_273 = arith.constant dense<0.000000e+00> : vector<8x128xf32>
    %568 = tpu.matmul %566, %567, %cst_273 {dimension_numbers = #tpu.dot_dimension_numbers<[1], [0], [0], [1], [0, 0, 1, 1], [], []>} : vector<8x32xbf16>, vector<32x128xbf16>, vector<8x128xf32> -> vector<8x128xf32>
    %569 = arith.index_cast %565 : i32 to index
    %c0_274 = arith.constant 0 : index
    %c0_275 = arith.constant 0 : index
    %570 = vector.load %arg20[%569, %c0_274, %c0_275] : memref<8x8x128xbf16, #tpu.memory_space<vmem>>, vector<1x8x128xbf16>
    %571 = vector.shape_cast %570 : vector<1x8x128xbf16> to vector<8x128xbf16>
    %572 = arith.extf %571 : vector<8x128xbf16> to vector<8x128xf32>
    %573 = arith.addf %568, %572 : vector<8x128xf32>
    %574 = vector.extract_strided_slice %573 {offsets = [0, 0], sizes = [8, 32], strides = [1, 1]} : vector<8x128xf32> to vector<8x32xf32>
    %575 = arith.negf %574 : vector<8x32xf32>
    %576 = math.exp %575 : vector<8x32xf32>
    %cst_276 = arith.constant 1.000000e+00 : f32
    %577 = vector.broadcast %cst_276 : f32 to vector<8x32xf32>
    %578 = arith.addf %577, %576 : vector<8x32xf32>
    %579 = arith.divf %577, %578 : vector<8x32xf32>
    %580 = vector.extract_strided_slice %573 {offsets = [0, 32], sizes = [8, 32], strides = [1, 1]} : vector<8x128xf32> to vector<8x32xf32>
    %581 = arith.negf %580 : vector<8x32xf32>
    %582 = math.exp %581 : vector<8x32xf32>
    %cst_277 = arith.constant 1.000000e+00 : f32
    %583 = vector.broadcast %cst_277 : f32 to vector<8x32xf32>
    %584 = arith.addf %583, %582 : vector<8x32xf32>
    %585 = arith.divf %583, %584 : vector<8x32xf32>
    %586 = vector.extract_strided_slice %573 {offsets = [0, 64], sizes = [8, 32], strides = [1, 1]} : vector<8x128xf32> to vector<8x32xf32>
    %587 = math.tanh %586 : vector<8x32xf32>
    %588 = vector.extract_strided_slice %573 {offsets = [0, 96], sizes = [8, 32], strides = [1, 1]} : vector<8x128xf32> to vector<8x32xf32>
    %589 = arith.negf %588 : vector<8x32xf32>
    %590 = math.exp %589 : vector<8x32xf32>
    %cst_278 = arith.constant 1.000000e+00 : f32
    %591 = vector.broadcast %cst_278 : f32 to vector<8x32xf32>
    %592 = arith.addf %591, %590 : vector<8x32xf32>
    %593 = arith.divf %591, %592 : vector<8x32xf32>
    %c0_279 = arith.constant 0 : index
    %c0_280 = arith.constant 0 : index
    %594 = vector.load %arg24[%c0_279, %c0_280] : memref<8x32xf32, #tpu.memory_space<vmem>>, vector<8x32xf32>
    %595 = arith.mulf %585, %594 : vector<8x32xf32>
    %596 = arith.mulf %579, %587 : vector<8x32xf32>
    %597 = arith.addf %595, %596 : vector<8x32xf32>
    %598 = math.tanh %597 : vector<8x32xf32>
    %599 = arith.mulf %593, %598 : vector<8x32xf32>
    %600 = arith.truncf %599 : vector<8x32xf32> to vector<8x32xbf16>
    %c0_281 = arith.constant 0 : index
    %c0_282 = arith.constant 0 : index
    %601 = vector.load %arg22[%c0_281, %c0_282] : memref<8x32xbf16, #tpu.memory_space<vmem>>, vector<8x32xbf16>
    tpu.vector_store %arg22[%c0_281, %c0_282], %600 {strides = array<i32>} : memref<8x32xbf16, #tpu.memory_space<vmem>>, vector<8x32xbf16>,
    %c0_283 = arith.constant 0 : index
    %c0_284 = arith.constant 0 : index
    %602 = vector.load %arg24[%c0_283, %c0_284] : memref<8x32xf32, #tpu.memory_space<vmem>>, vector<8x32xf32>
    tpu.vector_store %arg24[%c0_283, %c0_284], %597 {strides = array<i32>} : memref<8x32xf32, #tpu.memory_space<vmem>>, vector<8x32xf32>,
    %603 = arith.index_cast %565 : i32 to index
    %c0_285 = arith.constant 0 : index
    %c0_286 = arith.constant 0 : index
    %604 = vector.load %arg18[%603, %c0_285, %c0_286] : memref<8x8x32xbf16, #tpu.memory_space<vmem>>, vector<1x8x32xbf16>
    %605 = vector.shape_cast %604 : vector<1x8x32xbf16> to vector<8x32xbf16>
    %606 = vector.shape_cast %600 : vector<8x32xbf16> to vector<1x8x32xbf16>
    tpu.vector_store %arg18[%603, %c0_285, %c0_286], %606 {strides = array<i32>} : memref<8x8x32xbf16, #tpu.memory_space<vmem>>, vector<1x8x32xbf16>,
    %c7_i32_287 = arith.constant 7 : i32
    %c0_288 = arith.constant 0 : index
    %c0_289 = arith.constant 0 : index
    %607 = vector.load %arg21[%c0_288, %c0_289] : memref<8x32xbf16, #tpu.memory_space<vmem>>, vector<8x32xbf16>
    %c0_290 = arith.constant 0 : index
    %c0_291 = arith.constant 0 : index
    %608 = vector.load %arg10[%c0_290, %c0_291] : memref<32x128xbf16, #tpu.memory_space<vmem>>, vector<32x128xbf16>
    %cst_292 = arith.constant dense<0.000000e+00> : vector<8x128xf32>
    %609 = tpu.matmul %607, %608, %cst_292 {dimension_numbers = #tpu.dot_dimension_numbers<[1], [0], [0], [1], [0, 0, 1, 1], [], []>} : vector<8x32xbf16>, vector<32x128xbf16>, vector<8x128xf32> -> vector<8x128xf32>
    %610 = arith.index_cast %c7_i32_287 : i32 to index
    %c0_293 = arith.constant 0 : index
    %c0_294 = arith.constant 0 : index
    %611 = vector.load %arg19[%610, %c0_293, %c0_294] : memref<8x8x128xbf16, #tpu.memory_space<vmem>>, vector<1x8x128xbf16>
    %612 = vector.shape_cast %611 : vector<1x8x128xbf16> to vector<8x128xbf16>
    %613 = arith.extf %612 : vector<8x128xbf16> to vector<8x128xf32>
    %614 = arith.addf %609, %613 : vector<8x128xf32>
    %615 = vector.extract_strided_slice %614 {offsets = [0, 0], sizes = [8, 32], strides = [1, 1]} : vector<8x128xf32> to vector<8x32xf32>
    %616 = arith.negf %615 : vector<8x32xf32>
    %617 = math.exp %616 : vector<8x32xf32>
    %cst_295 = arith.constant 1.000000e+00 : f32
    %618 = vector.broadcast %cst_295 : f32 to vector<8x32xf32>
    %619 = arith.addf %618, %617 : vector<8x32xf32>
    %620 = arith.divf %618, %619 : vector<8x32xf32>
    %621 = vector.extract_strided_slice %614 {offsets = [0, 32], sizes = [8, 32], strides = [1, 1]} : vector<8x128xf32> to vector<8x32xf32>
    %622 = arith.negf %621 : vector<8x32xf32>
    %623 = math.exp %622 : vector<8x32xf32>
    %cst_296 = arith.constant 1.000000e+00 : f32
    %624 = vector.broadcast %cst_296 : f32 to vector<8x32xf32>
    %625 = arith.addf %624, %623 : vector<8x32xf32>
    %626 = arith.divf %624, %625 : vector<8x32xf32>
    %627 = vector.extract_strided_slice %614 {offsets = [0, 64], sizes = [8, 32], strides = [1, 1]} : vector<8x128xf32> to vector<8x32xf32>
    %628 = math.tanh %627 : vector<8x32xf32>
    %629 = vector.extract_strided_slice %614 {offsets = [0, 96], sizes = [8, 32], strides = [1, 1]} : vector<8x128xf32> to vector<8x32xf32>
    %630 = arith.negf %629 : vector<8x32xf32>
    %631 = math.exp %630 : vector<8x32xf32>
    %cst_297 = arith.constant 1.000000e+00 : f32
    %632 = vector.broadcast %cst_297 : f32 to vector<8x32xf32>
    %633 = arith.addf %632, %631 : vector<8x32xf32>
    %634 = arith.divf %632, %633 : vector<8x32xf32>
    %c0_298 = arith.constant 0 : index
    %c0_299 = arith.constant 0 : index
    %635 = vector.load %arg23[%c0_298, %c0_299] : memref<8x32xf32, #tpu.memory_space<vmem>>, vector<8x32xf32>
    %636 = arith.mulf %626, %635 : vector<8x32xf32>
    %637 = arith.mulf %620, %628 : vector<8x32xf32>
    %638 = arith.addf %636, %637 : vector<8x32xf32>
    %639 = math.tanh %638 : vector<8x32xf32>
    %640 = arith.mulf %634, %639 : vector<8x32xf32>
    %641 = arith.truncf %640 : vector<8x32xf32> to vector<8x32xbf16>
    %c0_300 = arith.constant 0 : index
    %c0_301 = arith.constant 0 : index
    %642 = vector.load %arg21[%c0_300, %c0_301] : memref<8x32xbf16, #tpu.memory_space<vmem>>, vector<8x32xbf16>
    tpu.vector_store %arg21[%c0_300, %c0_301], %641 {strides = array<i32>} : memref<8x32xbf16, #tpu.memory_space<vmem>>, vector<8x32xbf16>,
    %c0_302 = arith.constant 0 : index
    %c0_303 = arith.constant 0 : index
    %643 = vector.load %arg23[%c0_302, %c0_303] : memref<8x32xf32, #tpu.memory_space<vmem>>, vector<8x32xf32>
    tpu.vector_store %arg23[%c0_302, %c0_303], %638 {strides = array<i32>} : memref<8x32xf32, #tpu.memory_space<vmem>>, vector<8x32xf32>,
    %644 = arith.index_cast %c7_i32_287 : i32 to index
    %c0_304 = arith.constant 0 : index
    %c0_305 = arith.constant 0 : index
    %645 = vector.load %arg17[%644, %c0_304, %c0_305] : memref<8x8x32xbf16, #tpu.memory_space<vmem>>, vector<1x8x32xbf16>
    %646 = vector.shape_cast %645 : vector<1x8x32xbf16> to vector<8x32xbf16>
    %647 = vector.shape_cast %641 : vector<8x32xbf16> to vector<1x8x32xbf16>
    tpu.vector_store %arg17[%644, %c0_304, %c0_305], %647 {strides = array<i32>} : memref<8x8x32xbf16, #tpu.memory_space<vmem>>, vector<1x8x32xbf16>,
    %c7_i32_306 = arith.constant 7 : i32
    %648 = arith.subi %c7_i32_306, %c7_i32_287 : i32
    %c0_307 = arith.constant 0 : index
    %c0_308 = arith.constant 0 : index
    %649 = vector.load %arg22[%c0_307, %c0_308] : memref<8x32xbf16, #tpu.memory_space<vmem>>, vector<8x32xbf16>
    %c0_309 = arith.constant 0 : index
    %c0_310 = arith.constant 0 : index
    %650 = vector.load %arg11[%c0_309, %c0_310] : memref<32x128xbf16, #tpu.memory_space<vmem>>, vector<32x128xbf16>
    %cst_311 = arith.constant dense<0.000000e+00> : vector<8x128xf32>
    %651 = tpu.matmul %649, %650, %cst_311 {dimension_numbers = #tpu.dot_dimension_numbers<[1], [0], [0], [1], [0, 0, 1, 1], [], []>} : vector<8x32xbf16>, vector<32x128xbf16>, vector<8x128xf32> -> vector<8x128xf32>
    %652 = arith.index_cast %648 : i32 to index
    %c0_312 = arith.constant 0 : index
    %c0_313 = arith.constant 0 : index
    %653 = vector.load %arg20[%652, %c0_312, %c0_313] : memref<8x8x128xbf16, #tpu.memory_space<vmem>>, vector<1x8x128xbf16>
    %654 = vector.shape_cast %653 : vector<1x8x128xbf16> to vector<8x128xbf16>
    %655 = arith.extf %654 : vector<8x128xbf16> to vector<8x128xf32>
    %656 = arith.addf %651, %655 : vector<8x128xf32>
    %657 = vector.extract_strided_slice %656 {offsets = [0, 0], sizes = [8, 32], strides = [1, 1]} : vector<8x128xf32> to vector<8x32xf32>
    %658 = arith.negf %657 : vector<8x32xf32>
    %659 = math.exp %658 : vector<8x32xf32>
    %cst_314 = arith.constant 1.000000e+00 : f32
    %660 = vector.broadcast %cst_314 : f32 to vector<8x32xf32>
    %661 = arith.addf %660, %659 : vector<8x32xf32>
    %662 = arith.divf %660, %661 : vector<8x32xf32>
    %663 = vector.extract_strided_slice %656 {offsets = [0, 32], sizes = [8, 32], strides = [1, 1]} : vector<8x128xf32> to vector<8x32xf32>
    %664 = arith.negf %663 : vector<8x32xf32>
    %665 = math.exp %664 : vector<8x32xf32>
    %cst_315 = arith.constant 1.000000e+00 : f32
    %666 = vector.broadcast %cst_315 : f32 to vector<8x32xf32>
    %667 = arith.addf %666, %665 : vector<8x32xf32>
    %668 = arith.divf %666, %667 : vector<8x32xf32>
    %669 = vector.extract_strided_slice %656 {offsets = [0, 64], sizes = [8, 32], strides = [1, 1]} : vector<8x128xf32> to vector<8x32xf32>
    %670 = math.tanh %669 : vector<8x32xf32>
    %671 = vector.extract_strided_slice %656 {offsets = [0, 96], sizes = [8, 32], strides = [1, 1]} : vector<8x128xf32> to vector<8x32xf32>
    %672 = arith.negf %671 : vector<8x32xf32>
    %673 = math.exp %672 : vector<8x32xf32>
    %cst_316 = arith.constant 1.000000e+00 : f32
    %674 = vector.broadcast %cst_316 : f32 to vector<8x32xf32>
    %675 = arith.addf %674, %673 : vector<8x32xf32>
    %676 = arith.divf %674, %675 : vector<8x32xf32>
    %c0_317 = arith.constant 0 : index
    %c0_318 = arith.constant 0 : index
    %677 = vector.load %arg24[%c0_317, %c0_318] : memref<8x32xf32, #tpu.memory_space<vmem>>, vector<8x32xf32>
    %678 = arith.mulf %668, %677 : vector<8x32xf32>
    %679 = arith.mulf %662, %670 : vector<8x32xf32>
    %680 = arith.addf %678, %679 : vector<8x32xf32>
    %681 = math.tanh %680 : vector<8x32xf32>
    %682 = arith.mulf %676, %681 : vector<8x32xf32>
    %683 = arith.truncf %682 : vector<8x32xf32> to vector<8x32xbf16>
    %c0_319 = arith.constant 0 : index
    %c0_320 = arith.constant 0 : index
    %684 = vector.load %arg22[%c0_319, %c0_320] : memref<8x32xbf16, #tpu.memory_space<vmem>>, vector<8x32xbf16>
    tpu.vector_store %arg22[%c0_319, %c0_320], %683 {strides = array<i32>} : memref<8x32xbf16, #tpu.memory_space<vmem>>, vector<8x32xbf16>,
    %c0_321 = arith.constant 0 : index
    %c0_322 = arith.constant 0 : index
    %685 = vector.load %arg24[%c0_321, %c0_322] : memref<8x32xf32, #tpu.memory_space<vmem>>, vector<8x32xf32>
    tpu.vector_store %arg24[%c0_321, %c0_322], %680 {strides = array<i32>} : memref<8x32xf32, #tpu.memory_space<vmem>>, vector<8x32xf32>,
    %686 = arith.index_cast %648 : i32 to index
    %c0_323 = arith.constant 0 : index
    %c0_324 = arith.constant 0 : index
    %687 = vector.load %arg18[%686, %c0_323, %c0_324] : memref<8x8x32xbf16, #tpu.memory_space<vmem>>, vector<1x8x32xbf16>
    %688 = vector.shape_cast %687 : vector<1x8x32xbf16> to vector<8x32xbf16>
    %689 = vector.shape_cast %683 : vector<8x32xbf16> to vector<1x8x32xbf16>
    tpu.vector_store %arg18[%686, %c0_323, %c0_324], %689 {strides = array<i32>} : memref<8x8x32xbf16, #tpu.memory_space<vmem>>, vector<1x8x32xbf16>,
    %c8_i32 = arith.constant 8 : i32
    %c0_325 = arith.constant 0 : index
    %c0_326 = arith.constant 0 : index
    %c0_327 = arith.constant 0 : index
    %690 = vector.load %arg17[%c0_325, %c0_326, %c0_327] : memref<8x8x32xbf16, #tpu.memory_space<vmem>>, vector<8x8x32xbf16>
    %691 = vector.shape_cast %690 : vector<8x8x32xbf16> to vector<64x32xbf16>
    %c0_328 = arith.constant 0 : index
    %c0_329 = arith.constant 0 : index
    %c0_330 = arith.constant 0 : index
    %692 = vector.load %arg18[%c0_328, %c0_329, %c0_330] : memref<8x8x32xbf16, #tpu.memory_space<vmem>>, vector<8x8x32xbf16>
    %693 = vector.shape_cast %692 : vector<8x8x32xbf16> to vector<64x32xbf16>
    %c0_331 = arith.constant 0 : index
    %c0_332 = arith.constant 0 : index
    %694 = vector.load %arg4[%c0_331, %c0_332] : memref<64x128xbf16, #tpu.memory_space<vmem>>, vector<64x128xbf16>
    %695 = vector.extract_strided_slice %694 {offsets = [0, 0], sizes = [32, 128], strides = [1, 1]} : vector<64x128xbf16> to vector<32x128xbf16>
    %cst_333 = arith.constant dense<0.000000e+00> : vector<64x128xf32>
    %696 = tpu.matmul %691, %695, %cst_333 {dimension_numbers = #tpu.dot_dimension_numbers<[1], [0], [0], [1], [0, 0, 1, 1], [], []>} : vector<64x32xbf16>, vector<32x128xbf16>, vector<64x128xf32> -> vector<64x128xf32>
    %697 = vector.extract_strided_slice %694 {offsets = [32, 0], sizes = [32, 128], strides = [1, 1]} : vector<64x128xbf16> to vector<32x128xbf16>
    %cst_334 = arith.constant dense<0.000000e+00> : vector<64x128xf32>
    %698 = tpu.matmul %693, %697, %cst_334 {dimension_numbers = #tpu.dot_dimension_numbers<[1], [0], [0], [1], [0, 0, 1, 1], [], []>} : vector<64x32xbf16>, vector<32x128xbf16>, vector<64x128xf32> -> vector<64x128xf32>
    %699 = arith.addf %696, %698 : vector<64x128xf32>
    %c0_335 = arith.constant 0 : index
    %c0_336 = arith.constant 0 : index
    %700 = vector.load %arg8[%c0_335, %c0_336] : memref<1x128xf32, #tpu.memory_space<vmem>>, vector<1x128xf32>
    %701 = vector.broadcast %700 : vector<1x128xf32> to vector<64x128xf32>
    %702 = arith.addf %699, %701 : vector<64x128xf32>
    %703 = arith.truncf %702 : vector<64x128xf32> to vector<64x128xbf16>
    %704 = vector.shape_cast %703 : vector<64x128xbf16> to vector<8x8x128xbf16>
    %c0_337 = arith.constant 0 : index
    %c0_338 = arith.constant 0 : index
    %c0_339 = arith.constant 0 : index
    %705 = vector.load %arg19[%c0_337, %c0_338, %c0_339] : memref<8x8x128xbf16, #tpu.memory_space<vmem>>, vector<8x8x128xbf16>
    tpu.vector_store %arg19[%c0_337, %c0_338, %c0_339], %704 {strides = array<i32>} : memref<8x8x128xbf16, #tpu.memory_space<vmem>>, vector<8x8x128xbf16>,
    %c0_340 = arith.constant 0 : index
    %c0_341 = arith.constant 0 : index
    %706 = vector.load %arg5[%c0_340, %c0_341] : memref<64x128xbf16, #tpu.memory_space<vmem>>, vector<64x128xbf16>
    %707 = vector.extract_strided_slice %706 {offsets = [0, 0], sizes = [32, 128], strides = [1, 1]} : vector<64x128xbf16> to vector<32x128xbf16>
    %cst_342 = arith.constant dense<0.000000e+00> : vector<64x128xf32>
    %708 = tpu.matmul %691, %707, %cst_342 {dimension_numbers = #tpu.dot_dimension_numbers<[1], [0], [0], [1], [0, 0, 1, 1], [], []>} : vector<64x32xbf16>, vector<32x128xbf16>, vector<64x128xf32> -> vector<64x128xf32>
    %709 = vector.extract_strided_slice %706 {offsets = [32, 0], sizes = [32, 128], strides = [1, 1]} : vector<64x128xbf16> to vector<32x128xbf16>
    %cst_343 = arith.constant dense<0.000000e+00> : vector<64x128xf32>
    %710 = tpu.matmul %693, %709, %cst_343 {dimension_numbers = #tpu.dot_dimension_numbers<[1], [0], [0], [1], [0, 0, 1, 1], [], []>} : vector<64x32xbf16>, vector<32x128xbf16>, vector<64x128xf32> -> vector<64x128xf32>
    %711 = arith.addf %708, %710 : vector<64x128xf32>
    %c0_344 = arith.constant 0 : index
    %c0_345 = arith.constant 0 : index
    %712 = vector.load %arg9[%c0_344, %c0_345] : memref<1x128xf32, #tpu.memory_space<vmem>>, vector<1x128xf32>
    %713 = vector.broadcast %712 : vector<1x128xf32> to vector<64x128xf32>
    %714 = arith.addf %711, %713 : vector<64x128xf32>
    %715 = arith.truncf %714 : vector<64x128xf32> to vector<64x128xbf16>
    %716 = vector.shape_cast %715 : vector<64x128xbf16> to vector<8x8x128xbf16>
    %c0_346 = arith.constant 0 : index
    %c0_347 = arith.constant 0 : index
    %c0_348 = arith.constant 0 : index
    %717 = vector.load %arg20[%c0_346, %c0_347, %c0_348] : memref<8x8x128xbf16, #tpu.memory_space<vmem>>, vector<8x8x128xbf16>
    tpu.vector_store %arg20[%c0_346, %c0_347, %c0_348], %716 {strides = array<i32>} : memref<8x8x128xbf16, #tpu.memory_space<vmem>>, vector<8x8x128xbf16>,
    %cst_349 = arith.constant 0.000000e+00 : bf16
    %718 = vector.broadcast %cst_349 : bf16 to vector<8x32xbf16>
    %c0_350 = arith.constant 0 : index
    %c0_351 = arith.constant 0 : index
    %719 = vector.load %arg21[%c0_350, %c0_351] : memref<8x32xbf16, #tpu.memory_space<vmem>>, vector<8x32xbf16>
    tpu.vector_store %arg21[%c0_350, %c0_351], %718 {strides = array<i32>} : memref<8x32xbf16, #tpu.memory_space<vmem>>, vector<8x32xbf16>,
    %cst_352 = arith.constant 0.000000e+00 : f32
    %720 = vector.broadcast %cst_352 : f32 to vector<8x32xf32>
    %c0_353 = arith.constant 0 : index
    %c0_354 = arith.constant 0 : index
    %721 = vector.load %arg23[%c0_353, %c0_354] : memref<8x32xf32, #tpu.memory_space<vmem>>, vector<8x32xf32>
    tpu.vector_store %arg23[%c0_353, %c0_354], %720 {strides = array<i32>} : memref<8x32xf32, #tpu.memory_space<vmem>>, vector<8x32xf32>,
    %cst_355 = arith.constant 0.000000e+00 : bf16
    %722 = vector.broadcast %cst_355 : bf16 to vector<8x32xbf16>
    %c0_356 = arith.constant 0 : index
    %c0_357 = arith.constant 0 : index
    %723 = vector.load %arg22[%c0_356, %c0_357] : memref<8x32xbf16, #tpu.memory_space<vmem>>, vector<8x32xbf16>
    tpu.vector_store %arg22[%c0_356, %c0_357], %722 {strides = array<i32>} : memref<8x32xbf16, #tpu.memory_space<vmem>>, vector<8x32xbf16>,
    %cst_358 = arith.constant 0.000000e+00 : f32
    %724 = vector.broadcast %cst_358 : f32 to vector<8x32xf32>
    %c0_359 = arith.constant 0 : index
    %c0_360 = arith.constant 0 : index
    %725 = vector.load %arg24[%c0_359, %c0_360] : memref<8x32xf32, #tpu.memory_space<vmem>>, vector<8x32xf32>
    tpu.vector_store %arg24[%c0_359, %c0_360], %724 {strides = array<i32>} : memref<8x32xf32, #tpu.memory_space<vmem>>, vector<8x32xf32>,
    %c0_i32_361 = arith.constant 0 : i32
    %c0_362 = arith.constant 0 : index
    %c0_363 = arith.constant 0 : index
    %726 = vector.load %arg21[%c0_362, %c0_363] : memref<8x32xbf16, #tpu.memory_space<vmem>>, vector<8x32xbf16>
    %c0_364 = arith.constant 0 : index
    %c0_365 = arith.constant 0 : index
    %727 = vector.load %arg12[%c0_364, %c0_365] : memref<32x128xbf16, #tpu.memory_space<vmem>>, vector<32x128xbf16>
    %cst_366 = arith.constant dense<0.000000e+00> : vector<8x128xf32>
    %728 = tpu.matmul %726, %727, %cst_366 {dimension_numbers = #tpu.dot_dimension_numbers<[1], [0], [0], [1], [0, 0, 1, 1], [], []>} : vector<8x32xbf16>, vector<32x128xbf16>, vector<8x128xf32> -> vector<8x128xf32>
    %729 = arith.index_cast %c0_i32_361 : i32 to index
    %c0_367 = arith.constant 0 : index
    %c0_368 = arith.constant 0 : index
    %730 = vector.load %arg19[%729, %c0_367, %c0_368] : memref<8x8x128xbf16, #tpu.memory_space<vmem>>, vector<1x8x128xbf16>
    %731 = vector.shape_cast %730 : vector<1x8x128xbf16> to vector<8x128xbf16>
    %732 = arith.extf %731 : vector<8x128xbf16> to vector<8x128xf32>
    %733 = arith.addf %728, %732 : vector<8x128xf32>
    %734 = vector.extract_strided_slice %733 {offsets = [0, 0], sizes = [8, 32], strides = [1, 1]} : vector<8x128xf32> to vector<8x32xf32>
    %735 = arith.negf %734 : vector<8x32xf32>
    %736 = math.exp %735 : vector<8x32xf32>
    %cst_369 = arith.constant 1.000000e+00 : f32
    %737 = vector.broadcast %cst_369 : f32 to vector<8x32xf32>
    %738 = arith.addf %737, %736 : vector<8x32xf32>
    %739 = arith.divf %737, %738 : vector<8x32xf32>
    %740 = vector.extract_strided_slice %733 {offsets = [0, 32], sizes = [8, 32], strides = [1, 1]} : vector<8x128xf32> to vector<8x32xf32>
    %741 = arith.negf %740 : vector<8x32xf32>
    %742 = math.exp %741 : vector<8x32xf32>
    %cst_370 = arith.constant 1.000000e+00 : f32
    %743 = vector.broadcast %cst_370 : f32 to vector<8x32xf32>
    %744 = arith.addf %743, %742 : vector<8x32xf32>
    %745 = arith.divf %743, %744 : vector<8x32xf32>
    %746 = vector.extract_strided_slice %733 {offsets = [0, 64], sizes = [8, 32], strides = [1, 1]} : vector<8x128xf32> to vector<8x32xf32>
    %747 = math.tanh %746 : vector<8x32xf32>
    %748 = vector.extract_strided_slice %733 {offsets = [0, 96], sizes = [8, 32], strides = [1, 1]} : vector<8x128xf32> to vector<8x32xf32>
    %749 = arith.negf %748 : vector<8x32xf32>
    %750 = math.exp %749 : vector<8x32xf32>
    %cst_371 = arith.constant 1.000000e+00 : f32
    %751 = vector.broadcast %cst_371 : f32 to vector<8x32xf32>
    %752 = arith.addf %751, %750 : vector<8x32xf32>
    %753 = arith.divf %751, %752 : vector<8x32xf32>
    %c0_372 = arith.constant 0 : index
    %c0_373 = arith.constant 0 : index
    %754 = vector.load %arg23[%c0_372, %c0_373] : memref<8x32xf32, #tpu.memory_space<vmem>>, vector<8x32xf32>
    %755 = arith.mulf %745, %754 : vector<8x32xf32>
    %756 = arith.mulf %739, %747 : vector<8x32xf32>
    %757 = arith.addf %755, %756 : vector<8x32xf32>
    %758 = math.tanh %757 : vector<8x32xf32>
    %759 = arith.mulf %753, %758 : vector<8x32xf32>
    %760 = arith.truncf %759 : vector<8x32xf32> to vector<8x32xbf16>
    %c0_374 = arith.constant 0 : index
    %c0_375 = arith.constant 0 : index
    %761 = vector.load %arg21[%c0_374, %c0_375] : memref<8x32xbf16, #tpu.memory_space<vmem>>, vector<8x32xbf16>
    tpu.vector_store %arg21[%c0_374, %c0_375], %760 {strides = array<i32>} : memref<8x32xbf16, #tpu.memory_space<vmem>>, vector<8x32xbf16>,
    %c0_376 = arith.constant 0 : index
    %c0_377 = arith.constant 0 : index
    %762 = vector.load %arg23[%c0_376, %c0_377] : memref<8x32xf32, #tpu.memory_space<vmem>>, vector<8x32xf32>
    tpu.vector_store %arg23[%c0_376, %c0_377], %757 {strides = array<i32>} : memref<8x32xf32, #tpu.memory_space<vmem>>, vector<8x32xf32>,
    %763 = arith.index_cast %c0_i32_361 : i32 to index
    %c0_378 = arith.constant 0 : index
    %c0_379 = arith.constant 0 : index
    %764 = vector.load %arg17[%763, %c0_378, %c0_379] : memref<8x8x32xbf16, #tpu.memory_space<vmem>>, vector<1x8x32xbf16>
    %765 = vector.shape_cast %764 : vector<1x8x32xbf16> to vector<8x32xbf16>
    %766 = vector.shape_cast %760 : vector<8x32xbf16> to vector<1x8x32xbf16>
    tpu.vector_store %arg17[%763, %c0_378, %c0_379], %766 {strides = array<i32>} : memref<8x8x32xbf16, #tpu.memory_space<vmem>>, vector<1x8x32xbf16>,
    %c7_i32_380 = arith.constant 7 : i32
    %767 = arith.subi %c7_i32_380, %c0_i32_361 : i32
    %c0_381 = arith.constant 0 : index
    %c0_382 = arith.constant 0 : index
    %768 = vector.load %arg22[%c0_381, %c0_382] : memref<8x32xbf16, #tpu.memory_space<vmem>>, vector<8x32xbf16>
    %c0_383 = arith.constant 0 : index
    %c0_384 = arith.constant 0 : index
    %769 = vector.load %arg13[%c0_383, %c0_384] : memref<32x128xbf16, #tpu.memory_space<vmem>>, vector<32x128xbf16>
    %cst_385 = arith.constant dense<0.000000e+00> : vector<8x128xf32>
    %770 = tpu.matmul %768, %769, %cst_385 {dimension_numbers = #tpu.dot_dimension_numbers<[1], [0], [0], [1], [0, 0, 1, 1], [], []>} : vector<8x32xbf16>, vector<32x128xbf16>, vector<8x128xf32> -> vector<8x128xf32>
    %771 = arith.index_cast %767 : i32 to index
    %c0_386 = arith.constant 0 : index
    %c0_387 = arith.constant 0 : index
    %772 = vector.load %arg20[%771, %c0_386, %c0_387] : memref<8x8x128xbf16, #tpu.memory_space<vmem>>, vector<1x8x128xbf16>
    %773 = vector.shape_cast %772 : vector<1x8x128xbf16> to vector<8x128xbf16>
    %774 = arith.extf %773 : vector<8x128xbf16> to vector<8x128xf32>
    %775 = arith.addf %770, %774 : vector<8x128xf32>
    %776 = vector.extract_strided_slice %775 {offsets = [0, 0], sizes = [8, 32], strides = [1, 1]} : vector<8x128xf32> to vector<8x32xf32>
    %777 = arith.negf %776 : vector<8x32xf32>
    %778 = math.exp %777 : vector<8x32xf32>
    %cst_388 = arith.constant 1.000000e+00 : f32
    %779 = vector.broadcast %cst_388 : f32 to vector<8x32xf32>
    %780 = arith.addf %779, %778 : vector<8x32xf32>
    %781 = arith.divf %779, %780 : vector<8x32xf32>
    %782 = vector.extract_strided_slice %775 {offsets = [0, 32], sizes = [8, 32], strides = [1, 1]} : vector<8x128xf32> to vector<8x32xf32>
    %783 = arith.negf %782 : vector<8x32xf32>
    %784 = math.exp %783 : vector<8x32xf32>
    %cst_389 = arith.constant 1.000000e+00 : f32
    %785 = vector.broadcast %cst_389 : f32 to vector<8x32xf32>
    %786 = arith.addf %785, %784 : vector<8x32xf32>
    %787 = arith.divf %785, %786 : vector<8x32xf32>
    %788 = vector.extract_strided_slice %775 {offsets = [0, 64], sizes = [8, 32], strides = [1, 1]} : vector<8x128xf32> to vector<8x32xf32>
    %789 = math.tanh %788 : vector<8x32xf32>
    %790 = vector.extract_strided_slice %775 {offsets = [0, 96], sizes = [8, 32], strides = [1, 1]} : vector<8x128xf32> to vector<8x32xf32>
    %791 = arith.negf %790 : vector<8x32xf32>
    %792 = math.exp %791 : vector<8x32xf32>
    %cst_390 = arith.constant 1.000000e+00 : f32
    %793 = vector.broadcast %cst_390 : f32 to vector<8x32xf32>
    %794 = arith.addf %793, %792 : vector<8x32xf32>
    %795 = arith.divf %793, %794 : vector<8x32xf32>
    %c0_391 = arith.constant 0 : index
    %c0_392 = arith.constant 0 : index
    %796 = vector.load %arg24[%c0_391, %c0_392] : memref<8x32xf32, #tpu.memory_space<vmem>>, vector<8x32xf32>
    %797 = arith.mulf %787, %796 : vector<8x32xf32>
    %798 = arith.mulf %781, %789 : vector<8x32xf32>
    %799 = arith.addf %797, %798 : vector<8x32xf32>
    %800 = math.tanh %799 : vector<8x32xf32>
    %801 = arith.mulf %795, %800 : vector<8x32xf32>
    %802 = arith.truncf %801 : vector<8x32xf32> to vector<8x32xbf16>
    %c0_393 = arith.constant 0 : index
    %c0_394 = arith.constant 0 : index
    %803 = vector.load %arg22[%c0_393, %c0_394] : memref<8x32xbf16, #tpu.memory_space<vmem>>, vector<8x32xbf16>
    tpu.vector_store %arg22[%c0_393, %c0_394], %802 {strides = array<i32>} : memref<8x32xbf16, #tpu.memory_space<vmem>>, vector<8x32xbf16>,
    %c0_395 = arith.constant 0 : index
    %c0_396 = arith.constant 0 : index
    %804 = vector.load %arg24[%c0_395, %c0_396] : memref<8x32xf32, #tpu.memory_space<vmem>>, vector<8x32xf32>
    tpu.vector_store %arg24[%c0_395, %c0_396], %799 {strides = array<i32>} : memref<8x32xf32, #tpu.memory_space<vmem>>, vector<8x32xf32>,
    %805 = arith.index_cast %767 : i32 to index
    %c0_397 = arith.constant 0 : index
    %c0_398 = arith.constant 0 : index
    %806 = vector.load %arg18[%805, %c0_397, %c0_398] : memref<8x8x32xbf16, #tpu.memory_space<vmem>>, vector<1x8x32xbf16>
    %807 = vector.shape_cast %806 : vector<1x8x32xbf16> to vector<8x32xbf16>
    %808 = vector.shape_cast %802 : vector<8x32xbf16> to vector<1x8x32xbf16>
    tpu.vector_store %arg18[%805, %c0_397, %c0_398], %808 {strides = array<i32>} : memref<8x8x32xbf16, #tpu.memory_space<vmem>>, vector<1x8x32xbf16>,
    %c1_i32_399 = arith.constant 1 : i32
    %c0_400 = arith.constant 0 : index
    %c0_401 = arith.constant 0 : index
    %809 = vector.load %arg21[%c0_400, %c0_401] : memref<8x32xbf16, #tpu.memory_space<vmem>>, vector<8x32xbf16>
    %c0_402 = arith.constant 0 : index
    %c0_403 = arith.constant 0 : index
    %810 = vector.load %arg12[%c0_402, %c0_403] : memref<32x128xbf16, #tpu.memory_space<vmem>>, vector<32x128xbf16>
    %cst_404 = arith.constant dense<0.000000e+00> : vector<8x128xf32>
    %811 = tpu.matmul %809, %810, %cst_404 {dimension_numbers = #tpu.dot_dimension_numbers<[1], [0], [0], [1], [0, 0, 1, 1], [], []>} : vector<8x32xbf16>, vector<32x128xbf16>, vector<8x128xf32> -> vector<8x128xf32>
    %812 = arith.index_cast %c1_i32_399 : i32 to index
    %c0_405 = arith.constant 0 : index
    %c0_406 = arith.constant 0 : index
    %813 = vector.load %arg19[%812, %c0_405, %c0_406] : memref<8x8x128xbf16, #tpu.memory_space<vmem>>, vector<1x8x128xbf16>
    %814 = vector.shape_cast %813 : vector<1x8x128xbf16> to vector<8x128xbf16>
    %815 = arith.extf %814 : vector<8x128xbf16> to vector<8x128xf32>
    %816 = arith.addf %811, %815 : vector<8x128xf32>
    %817 = vector.extract_strided_slice %816 {offsets = [0, 0], sizes = [8, 32], strides = [1, 1]} : vector<8x128xf32> to vector<8x32xf32>
    %818 = arith.negf %817 : vector<8x32xf32>
    %819 = math.exp %818 : vector<8x32xf32>
    %cst_407 = arith.constant 1.000000e+00 : f32
    %820 = vector.broadcast %cst_407 : f32 to vector<8x32xf32>
    %821 = arith.addf %820, %819 : vector<8x32xf32>
    %822 = arith.divf %820, %821 : vector<8x32xf32>
    %823 = vector.extract_strided_slice %816 {offsets = [0, 32], sizes = [8, 32], strides = [1, 1]} : vector<8x128xf32> to vector<8x32xf32>
    %824 = arith.negf %823 : vector<8x32xf32>
    %825 = math.exp %824 : vector<8x32xf32>
    %cst_408 = arith.constant 1.000000e+00 : f32
    %826 = vector.broadcast %cst_408 : f32 to vector<8x32xf32>
    %827 = arith.addf %826, %825 : vector<8x32xf32>
    %828 = arith.divf %826, %827 : vector<8x32xf32>
    %829 = vector.extract_strided_slice %816 {offsets = [0, 64], sizes = [8, 32], strides = [1, 1]} : vector<8x128xf32> to vector<8x32xf32>
    %830 = math.tanh %829 : vector<8x32xf32>
    %831 = vector.extract_strided_slice %816 {offsets = [0, 96], sizes = [8, 32], strides = [1, 1]} : vector<8x128xf32> to vector<8x32xf32>
    %832 = arith.negf %831 : vector<8x32xf32>
    %833 = math.exp %832 : vector<8x32xf32>
    %cst_409 = arith.constant 1.000000e+00 : f32
    %834 = vector.broadcast %cst_409 : f32 to vector<8x32xf32>
    %835 = arith.addf %834, %833 : vector<8x32xf32>
    %836 = arith.divf %834, %835 : vector<8x32xf32>
    %c0_410 = arith.constant 0 : index
    %c0_411 = arith.constant 0 : index
    %837 = vector.load %arg23[%c0_410, %c0_411] : memref<8x32xf32, #tpu.memory_space<vmem>>, vector<8x32xf32>
    %838 = arith.mulf %828, %837 : vector<8x32xf32>
    %839 = arith.mulf %822, %830 : vector<8x32xf32>
    %840 = arith.addf %838, %839 : vector<8x32xf32>
    %841 = math.tanh %840 : vector<8x32xf32>
    %842 = arith.mulf %836, %841 : vector<8x32xf32>
    %843 = arith.truncf %842 : vector<8x32xf32> to vector<8x32xbf16>
    %c0_412 = arith.constant 0 : index
    %c0_413 = arith.constant 0 : index
    %844 = vector.load %arg21[%c0_412, %c0_413] : memref<8x32xbf16, #tpu.memory_space<vmem>>, vector<8x32xbf16>
    tpu.vector_store %arg21[%c0_412, %c0_413], %843 {strides = array<i32>} : memref<8x32xbf16, #tpu.memory_space<vmem>>, vector<8x32xbf16>,
    %c0_414 = arith.constant 0 : index
    %c0_415 = arith.constant 0 : index
    %845 = vector.load %arg23[%c0_414, %c0_415] : memref<8x32xf32, #tpu.memory_space<vmem>>, vector<8x32xf32>
    tpu.vector_store %arg23[%c0_414, %c0_415], %840 {strides = array<i32>} : memref<8x32xf32, #tpu.memory_space<vmem>>, vector<8x32xf32>,
    %846 = arith.index_cast %c1_i32_399 : i32 to index
    %c0_416 = arith.constant 0 : index
    %c0_417 = arith.constant 0 : index
    %847 = vector.load %arg17[%846, %c0_416, %c0_417] : memref<8x8x32xbf16, #tpu.memory_space<vmem>>, vector<1x8x32xbf16>
    %848 = vector.shape_cast %847 : vector<1x8x32xbf16> to vector<8x32xbf16>
    %849 = vector.shape_cast %843 : vector<8x32xbf16> to vector<1x8x32xbf16>
    tpu.vector_store %arg17[%846, %c0_416, %c0_417], %849 {strides = array<i32>} : memref<8x8x32xbf16, #tpu.memory_space<vmem>>, vector<1x8x32xbf16>,
    %c7_i32_418 = arith.constant 7 : i32
    %850 = arith.subi %c7_i32_418, %c1_i32_399 : i32
    %c0_419 = arith.constant 0 : index
    %c0_420 = arith.constant 0 : index
    %851 = vector.load %arg22[%c0_419, %c0_420] : memref<8x32xbf16, #tpu.memory_space<vmem>>, vector<8x32xbf16>
    %c0_421 = arith.constant 0 : index
    %c0_422 = arith.constant 0 : index
    %852 = vector.load %arg13[%c0_421, %c0_422] : memref<32x128xbf16, #tpu.memory_space<vmem>>, vector<32x128xbf16>
    %cst_423 = arith.constant dense<0.000000e+00> : vector<8x128xf32>
    %853 = tpu.matmul %851, %852, %cst_423 {dimension_numbers = #tpu.dot_dimension_numbers<[1], [0], [0], [1], [0, 0, 1, 1], [], []>} : vector<8x32xbf16>, vector<32x128xbf16>, vector<8x128xf32> -> vector<8x128xf32>
    %854 = arith.index_cast %850 : i32 to index
    %c0_424 = arith.constant 0 : index
    %c0_425 = arith.constant 0 : index
    %855 = vector.load %arg20[%854, %c0_424, %c0_425] : memref<8x8x128xbf16, #tpu.memory_space<vmem>>, vector<1x8x128xbf16>
    %856 = vector.shape_cast %855 : vector<1x8x128xbf16> to vector<8x128xbf16>
    %857 = arith.extf %856 : vector<8x128xbf16> to vector<8x128xf32>
    %858 = arith.addf %853, %857 : vector<8x128xf32>
    %859 = vector.extract_strided_slice %858 {offsets = [0, 0], sizes = [8, 32], strides = [1, 1]} : vector<8x128xf32> to vector<8x32xf32>
    %860 = arith.negf %859 : vector<8x32xf32>
    %861 = math.exp %860 : vector<8x32xf32>
    %cst_426 = arith.constant 1.000000e+00 : f32
    %862 = vector.broadcast %cst_426 : f32 to vector<8x32xf32>
    %863 = arith.addf %862, %861 : vector<8x32xf32>
    %864 = arith.divf %862, %863 : vector<8x32xf32>
    %865 = vector.extract_strided_slice %858 {offsets = [0, 32], sizes = [8, 32], strides = [1, 1]} : vector<8x128xf32> to vector<8x32xf32>
    %866 = arith.negf %865 : vector<8x32xf32>
    %867 = math.exp %866 : vector<8x32xf32>
    %cst_427 = arith.constant 1.000000e+00 : f32
    %868 = vector.broadcast %cst_427 : f32 to vector<8x32xf32>
    %869 = arith.addf %868, %867 : vector<8x32xf32>
    %870 = arith.divf %868, %869 : vector<8x32xf32>
    %871 = vector.extract_strided_slice %858 {offsets = [0, 64], sizes = [8, 32], strides = [1, 1]} : vector<8x128xf32> to vector<8x32xf32>
    %872 = math.tanh %871 : vector<8x32xf32>
    %873 = vector.extract_strided_slice %858 {offsets = [0, 96], sizes = [8, 32], strides = [1, 1]} : vector<8x128xf32> to vector<8x32xf32>
    %874 = arith.negf %873 : vector<8x32xf32>
    %875 = math.exp %874 : vector<8x32xf32>
    %cst_428 = arith.constant 1.000000e+00 : f32
    %876 = vector.broadcast %cst_428 : f32 to vector<8x32xf32>
    %877 = arith.addf %876, %875 : vector<8x32xf32>
    %878 = arith.divf %876, %877 : vector<8x32xf32>
    %c0_429 = arith.constant 0 : index
    %c0_430 = arith.constant 0 : index
    %879 = vector.load %arg24[%c0_429, %c0_430] : memref<8x32xf32, #tpu.memory_space<vmem>>, vector<8x32xf32>
    %880 = arith.mulf %870, %879 : vector<8x32xf32>
    %881 = arith.mulf %864, %872 : vector<8x32xf32>
    %882 = arith.addf %880, %881 : vector<8x32xf32>
    %883 = math.tanh %882 : vector<8x32xf32>
    %884 = arith.mulf %878, %883 : vector<8x32xf32>
    %885 = arith.truncf %884 : vector<8x32xf32> to vector<8x32xbf16>
    %c0_431 = arith.constant 0 : index
    %c0_432 = arith.constant 0 : index
    %886 = vector.load %arg22[%c0_431, %c0_432] : memref<8x32xbf16, #tpu.memory_space<vmem>>, vector<8x32xbf16>
    tpu.vector_store %arg22[%c0_431, %c0_432], %885 {strides = array<i32>} : memref<8x32xbf16, #tpu.memory_space<vmem>>, vector<8x32xbf16>,
    %c0_433 = arith.constant 0 : index
    %c0_434 = arith.constant 0 : index
    %887 = vector.load %arg24[%c0_433, %c0_434] : memref<8x32xf32, #tpu.memory_space<vmem>>, vector<8x32xf32>
    tpu.vector_store %arg24[%c0_433, %c0_434], %882 {strides = array<i32>} : memref<8x32xf32, #tpu.memory_space<vmem>>, vector<8x32xf32>,
    %888 = arith.index_cast %850 : i32 to index
    %c0_435 = arith.constant 0 : index
    %c0_436 = arith.constant 0 : index
    %889 = vector.load %arg18[%888, %c0_435, %c0_436] : memref<8x8x32xbf16, #tpu.memory_space<vmem>>, vector<1x8x32xbf16>
    %890 = vector.shape_cast %889 : vector<1x8x32xbf16> to vector<8x32xbf16>
    %891 = vector.shape_cast %885 : vector<8x32xbf16> to vector<1x8x32xbf16>
    tpu.vector_store %arg18[%888, %c0_435, %c0_436], %891 {strides = array<i32>} : memref<8x8x32xbf16, #tpu.memory_space<vmem>>, vector<1x8x32xbf16>,
    %c2_i32_437 = arith.constant 2 : i32
    %c0_438 = arith.constant 0 : index
    %c0_439 = arith.constant 0 : index
    %892 = vector.load %arg21[%c0_438, %c0_439] : memref<8x32xbf16, #tpu.memory_space<vmem>>, vector<8x32xbf16>
    %c0_440 = arith.constant 0 : index
    %c0_441 = arith.constant 0 : index
    %893 = vector.load %arg12[%c0_440, %c0_441] : memref<32x128xbf16, #tpu.memory_space<vmem>>, vector<32x128xbf16>
    %cst_442 = arith.constant dense<0.000000e+00> : vector<8x128xf32>
    %894 = tpu.matmul %892, %893, %cst_442 {dimension_numbers = #tpu.dot_dimension_numbers<[1], [0], [0], [1], [0, 0, 1, 1], [], []>} : vector<8x32xbf16>, vector<32x128xbf16>, vector<8x128xf32> -> vector<8x128xf32>
    %895 = arith.index_cast %c2_i32_437 : i32 to index
    %c0_443 = arith.constant 0 : index
    %c0_444 = arith.constant 0 : index
    %896 = vector.load %arg19[%895, %c0_443, %c0_444] : memref<8x8x128xbf16, #tpu.memory_space<vmem>>, vector<1x8x128xbf16>
    %897 = vector.shape_cast %896 : vector<1x8x128xbf16> to vector<8x128xbf16>
    %898 = arith.extf %897 : vector<8x128xbf16> to vector<8x128xf32>
    %899 = arith.addf %894, %898 : vector<8x128xf32>
    %900 = vector.extract_strided_slice %899 {offsets = [0, 0], sizes = [8, 32], strides = [1, 1]} : vector<8x128xf32> to vector<8x32xf32>
    %901 = arith.negf %900 : vector<8x32xf32>
    %902 = math.exp %901 : vector<8x32xf32>
    %cst_445 = arith.constant 1.000000e+00 : f32
    %903 = vector.broadcast %cst_445 : f32 to vector<8x32xf32>
    %904 = arith.addf %903, %902 : vector<8x32xf32>
    %905 = arith.divf %903, %904 : vector<8x32xf32>
    %906 = vector.extract_strided_slice %899 {offsets = [0, 32], sizes = [8, 32], strides = [1, 1]} : vector<8x128xf32> to vector<8x32xf32>
    %907 = arith.negf %906 : vector<8x32xf32>
    %908 = math.exp %907 : vector<8x32xf32>
    %cst_446 = arith.constant 1.000000e+00 : f32
    %909 = vector.broadcast %cst_446 : f32 to vector<8x32xf32>
    %910 = arith.addf %909, %908 : vector<8x32xf32>
    %911 = arith.divf %909, %910 : vector<8x32xf32>
    %912 = vector.extract_strided_slice %899 {offsets = [0, 64], sizes = [8, 32], strides = [1, 1]} : vector<8x128xf32> to vector<8x32xf32>
    %913 = math.tanh %912 : vector<8x32xf32>
    %914 = vector.extract_strided_slice %899 {offsets = [0, 96], sizes = [8, 32], strides = [1, 1]} : vector<8x128xf32> to vector<8x32xf32>
    %915 = arith.negf %914 : vector<8x32xf32>
    %916 = math.exp %915 : vector<8x32xf32>
    %cst_447 = arith.constant 1.000000e+00 : f32
    %917 = vector.broadcast %cst_447 : f32 to vector<8x32xf32>
    %918 = arith.addf %917, %916 : vector<8x32xf32>
    %919 = arith.divf %917, %918 : vector<8x32xf32>
    %c0_448 = arith.constant 0 : index
    %c0_449 = arith.constant 0 : index
    %920 = vector.load %arg23[%c0_448, %c0_449] : memref<8x32xf32, #tpu.memory_space<vmem>>, vector<8x32xf32>
    %921 = arith.mulf %911, %920 : vector<8x32xf32>
    %922 = arith.mulf %905, %913 : vector<8x32xf32>
    %923 = arith.addf %921, %922 : vector<8x32xf32>
    %924 = math.tanh %923 : vector<8x32xf32>
    %925 = arith.mulf %919, %924 : vector<8x32xf32>
    %926 = arith.truncf %925 : vector<8x32xf32> to vector<8x32xbf16>
    %c0_450 = arith.constant 0 : index
    %c0_451 = arith.constant 0 : index
    %927 = vector.load %arg21[%c0_450, %c0_451] : memref<8x32xbf16, #tpu.memory_space<vmem>>, vector<8x32xbf16>
    tpu.vector_store %arg21[%c0_450, %c0_451], %926 {strides = array<i32>} : memref<8x32xbf16, #tpu.memory_space<vmem>>, vector<8x32xbf16>,
    %c0_452 = arith.constant 0 : index
    %c0_453 = arith.constant 0 : index
    %928 = vector.load %arg23[%c0_452, %c0_453] : memref<8x32xf32, #tpu.memory_space<vmem>>, vector<8x32xf32>
    tpu.vector_store %arg23[%c0_452, %c0_453], %923 {strides = array<i32>} : memref<8x32xf32, #tpu.memory_space<vmem>>, vector<8x32xf32>,
    %929 = arith.index_cast %c2_i32_437 : i32 to index
    %c0_454 = arith.constant 0 : index
    %c0_455 = arith.constant 0 : index
    %930 = vector.load %arg17[%929, %c0_454, %c0_455] : memref<8x8x32xbf16, #tpu.memory_space<vmem>>, vector<1x8x32xbf16>
    %931 = vector.shape_cast %930 : vector<1x8x32xbf16> to vector<8x32xbf16>
    %932 = vector.shape_cast %926 : vector<8x32xbf16> to vector<1x8x32xbf16>
    tpu.vector_store %arg17[%929, %c0_454, %c0_455], %932 {strides = array<i32>} : memref<8x8x32xbf16, #tpu.memory_space<vmem>>, vector<1x8x32xbf16>,
    %c7_i32_456 = arith.constant 7 : i32
    %933 = arith.subi %c7_i32_456, %c2_i32_437 : i32
    %c0_457 = arith.constant 0 : index
    %c0_458 = arith.constant 0 : index
    %934 = vector.load %arg22[%c0_457, %c0_458] : memref<8x32xbf16, #tpu.memory_space<vmem>>, vector<8x32xbf16>
    %c0_459 = arith.constant 0 : index
    %c0_460 = arith.constant 0 : index
    %935 = vector.load %arg13[%c0_459, %c0_460] : memref<32x128xbf16, #tpu.memory_space<vmem>>, vector<32x128xbf16>
    %cst_461 = arith.constant dense<0.000000e+00> : vector<8x128xf32>
    %936 = tpu.matmul %934, %935, %cst_461 {dimension_numbers = #tpu.dot_dimension_numbers<[1], [0], [0], [1], [0, 0, 1, 1], [], []>} : vector<8x32xbf16>, vector<32x128xbf16>, vector<8x128xf32> -> vector<8x128xf32>
    %937 = arith.index_cast %933 : i32 to index
    %c0_462 = arith.constant 0 : index
    %c0_463 = arith.constant 0 : index
    %938 = vector.load %arg20[%937, %c0_462, %c0_463] : memref<8x8x128xbf16, #tpu.memory_space<vmem>>, vector<1x8x128xbf16>
    %939 = vector.shape_cast %938 : vector<1x8x128xbf16> to vector<8x128xbf16>
    %940 = arith.extf %939 : vector<8x128xbf16> to vector<8x128xf32>
    %941 = arith.addf %936, %940 : vector<8x128xf32>
    %942 = vector.extract_strided_slice %941 {offsets = [0, 0], sizes = [8, 32], strides = [1, 1]} : vector<8x128xf32> to vector<8x32xf32>
    %943 = arith.negf %942 : vector<8x32xf32>
    %944 = math.exp %943 : vector<8x32xf32>
    %cst_464 = arith.constant 1.000000e+00 : f32
    %945 = vector.broadcast %cst_464 : f32 to vector<8x32xf32>
    %946 = arith.addf %945, %944 : vector<8x32xf32>
    %947 = arith.divf %945, %946 : vector<8x32xf32>
    %948 = vector.extract_strided_slice %941 {offsets = [0, 32], sizes = [8, 32], strides = [1, 1]} : vector<8x128xf32> to vector<8x32xf32>
    %949 = arith.negf %948 : vector<8x32xf32>
    %950 = math.exp %949 : vector<8x32xf32>
    %cst_465 = arith.constant 1.000000e+00 : f32
    %951 = vector.broadcast %cst_465 : f32 to vector<8x32xf32>
    %952 = arith.addf %951, %950 : vector<8x32xf32>
    %953 = arith.divf %951, %952 : vector<8x32xf32>
    %954 = vector.extract_strided_slice %941 {offsets = [0, 64], sizes = [8, 32], strides = [1, 1]} : vector<8x128xf32> to vector<8x32xf32>
    %955 = math.tanh %954 : vector<8x32xf32>
    %956 = vector.extract_strided_slice %941 {offsets = [0, 96], sizes = [8, 32], strides = [1, 1]} : vector<8x128xf32> to vector<8x32xf32>
    %957 = arith.negf %956 : vector<8x32xf32>
    %958 = math.exp %957 : vector<8x32xf32>
    %cst_466 = arith.constant 1.000000e+00 : f32
    %959 = vector.broadcast %cst_466 : f32 to vector<8x32xf32>
    %960 = arith.addf %959, %958 : vector<8x32xf32>
    %961 = arith.divf %959, %960 : vector<8x32xf32>
    %c0_467 = arith.constant 0 : index
    %c0_468 = arith.constant 0 : index
    %962 = vector.load %arg24[%c0_467, %c0_468] : memref<8x32xf32, #tpu.memory_space<vmem>>, vector<8x32xf32>
    %963 = arith.mulf %953, %962 : vector<8x32xf32>
    %964 = arith.mulf %947, %955 : vector<8x32xf32>
    %965 = arith.addf %963, %964 : vector<8x32xf32>
    %966 = math.tanh %965 : vector<8x32xf32>
    %967 = arith.mulf %961, %966 : vector<8x32xf32>
    %968 = arith.truncf %967 : vector<8x32xf32> to vector<8x32xbf16>
    %c0_469 = arith.constant 0 : index
    %c0_470 = arith.constant 0 : index
    %969 = vector.load %arg22[%c0_469, %c0_470] : memref<8x32xbf16, #tpu.memory_space<vmem>>, vector<8x32xbf16>
    tpu.vector_store %arg22[%c0_469, %c0_470], %968 {strides = array<i32>} : memref<8x32xbf16, #tpu.memory_space<vmem>>, vector<8x32xbf16>,
    %c0_471 = arith.constant 0 : index
    %c0_472 = arith.constant 0 : index
    %970 = vector.load %arg24[%c0_471, %c0_472] : memref<8x32xf32, #tpu.memory_space<vmem>>, vector<8x32xf32>
    tpu.vector_store %arg24[%c0_471, %c0_472], %965 {strides = array<i32>} : memref<8x32xf32, #tpu.memory_space<vmem>>, vector<8x32xf32>,
    %971 = arith.index_cast %933 : i32 to index
    %c0_473 = arith.constant 0 : index
    %c0_474 = arith.constant 0 : index
    %972 = vector.load %arg18[%971, %c0_473, %c0_474] : memref<8x8x32xbf16, #tpu.memory_space<vmem>>, vector<1x8x32xbf16>
    %973 = vector.shape_cast %972 : vector<1x8x32xbf16> to vector<8x32xbf16>
    %974 = vector.shape_cast %968 : vector<8x32xbf16> to vector<1x8x32xbf16>
    tpu.vector_store %arg18[%971, %c0_473, %c0_474], %974 {strides = array<i32>} : memref<8x8x32xbf16, #tpu.memory_space<vmem>>, vector<1x8x32xbf16>,
    %c3_i32_475 = arith.constant 3 : i32
    %c0_476 = arith.constant 0 : index
    %c0_477 = arith.constant 0 : index
    %975 = vector.load %arg21[%c0_476, %c0_477] : memref<8x32xbf16, #tpu.memory_space<vmem>>, vector<8x32xbf16>
    %c0_478 = arith.constant 0 : index
    %c0_479 = arith.constant 0 : index
    %976 = vector.load %arg12[%c0_478, %c0_479] : memref<32x128xbf16, #tpu.memory_space<vmem>>, vector<32x128xbf16>
    %cst_480 = arith.constant dense<0.000000e+00> : vector<8x128xf32>
    %977 = tpu.matmul %975, %976, %cst_480 {dimension_numbers = #tpu.dot_dimension_numbers<[1], [0], [0], [1], [0, 0, 1, 1], [], []>} : vector<8x32xbf16>, vector<32x128xbf16>, vector<8x128xf32> -> vector<8x128xf32>
    %978 = arith.index_cast %c3_i32_475 : i32 to index
    %c0_481 = arith.constant 0 : index
    %c0_482 = arith.constant 0 : index
    %979 = vector.load %arg19[%978, %c0_481, %c0_482] : memref<8x8x128xbf16, #tpu.memory_space<vmem>>, vector<1x8x128xbf16>
    %980 = vector.shape_cast %979 : vector<1x8x128xbf16> to vector<8x128xbf16>
    %981 = arith.extf %980 : vector<8x128xbf16> to vector<8x128xf32>
    %982 = arith.addf %977, %981 : vector<8x128xf32>
    %983 = vector.extract_strided_slice %982 {offsets = [0, 0], sizes = [8, 32], strides = [1, 1]} : vector<8x128xf32> to vector<8x32xf32>
    %984 = arith.negf %983 : vector<8x32xf32>
    %985 = math.exp %984 : vector<8x32xf32>
    %cst_483 = arith.constant 1.000000e+00 : f32
    %986 = vector.broadcast %cst_483 : f32 to vector<8x32xf32>
    %987 = arith.addf %986, %985 : vector<8x32xf32>
    %988 = arith.divf %986, %987 : vector<8x32xf32>
    %989 = vector.extract_strided_slice %982 {offsets = [0, 32], sizes = [8, 32], strides = [1, 1]} : vector<8x128xf32> to vector<8x32xf32>
    %990 = arith.negf %989 : vector<8x32xf32>
    %991 = math.exp %990 : vector<8x32xf32>
    %cst_484 = arith.constant 1.000000e+00 : f32
    %992 = vector.broadcast %cst_484 : f32 to vector<8x32xf32>
    %993 = arith.addf %992, %991 : vector<8x32xf32>
    %994 = arith.divf %992, %993 : vector<8x32xf32>
    %995 = vector.extract_strided_slice %982 {offsets = [0, 64], sizes = [8, 32], strides = [1, 1]} : vector<8x128xf32> to vector<8x32xf32>
    %996 = math.tanh %995 : vector<8x32xf32>
    %997 = vector.extract_strided_slice %982 {offsets = [0, 96], sizes = [8, 32], strides = [1, 1]} : vector<8x128xf32> to vector<8x32xf32>
    %998 = arith.negf %997 : vector<8x32xf32>
    %999 = math.exp %998 : vector<8x32xf32>
    %cst_485 = arith.constant 1.000000e+00 : f32
    %1000 = vector.broadcast %cst_485 : f32 to vector<8x32xf32>
    %1001 = arith.addf %1000, %999 : vector<8x32xf32>
    %1002 = arith.divf %1000, %1001 : vector<8x32xf32>
    %c0_486 = arith.constant 0 : index
    %c0_487 = arith.constant 0 : index
    %1003 = vector.load %arg23[%c0_486, %c0_487] : memref<8x32xf32, #tpu.memory_space<vmem>>, vector<8x32xf32>
    %1004 = arith.mulf %994, %1003 : vector<8x32xf32>
    %1005 = arith.mulf %988, %996 : vector<8x32xf32>
    %1006 = arith.addf %1004, %1005 : vector<8x32xf32>
    %1007 = math.tanh %1006 : vector<8x32xf32>
    %1008 = arith.mulf %1002, %1007 : vector<8x32xf32>
    %1009 = arith.truncf %1008 : vector<8x32xf32> to vector<8x32xbf16>
    %c0_488 = arith.constant 0 : index
    %c0_489 = arith.constant 0 : index
    %1010 = vector.load %arg21[%c0_488, %c0_489] : memref<8x32xbf16, #tpu.memory_space<vmem>>, vector<8x32xbf16>
    tpu.vector_store %arg21[%c0_488, %c0_489], %1009 {strides = array<i32>} : memref<8x32xbf16, #tpu.memory_space<vmem>>, vector<8x32xbf16>,
    %c0_490 = arith.constant 0 : index
    %c0_491 = arith.constant 0 : index
    %1011 = vector.load %arg23[%c0_490, %c0_491] : memref<8x32xf32, #tpu.memory_space<vmem>>, vector<8x32xf32>
    tpu.vector_store %arg23[%c0_490, %c0_491], %1006 {strides = array<i32>} : memref<8x32xf32, #tpu.memory_space<vmem>>, vector<8x32xf32>,
    %1012 = arith.index_cast %c3_i32_475 : i32 to index
    %c0_492 = arith.constant 0 : index
    %c0_493 = arith.constant 0 : index
    %1013 = vector.load %arg17[%1012, %c0_492, %c0_493] : memref<8x8x32xbf16, #tpu.memory_space<vmem>>, vector<1x8x32xbf16>
    %1014 = vector.shape_cast %1013 : vector<1x8x32xbf16> to vector<8x32xbf16>
    %1015 = vector.shape_cast %1009 : vector<8x32xbf16> to vector<1x8x32xbf16>
    tpu.vector_store %arg17[%1012, %c0_492, %c0_493], %1015 {strides = array<i32>} : memref<8x8x32xbf16, #tpu.memory_space<vmem>>, vector<1x8x32xbf16>,
    %c7_i32_494 = arith.constant 7 : i32
    %1016 = arith.subi %c7_i32_494, %c3_i32_475 : i32
    %c0_495 = arith.constant 0 : index
    %c0_496 = arith.constant 0 : index
    %1017 = vector.load %arg22[%c0_495, %c0_496] : memref<8x32xbf16, #tpu.memory_space<vmem>>, vector<8x32xbf16>
    %c0_497 = arith.constant 0 : index
    %c0_498 = arith.constant 0 : index
    %1018 = vector.load %arg13[%c0_497, %c0_498] : memref<32x128xbf16, #tpu.memory_space<vmem>>, vector<32x128xbf16>
    %cst_499 = arith.constant dense<0.000000e+00> : vector<8x128xf32>
    %1019 = tpu.matmul %1017, %1018, %cst_499 {dimension_numbers = #tpu.dot_dimension_numbers<[1], [0], [0], [1], [0, 0, 1, 1], [], []>} : vector<8x32xbf16>, vector<32x128xbf16>, vector<8x128xf32> -> vector<8x128xf32>
    %1020 = arith.index_cast %1016 : i32 to index
    %c0_500 = arith.constant 0 : index
    %c0_501 = arith.constant 0 : index
    %1021 = vector.load %arg20[%1020, %c0_500, %c0_501] : memref<8x8x128xbf16, #tpu.memory_space<vmem>>, vector<1x8x128xbf16>
    %1022 = vector.shape_cast %1021 : vector<1x8x128xbf16> to vector<8x128xbf16>
    %1023 = arith.extf %1022 : vector<8x128xbf16> to vector<8x128xf32>
    %1024 = arith.addf %1019, %1023 : vector<8x128xf32>
    %1025 = vector.extract_strided_slice %1024 {offsets = [0, 0], sizes = [8, 32], strides = [1, 1]} : vector<8x128xf32> to vector<8x32xf32>
    %1026 = arith.negf %1025 : vector<8x32xf32>
    %1027 = math.exp %1026 : vector<8x32xf32>
    %cst_502 = arith.constant 1.000000e+00 : f32
    %1028 = vector.broadcast %cst_502 : f32 to vector<8x32xf32>
    %1029 = arith.addf %1028, %1027 : vector<8x32xf32>
    %1030 = arith.divf %1028, %1029 : vector<8x32xf32>
    %1031 = vector.extract_strided_slice %1024 {offsets = [0, 32], sizes = [8, 32], strides = [1, 1]} : vector<8x128xf32> to vector<8x32xf32>
    %1032 = arith.negf %1031 : vector<8x32xf32>
    %1033 = math.exp %1032 : vector<8x32xf32>
    %cst_503 = arith.constant 1.000000e+00 : f32
    %1034 = vector.broadcast %cst_503 : f32 to vector<8x32xf32>
    %1035 = arith.addf %1034, %1033 : vector<8x32xf32>
    %1036 = arith.divf %1034, %1035 : vector<8x32xf32>
    %1037 = vector.extract_strided_slice %1024 {offsets = [0, 64], sizes = [8, 32], strides = [1, 1]} : vector<8x128xf32> to vector<8x32xf32>
    %1038 = math.tanh %1037 : vector<8x32xf32>
    %1039 = vector.extract_strided_slice %1024 {offsets = [0, 96], sizes = [8, 32], strides = [1, 1]} : vector<8x128xf32> to vector<8x32xf32>
    %1040 = arith.negf %1039 : vector<8x32xf32>
    %1041 = math.exp %1040 : vector<8x32xf32>
    %cst_504 = arith.constant 1.000000e+00 : f32
    %1042 = vector.broadcast %cst_504 : f32 to vector<8x32xf32>
    %1043 = arith.addf %1042, %1041 : vector<8x32xf32>
    %1044 = arith.divf %1042, %1043 : vector<8x32xf32>
    %c0_505 = arith.constant 0 : index
    %c0_506 = arith.constant 0 : index
    %1045 = vector.load %arg24[%c0_505, %c0_506] : memref<8x32xf32, #tpu.memory_space<vmem>>, vector<8x32xf32>
    %1046 = arith.mulf %1036, %1045 : vector<8x32xf32>
    %1047 = arith.mulf %1030, %1038 : vector<8x32xf32>
    %1048 = arith.addf %1046, %1047 : vector<8x32xf32>
    %1049 = math.tanh %1048 : vector<8x32xf32>
    %1050 = arith.mulf %1044, %1049 : vector<8x32xf32>
    %1051 = arith.truncf %1050 : vector<8x32xf32> to vector<8x32xbf16>
    %c0_507 = arith.constant 0 : index
    %c0_508 = arith.constant 0 : index
    %1052 = vector.load %arg22[%c0_507, %c0_508] : memref<8x32xbf16, #tpu.memory_space<vmem>>, vector<8x32xbf16>
    tpu.vector_store %arg22[%c0_507, %c0_508], %1051 {strides = array<i32>} : memref<8x32xbf16, #tpu.memory_space<vmem>>, vector<8x32xbf16>,
    %c0_509 = arith.constant 0 : index
    %c0_510 = arith.constant 0 : index
    %1053 = vector.load %arg24[%c0_509, %c0_510] : memref<8x32xf32, #tpu.memory_space<vmem>>, vector<8x32xf32>
    tpu.vector_store %arg24[%c0_509, %c0_510], %1048 {strides = array<i32>} : memref<8x32xf32, #tpu.memory_space<vmem>>, vector<8x32xf32>,
    %1054 = arith.index_cast %1016 : i32 to index
    %c0_511 = arith.constant 0 : index
    %c0_512 = arith.constant 0 : index
    %1055 = vector.load %arg18[%1054, %c0_511, %c0_512] : memref<8x8x32xbf16, #tpu.memory_space<vmem>>, vector<1x8x32xbf16>
    %1056 = vector.shape_cast %1055 : vector<1x8x32xbf16> to vector<8x32xbf16>
    %1057 = vector.shape_cast %1051 : vector<8x32xbf16> to vector<1x8x32xbf16>
    tpu.vector_store %arg18[%1054, %c0_511, %c0_512], %1057 {strides = array<i32>} : memref<8x8x32xbf16, #tpu.memory_space<vmem>>, vector<1x8x32xbf16>,
    %c4_i32_513 = arith.constant 4 : i32
    %c0_514 = arith.constant 0 : index
    %c0_515 = arith.constant 0 : index
    %1058 = vector.load %arg21[%c0_514, %c0_515] : memref<8x32xbf16, #tpu.memory_space<vmem>>, vector<8x32xbf16>
    %c0_516 = arith.constant 0 : index
    %c0_517 = arith.constant 0 : index
    %1059 = vector.load %arg12[%c0_516, %c0_517] : memref<32x128xbf16, #tpu.memory_space<vmem>>, vector<32x128xbf16>
    %cst_518 = arith.constant dense<0.000000e+00> : vector<8x128xf32>
    %1060 = tpu.matmul %1058, %1059, %cst_518 {dimension_numbers = #tpu.dot_dimension_numbers<[1], [0], [0], [1], [0, 0, 1, 1], [], []>} : vector<8x32xbf16>, vector<32x128xbf16>, vector<8x128xf32> -> vector<8x128xf32>
    %1061 = arith.index_cast %c4_i32_513 : i32 to index
    %c0_519 = arith.constant 0 : index
    %c0_520 = arith.constant 0 : index
    %1062 = vector.load %arg19[%1061, %c0_519, %c0_520] : memref<8x8x128xbf16, #tpu.memory_space<vmem>>, vector<1x8x128xbf16>
    %1063 = vector.shape_cast %1062 : vector<1x8x128xbf16> to vector<8x128xbf16>
    %1064 = arith.extf %1063 : vector<8x128xbf16> to vector<8x128xf32>
    %1065 = arith.addf %1060, %1064 : vector<8x128xf32>
    %1066 = vector.extract_strided_slice %1065 {offsets = [0, 0], sizes = [8, 32], strides = [1, 1]} : vector<8x128xf32> to vector<8x32xf32>
    %1067 = arith.negf %1066 : vector<8x32xf32>
    %1068 = math.exp %1067 : vector<8x32xf32>
    %cst_521 = arith.constant 1.000000e+00 : f32
    %1069 = vector.broadcast %cst_521 : f32 to vector<8x32xf32>
    %1070 = arith.addf %1069, %1068 : vector<8x32xf32>
    %1071 = arith.divf %1069, %1070 : vector<8x32xf32>
    %1072 = vector.extract_strided_slice %1065 {offsets = [0, 32], sizes = [8, 32], strides = [1, 1]} : vector<8x128xf32> to vector<8x32xf32>
    %1073 = arith.negf %1072 : vector<8x32xf32>
    %1074 = math.exp %1073 : vector<8x32xf32>
    %cst_522 = arith.constant 1.000000e+00 : f32
    %1075 = vector.broadcast %cst_522 : f32 to vector<8x32xf32>
    %1076 = arith.addf %1075, %1074 : vector<8x32xf32>
    %1077 = arith.divf %1075, %1076 : vector<8x32xf32>
    %1078 = vector.extract_strided_slice %1065 {offsets = [0, 64], sizes = [8, 32], strides = [1, 1]} : vector<8x128xf32> to vector<8x32xf32>
    %1079 = math.tanh %1078 : vector<8x32xf32>
    %1080 = vector.extract_strided_slice %1065 {offsets = [0, 96], sizes = [8, 32], strides = [1, 1]} : vector<8x128xf32> to vector<8x32xf32>
    %1081 = arith.negf %1080 : vector<8x32xf32>
    %1082 = math.exp %1081 : vector<8x32xf32>
    %cst_523 = arith.constant 1.000000e+00 : f32
    %1083 = vector.broadcast %cst_523 : f32 to vector<8x32xf32>
    %1084 = arith.addf %1083, %1082 : vector<8x32xf32>
    %1085 = arith.divf %1083, %1084 : vector<8x32xf32>
    %c0_524 = arith.constant 0 : index
    %c0_525 = arith.constant 0 : index
    %1086 = vector.load %arg23[%c0_524, %c0_525] : memref<8x32xf32, #tpu.memory_space<vmem>>, vector<8x32xf32>
    %1087 = arith.mulf %1077, %1086 : vector<8x32xf32>
    %1088 = arith.mulf %1071, %1079 : vector<8x32xf32>
    %1089 = arith.addf %1087, %1088 : vector<8x32xf32>
    %1090 = math.tanh %1089 : vector<8x32xf32>
    %1091 = arith.mulf %1085, %1090 : vector<8x32xf32>
    %1092 = arith.truncf %1091 : vector<8x32xf32> to vector<8x32xbf16>
    %c0_526 = arith.constant 0 : index
    %c0_527 = arith.constant 0 : index
    %1093 = vector.load %arg21[%c0_526, %c0_527] : memref<8x32xbf16, #tpu.memory_space<vmem>>, vector<8x32xbf16>
    tpu.vector_store %arg21[%c0_526, %c0_527], %1092 {strides = array<i32>} : memref<8x32xbf16, #tpu.memory_space<vmem>>, vector<8x32xbf16>,
    %c0_528 = arith.constant 0 : index
    %c0_529 = arith.constant 0 : index
    %1094 = vector.load %arg23[%c0_528, %c0_529] : memref<8x32xf32, #tpu.memory_space<vmem>>, vector<8x32xf32>
    tpu.vector_store %arg23[%c0_528, %c0_529], %1089 {strides = array<i32>} : memref<8x32xf32, #tpu.memory_space<vmem>>, vector<8x32xf32>,
    %1095 = arith.index_cast %c4_i32_513 : i32 to index
    %c0_530 = arith.constant 0 : index
    %c0_531 = arith.constant 0 : index
    %1096 = vector.load %arg17[%1095, %c0_530, %c0_531] : memref<8x8x32xbf16, #tpu.memory_space<vmem>>, vector<1x8x32xbf16>
    %1097 = vector.shape_cast %1096 : vector<1x8x32xbf16> to vector<8x32xbf16>
    %1098 = vector.shape_cast %1092 : vector<8x32xbf16> to vector<1x8x32xbf16>
    tpu.vector_store %arg17[%1095, %c0_530, %c0_531], %1098 {strides = array<i32>} : memref<8x8x32xbf16, #tpu.memory_space<vmem>>, vector<1x8x32xbf16>,
    %c7_i32_532 = arith.constant 7 : i32
    %1099 = arith.subi %c7_i32_532, %c4_i32_513 : i32
    %c0_533 = arith.constant 0 : index
    %c0_534 = arith.constant 0 : index
    %1100 = vector.load %arg22[%c0_533, %c0_534] : memref<8x32xbf16, #tpu.memory_space<vmem>>, vector<8x32xbf16>
    %c0_535 = arith.constant 0 : index
    %c0_536 = arith.constant 0 : index
    %1101 = vector.load %arg13[%c0_535, %c0_536] : memref<32x128xbf16, #tpu.memory_space<vmem>>, vector<32x128xbf16>
    %cst_537 = arith.constant dense<0.000000e+00> : vector<8x128xf32>
    %1102 = tpu.matmul %1100, %1101, %cst_537 {dimension_numbers = #tpu.dot_dimension_numbers<[1], [0], [0], [1], [0, 0, 1, 1], [], []>} : vector<8x32xbf16>, vector<32x128xbf16>, vector<8x128xf32> -> vector<8x128xf32>
    %1103 = arith.index_cast %1099 : i32 to index
    %c0_538 = arith.constant 0 : index
    %c0_539 = arith.constant 0 : index
    %1104 = vector.load %arg20[%1103, %c0_538, %c0_539] : memref<8x8x128xbf16, #tpu.memory_space<vmem>>, vector<1x8x128xbf16>
    %1105 = vector.shape_cast %1104 : vector<1x8x128xbf16> to vector<8x128xbf16>
    %1106 = arith.extf %1105 : vector<8x128xbf16> to vector<8x128xf32>
    %1107 = arith.addf %1102, %1106 : vector<8x128xf32>
    %1108 = vector.extract_strided_slice %1107 {offsets = [0, 0], sizes = [8, 32], strides = [1, 1]} : vector<8x128xf32> to vector<8x32xf32>
    %1109 = arith.negf %1108 : vector<8x32xf32>
    %1110 = math.exp %1109 : vector<8x32xf32>
    %cst_540 = arith.constant 1.000000e+00 : f32
    %1111 = vector.broadcast %cst_540 : f32 to vector<8x32xf32>
    %1112 = arith.addf %1111, %1110 : vector<8x32xf32>
    %1113 = arith.divf %1111, %1112 : vector<8x32xf32>
    %1114 = vector.extract_strided_slice %1107 {offsets = [0, 32], sizes = [8, 32], strides = [1, 1]} : vector<8x128xf32> to vector<8x32xf32>
    %1115 = arith.negf %1114 : vector<8x32xf32>
    %1116 = math.exp %1115 : vector<8x32xf32>
    %cst_541 = arith.constant 1.000000e+00 : f32
    %1117 = vector.broadcast %cst_541 : f32 to vector<8x32xf32>
    %1118 = arith.addf %1117, %1116 : vector<8x32xf32>
    %1119 = arith.divf %1117, %1118 : vector<8x32xf32>
    %1120 = vector.extract_strided_slice %1107 {offsets = [0, 64], sizes = [8, 32], strides = [1, 1]} : vector<8x128xf32> to vector<8x32xf32>
    %1121 = math.tanh %1120 : vector<8x32xf32>
    %1122 = vector.extract_strided_slice %1107 {offsets = [0, 96], sizes = [8, 32], strides = [1, 1]} : vector<8x128xf32> to vector<8x32xf32>
    %1123 = arith.negf %1122 : vector<8x32xf32>
    %1124 = math.exp %1123 : vector<8x32xf32>
    %cst_542 = arith.constant 1.000000e+00 : f32
    %1125 = vector.broadcast %cst_542 : f32 to vector<8x32xf32>
    %1126 = arith.addf %1125, %1124 : vector<8x32xf32>
    %1127 = arith.divf %1125, %1126 : vector<8x32xf32>
    %c0_543 = arith.constant 0 : index
    %c0_544 = arith.constant 0 : index
    %1128 = vector.load %arg24[%c0_543, %c0_544] : memref<8x32xf32, #tpu.memory_space<vmem>>, vector<8x32xf32>
    %1129 = arith.mulf %1119, %1128 : vector<8x32xf32>
    %1130 = arith.mulf %1113, %1121 : vector<8x32xf32>
    %1131 = arith.addf %1129, %1130 : vector<8x32xf32>
    %1132 = math.tanh %1131 : vector<8x32xf32>
    %1133 = arith.mulf %1127, %1132 : vector<8x32xf32>
    %1134 = arith.truncf %1133 : vector<8x32xf32> to vector<8x32xbf16>
    %c0_545 = arith.constant 0 : index
    %c0_546 = arith.constant 0 : index
    %1135 = vector.load %arg22[%c0_545, %c0_546] : memref<8x32xbf16, #tpu.memory_space<vmem>>, vector<8x32xbf16>
    tpu.vector_store %arg22[%c0_545, %c0_546], %1134 {strides = array<i32>} : memref<8x32xbf16, #tpu.memory_space<vmem>>, vector<8x32xbf16>,
    %c0_547 = arith.constant 0 : index
    %c0_548 = arith.constant 0 : index
    %1136 = vector.load %arg24[%c0_547, %c0_548] : memref<8x32xf32, #tpu.memory_space<vmem>>, vector<8x32xf32>
    tpu.vector_store %arg24[%c0_547, %c0_548], %1131 {strides = array<i32>} : memref<8x32xf32, #tpu.memory_space<vmem>>, vector<8x32xf32>,
    %1137 = arith.index_cast %1099 : i32 to index
    %c0_549 = arith.constant 0 : index
    %c0_550 = arith.constant 0 : index
    %1138 = vector.load %arg18[%1137, %c0_549, %c0_550] : memref<8x8x32xbf16, #tpu.memory_space<vmem>>, vector<1x8x32xbf16>
    %1139 = vector.shape_cast %1138 : vector<1x8x32xbf16> to vector<8x32xbf16>
    %1140 = vector.shape_cast %1134 : vector<8x32xbf16> to vector<1x8x32xbf16>
    tpu.vector_store %arg18[%1137, %c0_549, %c0_550], %1140 {strides = array<i32>} : memref<8x8x32xbf16, #tpu.memory_space<vmem>>, vector<1x8x32xbf16>,
    %c5_i32_551 = arith.constant 5 : i32
    %c0_552 = arith.constant 0 : index
    %c0_553 = arith.constant 0 : index
    %1141 = vector.load %arg21[%c0_552, %c0_553] : memref<8x32xbf16, #tpu.memory_space<vmem>>, vector<8x32xbf16>
    %c0_554 = arith.constant 0 : index
    %c0_555 = arith.constant 0 : index
    %1142 = vector.load %arg12[%c0_554, %c0_555] : memref<32x128xbf16, #tpu.memory_space<vmem>>, vector<32x128xbf16>
    %cst_556 = arith.constant dense<0.000000e+00> : vector<8x128xf32>
    %1143 = tpu.matmul %1141, %1142, %cst_556 {dimension_numbers = #tpu.dot_dimension_numbers<[1], [0], [0], [1], [0, 0, 1, 1], [], []>} : vector<8x32xbf16>, vector<32x128xbf16>, vector<8x128xf32> -> vector<8x128xf32>
    %1144 = arith.index_cast %c5_i32_551 : i32 to index
    %c0_557 = arith.constant 0 : index
    %c0_558 = arith.constant 0 : index
    %1145 = vector.load %arg19[%1144, %c0_557, %c0_558] : memref<8x8x128xbf16, #tpu.memory_space<vmem>>, vector<1x8x128xbf16>
    %1146 = vector.shape_cast %1145 : vector<1x8x128xbf16> to vector<8x128xbf16>
    %1147 = arith.extf %1146 : vector<8x128xbf16> to vector<8x128xf32>
    %1148 = arith.addf %1143, %1147 : vector<8x128xf32>
    %1149 = vector.extract_strided_slice %1148 {offsets = [0, 0], sizes = [8, 32], strides = [1, 1]} : vector<8x128xf32> to vector<8x32xf32>
    %1150 = arith.negf %1149 : vector<8x32xf32>
    %1151 = math.exp %1150 : vector<8x32xf32>
    %cst_559 = arith.constant 1.000000e+00 : f32
    %1152 = vector.broadcast %cst_559 : f32 to vector<8x32xf32>
    %1153 = arith.addf %1152, %1151 : vector<8x32xf32>
    %1154 = arith.divf %1152, %1153 : vector<8x32xf32>
    %1155 = vector.extract_strided_slice %1148 {offsets = [0, 32], sizes = [8, 32], strides = [1, 1]} : vector<8x128xf32> to vector<8x32xf32>
    %1156 = arith.negf %1155 : vector<8x32xf32>
    %1157 = math.exp %1156 : vector<8x32xf32>
    %cst_560 = arith.constant 1.000000e+00 : f32
    %1158 = vector.broadcast %cst_560 : f32 to vector<8x32xf32>
    %1159 = arith.addf %1158, %1157 : vector<8x32xf32>
    %1160 = arith.divf %1158, %1159 : vector<8x32xf32>
    %1161 = vector.extract_strided_slice %1148 {offsets = [0, 64], sizes = [8, 32], strides = [1, 1]} : vector<8x128xf32> to vector<8x32xf32>
    %1162 = math.tanh %1161 : vector<8x32xf32>
    %1163 = vector.extract_strided_slice %1148 {offsets = [0, 96], sizes = [8, 32], strides = [1, 1]} : vector<8x128xf32> to vector<8x32xf32>
    %1164 = arith.negf %1163 : vector<8x32xf32>
    %1165 = math.exp %1164 : vector<8x32xf32>
    %cst_561 = arith.constant 1.000000e+00 : f32
    %1166 = vector.broadcast %cst_561 : f32 to vector<8x32xf32>
    %1167 = arith.addf %1166, %1165 : vector<8x32xf32>
    %1168 = arith.divf %1166, %1167 : vector<8x32xf32>
    %c0_562 = arith.constant 0 : index
    %c0_563 = arith.constant 0 : index
    %1169 = vector.load %arg23[%c0_562, %c0_563] : memref<8x32xf32, #tpu.memory_space<vmem>>, vector<8x32xf32>
    %1170 = arith.mulf %1160, %1169 : vector<8x32xf32>
    %1171 = arith.mulf %1154, %1162 : vector<8x32xf32>
    %1172 = arith.addf %1170, %1171 : vector<8x32xf32>
    %1173 = math.tanh %1172 : vector<8x32xf32>
    %1174 = arith.mulf %1168, %1173 : vector<8x32xf32>
    %1175 = arith.truncf %1174 : vector<8x32xf32> to vector<8x32xbf16>
    %c0_564 = arith.constant 0 : index
    %c0_565 = arith.constant 0 : index
    %1176 = vector.load %arg21[%c0_564, %c0_565] : memref<8x32xbf16, #tpu.memory_space<vmem>>, vector<8x32xbf16>
    tpu.vector_store %arg21[%c0_564, %c0_565], %1175 {strides = array<i32>} : memref<8x32xbf16, #tpu.memory_space<vmem>>, vector<8x32xbf16>,
    %c0_566 = arith.constant 0 : index
    %c0_567 = arith.constant 0 : index
    %1177 = vector.load %arg23[%c0_566, %c0_567] : memref<8x32xf32, #tpu.memory_space<vmem>>, vector<8x32xf32>
    tpu.vector_store %arg23[%c0_566, %c0_567], %1172 {strides = array<i32>} : memref<8x32xf32, #tpu.memory_space<vmem>>, vector<8x32xf32>,
    %1178 = arith.index_cast %c5_i32_551 : i32 to index
    %c0_568 = arith.constant 0 : index
    %c0_569 = arith.constant 0 : index
    %1179 = vector.load %arg17[%1178, %c0_568, %c0_569] : memref<8x8x32xbf16, #tpu.memory_space<vmem>>, vector<1x8x32xbf16>
    %1180 = vector.shape_cast %1179 : vector<1x8x32xbf16> to vector<8x32xbf16>
    %1181 = vector.shape_cast %1175 : vector<8x32xbf16> to vector<1x8x32xbf16>
    tpu.vector_store %arg17[%1178, %c0_568, %c0_569], %1181 {strides = array<i32>} : memref<8x8x32xbf16, #tpu.memory_space<vmem>>, vector<1x8x32xbf16>,
    %c7_i32_570 = arith.constant 7 : i32
    %1182 = arith.subi %c7_i32_570, %c5_i32_551 : i32
    %c0_571 = arith.constant 0 : index
    %c0_572 = arith.constant 0 : index
    %1183 = vector.load %arg22[%c0_571, %c0_572] : memref<8x32xbf16, #tpu.memory_space<vmem>>, vector<8x32xbf16>
    %c0_573 = arith.constant 0 : index
    %c0_574 = arith.constant 0 : index
    %1184 = vector.load %arg13[%c0_573, %c0_574] : memref<32x128xbf16, #tpu.memory_space<vmem>>, vector<32x128xbf16>
    %cst_575 = arith.constant dense<0.000000e+00> : vector<8x128xf32>
    %1185 = tpu.matmul %1183, %1184, %cst_575 {dimension_numbers = #tpu.dot_dimension_numbers<[1], [0], [0], [1], [0, 0, 1, 1], [], []>} : vector<8x32xbf16>, vector<32x128xbf16>, vector<8x128xf32> -> vector<8x128xf32>
    %1186 = arith.index_cast %1182 : i32 to index
    %c0_576 = arith.constant 0 : index
    %c0_577 = arith.constant 0 : index
    %1187 = vector.load %arg20[%1186, %c0_576, %c0_577] : memref<8x8x128xbf16, #tpu.memory_space<vmem>>, vector<1x8x128xbf16>
    %1188 = vector.shape_cast %1187 : vector<1x8x128xbf16> to vector<8x128xbf16>
    %1189 = arith.extf %1188 : vector<8x128xbf16> to vector<8x128xf32>
    %1190 = arith.addf %1185, %1189 : vector<8x128xf32>
    %1191 = vector.extract_strided_slice %1190 {offsets = [0, 0], sizes = [8, 32], strides = [1, 1]} : vector<8x128xf32> to vector<8x32xf32>
    %1192 = arith.negf %1191 : vector<8x32xf32>
    %1193 = math.exp %1192 : vector<8x32xf32>
    %cst_578 = arith.constant 1.000000e+00 : f32
    %1194 = vector.broadcast %cst_578 : f32 to vector<8x32xf32>
    %1195 = arith.addf %1194, %1193 : vector<8x32xf32>
    %1196 = arith.divf %1194, %1195 : vector<8x32xf32>
    %1197 = vector.extract_strided_slice %1190 {offsets = [0, 32], sizes = [8, 32], strides = [1, 1]} : vector<8x128xf32> to vector<8x32xf32>
    %1198 = arith.negf %1197 : vector<8x32xf32>
    %1199 = math.exp %1198 : vector<8x32xf32>
    %cst_579 = arith.constant 1.000000e+00 : f32
    %1200 = vector.broadcast %cst_579 : f32 to vector<8x32xf32>
    %1201 = arith.addf %1200, %1199 : vector<8x32xf32>
    %1202 = arith.divf %1200, %1201 : vector<8x32xf32>
    %1203 = vector.extract_strided_slice %1190 {offsets = [0, 64], sizes = [8, 32], strides = [1, 1]} : vector<8x128xf32> to vector<8x32xf32>
    %1204 = math.tanh %1203 : vector<8x32xf32>
    %1205 = vector.extract_strided_slice %1190 {offsets = [0, 96], sizes = [8, 32], strides = [1, 1]} : vector<8x128xf32> to vector<8x32xf32>
    %1206 = arith.negf %1205 : vector<8x32xf32>
    %1207 = math.exp %1206 : vector<8x32xf32>
    %cst_580 = arith.constant 1.000000e+00 : f32
    %1208 = vector.broadcast %cst_580 : f32 to vector<8x32xf32>
    %1209 = arith.addf %1208, %1207 : vector<8x32xf32>
    %1210 = arith.divf %1208, %1209 : vector<8x32xf32>
    %c0_581 = arith.constant 0 : index
    %c0_582 = arith.constant 0 : index
    %1211 = vector.load %arg24[%c0_581, %c0_582] : memref<8x32xf32, #tpu.memory_space<vmem>>, vector<8x32xf32>
    %1212 = arith.mulf %1202, %1211 : vector<8x32xf32>
    %1213 = arith.mulf %1196, %1204 : vector<8x32xf32>
    %1214 = arith.addf %1212, %1213 : vector<8x32xf32>
    %1215 = math.tanh %1214 : vector<8x32xf32>
    %1216 = arith.mulf %1210, %1215 : vector<8x32xf32>
    %1217 = arith.truncf %1216 : vector<8x32xf32> to vector<8x32xbf16>
    %c0_583 = arith.constant 0 : index
    %c0_584 = arith.constant 0 : index
    %1218 = vector.load %arg22[%c0_583, %c0_584] : memref<8x32xbf16, #tpu.memory_space<vmem>>, vector<8x32xbf16>
    tpu.vector_store %arg22[%c0_583, %c0_584], %1217 {strides = array<i32>} : memref<8x32xbf16, #tpu.memory_space<vmem>>, vector<8x32xbf16>,
    %c0_585 = arith.constant 0 : index
    %c0_586 = arith.constant 0 : index
    %1219 = vector.load %arg24[%c0_585, %c0_586] : memref<8x32xf32, #tpu.memory_space<vmem>>, vector<8x32xf32>
    tpu.vector_store %arg24[%c0_585, %c0_586], %1214 {strides = array<i32>} : memref<8x32xf32, #tpu.memory_space<vmem>>, vector<8x32xf32>,
    %1220 = arith.index_cast %1182 : i32 to index
    %c0_587 = arith.constant 0 : index
    %c0_588 = arith.constant 0 : index
    %1221 = vector.load %arg18[%1220, %c0_587, %c0_588] : memref<8x8x32xbf16, #tpu.memory_space<vmem>>, vector<1x8x32xbf16>
    %1222 = vector.shape_cast %1221 : vector<1x8x32xbf16> to vector<8x32xbf16>
    %1223 = vector.shape_cast %1217 : vector<8x32xbf16> to vector<1x8x32xbf16>
    tpu.vector_store %arg18[%1220, %c0_587, %c0_588], %1223 {strides = array<i32>} : memref<8x8x32xbf16, #tpu.memory_space<vmem>>, vector<1x8x32xbf16>,
    %c6_i32_589 = arith.constant 6 : i32
    %c0_590 = arith.constant 0 : index
    %c0_591 = arith.constant 0 : index
    %1224 = vector.load %arg21[%c0_590, %c0_591] : memref<8x32xbf16, #tpu.memory_space<vmem>>, vector<8x32xbf16>
    %c0_592 = arith.constant 0 : index
    %c0_593 = arith.constant 0 : index
    %1225 = vector.load %arg12[%c0_592, %c0_593] : memref<32x128xbf16, #tpu.memory_space<vmem>>, vector<32x128xbf16>
    %cst_594 = arith.constant dense<0.000000e+00> : vector<8x128xf32>
    %1226 = tpu.matmul %1224, %1225, %cst_594 {dimension_numbers = #tpu.dot_dimension_numbers<[1], [0], [0], [1], [0, 0, 1, 1], [], []>} : vector<8x32xbf16>, vector<32x128xbf16>, vector<8x128xf32> -> vector<8x128xf32>
    %1227 = arith.index_cast %c6_i32_589 : i32 to index
    %c0_595 = arith.constant 0 : index
    %c0_596 = arith.constant 0 : index
    %1228 = vector.load %arg19[%1227, %c0_595, %c0_596] : memref<8x8x128xbf16, #tpu.memory_space<vmem>>, vector<1x8x128xbf16>
    %1229 = vector.shape_cast %1228 : vector<1x8x128xbf16> to vector<8x128xbf16>
    %1230 = arith.extf %1229 : vector<8x128xbf16> to vector<8x128xf32>
    %1231 = arith.addf %1226, %1230 : vector<8x128xf32>
    %1232 = vector.extract_strided_slice %1231 {offsets = [0, 0], sizes = [8, 32], strides = [1, 1]} : vector<8x128xf32> to vector<8x32xf32>
    %1233 = arith.negf %1232 : vector<8x32xf32>
    %1234 = math.exp %1233 : vector<8x32xf32>
    %cst_597 = arith.constant 1.000000e+00 : f32
    %1235 = vector.broadcast %cst_597 : f32 to vector<8x32xf32>
    %1236 = arith.addf %1235, %1234 : vector<8x32xf32>
    %1237 = arith.divf %1235, %1236 : vector<8x32xf32>
    %1238 = vector.extract_strided_slice %1231 {offsets = [0, 32], sizes = [8, 32], strides = [1, 1]} : vector<8x128xf32> to vector<8x32xf32>
    %1239 = arith.negf %1238 : vector<8x32xf32>
    %1240 = math.exp %1239 : vector<8x32xf32>
    %cst_598 = arith.constant 1.000000e+00 : f32
    %1241 = vector.broadcast %cst_598 : f32 to vector<8x32xf32>
    %1242 = arith.addf %1241, %1240 : vector<8x32xf32>
    %1243 = arith.divf %1241, %1242 : vector<8x32xf32>
    %1244 = vector.extract_strided_slice %1231 {offsets = [0, 64], sizes = [8, 32], strides = [1, 1]} : vector<8x128xf32> to vector<8x32xf32>
    %1245 = math.tanh %1244 : vector<8x32xf32>
    %1246 = vector.extract_strided_slice %1231 {offsets = [0, 96], sizes = [8, 32], strides = [1, 1]} : vector<8x128xf32> to vector<8x32xf32>
    %1247 = arith.negf %1246 : vector<8x32xf32>
    %1248 = math.exp %1247 : vector<8x32xf32>
    %cst_599 = arith.constant 1.000000e+00 : f32
    %1249 = vector.broadcast %cst_599 : f32 to vector<8x32xf32>
    %1250 = arith.addf %1249, %1248 : vector<8x32xf32>
    %1251 = arith.divf %1249, %1250 : vector<8x32xf32>
    %c0_600 = arith.constant 0 : index
    %c0_601 = arith.constant 0 : index
    %1252 = vector.load %arg23[%c0_600, %c0_601] : memref<8x32xf32, #tpu.memory_space<vmem>>, vector<8x32xf32>
    %1253 = arith.mulf %1243, %1252 : vector<8x32xf32>
    %1254 = arith.mulf %1237, %1245 : vector<8x32xf32>
    %1255 = arith.addf %1253, %1254 : vector<8x32xf32>
    %1256 = math.tanh %1255 : vector<8x32xf32>
    %1257 = arith.mulf %1251, %1256 : vector<8x32xf32>
    %1258 = arith.truncf %1257 : vector<8x32xf32> to vector<8x32xbf16>
    %c0_602 = arith.constant 0 : index
    %c0_603 = arith.constant 0 : index
    %1259 = vector.load %arg21[%c0_602, %c0_603] : memref<8x32xbf16, #tpu.memory_space<vmem>>, vector<8x32xbf16>
    tpu.vector_store %arg21[%c0_602, %c0_603], %1258 {strides = array<i32>} : memref<8x32xbf16, #tpu.memory_space<vmem>>, vector<8x32xbf16>,
    %c0_604 = arith.constant 0 : index
    %c0_605 = arith.constant 0 : index
    %1260 = vector.load %arg23[%c0_604, %c0_605] : memref<8x32xf32, #tpu.memory_space<vmem>>, vector<8x32xf32>
    tpu.vector_store %arg23[%c0_604, %c0_605], %1255 {strides = array<i32>} : memref<8x32xf32, #tpu.memory_space<vmem>>, vector<8x32xf32>,
    %1261 = arith.index_cast %c6_i32_589 : i32 to index
    %c0_606 = arith.constant 0 : index
    %c0_607 = arith.constant 0 : index
    %1262 = vector.load %arg17[%1261, %c0_606, %c0_607] : memref<8x8x32xbf16, #tpu.memory_space<vmem>>, vector<1x8x32xbf16>
    %1263 = vector.shape_cast %1262 : vector<1x8x32xbf16> to vector<8x32xbf16>
    %1264 = vector.shape_cast %1258 : vector<8x32xbf16> to vector<1x8x32xbf16>
    tpu.vector_store %arg17[%1261, %c0_606, %c0_607], %1264 {strides = array<i32>} : memref<8x8x32xbf16, #tpu.memory_space<vmem>>, vector<1x8x32xbf16>,
    %c7_i32_608 = arith.constant 7 : i32
    %1265 = arith.subi %c7_i32_608, %c6_i32_589 : i32
    %c0_609 = arith.constant 0 : index
    %c0_610 = arith.constant 0 : index
    %1266 = vector.load %arg22[%c0_609, %c0_610] : memref<8x32xbf16, #tpu.memory_space<vmem>>, vector<8x32xbf16>
    %c0_611 = arith.constant 0 : index
    %c0_612 = arith.constant 0 : index
    %1267 = vector.load %arg13[%c0_611, %c0_612] : memref<32x128xbf16, #tpu.memory_space<vmem>>, vector<32x128xbf16>
    %cst_613 = arith.constant dense<0.000000e+00> : vector<8x128xf32>
    %1268 = tpu.matmul %1266, %1267, %cst_613 {dimension_numbers = #tpu.dot_dimension_numbers<[1], [0], [0], [1], [0, 0, 1, 1], [], []>} : vector<8x32xbf16>, vector<32x128xbf16>, vector<8x128xf32> -> vector<8x128xf32>
    %1269 = arith.index_cast %1265 : i32 to index
    %c0_614 = arith.constant 0 : index
    %c0_615 = arith.constant 0 : index
    %1270 = vector.load %arg20[%1269, %c0_614, %c0_615] : memref<8x8x128xbf16, #tpu.memory_space<vmem>>, vector<1x8x128xbf16>
    %1271 = vector.shape_cast %1270 : vector<1x8x128xbf16> to vector<8x128xbf16>
    %1272 = arith.extf %1271 : vector<8x128xbf16> to vector<8x128xf32>
    %1273 = arith.addf %1268, %1272 : vector<8x128xf32>
    %1274 = vector.extract_strided_slice %1273 {offsets = [0, 0], sizes = [8, 32], strides = [1, 1]} : vector<8x128xf32> to vector<8x32xf32>
    %1275 = arith.negf %1274 : vector<8x32xf32>
    %1276 = math.exp %1275 : vector<8x32xf32>
    %cst_616 = arith.constant 1.000000e+00 : f32
    %1277 = vector.broadcast %cst_616 : f32 to vector<8x32xf32>
    %1278 = arith.addf %1277, %1276 : vector<8x32xf32>
    %1279 = arith.divf %1277, %1278 : vector<8x32xf32>
    %1280 = vector.extract_strided_slice %1273 {offsets = [0, 32], sizes = [8, 32], strides = [1, 1]} : vector<8x128xf32> to vector<8x32xf32>
    %1281 = arith.negf %1280 : vector<8x32xf32>
    %1282 = math.exp %1281 : vector<8x32xf32>
    %cst_617 = arith.constant 1.000000e+00 : f32
    %1283 = vector.broadcast %cst_617 : f32 to vector<8x32xf32>
    %1284 = arith.addf %1283, %1282 : vector<8x32xf32>
    %1285 = arith.divf %1283, %1284 : vector<8x32xf32>
    %1286 = vector.extract_strided_slice %1273 {offsets = [0, 64], sizes = [8, 32], strides = [1, 1]} : vector<8x128xf32> to vector<8x32xf32>
    %1287 = math.tanh %1286 : vector<8x32xf32>
    %1288 = vector.extract_strided_slice %1273 {offsets = [0, 96], sizes = [8, 32], strides = [1, 1]} : vector<8x128xf32> to vector<8x32xf32>
    %1289 = arith.negf %1288 : vector<8x32xf32>
    %1290 = math.exp %1289 : vector<8x32xf32>
    %cst_618 = arith.constant 1.000000e+00 : f32
    %1291 = vector.broadcast %cst_618 : f32 to vector<8x32xf32>
    %1292 = arith.addf %1291, %1290 : vector<8x32xf32>
    %1293 = arith.divf %1291, %1292 : vector<8x32xf32>
    %c0_619 = arith.constant 0 : index
    %c0_620 = arith.constant 0 : index
    %1294 = vector.load %arg24[%c0_619, %c0_620] : memref<8x32xf32, #tpu.memory_space<vmem>>, vector<8x32xf32>
    %1295 = arith.mulf %1285, %1294 : vector<8x32xf32>
    %1296 = arith.mulf %1279, %1287 : vector<8x32xf32>
    %1297 = arith.addf %1295, %1296 : vector<8x32xf32>
    %1298 = math.tanh %1297 : vector<8x32xf32>
    %1299 = arith.mulf %1293, %1298 : vector<8x32xf32>
    %1300 = arith.truncf %1299 : vector<8x32xf32> to vector<8x32xbf16>
    %c0_621 = arith.constant 0 : index
    %c0_622 = arith.constant 0 : index
    %1301 = vector.load %arg22[%c0_621, %c0_622] : memref<8x32xbf16, #tpu.memory_space<vmem>>, vector<8x32xbf16>
    tpu.vector_store %arg22[%c0_621, %c0_622], %1300 {strides = array<i32>} : memref<8x32xbf16, #tpu.memory_space<vmem>>, vector<8x32xbf16>,
    %c0_623 = arith.constant 0 : index
    %c0_624 = arith.constant 0 : index
    %1302 = vector.load %arg24[%c0_623, %c0_624] : memref<8x32xf32, #tpu.memory_space<vmem>>, vector<8x32xf32>
    tpu.vector_store %arg24[%c0_623, %c0_624], %1297 {strides = array<i32>} : memref<8x32xf32, #tpu.memory_space<vmem>>, vector<8x32xf32>,
    %1303 = arith.index_cast %1265 : i32 to index
    %c0_625 = arith.constant 0 : index
    %c0_626 = arith.constant 0 : index
    %1304 = vector.load %arg18[%1303, %c0_625, %c0_626] : memref<8x8x32xbf16, #tpu.memory_space<vmem>>, vector<1x8x32xbf16>
    %1305 = vector.shape_cast %1304 : vector<1x8x32xbf16> to vector<8x32xbf16>
    %1306 = vector.shape_cast %1300 : vector<8x32xbf16> to vector<1x8x32xbf16>
    tpu.vector_store %arg18[%1303, %c0_625, %c0_626], %1306 {strides = array<i32>} : memref<8x8x32xbf16, #tpu.memory_space<vmem>>, vector<1x8x32xbf16>,
    %c7_i32_627 = arith.constant 7 : i32
    %c0_628 = arith.constant 0 : index
    %c0_629 = arith.constant 0 : index
    %1307 = vector.load %arg21[%c0_628, %c0_629] : memref<8x32xbf16, #tpu.memory_space<vmem>>, vector<8x32xbf16>
    %c0_630 = arith.constant 0 : index
    %c0_631 = arith.constant 0 : index
    %1308 = vector.load %arg12[%c0_630, %c0_631] : memref<32x128xbf16, #tpu.memory_space<vmem>>, vector<32x128xbf16>
    %cst_632 = arith.constant dense<0.000000e+00> : vector<8x128xf32>
    %1309 = tpu.matmul %1307, %1308, %cst_632 {dimension_numbers = #tpu.dot_dimension_numbers<[1], [0], [0], [1], [0, 0, 1, 1], [], []>} : vector<8x32xbf16>, vector<32x128xbf16>, vector<8x128xf32> -> vector<8x128xf32>
    %1310 = arith.index_cast %c7_i32_627 : i32 to index
    %c0_633 = arith.constant 0 : index
    %c0_634 = arith.constant 0 : index
    %1311 = vector.load %arg19[%1310, %c0_633, %c0_634] : memref<8x8x128xbf16, #tpu.memory_space<vmem>>, vector<1x8x128xbf16>
    %1312 = vector.shape_cast %1311 : vector<1x8x128xbf16> to vector<8x128xbf16>
    %1313 = arith.extf %1312 : vector<8x128xbf16> to vector<8x128xf32>
    %1314 = arith.addf %1309, %1313 : vector<8x128xf32>
    %1315 = vector.extract_strided_slice %1314 {offsets = [0, 0], sizes = [8, 32], strides = [1, 1]} : vector<8x128xf32> to vector<8x32xf32>
    %1316 = arith.negf %1315 : vector<8x32xf32>
    %1317 = math.exp %1316 : vector<8x32xf32>
    %cst_635 = arith.constant 1.000000e+00 : f32
    %1318 = vector.broadcast %cst_635 : f32 to vector<8x32xf32>
    %1319 = arith.addf %1318, %1317 : vector<8x32xf32>
    %1320 = arith.divf %1318, %1319 : vector<8x32xf32>
    %1321 = vector.extract_strided_slice %1314 {offsets = [0, 32], sizes = [8, 32], strides = [1, 1]} : vector<8x128xf32> to vector<8x32xf32>
    %1322 = arith.negf %1321 : vector<8x32xf32>
    %1323 = math.exp %1322 : vector<8x32xf32>
    %cst_636 = arith.constant 1.000000e+00 : f32
    %1324 = vector.broadcast %cst_636 : f32 to vector<8x32xf32>
    %1325 = arith.addf %1324, %1323 : vector<8x32xf32>
    %1326 = arith.divf %1324, %1325 : vector<8x32xf32>
    %1327 = vector.extract_strided_slice %1314 {offsets = [0, 64], sizes = [8, 32], strides = [1, 1]} : vector<8x128xf32> to vector<8x32xf32>
    %1328 = math.tanh %1327 : vector<8x32xf32>
    %1329 = vector.extract_strided_slice %1314 {offsets = [0, 96], sizes = [8, 32], strides = [1, 1]} : vector<8x128xf32> to vector<8x32xf32>
    %1330 = arith.negf %1329 : vector<8x32xf32>
    %1331 = math.exp %1330 : vector<8x32xf32>
    %cst_637 = arith.constant 1.000000e+00 : f32
    %1332 = vector.broadcast %cst_637 : f32 to vector<8x32xf32>
    %1333 = arith.addf %1332, %1331 : vector<8x32xf32>
    %1334 = arith.divf %1332, %1333 : vector<8x32xf32>
    %c0_638 = arith.constant 0 : index
    %c0_639 = arith.constant 0 : index
    %1335 = vector.load %arg23[%c0_638, %c0_639] : memref<8x32xf32, #tpu.memory_space<vmem>>, vector<8x32xf32>
    %1336 = arith.mulf %1326, %1335 : vector<8x32xf32>
    %1337 = arith.mulf %1320, %1328 : vector<8x32xf32>
    %1338 = arith.addf %1336, %1337 : vector<8x32xf32>
    %1339 = math.tanh %1338 : vector<8x32xf32>
    %1340 = arith.mulf %1334, %1339 : vector<8x32xf32>
    %1341 = arith.truncf %1340 : vector<8x32xf32> to vector<8x32xbf16>
    %c0_640 = arith.constant 0 : index
    %c0_641 = arith.constant 0 : index
    %1342 = vector.load %arg21[%c0_640, %c0_641] : memref<8x32xbf16, #tpu.memory_space<vmem>>, vector<8x32xbf16>
    tpu.vector_store %arg21[%c0_640, %c0_641], %1341 {strides = array<i32>} : memref<8x32xbf16, #tpu.memory_space<vmem>>, vector<8x32xbf16>,
    %c0_642 = arith.constant 0 : index
    %c0_643 = arith.constant 0 : index
    %1343 = vector.load %arg23[%c0_642, %c0_643] : memref<8x32xf32, #tpu.memory_space<vmem>>, vector<8x32xf32>
    tpu.vector_store %arg23[%c0_642, %c0_643], %1338 {strides = array<i32>} : memref<8x32xf32, #tpu.memory_space<vmem>>, vector<8x32xf32>,
    %1344 = arith.index_cast %c7_i32_627 : i32 to index
    %c0_644 = arith.constant 0 : index
    %c0_645 = arith.constant 0 : index
    %1345 = vector.load %arg17[%1344, %c0_644, %c0_645] : memref<8x8x32xbf16, #tpu.memory_space<vmem>>, vector<1x8x32xbf16>
    %1346 = vector.shape_cast %1345 : vector<1x8x32xbf16> to vector<8x32xbf16>
    %1347 = vector.shape_cast %1341 : vector<8x32xbf16> to vector<1x8x32xbf16>
    tpu.vector_store %arg17[%1344, %c0_644, %c0_645], %1347 {strides = array<i32>} : memref<8x8x32xbf16, #tpu.memory_space<vmem>>, vector<1x8x32xbf16>,
    %c7_i32_646 = arith.constant 7 : i32
    %1348 = arith.subi %c7_i32_646, %c7_i32_627 : i32
    %c0_647 = arith.constant 0 : index
    %c0_648 = arith.constant 0 : index
    %1349 = vector.load %arg22[%c0_647, %c0_648] : memref<8x32xbf16, #tpu.memory_space<vmem>>, vector<8x32xbf16>
    %c0_649 = arith.constant 0 : index
    %c0_650 = arith.constant 0 : index
    %1350 = vector.load %arg13[%c0_649, %c0_650] : memref<32x128xbf16, #tpu.memory_space<vmem>>, vector<32x128xbf16>
    %cst_651 = arith.constant dense<0.000000e+00> : vector<8x128xf32>
    %1351 = tpu.matmul %1349, %1350, %cst_651 {dimension_numbers = #tpu.dot_dimension_numbers<[1], [0], [0], [1], [0, 0, 1, 1], [], []>} : vector<8x32xbf16>, vector<32x128xbf16>, vector<8x128xf32> -> vector<8x128xf32>
    %1352 = arith.index_cast %1348 : i32 to index
    %c0_652 = arith.constant 0 : index
    %c0_653 = arith.constant 0 : index
    %1353 = vector.load %arg20[%1352, %c0_652, %c0_653] : memref<8x8x128xbf16, #tpu.memory_space<vmem>>, vector<1x8x128xbf16>
    %1354 = vector.shape_cast %1353 : vector<1x8x128xbf16> to vector<8x128xbf16>
    %1355 = arith.extf %1354 : vector<8x128xbf16> to vector<8x128xf32>
    %1356 = arith.addf %1351, %1355 : vector<8x128xf32>
    %1357 = vector.extract_strided_slice %1356 {offsets = [0, 0], sizes = [8, 32], strides = [1, 1]} : vector<8x128xf32> to vector<8x32xf32>
    %1358 = arith.negf %1357 : vector<8x32xf32>
    %1359 = math.exp %1358 : vector<8x32xf32>
    %cst_654 = arith.constant 1.000000e+00 : f32
    %1360 = vector.broadcast %cst_654 : f32 to vector<8x32xf32>
    %1361 = arith.addf %1360, %1359 : vector<8x32xf32>
    %1362 = arith.divf %1360, %1361 : vector<8x32xf32>
    %1363 = vector.extract_strided_slice %1356 {offsets = [0, 32], sizes = [8, 32], strides = [1, 1]} : vector<8x128xf32> to vector<8x32xf32>
    %1364 = arith.negf %1363 : vector<8x32xf32>
    %1365 = math.exp %1364 : vector<8x32xf32>
    %cst_655 = arith.constant 1.000000e+00 : f32
    %1366 = vector.broadcast %cst_655 : f32 to vector<8x32xf32>
    %1367 = arith.addf %1366, %1365 : vector<8x32xf32>
    %1368 = arith.divf %1366, %1367 : vector<8x32xf32>
    %1369 = vector.extract_strided_slice %1356 {offsets = [0, 64], sizes = [8, 32], strides = [1, 1]} : vector<8x128xf32> to vector<8x32xf32>
    %1370 = math.tanh %1369 : vector<8x32xf32>
    %1371 = vector.extract_strided_slice %1356 {offsets = [0, 96], sizes = [8, 32], strides = [1, 1]} : vector<8x128xf32> to vector<8x32xf32>
    %1372 = arith.negf %1371 : vector<8x32xf32>
    %1373 = math.exp %1372 : vector<8x32xf32>
    %cst_656 = arith.constant 1.000000e+00 : f32
    %1374 = vector.broadcast %cst_656 : f32 to vector<8x32xf32>
    %1375 = arith.addf %1374, %1373 : vector<8x32xf32>
    %1376 = arith.divf %1374, %1375 : vector<8x32xf32>
    %c0_657 = arith.constant 0 : index
    %c0_658 = arith.constant 0 : index
    %1377 = vector.load %arg24[%c0_657, %c0_658] : memref<8x32xf32, #tpu.memory_space<vmem>>, vector<8x32xf32>
    %1378 = arith.mulf %1368, %1377 : vector<8x32xf32>
    %1379 = arith.mulf %1362, %1370 : vector<8x32xf32>
    %1380 = arith.addf %1378, %1379 : vector<8x32xf32>
    %1381 = math.tanh %1380 : vector<8x32xf32>
    %1382 = arith.mulf %1376, %1381 : vector<8x32xf32>
    %1383 = arith.truncf %1382 : vector<8x32xf32> to vector<8x32xbf16>
    %c0_659 = arith.constant 0 : index
    %c0_660 = arith.constant 0 : index
    %1384 = vector.load %arg22[%c0_659, %c0_660] : memref<8x32xbf16, #tpu.memory_space<vmem>>, vector<8x32xbf16>
    tpu.vector_store %arg22[%c0_659, %c0_660], %1383 {strides = array<i32>} : memref<8x32xbf16, #tpu.memory_space<vmem>>, vector<8x32xbf16>,
    %c0_661 = arith.constant 0 : index
    %c0_662 = arith.constant 0 : index
    %1385 = vector.load %arg24[%c0_661, %c0_662] : memref<8x32xf32, #tpu.memory_space<vmem>>, vector<8x32xf32>
    tpu.vector_store %arg24[%c0_661, %c0_662], %1380 {strides = array<i32>} : memref<8x32xf32, #tpu.memory_space<vmem>>, vector<8x32xf32>,
    %1386 = arith.index_cast %1348 : i32 to index
    %c0_663 = arith.constant 0 : index
    %c0_664 = arith.constant 0 : index
    %1387 = vector.load %arg18[%1386, %c0_663, %c0_664] : memref<8x8x32xbf16, #tpu.memory_space<vmem>>, vector<1x8x32xbf16>
    %1388 = vector.shape_cast %1387 : vector<1x8x32xbf16> to vector<8x32xbf16>
    %1389 = vector.shape_cast %1383 : vector<8x32xbf16> to vector<1x8x32xbf16>
    tpu.vector_store %arg18[%1386, %c0_663, %c0_664], %1389 {strides = array<i32>} : memref<8x8x32xbf16, #tpu.memory_space<vmem>>, vector<1x8x32xbf16>,
    %c8_i32_665 = arith.constant 8 : i32
    %c0_666 = arith.constant 0 : index
    %c0_667 = arith.constant 0 : index
    %1390 = vector.load %arg14[%c0_666, %c0_667] : memref<64x128xbf16, #tpu.memory_space<vmem>>, vector<64x128xbf16>
    %c0_668 = arith.constant 0 : index
    %c0_669 = arith.constant 0 : index
    %c0_670 = arith.constant 0 : index
    %1391 = vector.load %arg17[%c0_668, %c0_669, %c0_670] : memref<8x8x32xbf16, #tpu.memory_space<vmem>>, vector<8x8x32xbf16>
    %1392 = vector.shape_cast %1391 : vector<8x8x32xbf16> to vector<64x32xbf16>
    %1393 = vector.extract_strided_slice %1390 {offsets = [0, 0], sizes = [32, 128], strides = [1, 1]} : vector<64x128xbf16> to vector<32x128xbf16>
    %cst_671 = arith.constant dense<0.000000e+00> : vector<64x128xf32>
    %1394 = tpu.matmul %1392, %1393, %cst_671 {dimension_numbers = #tpu.dot_dimension_numbers<[1], [0], [0], [1], [0, 0, 1, 1], [], []>} : vector<64x32xbf16>, vector<32x128xbf16>, vector<64x128xf32> -> vector<64x128xf32>
    %c0_672 = arith.constant 0 : index
    %c0_673 = arith.constant 0 : index
    %c0_674 = arith.constant 0 : index
    %1395 = vector.load %arg18[%c0_672, %c0_673, %c0_674] : memref<8x8x32xbf16, #tpu.memory_space<vmem>>, vector<8x8x32xbf16>
    %1396 = vector.shape_cast %1395 : vector<8x8x32xbf16> to vector<64x32xbf16>
    %1397 = vector.extract_strided_slice %1390 {offsets = [32, 0], sizes = [32, 128], strides = [1, 1]} : vector<64x128xbf16> to vector<32x128xbf16>
    %cst_675 = arith.constant dense<0.000000e+00> : vector<64x128xf32>
    %1398 = tpu.matmul %1396, %1397, %cst_675 {dimension_numbers = #tpu.dot_dimension_numbers<[1], [0], [0], [1], [0, 0, 1, 1], [], []>} : vector<64x32xbf16>, vector<32x128xbf16>, vector<64x128xf32> -> vector<64x128xf32>
    %1399 = arith.addf %1394, %1398 : vector<64x128xf32>
    %c0_676 = arith.constant 0 : index
    %c0_677 = arith.constant 0 : index
    %1400 = vector.load %arg15[%c0_676, %c0_677] : memref<1x128xf32, #tpu.memory_space<vmem>>, vector<1x128xf32>
    %1401 = vector.broadcast %1400 : vector<1x128xf32> to vector<64x128xf32>
    %1402 = arith.addf %1399, %1401 : vector<64x128xf32>
    %1403 = arith.truncf %1402 : vector<64x128xf32> to vector<64x128xbf16>
    %1404 = vector.shape_cast %1403 : vector<64x128xbf16> to vector<8x8x128xbf16>
    %c0_678 = arith.constant 0 : index
    %c0_679 = arith.constant 0 : index
    %c0_680 = arith.constant 0 : index
    %1405 = vector.load %arg16[%c0_678, %c0_679, %c0_680] : memref<8x8x128xbf16, #tpu.memory_space<vmem>>, vector<8x8x128xbf16>
    tpu.vector_store %arg16[%c0_678, %c0_679, %c0_680], %1404 {strides = array<i32>} : memref<8x8x128xbf16, #tpu.memory_space<vmem>>, vector<8x8x128xbf16>,
    return
  }
  func.func @transform_0(%arg0: i32) -> (i32, i32, i32) {
    %c0_i32 = arith.constant 0 : i32
    %c0_i32_0 = arith.constant 0 : i32
    %c0_i32_1 = arith.constant 0 : i32
    return %c0_i32, %arg0, %c0_i32_0 : i32, i32, i32
  }
  func.func @transform_1(%arg0: i32) -> (i32, i32) {
    %c0_i32 = arith.constant 0 : i32
    %c0_i32_0 = arith.constant 0 : i32
    %c0_i32_1 = arith.constant 0 : i32
    return %c0_i32, %c0_i32_0 : i32, i32
  }
  func.func @transform_2(%arg0: i32) -> (i32, i32) {
    %c0_i32 = arith.constant 0 : i32
    %c0_i32_0 = arith.constant 0 : i32
    %c0_i32_1 = arith.constant 0 : i32
    return %c0_i32, %c0_i32_0 : i32, i32
  }
  func.func @transform_3(%arg0: i32) -> (i32, i32) {
    %c0_i32 = arith.constant 0 : i32
    %c0_i32_0 = arith.constant 0 : i32
    %c0_i32_1 = arith.constant 0 : i32
    return %c0_i32, %c0_i32_0 : i32, i32
  }
  func.func @transform_4(%arg0: i32) -> (i32, i32) {
    %c0_i32 = arith.constant 0 : i32
    %c0_i32_0 = arith.constant 0 : i32
    %c0_i32_1 = arith.constant 0 : i32
    return %c0_i32, %c0_i32_0 : i32, i32
  }
  func.func @transform_5(%arg0: i32) -> (i32, i32) {
    %c0_i32 = arith.constant 0 : i32
    %c0_i32_0 = arith.constant 0 : i32
    %c0_i32_1 = arith.constant 0 : i32
    return %c0_i32, %c0_i32_0 : i32, i32
  }
  func.func @transform_6(%arg0: i32) -> (i32, i32) {
    %c0_i32 = arith.constant 0 : i32
    %c0_i32_0 = arith.constant 0 : i32
    %c0_i32_1 = arith.constant 0 : i32
    return %c0_i32, %c0_i32_0 : i32, i32
  }
  func.func @transform_7(%arg0: i32) -> (i32, i32) {
    %c0_i32 = arith.constant 0 : i32
    %c0_i32_0 = arith.constant 0 : i32
    %c0_i32_1 = arith.constant 0 : i32
    return %c0_i32, %c0_i32_0 : i32, i32
  }
  func.func @transform_8(%arg0: i32) -> (i32, i32) {
    %c0_i32 = arith.constant 0 : i32
    %c0_i32_0 = arith.constant 0 : i32
    %c0_i32_1 = arith.constant 0 : i32
    return %c0_i32, %c0_i32_0 : i32, i32
  }
  func.func @transform_9(%arg0: i32) -> (i32, i32) {
    %c0_i32 = arith.constant 0 : i32
    %c0_i32_0 = arith.constant 0 : i32
    %c0_i32_1 = arith.constant 0 : i32
    return %c0_i32, %c0_i32_0 : i32, i32
  }
  func.func @transform_10(%arg0: i32) -> (i32, i32) {
    %c0_i32 = arith.constant 0 : i32
    %c0_i32_0 = arith.constant 0 : i32
    %c0_i32_1 = arith.constant 0 : i32
    return %c0_i32, %c0_i32_0 : i32, i32
  }
  func.func @transform_11(%arg0: i32) -> (i32, i32) {
    %c0_i32 = arith.constant 0 : i32
    %c0_i32_0 = arith.constant 0 : i32
    %c0_i32_1 = arith.constant 0 : i32
    return %c0_i32, %c0_i32_0 : i32, i32
  }
  func.func @transform_12(%arg0: i32) -> (i32, i32) {
    %c0_i32 = arith.constant 0 : i32
    %c0_i32_0 = arith.constant 0 : i32
    %c0_i32_1 = arith.constant 0 : i32
    return %c0_i32, %c0_i32_0 : i32, i32
  }
  func.func @transform_13(%arg0: i32) -> (i32, i32) {
    %c0_i32 = arith.constant 0 : i32
    %c0_i32_0 = arith.constant 0 : i32
    %c0_i32_1 = arith.constant 0 : i32
    return %c0_i32, %c0_i32_0 : i32, i32
  }
  func.func @transform_14(%arg0: i32) -> (i32, i32) {
    %c0_i32 = arith.constant 0 : i32
    %c0_i32_0 = arith.constant 0 : i32
    %c0_i32_1 = arith.constant 0 : i32
    return %c0_i32, %c0_i32_0 : i32, i32
  }
  func.func @transform_15(%arg0: i32) -> (i32, i32, i32) {
    %c0_i32 = arith.constant 0 : i32
    %c0_i32_0 = arith.constant 0 : i32
    %c0_i32_1 = arith.constant 0 : i32
    return %c0_i32, %arg0, %c0_i32_0 : i32, i32, i32
  }
}

</mosaic_0001>

<llo_original>
// kernel: tpu_custom_call.1
$region0: #{tpu_custom_call.1}
  #allocation0 [shape = 'u32[]', space=smem, size = 0x4, offset = 0x4, fixed_abs, tag = 'smem constant byte address 0x4 - core index']
  #allocation1 [shape = 'u32[144,128]{1,0:T(1,128)}', space=vmem, size = 0x12000, scoped, tag = 'internal scratch']
  #allocation2 [shape = 'bf16[8,8,32]{2,1,0:T(8,128)(2,1)}', space=vmem, size = 0x4000, scoped, tag = 'scratch operand']
  #allocation3 [shape = 'bf16[8,8,32]{2,1,0:T(8,128)(2,1)}', space=vmem, size = 0x4000, scoped, tag = 'scratch operand']
  #allocation4 [shape = 'bf16[8,8,128]{2,1,0:T(8,128)(2,1)}', space=vmem, size = 0x4000, scoped, tag = 'scratch operand']
  #allocation5 [shape = 'bf16[8,8,128]{2,1,0:T(8,128)(2,1)}', space=vmem, size = 0x4000, scoped, tag = 'scratch operand']
  #allocation6 [shape = 'bf16[8,32]{1,0:T(8,128)(2,1)}', space=vmem, size = 0x800, scoped, tag = 'scratch operand']
  #allocation7 [shape = 'bf16[8,32]{1,0:T(8,128)(2,1)}', space=vmem, size = 0x800, scoped, tag = 'scratch operand']
  #allocation8 [shape = 'f32[8,32]{1,0:T(8,128)}', space=vmem, size = 0x1000, scoped, tag = 'scratch operand']
  #allocation9 [shape = 'f32[8,32]{1,0:T(8,128)}', space=vmem, size = 0x1000, scoped, tag = 'scratch operand']
  %s0 = inlined_call_operand.hbm [shape: bf16[8,8,128], index: 0, kind: input, shape index: {}]
  %s1 = inlined_call_operand.hbm [shape: bf16[128,128], index: 1, kind: input, shape index: {}]
  %s2 = inlined_call_operand.hbm [shape: bf16[128,128], index: 2, kind: input, shape index: {}]
  %s3 = inlined_call_operand.hbm [shape: bf16[64,128], index: 3, kind: input, shape index: {}]
  %s4 = inlined_call_operand.hbm [shape: bf16[64,128], index: 4, kind: input, shape index: {}]
  %s5 = inlined_call_operand.hbm [shape: f32[1,128], index: 5, kind: input, shape index: {}]
  %s6 = inlined_call_operand.hbm [shape: f32[1,128], index: 6, kind: input, shape index: {}]
  %s7 = inlined_call_operand.hbm [shape: f32[1,128], index: 7, kind: input, shape index: {}]
  %s8 = inlined_call_operand.hbm [shape: f32[1,128], index: 8, kind: input, shape index: {}]
  %s9 = inlined_call_operand.vmem [shape: bf16[32,128], index: 9, kind: input, shape index: {}]
  %s10 = inlined_call_operand.hbm [shape: bf16[32,128], index: 10, kind: input, shape index: {}]
  %s11 = inlined_call_operand.hbm [shape: bf16[32,128], index: 11, kind: input, shape index: {}]
  %s12 = inlined_call_operand.hbm [shape: bf16[32,128], index: 12, kind: input, shape index: {}]
  %s13 = inlined_call_operand.hbm [shape: bf16[64,128], index: 13, kind: input, shape index: {}]
  %s14 = inlined_call_operand.vmem [shape: f32[1,128], index: 14, kind: input, shape index: {}]
  %s15 = inlined_call_operand.hbm [shape: bf16[8,8,128], index: 15, kind: output, shape index: {}]
  %s16 = sld [smem:[#allocation0]]
  $region122: #{tpu_custom_call.1} parent=0
    _
  %s18 = ssub.s32 1, %s16
  %s19 = scalar_select 0, %s18, %s16
  $region1: #{tpu_custom_call.1} parent=0
    #allocation10 [shape = 'u8[16384]{0}', space=vmem, size = 0x4000, scoped, tag = 'input window, operand 0, single buffered']
    #allocation11 [shape = 's32[1]{0}', space=sflag, size = 0x4, scoped, tag = 'scoped memory for tpu_custom_call.1']
    #allocation12 [shape = 's32[1]{0}', space=sflag, size = 0x4, scoped, tag = 'scoped memory for tpu_custom_call.1']
    #allocation13 [shape = 'u8[32768]{0}', space=vmem, size = 0x8000, scoped, tag = 'input window, operand 1, single buffered']
    #allocation14 [shape = 's32[1]{0}', space=sflag, size = 0x4, scoped, tag = 'scoped memory for tpu_custom_call.1']
    #allocation15 [shape = 'u8[32768]{0}', space=vmem, size = 0x8000, scoped, tag = 'input window, operand 2, single buffered']
    #allocation16 [shape = 'u8[16384]{0}', space=vmem, size = 0x4000, scoped, tag = 'input window, operand 3, single buffered']
    #allocation17 [shape = 's32[1]{0}', space=sflag, size = 0x4, scoped, tag = 'scoped memory for tpu_custom_call.1']
    #allocation18 [shape = 'u8[16384]{0}', space=vmem, size = 0x4000, scoped, tag = 'input window, operand 4, single buffered']
    #allocation19 [shape = 'u8[512]{0}', space=vmem, size = 0x400, scoped, tag = 'input window, operand 5, single buffered']
    #allocation20 [shape = 's32[1]{0}', space=sflag, size = 0x4, scoped, tag = 'scoped memory for tpu_custom_call.1']
    #allocation21 [shape = 'u8[512]{0}', space=vmem, size = 0x400, scoped, tag = 'input window, operand 6, single buffered']
    #allocation22 [shape = 'u8[512]{0}', space=vmem, size = 0x400, scoped, tag = 'input window, operand 7, single buffered']
    #allocation23 [shape = 's32[1]{0}', space=sflag, size = 0x4, scoped, tag = 'scoped memory for tpu_custom_call.1']
    #allocation24 [shape = 'u8[512]{0}', space=vmem, size = 0x400, scoped, tag = 'input window, operand 8, single buffered']
    #allocation25 [shape = 'u8[8192]{0}', space=vmem, size = 0x2000, scoped, tag = 'input window, operand 10, single buffered']
    #allocation26 [shape = 's32[1]{0}', space=sflag, size = 0x4, scoped, tag = 'scoped memory for tpu_custom_call.1']
    #allocation27 [shape = 'u8[8192]{0}', space=vmem, size = 0x2000, scoped, tag = 'input window, operand 11, single buffered']
    #allocation28 [shape = 'u8[8192]{0}', space=vmem, size = 0x2000, scoped, tag = 'input window, operand 12, single buffered']
    #allocation29 [shape = 's32[1]{0}', space=sflag, size = 0x4, scoped, tag = 'scoped memory for tpu_custom_call.1']
    #allocation30 [shape = 'u8[16384]{0}', space=vmem, size = 0x4000, scoped, tag = 'input window, operand 13, single buffered']
    #allocation31 [shape = 'u8[16384]{0}', space=vmem, size = 0x4000, scoped, tag = 'output window, operand 0, single buffered']
    %20 = vsyncpa [#allocation11], 0
    %21 = vsyncpa [#allocation14], 0
    %22 = vsyncpa [#allocation17], 0
    %23 = vsyncpa [#allocation20], 0
    %24 = vsyncpa [#allocation23], 0
    %25 = vsyncpa [#allocation26], 0
    %26 = vsyncpa [#allocation29], 0
    %27 = vsyncpa [#allocation12], 0
    // Predicated region
    $region2: #{tpu_custom_call.1} parent=1 // pred_check
      _
    $region3: #{tpu_custom_call.1} parent=1 // pred_check_branch
      %29 = sbr.rel (0) target = $region5
    $region4: #{tpu_custom_call.1} parent=1 // pred_region
      %s31 = ssub.s32 512, 512
      %32 = vsyncadd [#allocation11], %s31
      %s33 = sshll.u32 [#allocation10], 4
      %s34 = int_to_ptr.vmem [resolvable:$true] %s33
      %39 = dma.hbm_to_vmem [thread:$0]  %s0, 512, %s34, [#allocation11], 64, 64, 4
    $region5: #{tpu_custom_call.1} parent=1 // pred_fallthru
      _
    // Predicated region
    $region6: #{tpu_custom_call.1} parent=1 // pred_check
      _
    $region7: #{tpu_custom_call.1} parent=1 // pred_check_branch
      %41 = sbr.rel (0) target = $region9
    $region8: #{tpu_custom_call.1} parent=1 // pred_region
      %s43 = ssub.s32 1024, 1024
      %44 = vsyncadd [#allocation14], %s43
      %s45 = sshll.u32 [#allocation13], 4
      %s46 = int_to_ptr.vmem [resolvable:$true] %s45
      %51 = dma.hbm_to_vmem [thread:$0]  %s1, 1024, %s46, [#allocation14], 64, 64, 4
    $region9: #{tpu_custom_call.1} parent=1 // pred_fallthru
      _
    // Predicated region
    $region10: #{tpu_custom_call.1} parent=1 // pred_check
      _
    $region11: #{tpu_custom_call.1} parent=1 // pred_check_branch
      %53 = sbr.rel (0) target = $region13
    $region12: #{tpu_custom_call.1} parent=1 // pred_region
      %s55 = ssub.s32 1024, 1024
      %56 = vsyncadd [#allocation14], %s55
      %s57 = sshll.u32 [#allocation15], 4
      %s58 = int_to_ptr.vmem [resolvable:$true] %s57
      %63 = dma.hbm_to_vmem [thread:$0]  %s2, 1024, %s58, [#allocation14], 64, 64, 4
    $region13: #{tpu_custom_call.1} parent=1 // pred_fallthru
      _
    // Predicated region
    $region14: #{tpu_custom_call.1} parent=1 // pred_check
      _
    $region15: #{tpu_custom_call.1} parent=1 // pred_check_branch
      %65 = sbr.rel (0) target = $region17
    $region16: #{tpu_custom_call.1} parent=1 // pred_region
      %s67 = ssub.s32 512, 512
      %68 = vsyncadd [#allocation17], %s67
      %s69 = sshll.u32 [#allocation16], 4
      %s70 = int_to_ptr.vmem [resolvable:$true] %s69
      %75 = dma.hbm_to_vmem [thread:$0]  %s3, 512, %s70, [#allocation17], 64, 64, 4
    $region17: #{tpu_custom_call.1} parent=1 // pred_fallthru
      _
    // Predicated region
    $region18: #{tpu_custom_call.1} parent=1 // pred_check
      _
    $region19: #{tpu_custom_call.1} parent=1 // pred_check_branch
      %77 = sbr.rel (0) target = $region21
    $region20: #{tpu_custom_call.1} parent=1 // pred_region
      %s79 = ssub.s32 512, 512
      %80 = vsyncadd [#allocation17], %s79
      %s81 = sshll.u32 [#allocation18], 4
      %s82 = int_to_ptr.vmem [resolvable:$true] %s81
      %87 = dma.hbm_to_vmem [thread:$0]  %s4, 512, %s82, [#allocation17], 64, 64, 4
    $region21: #{tpu_custom_call.1} parent=1 // pred_fallthru
      _
    // Predicated region
    $region22: #{tpu_custom_call.1} parent=1 // pred_check
      _
    $region23: #{tpu_custom_call.1} parent=1 // pred_check_branch
      %89 = sbr.rel (0) target = $region25
    $region24: #{tpu_custom_call.1} parent=1 // pred_region
      %s91 = ssub.s32 16, 16
      %92 = vsyncadd [#allocation20], %s91
      %s94 = sshll.u32 [#allocation19], 4
      %s95 = int_to_ptr.vmem [resolvable:$true] %s94
      %97 = dma.hbm_to_vmem [thread:$0]  %s5, 16, %s95, [#allocation20]
    $region25: #{tpu_custom_call.1} parent=1 // pred_fallthru
      _
    // Predicated region
    $region26: #{tpu_custom_call.1} parent=1 // pred_check
      _
    $region27: #{tpu_custom_call.1} parent=1 // pred_check_branch
      %99 = sbr.rel (0) target = $region29
    $region28: #{tpu_custom_call.1} parent=1 // pred_region
      %s101 = ssub.s32 16, 16
      %102 = vsyncadd [#allocation20], %s101
      %s104 = sshll.u32 [#allocation21], 4
      %s105 = int_to_ptr.vmem [resolvable:$true] %s104
      %107 = dma.hbm_to_vmem [thread:$0]  %s6, 16, %s105, [#allocation20]
    $region29: #{tpu_custom_call.1} parent=1 // pred_fallthru
      _
    // Predicated region
    $region30: #{tpu_custom_call.1} parent=1 // pred_check
      _
    $region31: #{tpu_custom_call.1} parent=1 // pred_check_branch
      %109 = sbr.rel (0) target = $region33
    $region32: #{tpu_custom_call.1} parent=1 // pred_region
      %s111 = ssub.s32 16, 16
      %112 = vsyncadd [#allocation23], %s111
      %s114 = sshll.u32 [#allocation22], 4
      %s115 = int_to_ptr.vmem [resolvable:$true] %s114
      %117 = dma.hbm_to_vmem [thread:$0]  %s7, 16, %s115, [#allocation23]
    $region33: #{tpu_custom_call.1} parent=1 // pred_fallthru
      _
    // Predicated region
    $region34: #{tpu_custom_call.1} parent=1 // pred_check
      _
    $region35: #{tpu_custom_call.1} parent=1 // pred_check_branch
      %119 = sbr.rel (0) target = $region37
    $region36: #{tpu_custom_call.1} parent=1 // pred_region
      %s121 = ssub.s32 16, 16
      %122 = vsyncadd [#allocation23], %s121
      %s124 = sshll.u32 [#allocation24], 4
      %s125 = int_to_ptr.vmem [resolvable:$true] %s124
      %127 = dma.hbm_to_vmem [thread:$0]  %s8, 16, %s125, [#allocation23]
    $region37: #{tpu_custom_call.1} parent=1 // pred_fallthru
      _
    // Predicated region
    $region38: #{tpu_custom_call.1} parent=1 // pred_check
      _
    $region39: #{tpu_custom_call.1} parent=1 // pred_check_branch
      %129 = sbr.rel (0) target = $region41
    $region40: #{tpu_custom_call.1} parent=1 // pred_region
      _
    $region41: #{tpu_custom_call.1} parent=1 // pred_fallthru
      _
    // Predicated region
    $region42: #{tpu_custom_call.1} parent=1 // pred_check
      _
    $region43: #{tpu_custom_call.1} parent=1 // pred_check_branch
      %131 = sbr.rel (0) target = $region45
    $region44: #{tpu_custom_call.1} parent=1 // pred_region
      %s133 = ssub.s32 256, 256
      %134 = vsyncadd [#allocation26], %s133
      %s135 = sshll.u32 [#allocation25], 4
      %s136 = int_to_ptr.vmem [resolvable:$true] %s135
      %141 = dma.hbm_to_vmem [thread:$0]  %s10, 256, %s136, [#allocation26], 64, 64, 4
    $region45: #{tpu_custom_call.1} parent=1 // pred_fallthru
      _
    // Predicated region
    $region46: #{tpu_custom_call.1} parent=1 // pred_check
      _
    $region47: #{tpu_custom_call.1} parent=1 // pred_check_branch
      %143 = sbr.rel (0) target = $region49
    $region48: #{tpu_custom_call.1} parent=1 // pred_region
      %s145 = ssub.s32 256, 256
      %146 = vsyncadd [#allocation26], %s145
      %s147 = sshll.u32 [#allocation27], 4
      %s148 = int_to_ptr.vmem [resolvable:$true] %s147
      %153 = dma.hbm_to_vmem [thread:$0]  %s11, 256, %s148, [#allocation26], 64, 64, 4
    $region49: #{tpu_custom_call.1} parent=1 // pred_fallthru
      _
    // Predicated region
    $region50: #{tpu_custom_call.1} parent=1 // pred_check
      _
    $region51: #{tpu_custom_call.1} parent=1 // pred_check_branch
      %155 = sbr.rel (0) target = $region53
    $region52: #{tpu_custom_call.1} parent=1 // pred_region
      %s157 = ssub.s32 256, 256
      %158 = vsyncadd [#allocation29], %s157
      %s159 = sshll.u32 [#allocation28], 4
      %s160 = int_to_ptr.vmem [resolvable:$true] %s159
      %165 = dma.hbm_to_vmem [thread:$0]  %s12, 256, %s160, [#allocation29], 64, 64, 4
    $region53: #{tpu_custom_call.1} parent=1 // pred_fallthru
      _
    // Predicated region
    $region54: #{tpu_custom_call.1} parent=1 // pred_check
      _
    $region55: #{tpu_custom_call.1} parent=1 // pred_check_branch
      %167 = sbr.rel (0) target = $region57
    $region56: #{tpu_custom_call.1} parent=1 // pred_region
      %s169 = ssub.s32 512, 512
      %170 = vsyncadd [#allocation29], %s169
      %s171 = sshll.u32 [#allocation30], 4
      %s172 = int_to_ptr.vmem [resolvable:$true] %s171
      %177 = dma.hbm_to_vmem [thread:$0]  %s13, 512, %s172, [#allocation29], 64, 64, 4
    $region57: #{tpu_custom_call.1} parent=1 // pred_fallthru
      _
    // Predicated region
    $region58: #{tpu_custom_call.1} parent=1 // pred_check
      _
    $region59: #{tpu_custom_call.1} parent=1 // pred_check_branch
      %179 = sbr.rel (0) target = $region61
    $region60: #{tpu_custom_call.1} parent=1 // pred_region
      _
    $region61: #{tpu_custom_call.1} parent=1 // pred_fallthru
      _
    // Predicated region
    $region62: #{tpu_custom_call.1} parent=1 // pred_check
      _
    $region63: #{tpu_custom_call.1} parent=1 // pred_check_branch
      %181 = sbr.rel (0) target = $region65
    $region64: #{tpu_custom_call.1} parent=1 // pred_region
      %182 = dma.done [#allocation11], 512
    $region65: #{tpu_custom_call.1} parent=1 // pred_fallthru
      _
    // Predicated region
    $region66: #{tpu_custom_call.1} parent=1 // pred_check
      _
    $region67: #{tpu_custom_call.1} parent=1 // pred_check_branch
      %184 = sbr.rel (0) target = $region69
    $region68: #{tpu_custom_call.1} parent=1 // pred_region
      %185 = dma.done [#allocation14], 1024
    $region69: #{tpu_custom_call.1} parent=1 // pred_fallthru
      _
    // Predicated region
    $region70: #{tpu_custom_call.1} parent=1 // pred_check
      _
    $region71: #{tpu_custom_call.1} parent=1 // pred_check_branch
      %187 = sbr.rel (0) target = $region73
    $region72: #{tpu_custom_call.1} parent=1 // pred_region
      %188 = dma.done [#allocation14], 1024
    $region73: #{tpu_custom_call.1} parent=1 // pred_fallthru
      _
    // Predicated region
    $region74: #{tpu_custom_call.1} parent=1 // pred_check
      _
    $region75: #{tpu_custom_call.1} parent=1 // pred_check_branch
      %190 = sbr.rel (0) target = $region77
    $region76: #{tpu_custom_call.1} parent=1 // pred_region
      %191 = dma.done [#allocation17], 512
    $region77: #{tpu_custom_call.1} parent=1 // pred_fallthru
      _
    // Predicated region
    $region78: #{tpu_custom_call.1} parent=1 // pred_check
      _
    $region79: #{tpu_custom_call.1} parent=1 // pred_check_branch
      %193 = sbr.rel (0) target = $region81
    $region80: #{tpu_custom_call.1} parent=1 // pred_region
      %194 = dma.done [#allocation17], 512
    $region81: #{tpu_custom_call.1} parent=1 // pred_fallthru
      _
    // Predicated region
    $region82: #{tpu_custom_call.1} parent=1 // pred_check
      _
    $region83: #{tpu_custom_call.1} parent=1 // pred_check_branch
      %196 = sbr.rel (0) target = $region85
    $region84: #{tpu_custom_call.1} parent=1 // pred_region
      %197 = dma.done [#allocation20], 16
    $region85: #{tpu_custom_call.1} parent=1 // pred_fallthru
      _
    // Predicated region
    $region86: #{tpu_custom_call.1} parent=1 // pred_check
      _
    $region87: #{tpu_custom_call.1} parent=1 // pred_check_branch
      %199 = sbr.rel (0) target = $region89
    $region88: #{tpu_custom_call.1} parent=1 // pred_region
      %200 = dma.done [#allocation20], 16
    $region89: #{tpu_custom_call.1} parent=1 // pred_fallthru
      _
    // Predicated region
    $region90: #{tpu_custom_call.1} parent=1 // pred_check
      _
    $region91: #{tpu_custom_call.1} parent=1 // pred_check_branch
      %202 = sbr.rel (0) target = $region93
    $region92: #{tpu_custom_call.1} parent=1 // pred_region
      %203 = dma.done [#allocation23], 16
    $region93: #{tpu_custom_call.1} parent=1 // pred_fallthru
      _
    // Predicated region
    $region94: #{tpu_custom_call.1} parent=1 // pred_check
      _
    $region95: #{tpu_custom_call.1} parent=1 // pred_check_branch
      %205 = sbr.rel (0) target = $region97
    $region96: #{tpu_custom_call.1} parent=1 // pred_region
      %206 = dma.done [#allocation23], 16
    $region97: #{tpu_custom_call.1} parent=1 // pred_fallthru
      _
    // Predicated region
    $region98: #{tpu_custom_call.1} parent=1 // pred_check
      _
    $region99: #{tpu_custom_call.1} parent=1 // pred_check_branch
      %208 = sbr.rel (0) target = $region101
    $region100: #{tpu_custom_call.1} parent=1 // pred_region
      %209 = dma.done [#allocation26], 256
    $region101: #{tpu_custom_call.1} parent=1 // pred_fallthru
      _
    // Predicated region
    $region102: #{tpu_custom_call.1} parent=1 // pred_check
      _
    $region103: #{tpu_custom_call.1} parent=1 // pred_check_branch
      %211 = sbr.rel (0) target = $region105
    $region104: #{tpu_custom_call.1} parent=1 // pred_region
      %212 = dma.done [#allocation26], 256
    $region105: #{tpu_custom_call.1} parent=1 // pred_fallthru
      _
    // Predicated region
    $region106: #{tpu_custom_call.1} parent=1 // pred_check
      _
    $region107: #{tpu_custom_call.1} parent=1 // pred_check_branch
      %214 = sbr.rel (0) target = $region109
    $region108: #{tpu_custom_call.1} parent=1 // pred_region
      %215 = dma.done [#allocation29], 256
    $region109: #{tpu_custom_call.1} parent=1 // pred_fallthru
      _
    // Predicated region
    $region110: #{tpu_custom_call.1} parent=1 // pred_check
      _
    $region111: #{tpu_custom_call.1} parent=1 // pred_check_branch
      %217 = sbr.rel (0) target = $region113
    $region112: #{tpu_custom_call.1} parent=1 // pred_region
      %218 = dma.done [#allocation29], 512
    $region113: #{tpu_custom_call.1} parent=1 // pred_fallthru
      _
    %v220 = vld [vmem:[#allocation10] sm:$0xf]
    %v221 = vld [vmem:[#allocation10 + $0x4] sm:$0xf]
    %v222 = vld [vmem:[#allocation10 + $0x8] sm:$0xf]
    %v223 = vld [vmem:[#allocation10 + $0xc] sm:$0xf]
    %v224 = vld [vmem:[#allocation10 + $0x10] sm:$0xf]
    %v225 = vld [vmem:[#allocation10 + $0x14] sm:$0xf]
    %v226 = vld [vmem:[#allocation10 + $0x18] sm:$0xf]
    %v227 = vld [vmem:[#allocation10 + $0x1c] sm:$0xf]
    %v228 = vld [vmem:[#allocation13] sm:$0xf]
    %v229 = vld [vmem:[#allocation13 + $0x4] sm:$0xf]
    %v230 = vld [vmem:[#allocation13 + $0x8] sm:$0xf]
    %v231 = vld [vmem:[#allocation13 + $0xc] sm:$0xf]
    %v232 = vld [vmem:[#allocation13 + $0x10] sm:$0xf]
    %v233 = vld [vmem:[#allocation13 + $0x14] sm:$0xf]
    %v234 = vld [vmem:[#allocation13 + $0x18] sm:$0xf]
    %v235 = vld [vmem:[#allocation13 + $0x1c] sm:$0xf]
    %v236 = vld [vmem:[#allocation13 + $0x20] sm:$0xf]
    %v237 = vld [vmem:[#allocation13 + $0x24] sm:$0xf]
    %v238 = vld [vmem:[#allocation13 + $0x28] sm:$0xf]
    %v239 = vld [vmem:[#allocation13 + $0x2c] sm:$0xf]
    %v240 = vld [vmem:[#allocation13 + $0x30] sm:$0xf]
    %v241 = vld [vmem:[#allocation13 + $0x34] sm:$0xf]
    %v242 = vld [vmem:[#allocation13 + $0x38] sm:$0xf]
    %v243 = vld [vmem:[#allocation13 + $0x3c] sm:$0xf]
    %v244 = vld [vmem:[#allocation19] sm:$0x1]
    %v246 = vlaneseq
    %v247 = vshrl.u32 %v246, 7
    %v248 = vsub.s32 0, %v247
    %v249 = vrot.slane %v244, %v248
    %v259 = vunpack.c.l.b16 %v220
    %v260 = vunpack.c.l.b16 %v221
    %v261 = vunpack.c.l.b16 %v222
    %v262 = vunpack.c.l.b16 %v223
    %v263 = vunpack.c.l.b16 %v224
    %v264 = vunpack.c.l.b16 %v225
    %v265 = vunpack.c.l.b16 %v226
    %v266 = vunpack.c.l.b16 %v227
    %v267 = vpack.c.b16 %v260, %v259
    %v268 = vpack.c.b16 %v262, %v261
    %v269 = vpack.c.b16 %v264, %v263
    %v270 = vpack.c.b16 %v266, %v265
    %v291 = vunpack.c.l.b16 %v228
    %v292 = vunpack.c.l.b16 %v229
    %v293 = vunpack.c.l.b16 %v230
    %v294 = vunpack.c.l.b16 %v231
    %v295 = vunpack.c.l.b16 %v232
    %v296 = vunpack.c.l.b16 %v233
    %v297 = vunpack.c.l.b16 %v234
    %v298 = vunpack.c.l.b16 %v235
    %v299 = vunpack.c.l.b16 %v236
    %v300 = vunpack.c.l.b16 %v237
    %v301 = vunpack.c.l.b16 %v238
    %v302 = vunpack.c.l.b16 %v239
    %v303 = vunpack.c.l.b16 %v240
    %v304 = vunpack.c.l.b16 %v241
    %v305 = vunpack.c.l.b16 %v242
    %v306 = vunpack.c.l.b16 %v243
    %v307 = vpack.c.b16 %v292, %v291
    %v308 = vpack.c.b16 %v294, %v293
    %v309 = vpack.c.b16 %v296, %v295
    %v310 = vpack.c.b16 %v298, %v297
    %v311 = vpack.c.b16 %v300, %v299
    %v312 = vpack.c.b16 %v302, %v301
    %v313 = vpack.c.b16 %v304, %v303
    %v314 = vpack.c.b16 %v306, %v305
    %323 = vmatprep.subr.bf16.mxu0 0
    %324 = vmatpush1.bf16.msra.mxu0 %v314
    %325 = vmatprep.subr.bf16.mxu0 0
    %326 = vmatpush1.bf16.msra.mxu0 %v313
    %327 = vmatprep.subr.bf16.mxu0 0
    %328 = vmatpush1.bf16.msra.mxu0 %v312
    %329 = vmatprep.subr.bf16.mxu0 0
    %330 = vmatpush1.bf16.msra.mxu0 %v311
    %331 = vmatprep.subr.bf16.mxu0 0
    %332 = vmatpush1.bf16.msra.mxu0 %v310
    %333 = vmatprep.subr.bf16.mxu0 0
    %334 = vmatpush1.bf16.msra.mxu0 %v309
    %335 = vmatprep.subr.bf16.mxu0 0
    %336 = vmatpush1.bf16.msra.mxu0 %v308
    %337 = vmatprep.subr.bf16.mxu0 0
    %338 = vmatpush1.bf16.msra.mxu0 %v307
    %339 = vmatprep.subr.bf16.mxu0 0
    %340 = vmatpush2.bf16.msra.mxu0 0
    %341 = vmatprep.subr.bf16.mxu0 0
    %342 = vmatpush2.bf16.msra.mxu0 0
    %343 = vmatprep.subr.bf16.mxu0 0
    %344 = vmatpush2.bf16.msra.mxu0 0
    %345 = vmatprep.subr.bf16.mxu0 0
    %346 = vmatpush2.bf16.msra.mxu0 0
    %347 = vmatprep.subr.bf16.mxu0 0
    %348 = vmatpush2.bf16.msra.mxu0 0
    %349 = vmatprep.subr.bf16.mxu0 0
    %350 = vmatpush2.bf16.msra.mxu0 0
    %351 = vmatprep.subr.bf16.mxu0 0
    %352 = vmatpush2.bf16.msra.mxu0 0
    %353 = vmatprep.subr.bf16.mxu0 0
    %354 = vmatpush2.bf16.msra.mxu0 0
    %355 = vmatprep.mubr.bf16.mxu0 0
    %356 = vmatmul.mubr.bf16.gmra.mxu0 %v267
    %v357 = vpop.f32.mrf.mxu0
    %v358 = vadd.f32 %v249, %v357
    %v359 = vpop.f32.mrf.mxu0
    %v360 = vpop.f32.mrf.mxu0
    %v361 = vadd.f32 %v249, %v360
    %v362 = vpop.f32.mrf.mxu0
    %363 = vmatprep.mubr.bf16.mxu0 0
    %364 = vmatmul.mubr.bf16.gmra.mxu0 %v268
    %v365 = vpop.f32.mrf.mxu0
    %v366 = vadd.f32 %v249, %v365
    %v367 = vpop.f32.mrf.mxu0
    %v368 = vpop.f32.mrf.mxu0
    %v369 = vadd.f32 %v249, %v368
    %v370 = vpop.f32.mrf.mxu0
    %371 = vmatprep.mubr.bf16.mxu0 0
    %372 = vmatmul.mubr.bf16.gmra.mxu0 %v269
    %v373 = vpop.f32.mrf.mxu0
    %v374 = vadd.f32 %v249, %v373
    %v375 = vpop.f32.mrf.mxu0
    %v376 = vpop.f32.mrf.mxu0
    %v377 = vadd.f32 %v249, %v376
    %v378 = vpop.f32.mrf.mxu0
    %379 = vmatprep.mubr.bf16.mxu0 0
    %380 = vmatmul.mubr.bf16.gmra.mxu0 %v270
    %v381 = vpop.f32.mrf.mxu0
    %v382 = vadd.f32 %v249, %v381
    %v383 = vpop.f32.mrf.mxu0
    %v384 = vpop.f32.mrf.mxu0
    %v385 = vadd.f32 %v249, %v384
    %v386 = vpop.f32.mrf.mxu0
    %387 = vdwg.mxu0
    %v388 = vpack.c.bf16 %v361, %v358
    %v389 = vpack.c.bf16 %v369, %v366
    %v390 = vpack.c.bf16 %v377, %v374
    %v391 = vpack.c.bf16 %v385, %v382
    %v396 = vunpack.c.l.b16 %v388
    %v397 = vunpack.c.h.b16 %v388
    %v398 = vunpack.c.l.b16 %v389
    %v399 = vunpack.c.h.b16 %v389
    %v400 = vunpack.c.l.b16 %v390
    %v401 = vunpack.c.h.b16 %v390
    %v402 = vunpack.c.l.b16 %v391
    %v403 = vunpack.c.h.b16 %v391
    %v404 = vpack.c.b16 %v396, %v396
    %v405 = vpack.c.b16 %v397, %v397
    %v406 = vpack.c.b16 %v398, %v398
    %v407 = vpack.c.b16 %v399, %v399
    %v408 = vpack.c.b16 %v400, %v400
    %v409 = vpack.c.b16 %v401, %v401
    %v410 = vpack.c.b16 %v402, %v402
    %v411 = vpack.c.b16 %v403, %v403
    %420 = vst [vmem:[#allocation4] sm:$0xf] %v404
    %421 = vst [vmem:[#allocation4 + $0x4] sm:$0xf] %v405
    %422 = vst [vmem:[#allocation4 + $0x8] sm:$0xf] %v406
    %423 = vst [vmem:[#allocation4 + $0xc] sm:$0xf] %v407
    %424 = vst [vmem:[#allocation4 + $0x10] sm:$0xf] %v408
    %425 = vst [vmem:[#allocation4 + $0x14] sm:$0xf] %v409
    %426 = vst [vmem:[#allocation4 + $0x18] sm:$0xf] %v410
    %427 = vst [vmem:[#allocation4 + $0x1c] sm:$0xf] %v411
    %v428 = vld [vmem:[#allocation15] sm:$0xf]
    %v429 = vld [vmem:[#allocation15 + $0x4] sm:$0xf]
    %v430 = vld [vmem:[#allocation15 + $0x8] sm:$0xf]
    %v431 = vld [vmem:[#allocation15 + $0xc] sm:$0xf]
    %v432 = vld [vmem:[#allocation15 + $0x10] sm:$0xf]
    %v433 = vld [vmem:[#allocation15 + $0x14] sm:$0xf]
    %v434 = vld [vmem:[#allocation15 + $0x18] sm:$0xf]
    %v435 = vld [vmem:[#allocation15 + $0x1c] sm:$0xf]
    %v436 = vld [vmem:[#allocation15 + $0x20] sm:$0xf]
    %v437 = vld [vmem:[#allocation15 + $0x24] sm:$0xf]
    %v438 = vld [vmem:[#allocation15 + $0x28] sm:$0xf]
    %v439 = vld [vmem:[#allocation15 + $0x2c] sm:$0xf]
    %v440 = vld [vmem:[#allocation15 + $0x30] sm:$0xf]
    %v441 = vld [vmem:[#allocation15 + $0x34] sm:$0xf]
    %v442 = vld [vmem:[#allocation15 + $0x38] sm:$0xf]
    %v443 = vld [vmem:[#allocation15 + $0x3c] sm:$0xf]
    %v444 = vld [vmem:[#allocation21] sm:$0x1]
    %v446 = vlaneseq
    %v447 = vshrl.u32 %v446, 7
    %v448 = vsub.s32 0, %v447
    %v449 = vrot.slane %v444, %v448
    %v467 = vunpack.c.l.b16 %v428
    %v468 = vunpack.c.l.b16 %v429
    %v469 = vunpack.c.l.b16 %v430
    %v470 = vunpack.c.l.b16 %v431
    %v471 = vunpack.c.l.b16 %v432
    %v472 = vunpack.c.l.b16 %v433
    %v473 = vunpack.c.l.b16 %v434
    %v474 = vunpack.c.l.b16 %v435
    %v475 = vunpack.c.l.b16 %v436
    %v476 = vunpack.c.l.b16 %v437
    %v477 = vunpack.c.l.b16 %v438
    %v478 = vunpack.c.l.b16 %v439
    %v479 = vunpack.c.l.b16 %v440
    %v480 = vunpack.c.l.b16 %v441
    %v481 = vunpack.c.l.b16 %v442
    %v482 = vunpack.c.l.b16 %v443
    %v483 = vpack.c.b16 %v468, %v467
    %v484 = vpack.c.b16 %v470, %v469
    %v485 = vpack.c.b16 %v472, %v471
    %v486 = vpack.c.b16 %v474, %v473
    %v487 = vpack.c.b16 %v476, %v475
    %v488 = vpack.c.b16 %v478, %v477
    %v489 = vpack.c.b16 %v480, %v479
    %v490 = vpack.c.b16 %v482, %v481
    %499 = vmatprep.subr.bf16.mxu0 0
    %500 = vmatpush1.bf16.msra.mxu0 %v490
    %501 = vmatprep.subr.bf16.mxu0 0
    %502 = vmatpush1.bf16.msra.mxu0 %v489
    %503 = vmatprep.subr.bf16.mxu0 0
    %504 = vmatpush1.bf16.msra.mxu0 %v488
    %505 = vmatprep.subr.bf16.mxu0 0
    %506 = vmatpush1.bf16.msra.mxu0 %v487
    %507 = vmatprep.subr.bf16.mxu0 0
    %508 = vmatpush1.bf16.msra.mxu0 %v486
    %509 = vmatprep.subr.bf16.mxu0 0
    %510 = vmatpush1.bf16.msra.mxu0 %v485
    %511 = vmatprep.subr.bf16.mxu0 0
    %512 = vmatpush1.bf16.msra.mxu0 %v484
    %513 = vmatprep.subr.bf16.mxu0 0
    %514 = vmatpush1.bf16.msra.mxu0 %v483
    %515 = vmatprep.subr.bf16.mxu0 0
    %516 = vmatpush2.bf16.msra.mxu0 0
    %517 = vmatprep.subr.bf16.mxu0 0
    %518 = vmatpush2.bf16.msra.mxu0 0
    %519 = vmatprep.subr.bf16.mxu0 0
    %520 = vmatpush2.bf16.msra.mxu0 0
    %521 = vmatprep.subr.bf16.mxu0 0
    %522 = vmatpush2.bf16.msra.mxu0 0
    %523 = vmatprep.subr.bf16.mxu0 0
    %524 = vmatpush2.bf16.msra.mxu0 0
    %525 = vmatprep.subr.bf16.mxu0 0
    %526 = vmatpush2.bf16.msra.mxu0 0
    %527 = vmatprep.subr.bf16.mxu0 0
    %528 = vmatpush2.bf16.msra.mxu0 0
    %529 = vmatprep.subr.bf16.mxu0 0
    %530 = vmatpush2.bf16.msra.mxu0 0
    %531 = vmatprep.mubr.bf16.mxu0 0
    %532 = vmatmul.mubr.bf16.gmra.mxu0 %v267
    %v533 = vpop.f32.mrf.mxu0
    %v534 = vadd.f32 %v449, %v533
    %v535 = vpop.f32.mrf.mxu0
    %v536 = vpop.f32.mrf.mxu0
    %v537 = vadd.f32 %v449, %v536
    %v538 = vpop.f32.mrf.mxu0
    %539 = vmatprep.mubr.bf16.mxu0 0
    %540 = vmatmul.mubr.bf16.gmra.mxu0 %v268
    %v541 = vpop.f32.mrf.mxu0
    %v542 = vadd.f32 %v449, %v541
    %v543 = vpop.f32.mrf.mxu0
    %v544 = vpop.f32.mrf.mxu0
    %v545 = vadd.f32 %v449, %v544
    %v546 = vpop.f32.mrf.mxu0
    %547 = vmatprep.mubr.bf16.mxu0 0
    %548 = vmatmul.mubr.bf16.gmra.mxu0 %v269
    %v549 = vpop.f32.mrf.mxu0
    %v550 = vadd.f32 %v449, %v549
    %v551 = vpop.f32.mrf.mxu0
    %v552 = vpop.f32.mrf.mxu0
    %v553 = vadd.f32 %v449, %v552
    %v554 = vpop.f32.mrf.mxu0
    %555 = vmatprep.mubr.bf16.mxu0 0
    %556 = vmatmul.mubr.bf16.gmra.mxu0 %v270
    %v557 = vpop.f32.mrf.mxu0
    %v558 = vadd.f32 %v449, %v557
    %v559 = vpop.f32.mrf.mxu0
    %v560 = vpop.f32.mrf.mxu0
    %v561 = vadd.f32 %v449, %v560
    %v562 = vpop.f32.mrf.mxu0
    %563 = vdwg.mxu0
    %v564 = vpack.c.bf16 %v537, %v534
    %v565 = vpack.c.bf16 %v545, %v542
    %v566 = vpack.c.bf16 %v553, %v550
    %v567 = vpack.c.bf16 %v561, %v558
    %v572 = vunpack.c.l.b16 %v564
    %v573 = vunpack.c.h.b16 %v564
    %v574 = vunpack.c.l.b16 %v565
    %v575 = vunpack.c.h.b16 %v565
    %v576 = vunpack.c.l.b16 %v566
    %v577 = vunpack.c.h.b16 %v566
    %v578 = vunpack.c.l.b16 %v567
    %v579 = vunpack.c.h.b16 %v567
    %v580 = vpack.c.b16 %v572, %v572
    %v581 = vpack.c.b16 %v573, %v573
    %v582 = vpack.c.b16 %v574, %v574
    %v583 = vpack.c.b16 %v575, %v575
    %v584 = vpack.c.b16 %v576, %v576
    %v585 = vpack.c.b16 %v577, %v577
    %v586 = vpack.c.b16 %v578, %v578
    %v587 = vpack.c.b16 %v579, %v579
    %596 = vst [vmem:[#allocation5] sm:$0xf] %v580
    %597 = vst [vmem:[#allocation5 + $0x4] sm:$0xf] %v581
    %598 = vst [vmem:[#allocation5 + $0x8] sm:$0xf] %v582
    %599 = vst [vmem:[#allocation5 + $0xc] sm:$0xf] %v583
    %600 = vst [vmem:[#allocation5 + $0x10] sm:$0xf] %v584
    %601 = vst [vmem:[#allocation5 + $0x14] sm:$0xf] %v585
    %602 = vst [vmem:[#allocation5 + $0x18] sm:$0xf] %v586
    %603 = vst [vmem:[#allocation5 + $0x1c] sm:$0xf] %v587
    %vm604 = vcmask 257024
    %605 = vst.msk [vmem:[#allocation6] sm:$0xf] %vm604, 0
    %vm606 = vcmask 261120
    %607 = vst.msk [vmem:[#allocation8] sm:$0xff] %vm606, 0.0
    %608 = vst.msk [vmem:[#allocation7] sm:$0xf] %vm604, 0
    %609 = vst.msk [vmem:[#allocation9] sm:$0xff] %vm606, 0.0
    %v610 = vld [vmem:[#allocation6] sm:$0xf]
    %v611 = vld [vmem:[%s9] sm:$0xf]
    %v612 = vld [vmem:[%s9 + $0x4] sm:$0xf]
    %v613 = vld [vmem:[%s9 + $0x8] sm:$0xf]
    %v614 = vld [vmem:[%s9 + $0xc] sm:$0xf]
    %v615 = vld [vmem:[#allocation4] sm:$0xf]
    %v616 = vunpack.c.l.bf16 %v615
    %v621 = vunpack.c.l.b16 %v611
    %v622 = vunpack.c.l.b16 %v612
    %v623 = vunpack.c.l.b16 %v613
    %v624 = vunpack.c.l.b16 %v614
    %v625 = vpack.c.b16 %v622, %v621
    %v626 = vpack.c.b16 %v624, %v623
    %v630 = vsel %vm606, %v610, 0
    %632 = vmatprep.subr.bf16.mxu0 0
    %633 = vmatpush1.bf16.msra.mxu0 0
    %634 = vmatprep.subr.bf16.mxu0 0
    %635 = vmatpush1.bf16.msra.mxu0 0
    %636 = vmatprep.subr.bf16.mxu0 0
    %637 = vmatpush1.bf16.msra.mxu0 0
    %638 = vmatprep.subr.bf16.mxu0 0
    %639 = vmatpush1.bf16.msra.mxu0 0
    %640 = vmatprep.subr.bf16.mxu0 0
    %641 = vmatpush1.bf16.msra.mxu0 0
    %642 = vmatprep.subr.bf16.mxu0 0
    %643 = vmatpush1.bf16.msra.mxu0 0
    %644 = vmatprep.subr.bf16.mxu0 0
    %645 = vmatpush1.bf16.msra.mxu0 %v626
    %646 = vmatprep.subr.bf16.mxu0 0
    %647 = vmatpush1.bf16.msra.mxu0 %v625
    %648 = vmatprep.subr.bf16.mxu0 0
    %649 = vmatpush2.bf16.msra.mxu0 0
    %650 = vmatprep.subr.bf16.mxu0 0
    %651 = vmatpush2.bf16.msra.mxu0 0
    %652 = vmatprep.subr.bf16.mxu0 0
    %653 = vmatpush2.bf16.msra.mxu0 0
    %654 = vmatprep.subr.bf16.mxu0 0
    %655 = vmatpush2.bf16.msra.mxu0 0
    %656 = vmatprep.subr.bf16.mxu0 0
    %657 = vmatpush2.bf16.msra.mxu0 0
    %658 = vmatprep.subr.bf16.mxu0 0
    %659 = vmatpush2.bf16.msra.mxu0 0
    %660 = vmatprep.subr.bf16.mxu0 0
    %661 = vmatpush2.bf16.msra.mxu0 0
    %662 = vmatprep.subr.bf16.mxu0 0
    %663 = vmatpush2.bf16.msra.mxu0 0
    %664 = vmatprep.mubr.bf16.mxu0 0
    %665 = vmatmul.mubr.bf16.gmra.mxu0 %v630
    %v666 = vpop.f32.mrf.mxu0
    %v667 = vadd.f32 %v616, %v666
    %v668 = vpop.f32.mrf.mxu0
    %v669 = vpop.f32.mrf.mxu0
    %v670 = vpop.f32.mrf.mxu0
    %671 = vdwg.mxu0
    %v672 = vxor.u32 %v667, 2147483648
    %v673 = vmul.f32 %v672, 1.442695
    %v674 = vpow.pop %v673
    %v675 = vadd.f32 %v674, 1.0
    %v676 = vrcp.pop %v675
    %v677 = vmul.f32 1.0, %v676
    %v678 = vtanh.pop %v667
    %v679 = vld [vmem:[#allocation8] sm:$0xff]
    %681 = vrot.lane.b32.xlu0 %v679, 32
    %v682 = vpop.permute.xlu0 %681
    %v684 = vmul.f32 %v677, %v682
    %686 = vrot.lane.b32.xlu0 %v678, 64
    %v687 = vpop.permute.xlu0 %686
    %v689 = vmul.f32 %v677, %v687
    %691 = vrot.lane.b32.xlu0 %v689, 32
    %v692 = vpop.permute.xlu0 %691
    %v694 = vadd.f32 %v684, %v692
    %v695 = vtanh.pop %v694
    %697 = vrot.lane.b32.xlu0 %v695, 64
    %v698 = vpop.permute.xlu0 %697
    %v700 = vmul.f32 %v677, %v698
    %v701 = vpack.c.bf16 %v700, %v700
    %v703 = vunpack.c.l.b16 %v701
    %v704 = vpack.c.b16 %v703, %v703
    %705 = vrot.lane.b32.xlu0 %v704, 32
    %v706 = vpop.permute.xlu0 %705
    %708 = vst.msk [vmem:[#allocation6] sm:$0xf] %vm604, %v706
    %710 = vrot.lane.b32.xlu0 %v694, 96
    %v711 = vpop.permute.xlu0 %710
    %713 = vst.msk [vmem:[#allocation8] sm:$0xff] %vm606, %v711
    %714 = vst.msk [vmem:[#allocation2] sm:$0xf] %vm604, %v706
    %v715 = vld [vmem:[#allocation7] sm:$0xf]
    %v716 = vld [vmem:[#allocation25] sm:$0xf]
    %v717 = vld [vmem:[#allocation25 + $0x4] sm:$0xf]
    %v718 = vld [vmem:[#allocation25 + $0x8] sm:$0xf]
    %v719 = vld [vmem:[#allocation25 + $0xc] sm:$0xf]
    %s720 = scalar_lea.vmem [#allocation5], 28
    %v721 = vld [vmem:[%s720] sm:$0xf]
    %v722 = vunpack.c.l.bf16 %v721
    %v727 = vunpack.c.l.b16 %v716
    %v728 = vunpack.c.l.b16 %v717
    %v729 = vunpack.c.l.b16 %v718
    %v730 = vunpack.c.l.b16 %v719
    %v731 = vpack.c.b16 %v728, %v727
    %v732 = vpack.c.b16 %v730, %v729
    %v736 = vsel %vm606, %v715, 0
    %738 = vmatprep.subr.bf16.mxu0 0
    %739 = vmatpush1.bf16.msra.mxu0 0
    %740 = vmatprep.subr.bf16.mxu0 0
    %741 = vmatpush1.bf16.msra.mxu0 0
    %742 = vmatprep.subr.bf16.mxu0 0
    %743 = vmatpush1.bf16.msra.mxu0 0
    %744 = vmatprep.subr.bf16.mxu0 0
    %745 = vmatpush1.bf16.msra.mxu0 0
    %746 = vmatprep.subr.bf16.mxu0 0
    %747 = vmatpush1.bf16.msra.mxu0 0
    %748 = vmatprep.subr.bf16.mxu0 0
    %749 = vmatpush1.bf16.msra.mxu0 0
    %750 = vmatprep.subr.bf16.mxu0 0
    %751 = vmatpush1.bf16.msra.mxu0 %v732
    %752 = vmatprep.subr.bf16.mxu0 0
    %753 = vmatpush1.bf16.msra.mxu0 %v731
    %754 = vmatprep.subr.bf16.mxu0 0
    %755 = vmatpush2.bf16.msra.mxu0 0
    %756 = vmatprep.subr.bf16.mxu0 0
    %757 = vmatpush2.bf16.msra.mxu0 0
    %758 = vmatprep.subr.bf16.mxu0 0
    %759 = vmatpush2.bf16.msra.mxu0 0
    %760 = vmatprep.subr.bf16.mxu0 0
    %761 = vmatpush2.bf16.msra.mxu0 0
    %762 = vmatprep.subr.bf16.mxu0 0
    %763 = vmatpush2.bf16.msra.mxu0 0
    %764 = vmatprep.subr.bf16.mxu0 0
    %765 = vmatpush2.bf16.msra.mxu0 0
    %766 = vmatprep.subr.bf16.mxu0 0
    %767 = vmatpush2.bf16.msra.mxu0 0
    %768 = vmatprep.subr.bf16.mxu0 0
    %769 = vmatpush2.bf16.msra.mxu0 0
    %770 = vmatprep.mubr.bf16.mxu0 0
    %771 = vmatmul.mubr.bf16.gmra.mxu0 %v736
    %v772 = vpop.f32.mrf.mxu0
    %v773 = vadd.f32 %v722, %v772
    %v774 = vpop.f32.mrf.mxu0
    %v775 = vpop.f32.mrf.mxu0
    %v776 = vpop.f32.mrf.mxu0
    %777 = vdwg.mxu0
    %v778 = vxor.u32 %v773, 2147483648
    %v779 = vmul.f32 %v778, 1.442695
    %v780 = vpow.pop %v779
    %v781 = vadd.f32 %v780, 1.0
    %v782 = vrcp.pop %v781
    %v783 = vmul.f32 1.0, %v782
    %v784 = vtanh.pop %v773
    %v785 = vld [vmem:[#allocation9] sm:$0xff]
    %787 = vrot.lane.b32.xlu0 %v785, 32
    %v788 = vpop.permute.xlu0 %787
    %v790 = vmul.f32 %v783, %v788
    %792 = vrot.lane.b32.xlu0 %v784, 64
    %v793 = vpop.permute.xlu0 %792
    %v795 = vmul.f32 %v783, %v793
    %797 = vrot.lane.b32.xlu0 %v795, 32
    %v798 = vpop.permute.xlu0 %797
    %v800 = vadd.f32 %v790, %v798
    %v801 = vtanh.pop %v800
    %803 = vrot.lane.b32.xlu0 %v801, 64
    %v804 = vpop.permute.xlu0 %803
    %v806 = vmul.f32 %v783, %v804
    %v807 = vpack.c.bf16 %v806, %v806
    %v809 = vunpack.c.l.b16 %v807
    %v810 = vpack.c.b16 %v809, %v809
    %811 = vrot.lane.b32.xlu0 %v810, 32
    %v812 = vpop.permute.xlu0 %811
    %814 = vst.msk [vmem:[#allocation7] sm:$0xf] %vm604, %v812
    %816 = vrot.lane.b32.xlu0 %v800, 96
    %v817 = vpop.permute.xlu0 %816
    %819 = vst.msk [vmem:[#allocation9] sm:$0xff] %vm606, %v817
    %s820 = scalar_lea.vmem [#allocation3], 28
    %821 = vst.msk [vmem:[%s820] sm:$0xf] %vm604, %v812
    %v822 = vld [vmem:[#allocation6] sm:$0xf]
    %v823 = vld [vmem:[%s9] sm:$0xf]
    %v824 = vld [vmem:[%s9 + $0x4] sm:$0xf]
    %v825 = vld [vmem:[%s9 + $0x8] sm:$0xf]
    %v826 = vld [vmem:[%s9 + $0xc] sm:$0xf]
    %s827 = scalar_lea.vmem [#allocation4], 4
    %v828 = vld [vmem:[%s827] sm:$0xf]
    %v829 = vunpack.c.l.bf16 %v828
    %v834 = vunpack.c.l.b16 %v823
    %v835 = vunpack.c.l.b16 %v824
    %v836 = vunpack.c.l.b16 %v825
    %v837 = vunpack.c.l.b16 %v826
    %v838 = vpack.c.b16 %v835, %v834
    %v839 = vpack.c.b16 %v837, %v836
    %v843 = vsel %vm606, %v822, 0
    %845 = vmatprep.subr.bf16.mxu0 0
    %846 = vmatpush1.bf16.msra.mxu0 0
    %847 = vmatprep.subr.bf16.mxu0 0
    %848 = vmatpush1.bf16.msra.mxu0 0
    %849 = vmatprep.subr.bf16.mxu0 0
    %850 = vmatpush1.bf16.msra.mxu0 0
    %851 = vmatprep.subr.bf16.mxu0 0
    %852 = vmatpush1.bf16.msra.mxu0 0
    %853 = vmatprep.subr.bf16.mxu0 0
    %854 = vmatpush1.bf16.msra.mxu0 0
    %855 = vmatprep.subr.bf16.mxu0 0
    %856 = vmatpush1.bf16.msra.mxu0 0
    %857 = vmatprep.subr.bf16.mxu0 0
    %858 = vmatpush1.bf16.msra.mxu0 %v839
    %859 = vmatprep.subr.bf16.mxu0 0
    %860 = vmatpush1.bf16.msra.mxu0 %v838
    %861 = vmatprep.subr.bf16.mxu0 0
    %862 = vmatpush2.bf16.msra.mxu0 0
    %863 = vmatprep.subr.bf16.mxu0 0
    %864 = vmatpush2.bf16.msra.mxu0 0
    %865 = vmatprep.subr.bf16.mxu0 0
    %866 = vmatpush2.bf16.msra.mxu0 0
    %867 = vmatprep.subr.bf16.mxu0 0
    %868 = vmatpush2.bf16.msra.mxu0 0
    %869 = vmatprep.subr.bf16.mxu0 0
    %870 = vmatpush2.bf16.msra.mxu0 0
    %871 = vmatprep.subr.bf16.mxu0 0
    %872 = vmatpush2.bf16.msra.mxu0 0
    %873 = vmatprep.subr.bf16.mxu0 0
    %874 = vmatpush2.bf16.msra.mxu0 0
    %875 = vmatprep.subr.bf16.mxu0 0
    %876 = vmatpush2.bf16.msra.mxu0 0
    %877 = vmatprep.mubr.bf16.mxu0 0
    %878 = vmatmul.mubr.bf16.gmra.mxu0 %v843
    %v879 = vpop.f32.mrf.mxu0
    %v880 = vadd.f32 %v829, %v879
    %v881 = vpop.f32.mrf.mxu0
    %v882 = vpop.f32.mrf.mxu0
    %v883 = vpop.f32.mrf.mxu0
    %884 = vdwg.mxu0
    %v885 = vxor.u32 %v880, 2147483648
    %v886 = vmul.f32 %v885, 1.442695
    %v887 = vpow.pop %v886
    %v888 = vadd.f32 %v887, 1.0
    %v889 = vrcp.pop %v888
    %v890 = vmul.f32 1.0, %v889
    %v891 = vtanh.pop %v880
    %v892 = vld [vmem:[#allocation8] sm:$0xff]
    %894 = vrot.lane.b32.xlu0 %v892, 32
    %v895 = vpop.permute.xlu0 %894
    %v897 = vmul.f32 %v890, %v895
    %899 = vrot.lane.b32.xlu0 %v891, 64
    %v900 = vpop.permute.xlu0 %899
    %v902 = vmul.f32 %v890, %v900
    %904 = vrot.lane.b32.xlu0 %v902, 32
    %v905 = vpop.permute.xlu0 %904
    %v907 = vadd.f32 %v897, %v905
    %v908 = vtanh.pop %v907
    %910 = vrot.lane.b32.xlu0 %v908, 64
    %v911 = vpop.permute.xlu0 %910
    %v913 = vmul.f32 %v890, %v911
    %v914 = vpack.c.bf16 %v913, %v913
    %v916 = vunpack.c.l.b16 %v914
    %v917 = vpack.c.b16 %v916, %v916
    %918 = vrot.lane.b32.xlu0 %v917, 32
    %v919 = vpop.permute.xlu0 %918
    %921 = vst.msk [vmem:[#allocation6] sm:$0xf] %vm604, %v919
    %923 = vrot.lane.b32.xlu0 %v907, 96
    %v924 = vpop.permute.xlu0 %923
    %926 = vst.msk [vmem:[#allocation8] sm:$0xff] %vm606, %v924
    %s927 = scalar_lea.vmem [#allocation2], 4
    %928 = vst.msk [vmem:[%s927] sm:$0xf] %vm604, %v919
    %v929 = vld [vmem:[#allocation7] sm:$0xf]
    %v930 = vld [vmem:[#allocation25] sm:$0xf]
    %v931 = vld [vmem:[#allocation25 + $0x4] sm:$0xf]
    %v932 = vld [vmem:[#allocation25 + $0x8] sm:$0xf]
    %v933 = vld [vmem:[#allocation25 + $0xc] sm:$0xf]
    %s934 = scalar_lea.vmem [#allocation5], 24
    %v935 = vld [vmem:[%s934] sm:$0xf]
    %v936 = vunpack.c.l.bf16 %v935
    %v941 = vunpack.c.l.b16 %v930
    %v942 = vunpack.c.l.b16 %v931
    %v943 = vunpack.c.l.b16 %v932
    %v944 = vunpack.c.l.b16 %v933
    %v945 = vpack.c.b16 %v942, %v941
    %v946 = vpack.c.b16 %v944, %v943
    %v950 = vsel %vm606, %v929, 0
    %952 = vmatprep.subr.bf16.mxu0 0
    %953 = vmatpush1.bf16.msra.mxu0 0
    %954 = vmatprep.subr.bf16.mxu0 0
    %955 = vmatpush1.bf16.msra.mxu0 0
    %956 = vmatprep.subr.bf16.mxu0 0
    %957 = vmatpush1.bf16.msra.mxu0 0
    %958 = vmatprep.subr.bf16.mxu0 0
    %959 = vmatpush1.bf16.msra.mxu0 0
    %960 = vmatprep.subr.bf16.mxu0 0
    %961 = vmatpush1.bf16.msra.mxu0 0
    %962 = vmatprep.subr.bf16.mxu0 0
    %963 = vmatpush1.bf16.msra.mxu0 0
    %964 = vmatprep.subr.bf16.mxu0 0
    %965 = vmatpush1.bf16.msra.mxu0 %v946
    %966 = vmatprep.subr.bf16.mxu0 0
    %967 = vmatpush1.bf16.msra.mxu0 %v945
    %968 = vmatprep.subr.bf16.mxu0 0
    %969 = vmatpush2.bf16.msra.mxu0 0
    %970 = vmatprep.subr.bf16.mxu0 0
    %971 = vmatpush2.bf16.msra.mxu0 0
    %972 = vmatprep.subr.bf16.mxu0 0
    %973 = vmatpush2.bf16.msra.mxu0 0
    %974 = vmatprep.subr.bf16.mxu0 0
    %975 = vmatpush2.bf16.msra.mxu0 0
    %976 = vmatprep.subr.bf16.mxu0 0
    %977 = vmatpush2.bf16.msra.mxu0 0
    %978 = vmatprep.subr.bf16.mxu0 0
    %979 = vmatpush2.bf16.msra.mxu0 0
    %980 = vmatprep.subr.bf16.mxu0 0
    %981 = vmatpush2.bf16.msra.mxu0 0
    %982 = vmatprep.subr.bf16.mxu0 0
    %983 = vmatpush2.bf16.msra.mxu0 0
    %984 = vmatprep.mubr.bf16.mxu0 0
    %985 = vmatmul.mubr.bf16.gmra.mxu0 %v950
    %v986 = vpop.f32.mrf.mxu0
    %v987 = vadd.f32 %v936, %v986
    %v988 = vpop.f32.mrf.mxu0
    %v989 = vpop.f32.mrf.mxu0
    %v990 = vpop.f32.mrf.mxu0
    %991 = vdwg.mxu0
    %v992 = vxor.u32 %v987, 2147483648
    %v993 = vmul.f32 %v992, 1.442695
    %v994 = vpow.pop %v993
    %v995 = vadd.f32 %v994, 1.0
    %v996 = vrcp.pop %v995
    %v997 = vmul.f32 1.0, %v996
    %v998 = vtanh.pop %v987
    %v999 = vld [vmem:[#allocation9] sm:$0xff]
    %1001 = vrot.lane.b32.xlu0 %v999, 32
    %v1002 = vpop.permute.xlu0 %1001
    %v1004 = vmul.f32 %v997, %v1002
    %1006 = vrot.lane.b32.xlu0 %v998, 64
    %v1007 = vpop.permute.xlu0 %1006
    %v1009 = vmul.f32 %v997, %v1007
    %1011 = vrot.lane.b32.xlu0 %v1009, 32
    %v1012 = vpop.permute.xlu0 %1011
    %v1014 = vadd.f32 %v1004, %v1012
    %v1015 = vtanh.pop %v1014
    %1017 = vrot.lane.b32.xlu0 %v1015, 64
    %v1018 = vpop.permute.xlu0 %1017
    %v1020 = vmul.f32 %v997, %v1018
    %v1021 = vpack.c.bf16 %v1020, %v1020
    %v1023 = vunpack.c.l.b16 %v1021
    %v1024 = vpack.c.b16 %v1023, %v1023
    %1025 = vrot.lane.b32.xlu0 %v1024, 32
    %v1026 = vpop.permute.xlu0 %1025
    %1028 = vst.msk [vmem:[#allocation7] sm:$0xf] %vm604, %v1026
    %1030 = vrot.lane.b32.xlu0 %v1014, 96
    %v1031 = vpop.permute.xlu0 %1030
    %1033 = vst.msk [vmem:[#allocation9] sm:$0xff] %vm606, %v1031
    %s1034 = scalar_lea.vmem [#allocation3], 24
    %1035 = vst.msk [vmem:[%s1034] sm:$0xf] %vm604, %v1026
    %v1036 = vld [vmem:[#allocation6] sm:$0xf]
    %v1037 = vld [vmem:[%s9] sm:$0xf]
    %v1038 = vld [vmem:[%s9 + $0x4] sm:$0xf]
    %v1039 = vld [vmem:[%s9 + $0x8] sm:$0xf]
    %v1040 = vld [vmem:[%s9 + $0xc] sm:$0xf]
    %s1041 = scalar_lea.vmem [#allocation4], 8
    %v1042 = vld [vmem:[%s1041] sm:$0xf]
    %v1043 = vunpack.c.l.bf16 %v1042
    %v1048 = vunpack.c.l.b16 %v1037
    %v1049 = vunpack.c.l.b16 %v1038
    %v1050 = vunpack.c.l.b16 %v1039
    %v1051 = vunpack.c.l.b16 %v1040
    %v1052 = vpack.c.b16 %v1049, %v1048
    %v1053 = vpack.c.b16 %v1051, %v1050
    %v1057 = vsel %vm606, %v1036, 0
    %1059 = vmatprep.subr.bf16.mxu0 0
    %1060 = vmatpush1.bf16.msra.mxu0 0
    %1061 = vmatprep.subr.bf16.mxu0 0
    %1062 = vmatpush1.bf16.msra.mxu0 0
    %1063 = vmatprep.subr.bf16.mxu0 0
    %1064 = vmatpush1.bf16.msra.mxu0 0
    %1065 = vmatprep.subr.bf16.mxu0 0
    %1066 = vmatpush1.bf16.msra.mxu0 0
    %1067 = vmatprep.subr.bf16.mxu0 0
    %1068 = vmatpush1.bf16.msra.mxu0 0
    %1069 = vmatprep.subr.bf16.mxu0 0
    %1070 = vmatpush1.bf16.msra.mxu0 0
    %1071 = vmatprep.subr.bf16.mxu0 0
    %1072 = vmatpush1.bf16.msra.mxu0 %v1053
    %1073 = vmatprep.subr.bf16.mxu0 0
    %1074 = vmatpush1.bf16.msra.mxu0 %v1052
    %1075 = vmatprep.subr.bf16.mxu0 0
    %1076 = vmatpush2.bf16.msra.mxu0 0
    %1077 = vmatprep.subr.bf16.mxu0 0
    %1078 = vmatpush2.bf16.msra.mxu0 0
    %1079 = vmatprep.subr.bf16.mxu0 0
    %1080 = vmatpush2.bf16.msra.mxu0 0
    %1081 = vmatprep.subr.bf16.mxu0 0
    %1082 = vmatpush2.bf16.msra.mxu0 0
    %1083 = vmatprep.subr.bf16.mxu0 0
    %1084 = vmatpush2.bf16.msra.mxu0 0
    %1085 = vmatprep.subr.bf16.mxu0 0
    %1086 = vmatpush2.bf16.msra.mxu0 0
    %1087 = vmatprep.subr.bf16.mxu0 0
    %1088 = vmatpush2.bf16.msra.mxu0 0
    %1089 = vmatprep.subr.bf16.mxu0 0
    %1090 = vmatpush2.bf16.msra.mxu0 0
    %1091 = vmatprep.mubr.bf16.mxu0 0
    %1092 = vmatmul.mubr.bf16.gmra.mxu0 %v1057
    %v1093 = vpop.f32.mrf.mxu0
    %v1094 = vadd.f32 %v1043, %v1093
    %v1095 = vpop.f32.mrf.mxu0
    %v1096 = vpop.f32.mrf.mxu0
    %v1097 = vpop.f32.mrf.mxu0
    %1098 = vdwg.mxu0
    %v1099 = vxor.u32 %v1094, 2147483648
    %v1100 = vmul.f32 %v1099, 1.442695
    %v1101 = vpow.pop %v1100
    %v1102 = vadd.f32 %v1101, 1.0
    %v1103 = vrcp.pop %v1102
    %v1104 = vmul.f32 1.0, %v1103
    %v1105 = vtanh.pop %v1094
    %v1106 = vld [vmem:[#allocation8] sm:$0xff]
    %1108 = vrot.lane.b32.xlu0 %v1106, 32
    %v1109 = vpop.permute.xlu0 %1108
    %v1111 = vmul.f32 %v1104, %v1109
    %1113 = vrot.lane.b32.xlu0 %v1105, 64
    %v1114 = vpop.permute.xlu0 %1113
    %v1116 = vmul.f32 %v1104, %v1114
    %1118 = vrot.lane.b32.xlu0 %v1116, 32
    %v1119 = vpop.permute.xlu0 %1118
    %v1121 = vadd.f32 %v1111, %v1119
    %v1122 = vtanh.pop %v1121
    %1124 = vrot.lane.b32.xlu0 %v1122, 64
    %v1125 = vpop.permute.xlu0 %1124
    %v1127 = vmul.f32 %v1104, %v1125
    %v1128 = vpack.c.bf16 %v1127, %v1127
    %v1130 = vunpack.c.l.b16 %v1128
    %v1131 = vpack.c.b16 %v1130, %v1130
    %1132 = vrot.lane.b32.xlu0 %v1131, 32
    %v1133 = vpop.permute.xlu0 %1132
    %1135 = vst.msk [vmem:[#allocation6] sm:$0xf] %vm604, %v1133
    %1137 = vrot.lane.b32.xlu0 %v1121, 96
    %v1138 = vpop.permute.xlu0 %1137
    %1140 = vst.msk [vmem:[#allocation8] sm:$0xff] %vm606, %v1138
    %s1141 = scalar_lea.vmem [#allocation2], 8
    %1142 = vst.msk [vmem:[%s1141] sm:$0xf] %vm604, %v1133
    %v1143 = vld [vmem:[#allocation7] sm:$0xf]
    %v1144 = vld [vmem:[#allocation25] sm:$0xf]
    %v1145 = vld [vmem:[#allocation25 + $0x4] sm:$0xf]
    %v1146 = vld [vmem:[#allocation25 + $0x8] sm:$0xf]
    %v1147 = vld [vmem:[#allocation25 + $0xc] sm:$0xf]
    %s1148 = scalar_lea.vmem [#allocation5], 20
    %v1149 = vld [vmem:[%s1148] sm:$0xf]
    %v1150 = vunpack.c.l.bf16 %v1149
    %v1155 = vunpack.c.l.b16 %v1144
    %v1156 = vunpack.c.l.b16 %v1145
    %v1157 = vunpack.c.l.b16 %v1146
    %v1158 = vunpack.c.l.b16 %v1147
    %v1159 = vpack.c.b16 %v1156, %v1155
    %v1160 = vpack.c.b16 %v1158, %v1157
    %v1164 = vsel %vm606, %v1143, 0
    %1166 = vmatprep.subr.bf16.mxu0 0
    %1167 = vmatpush1.bf16.msra.mxu0 0
    %1168 = vmatprep.subr.bf16.mxu0 0
    %1169 = vmatpush1.bf16.msra.mxu0 0
    %1170 = vmatprep.subr.bf16.mxu0 0
    %1171 = vmatpush1.bf16.msra.mxu0 0
    %1172 = vmatprep.subr.bf16.mxu0 0
    %1173 = vmatpush1.bf16.msra.mxu0 0
    %1174 = vmatprep.subr.bf16.mxu0 0
    %1175 = vmatpush1.bf16.msra.mxu0 0
    %1176 = vmatprep.subr.bf16.mxu0 0
    %1177 = vmatpush1.bf16.msra.mxu0 0
    %1178 = vmatprep.subr.bf16.mxu0 0
    %1179 = vmatpush1.bf16.msra.mxu0 %v1160
    %1180 = vmatprep.subr.bf16.mxu0 0
    %1181 = vmatpush1.bf16.msra.mxu0 %v1159
    %1182 = vmatprep.subr.bf16.mxu0 0
    %1183 = vmatpush2.bf16.msra.mxu0 0
    %1184 = vmatprep.subr.bf16.mxu0 0
    %1185 = vmatpush2.bf16.msra.mxu0 0
    %1186 = vmatprep.subr.bf16.mxu0 0
    %1187 = vmatpush2.bf16.msra.mxu0 0
    %1188 = vmatprep.subr.bf16.mxu0 0
    %1189 = vmatpush2.bf16.msra.mxu0 0
    %1190 = vmatprep.subr.bf16.mxu0 0
    %1191 = vmatpush2.bf16.msra.mxu0 0
    %1192 = vmatprep.subr.bf16.mxu0 0
    %1193 = vmatpush2.bf16.msra.mxu0 0
    %1194 = vmatprep.subr.bf16.mxu0 0
    %1195 = vmatpush2.bf16.msra.mxu0 0
    %1196 = vmatprep.subr.bf16.mxu0 0
    %1197 = vmatpush2.bf16.msra.mxu0 0
    %1198 = vmatprep.mubr.bf16.mxu0 0
    %1199 = vmatmul.mubr.bf16.gmra.mxu0 %v1164
    %v1200 = vpop.f32.mrf.mxu0
    %v1201 = vadd.f32 %v1150, %v1200
    %v1202 = vpop.f32.mrf.mxu0
    %v1203 = vpop.f32.mrf.mxu0
    %v1204 = vpop.f32.mrf.mxu0
    %1205 = vdwg.mxu0
    %v1206 = vxor.u32 %v1201, 2147483648
    %v1207 = vmul.f32 %v1206, 1.442695
    %v1208 = vpow.pop %v1207
    %v1209 = vadd.f32 %v1208, 1.0
    %v1210 = vrcp.pop %v1209
    %v1211 = vmul.f32 1.0, %v1210
    %v1212 = vtanh.pop %v1201
    %v1213 = vld [vmem:[#allocation9] sm:$0xff]
    %1215 = vrot.lane.b32.xlu0 %v1213, 32
    %v1216 = vpop.permute.xlu0 %1215
    %v1218 = vmul.f32 %v1211, %v1216
    %1220 = vrot.lane.b32.xlu0 %v1212, 64
    %v1221 = vpop.permute.xlu0 %1220
    %v1223 = vmul.f32 %v1211, %v1221
    %1225 = vrot.lane.b32.xlu0 %v1223, 32
    %v1226 = vpop.permute.xlu0 %1225
    %v1228 = vadd.f32 %v1218, %v1226
    %v1229 = vtanh.pop %v1228
    %1231 = vrot.lane.b32.xlu0 %v1229, 64
    %v1232 = vpop.permute.xlu0 %1231
    %v1234 = vmul.f32 %v1211, %v1232
    %v1235 = vpack.c.bf16 %v1234, %v1234
    %v1237 = vunpack.c.l.b16 %v1235
    %v1238 = vpack.c.b16 %v1237, %v1237
    %1239 = vrot.lane.b32.xlu0 %v1238, 32
    %v1240 = vpop.permute.xlu0 %1239
    %1242 = vst.msk [vmem:[#allocation7] sm:$0xf] %vm604, %v1240
    %1244 = vrot.lane.b32.xlu0 %v1228, 96
    %v1245 = vpop.permute.xlu0 %1244
    %1247 = vst.msk [vmem:[#allocation9] sm:$0xff] %vm606, %v1245
    %s1248 = scalar_lea.vmem [#allocation3], 20
    %1249 = vst.msk [vmem:[%s1248] sm:$0xf] %vm604, %v1240
    %v1250 = vld [vmem:[#allocation6] sm:$0xf]
    %v1251 = vld [vmem:[%s9] sm:$0xf]
    %v1252 = vld [vmem:[%s9 + $0x4] sm:$0xf]
    %v1253 = vld [vmem:[%s9 + $0x8] sm:$0xf]
    %v1254 = vld [vmem:[%s9 + $0xc] sm:$0xf]
    %s1255 = scalar_lea.vmem [#allocation4], 12
    %v1256 = vld [vmem:[%s1255] sm:$0xf]
    %v1257 = vunpack.c.l.bf16 %v1256
    %v1262 = vunpack.c.l.b16 %v1251
    %v1263 = vunpack.c.l.b16 %v1252
    %v1264 = vunpack.c.l.b16 %v1253
    %v1265 = vunpack.c.l.b16 %v1254
    %v1266 = vpack.c.b16 %v1263, %v1262
    %v1267 = vpack.c.b16 %v1265, %v1264
    %v1271 = vsel %vm606, %v1250, 0
    %1273 = vmatprep.subr.bf16.mxu0 0
    %1274 = vmatpush1.bf16.msra.mxu0 0
    %1275 = vmatprep.subr.bf16.mxu0 0
    %1276 = vmatpush1.bf16.msra.mxu0 0
    %1277 = vmatprep.subr.bf16.mxu0 0
    %1278 = vmatpush1.bf16.msra.mxu0 0
    %1279 = vmatprep.subr.bf16.mxu0 0
    %1280 = vmatpush1.bf16.msra.mxu0 0
    %1281 = vmatprep.subr.bf16.mxu0 0
    %1282 = vmatpush1.bf16.msra.mxu0 0
    %1283 = vmatprep.subr.bf16.mxu0 0
    %1284 = vmatpush1.bf16.msra.mxu0 0
    %1285 = vmatprep.subr.bf16.mxu0 0
    %1286 = vmatpush1.bf16.msra.mxu0 %v1267
    %1287 = vmatprep.subr.bf16.mxu0 0
    %1288 = vmatpush1.bf16.msra.mxu0 %v1266
    %1289 = vmatprep.subr.bf16.mxu0 0
    %1290 = vmatpush2.bf16.msra.mxu0 0
    %1291 = vmatprep.subr.bf16.mxu0 0
    %1292 = vmatpush2.bf16.msra.mxu0 0
    %1293 = vmatprep.subr.bf16.mxu0 0
    %1294 = vmatpush2.bf16.msra.mxu0 0
    %1295 = vmatprep.subr.bf16.mxu0 0
    %1296 = vmatpush2.bf16.msra.mxu0 0
    %1297 = vmatprep.subr.bf16.mxu0 0
    %1298 = vmatpush2.bf16.msra.mxu0 0
    %1299 = vmatprep.subr.bf16.mxu0 0
    %1300 = vmatpush2.bf16.msra.mxu0 0
    %1301 = vmatprep.subr.bf16.mxu0 0
    %1302 = vmatpush2.bf16.msra.mxu0 0
    %1303 = vmatprep.subr.bf16.mxu0 0
    %1304 = vmatpush2.bf16.msra.mxu0 0
    %1305 = vmatprep.mubr.bf16.mxu0 0
    %1306 = vmatmul.mubr.bf16.gmra.mxu0 %v1271
    %v1307 = vpop.f32.mrf.mxu0
    %v1308 = vadd.f32 %v1257, %v1307
    %v1309 = vpop.f32.mrf.mxu0
    %v1310 = vpop.f32.mrf.mxu0
    %v1311 = vpop.f32.mrf.mxu0
    %1312 = vdwg.mxu0
    %v1313 = vxor.u32 %v1308, 2147483648
    %v1314 = vmul.f32 %v1313, 1.442695
    %v1315 = vpow.pop %v1314
    %v1316 = vadd.f32 %v1315, 1.0
    %v1317 = vrcp.pop %v1316
    %v1318 = vmul.f32 1.0, %v1317
    %v1319 = vtanh.pop %v1308
    %v1320 = vld [vmem:[#allocation8] sm:$0xff]
    %1322 = vrot.lane.b32.xlu0 %v1320, 32
    %v1323 = vpop.permute.xlu0 %1322
    %v1325 = vmul.f32 %v1318, %v1323
    %1327 = vrot.lane.b32.xlu0 %v1319, 64
    %v1328 = vpop.permute.xlu0 %1327
    %v1330 = vmul.f32 %v1318, %v1328
    %1332 = vrot.lane.b32.xlu0 %v1330, 32
    %v1333 = vpop.permute.xlu0 %1332
    %v1335 = vadd.f32 %v1325, %v1333
    %v1336 = vtanh.pop %v1335
    %1338 = vrot.lane.b32.xlu0 %v1336, 64
    %v1339 = vpop.permute.xlu0 %1338
    %v1341 = vmul.f32 %v1318, %v1339
    %v1342 = vpack.c.bf16 %v1341, %v1341
    %v1344 = vunpack.c.l.b16 %v1342
    %v1345 = vpack.c.b16 %v1344, %v1344
    %1346 = vrot.lane.b32.xlu0 %v1345, 32
    %v1347 = vpop.permute.xlu0 %1346
    %1349 = vst.msk [vmem:[#allocation6] sm:$0xf] %vm604, %v1347
    %1351 = vrot.lane.b32.xlu0 %v1335, 96
    %v1352 = vpop.permute.xlu0 %1351
    %1354 = vst.msk [vmem:[#allocation8] sm:$0xff] %vm606, %v1352
    %s1355 = scalar_lea.vmem [#allocation2], 12
    %1356 = vst.msk [vmem:[%s1355] sm:$0xf] %vm604, %v1347
    %v1357 = vld [vmem:[#allocation7] sm:$0xf]
    %v1358 = vld [vmem:[#allocation25] sm:$0xf]
    %v1359 = vld [vmem:[#allocation25 + $0x4] sm:$0xf]
    %v1360 = vld [vmem:[#allocation25 + $0x8] sm:$0xf]
    %v1361 = vld [vmem:[#allocation25 + $0xc] sm:$0xf]
    %s1362 = scalar_lea.vmem [#allocation5], 16
    %v1363 = vld [vmem:[%s1362] sm:$0xf]
    %v1364 = vunpack.c.l.bf16 %v1363
    %v1369 = vunpack.c.l.b16 %v1358
    %v1370 = vunpack.c.l.b16 %v1359
    %v1371 = vunpack.c.l.b16 %v1360
    %v1372 = vunpack.c.l.b16 %v1361
    %v1373 = vpack.c.b16 %v1370, %v1369
    %v1374 = vpack.c.b16 %v1372, %v1371
    %v1378 = vsel %vm606, %v1357, 0
    %1380 = vmatprep.subr.bf16.mxu0 0
    %1381 = vmatpush1.bf16.msra.mxu0 0
    %1382 = vmatprep.subr.bf16.mxu0 0
    %1383 = vmatpush1.bf16.msra.mxu0 0
    %1384 = vmatprep.subr.bf16.mxu0 0
    %1385 = vmatpush1.bf16.msra.mxu0 0
    %1386 = vmatprep.subr.bf16.mxu0 0
    %1387 = vmatpush1.bf16.msra.mxu0 0
    %1388 = vmatprep.subr.bf16.mxu0 0
    %1389 = vmatpush1.bf16.msra.mxu0 0
    %1390 = vmatprep.subr.bf16.mxu0 0
    %1391 = vmatpush1.bf16.msra.mxu0 0
    %1392 = vmatprep.subr.bf16.mxu0 0
    %1393 = vmatpush1.bf16.msra.mxu0 %v1374
    %1394 = vmatprep.subr.bf16.mxu0 0
    %1395 = vmatpush1.bf16.msra.mxu0 %v1373
    %1396 = vmatprep.subr.bf16.mxu0 0
    %1397 = vmatpush2.bf16.msra.mxu0 0
    %1398 = vmatprep.subr.bf16.mxu0 0
    %1399 = vmatpush2.bf16.msra.mxu0 0
    %1400 = vmatprep.subr.bf16.mxu0 0
    %1401 = vmatpush2.bf16.msra.mxu0 0
    %1402 = vmatprep.subr.bf16.mxu0 0
    %1403 = vmatpush2.bf16.msra.mxu0 0
    %1404 = vmatprep.subr.bf16.mxu0 0
    %1405 = vmatpush2.bf16.msra.mxu0 0
    %1406 = vmatprep.subr.bf16.mxu0 0
    %1407 = vmatpush2.bf16.msra.mxu0 0
    %1408 = vmatprep.subr.bf16.mxu0 0
    %1409 = vmatpush2.bf16.msra.mxu0 0
    %1410 = vmatprep.subr.bf16.mxu0 0
    %1411 = vmatpush2.bf16.msra.mxu0 0
    %1412 = vmatprep.mubr.bf16.mxu0 0
    %1413 = vmatmul.mubr.bf16.gmra.mxu0 %v1378
    %v1414 = vpop.f32.mrf.mxu0
    %v1415 = vadd.f32 %v1364, %v1414
    %v1416 = vpop.f32.mrf.mxu0
    %v1417 = vpop.f32.mrf.mxu0
    %v1418 = vpop.f32.mrf.mxu0
    %1419 = vdwg.mxu0
    %v1420 = vxor.u32 %v1415, 2147483648
    %v1421 = vmul.f32 %v1420, 1.442695
    %v1422 = vpow.pop %v1421
    %v1423 = vadd.f32 %v1422, 1.0
    %v1424 = vrcp.pop %v1423
    %v1425 = vmul.f32 1.0, %v1424
    %v1426 = vtanh.pop %v1415
    %v1427 = vld [vmem:[#allocation9] sm:$0xff]
    %1429 = vrot.lane.b32.xlu0 %v1427, 32
    %v1430 = vpop.permute.xlu0 %1429
    %v1432 = vmul.f32 %v1425, %v1430
    %1434 = vrot.lane.b32.xlu0 %v1426, 64
    %v1435 = vpop.permute.xlu0 %1434
    %v1437 = vmul.f32 %v1425, %v1435
    %1439 = vrot.lane.b32.xlu0 %v1437, 32
    %v1440 = vpop.permute.xlu0 %1439
    %v1442 = vadd.f32 %v1432, %v1440
    %v1443 = vtanh.pop %v1442
    %1445 = vrot.lane.b32.xlu0 %v1443, 64
    %v1446 = vpop.permute.xlu0 %1445
    %v1448 = vmul.f32 %v1425, %v1446
    %v1449 = vpack.c.bf16 %v1448, %v1448
    %v1451 = vunpack.c.l.b16 %v1449
    %v1452 = vpack.c.b16 %v1451, %v1451
    %1453 = vrot.lane.b32.xlu0 %v1452, 32
    %v1454 = vpop.permute.xlu0 %1453
    %1456 = vst.msk [vmem:[#allocation7] sm:$0xf] %vm604, %v1454
    %1458 = vrot.lane.b32.xlu0 %v1442, 96
    %v1459 = vpop.permute.xlu0 %1458
    %1461 = vst.msk [vmem:[#allocation9] sm:$0xff] %vm606, %v1459
    %s1462 = scalar_lea.vmem [#allocation3], 16
    %1463 = vst.msk [vmem:[%s1462] sm:$0xf] %vm604, %v1454
    %v1464 = vld [vmem:[#allocation6] sm:$0xf]
    %v1465 = vld [vmem:[%s9] sm:$0xf]
    %v1466 = vld [vmem:[%s9 + $0x4] sm:$0xf]
    %v1467 = vld [vmem:[%s9 + $0x8] sm:$0xf]
    %v1468 = vld [vmem:[%s9 + $0xc] sm:$0xf]
    %s1469 = scalar_lea.vmem [#allocation4], 16
    %v1470 = vld [vmem:[%s1469] sm:$0xf]
    %v1471 = vunpack.c.l.bf16 %v1470
    %v1476 = vunpack.c.l.b16 %v1465
    %v1477 = vunpack.c.l.b16 %v1466
    %v1478 = vunpack.c.l.b16 %v1467
    %v1479 = vunpack.c.l.b16 %v1468
    %v1480 = vpack.c.b16 %v1477, %v1476
    %v1481 = vpack.c.b16 %v1479, %v1478
    %v1485 = vsel %vm606, %v1464, 0
    %1487 = vmatprep.subr.bf16.mxu0 0
    %1488 = vmatpush1.bf16.msra.mxu0 0
    %1489 = vmatprep.subr.bf16.mxu0 0
    %1490 = vmatpush1.bf16.msra.mxu0 0
    %1491 = vmatprep.subr.bf16.mxu0 0
    %1492 = vmatpush1.bf16.msra.mxu0 0
    %1493 = vmatprep.subr.bf16.mxu0 0
    %1494 = vmatpush1.bf16.msra.mxu0 0
    %1495 = vmatprep.subr.bf16.mxu0 0
    %1496 = vmatpush1.bf16.msra.mxu0 0
    %1497 = vmatprep.subr.bf16.mxu0 0
    %1498 = vmatpush1.bf16.msra.mxu0 0
    %1499 = vmatprep.subr.bf16.mxu0 0
    %1500 = vmatpush1.bf16.msra.mxu0 %v1481
    %1501 = vmatprep.subr.bf16.mxu0 0
    %1502 = vmatpush1.bf16.msra.mxu0 %v1480
    %1503 = vmatprep.subr.bf16.mxu0 0
    %1504 = vmatpush2.bf16.msra.mxu0 0
    %1505 = vmatprep.subr.bf16.mxu0 0
    %1506 = vmatpush2.bf16.msra.mxu0 0
    %1507 = vmatprep.subr.bf16.mxu0 0
    %1508 = vmatpush2.bf16.msra.mxu0 0
    %1509 = vmatprep.subr.bf16.mxu0 0
    %1510 = vmatpush2.bf16.msra.mxu0 0
    %1511 = vmatprep.subr.bf16.mxu0 0
    %1512 = vmatpush2.bf16.msra.mxu0 0
    %1513 = vmatprep.subr.bf16.mxu0 0
    %1514 = vmatpush2.bf16.msra.mxu0 0
    %1515 = vmatprep.subr.bf16.mxu0 0
    %1516 = vmatpush2.bf16.msra.mxu0 0
    %1517 = vmatprep.subr.bf16.mxu0 0
    %1518 = vmatpush2.bf16.msra.mxu0 0
    %1519 = vmatprep.mubr.bf16.mxu0 0
    %1520 = vmatmul.mubr.bf16.gmra.mxu0 %v1485
    %v1521 = vpop.f32.mrf.mxu0
    %v1522 = vadd.f32 %v1471, %v1521
    %v1523 = vpop.f32.mrf.mxu0
    %v1524 = vpop.f32.mrf.mxu0
    %v1525 = vpop.f32.mrf.mxu0
    %1526 = vdwg.mxu0
    %v1527 = vxor.u32 %v1522, 2147483648
    %v1528 = vmul.f32 %v1527, 1.442695
    %v1529 = vpow.pop %v1528
    %v1530 = vadd.f32 %v1529, 1.0
    %v1531 = vrcp.pop %v1530
    %v1532 = vmul.f32 1.0, %v1531
    %v1533 = vtanh.pop %v1522
    %v1534 = vld [vmem:[#allocation8] sm:$0xff]
    %1536 = vrot.lane.b32.xlu0 %v1534, 32
    %v1537 = vpop.permute.xlu0 %1536
    %v1539 = vmul.f32 %v1532, %v1537
    %1541 = vrot.lane.b32.xlu0 %v1533, 64
    %v1542 = vpop.permute.xlu0 %1541
    %v1544 = vmul.f32 %v1532, %v1542
    %1546 = vrot.lane.b32.xlu0 %v1544, 32
    %v1547 = vpop.permute.xlu0 %1546
    %v1549 = vadd.f32 %v1539, %v1547
    %v1550 = vtanh.pop %v1549
    %1552 = vrot.lane.b32.xlu0 %v1550, 64
    %v1553 = vpop.permute.xlu0 %1552
    %v1555 = vmul.f32 %v1532, %v1553
    %v1556 = vpack.c.bf16 %v1555, %v1555
    %v1558 = vunpack.c.l.b16 %v1556
    %v1559 = vpack.c.b16 %v1558, %v1558
    %1560 = vrot.lane.b32.xlu0 %v1559, 32
    %v1561 = vpop.permute.xlu0 %1560
    %1563 = vst.msk [vmem:[#allocation6] sm:$0xf] %vm604, %v1561
    %1565 = vrot.lane.b32.xlu0 %v1549, 96
    %v1566 = vpop.permute.xlu0 %1565
    %1568 = vst.msk [vmem:[#allocation8] sm:$0xff] %vm606, %v1566
    %s1569 = scalar_lea.vmem [#allocation2], 16
    %1570 = vst.msk [vmem:[%s1569] sm:$0xf] %vm604, %v1561
    %v1571 = vld [vmem:[#allocation7] sm:$0xf]
    %v1572 = vld [vmem:[#allocation25] sm:$0xf]
    %v1573 = vld [vmem:[#allocation25 + $0x4] sm:$0xf]
    %v1574 = vld [vmem:[#allocation25 + $0x8] sm:$0xf]
    %v1575 = vld [vmem:[#allocation25 + $0xc] sm:$0xf]
    %s1576 = scalar_lea.vmem [#allocation5], 12
    %v1577 = vld [vmem:[%s1576] sm:$0xf]
    %v1578 = vunpack.c.l.bf16 %v1577
    %v1583 = vunpack.c.l.b16 %v1572
    %v1584 = vunpack.c.l.b16 %v1573
    %v1585 = vunpack.c.l.b16 %v1574
    %v1586 = vunpack.c.l.b16 %v1575
    %v1587 = vpack.c.b16 %v1584, %v1583
    %v1588 = vpack.c.b16 %v1586, %v1585
    %v1592 = vsel %vm606, %v1571, 0
    %1594 = vmatprep.subr.bf16.mxu0 0
    %1595 = vmatpush1.bf16.msra.mxu0 0
    %1596 = vmatprep.subr.bf16.mxu0 0
    %1597 = vmatpush1.bf16.msra.mxu0 0
    %1598 = vmatprep.subr.bf16.mxu0 0
    %1599 = vmatpush1.bf16.msra.mxu0 0
    %1600 = vmatprep.subr.bf16.mxu0 0
    %1601 = vmatpush1.bf16.msra.mxu0 0
    %1602 = vmatprep.subr.bf16.mxu0 0
    %1603 = vmatpush1.bf16.msra.mxu0 0
    %1604 = vmatprep.subr.bf16.mxu0 0
    %1605 = vmatpush1.bf16.msra.mxu0 0
    %1606 = vmatprep.subr.bf16.mxu0 0
    %1607 = vmatpush1.bf16.msra.mxu0 %v1588
    %1608 = vmatprep.subr.bf16.mxu0 0
    %1609 = vmatpush1.bf16.msra.mxu0 %v1587
    %1610 = vmatprep.subr.bf16.mxu0 0
    %1611 = vmatpush2.bf16.msra.mxu0 0
    %1612 = vmatprep.subr.bf16.mxu0 0
    %1613 = vmatpush2.bf16.msra.mxu0 0
    %1614 = vmatprep.subr.bf16.mxu0 0
    %1615 = vmatpush2.bf16.msra.mxu0 0
    %1616 = vmatprep.subr.bf16.mxu0 0
    %1617 = vmatpush2.bf16.msra.mxu0 0
    %1618 = vmatprep.subr.bf16.mxu0 0
    %1619 = vmatpush2.bf16.msra.mxu0 0
    %1620 = vmatprep.subr.bf16.mxu0 0
    %1621 = vmatpush2.bf16.msra.mxu0 0
    %1622 = vmatprep.subr.bf16.mxu0 0
    %1623 = vmatpush2.bf16.msra.mxu0 0
    %1624 = vmatprep.subr.bf16.mxu0 0
    %1625 = vmatpush2.bf16.msra.mxu0 0
    %1626 = vmatprep.mubr.bf16.mxu0 0
    %1627 = vmatmul.mubr.bf16.gmra.mxu0 %v1592
    %v1628 = vpop.f32.mrf.mxu0
    %v1629 = vadd.f32 %v1578, %v1628
    %v1630 = vpop.f32.mrf.mxu0
    %v1631 = vpop.f32.mrf.mxu0
    %v1632 = vpop.f32.mrf.mxu0
    %1633 = vdwg.mxu0
    %v1634 = vxor.u32 %v1629, 2147483648
    %v1635 = vmul.f32 %v1634, 1.442695
    %v1636 = vpow.pop %v1635
    %v1637 = vadd.f32 %v1636, 1.0
    %v1638 = vrcp.pop %v1637
    %v1639 = vmul.f32 1.0, %v1638
    %v1640 = vtanh.pop %v1629
    %v1641 = vld [vmem:[#allocation9] sm:$0xff]
    %1643 = vrot.lane.b32.xlu0 %v1641, 32
    %v1644 = vpop.permute.xlu0 %1643
    %v1646 = vmul.f32 %v1639, %v1644
    %1648 = vrot.lane.b32.xlu0 %v1640, 64
    %v1649 = vpop.permute.xlu0 %1648
    %v1651 = vmul.f32 %v1639, %v1649
    %1653 = vrot.lane.b32.xlu0 %v1651, 32
    %v1654 = vpop.permute.xlu0 %1653
    %v1656 = vadd.f32 %v1646, %v1654
    %v1657 = vtanh.pop %v1656
    %1659 = vrot.lane.b32.xlu0 %v1657, 64
    %v1660 = vpop.permute.xlu0 %1659
    %v1662 = vmul.f32 %v1639, %v1660
    %v1663 = vpack.c.bf16 %v1662, %v1662
    %v1665 = vunpack.c.l.b16 %v1663
    %v1666 = vpack.c.b16 %v1665, %v1665
    %1667 = vrot.lane.b32.xlu0 %v1666, 32
    %v1668 = vpop.permute.xlu0 %1667
    %1670 = vst.msk [vmem:[#allocation7] sm:$0xf] %vm604, %v1668
    %1672 = vrot.lane.b32.xlu0 %v1656, 96
    %v1673 = vpop.permute.xlu0 %1672
    %1675 = vst.msk [vmem:[#allocation9] sm:$0xff] %vm606, %v1673
    %s1676 = scalar_lea.vmem [#allocation3], 12
    %1677 = vst.msk [vmem:[%s1676] sm:$0xf] %vm604, %v1668
    %v1678 = vld [vmem:[#allocation6] sm:$0xf]
    %v1679 = vld [vmem:[%s9] sm:$0xf]
    %v1680 = vld [vmem:[%s9 + $0x4] sm:$0xf]
    %v1681 = vld [vmem:[%s9 + $0x8] sm:$0xf]
    %v1682 = vld [vmem:[%s9 + $0xc] sm:$0xf]
    %s1683 = scalar_lea.vmem [#allocation4], 20
    %v1684 = vld [vmem:[%s1683] sm:$0xf]
    %v1685 = vunpack.c.l.bf16 %v1684
    %v1690 = vunpack.c.l.b16 %v1679
    %v1691 = vunpack.c.l.b16 %v1680
    %v1692 = vunpack.c.l.b16 %v1681
    %v1693 = vunpack.c.l.b16 %v1682
    %v1694 = vpack.c.b16 %v1691, %v1690
    %v1695 = vpack.c.b16 %v1693, %v1692
    %v1699 = vsel %vm606, %v1678, 0
    %1701 = vmatprep.subr.bf16.mxu0 0
    %1702 = vmatpush1.bf16.msra.mxu0 0
    %1703 = vmatprep.subr.bf16.mxu0 0
    %1704 = vmatpush1.bf16.msra.mxu0 0
    %1705 = vmatprep.subr.bf16.mxu0 0
    %1706 = vmatpush1.bf16.msra.mxu0 0
    %1707 = vmatprep.subr.bf16.mxu0 0
    %1708 = vmatpush1.bf16.msra.mxu0 0
    %1709 = vmatprep.subr.bf16.mxu0 0
    %1710 = vmatpush1.bf16.msra.mxu0 0
    %1711 = vmatprep.subr.bf16.mxu0 0
    %1712 = vmatpush1.bf16.msra.mxu0 0
    %1713 = vmatprep.subr.bf16.mxu0 0
    %1714 = vmatpush1.bf16.msra.mxu0 %v1695
    %1715 = vmatprep.subr.bf16.mxu0 0
    %1716 = vmatpush1.bf16.msra.mxu0 %v1694
    %1717 = vmatprep.subr.bf16.mxu0 0
    %1718 = vmatpush2.bf16.msra.mxu0 0
    %1719 = vmatprep.subr.bf16.mxu0 0
    %1720 = vmatpush2.bf16.msra.mxu0 0
    %1721 = vmatprep.subr.bf16.mxu0 0
    %1722 = vmatpush2.bf16.msra.mxu0 0
    %1723 = vmatprep.subr.bf16.mxu0 0
    %1724 = vmatpush2.bf16.msra.mxu0 0
    %1725 = vmatprep.subr.bf16.mxu0 0
    %1726 = vmatpush2.bf16.msra.mxu0 0
    %1727 = vmatprep.subr.bf16.mxu0 0
    %1728 = vmatpush2.bf16.msra.mxu0 0
    %1729 = vmatprep.subr.bf16.mxu0 0
    %1730 = vmatpush2.bf16.msra.mxu0 0
    %1731 = vmatprep.subr.bf16.mxu0 0
    %1732 = vmatpush2.bf16.msra.mxu0 0
    %1733 = vmatprep.mubr.bf16.mxu0 0
    %1734 = vmatmul.mubr.bf16.gmra.mxu0 %v1699
    %v1735 = vpop.f32.mrf.mxu0
    %v1736 = vadd.f32 %v1685, %v1735
    %v1737 = vpop.f32.mrf.mxu0
    %v1738 = vpop.f32.mrf.mxu0
    %v1739 = vpop.f32.mrf.mxu0
    %1740 = vdwg.mxu0
    %v1741 = vxor.u32 %v1736, 2147483648
    %v1742 = vmul.f32 %v1741, 1.442695
    %v1743 = vpow.pop %v1742
    %v1744 = vadd.f32 %v1743, 1.0
    %v1745 = vrcp.pop %v1744
    %v1746 = vmul.f32 1.0, %v1745
    %v1747 = vtanh.pop %v1736
    %v1748 = vld [vmem:[#allocation8] sm:$0xff]
    %1750 = vrot.lane.b32.xlu0 %v1748, 32
    %v1751 = vpop.permute.xlu0 %1750
    %v1753 = vmul.f32 %v1746, %v1751
    %1755 = vrot.lane.b32.xlu0 %v1747, 64
    %v1756 = vpop.permute.xlu0 %1755
    %v1758 = vmul.f32 %v1746, %v1756
    %1760 = vrot.lane.b32.xlu0 %v1758, 32
    %v1761 = vpop.permute.xlu0 %1760
    %v1763 = vadd.f32 %v1753, %v1761
    %v1764 = vtanh.pop %v1763
    %1766 = vrot.lane.b32.xlu0 %v1764, 64
    %v1767 = vpop.permute.xlu0 %1766
    %v1769 = vmul.f32 %v1746, %v1767
    %v1770 = vpack.c.bf16 %v1769, %v1769
    %v1772 = vunpack.c.l.b16 %v1770
    %v1773 = vpack.c.b16 %v1772, %v1772
    %1774 = vrot.lane.b32.xlu0 %v1773, 32
    %v1775 = vpop.permute.xlu0 %1774
    %1777 = vst.msk [vmem:[#allocation6] sm:$0xf] %vm604, %v1775
    %1779 = vrot.lane.b32.xlu0 %v1763, 96
    %v1780 = vpop.permute.xlu0 %1779
    %1782 = vst.msk [vmem:[#allocation8] sm:$0xff] %vm606, %v1780
    %s1783 = scalar_lea.vmem [#allocation2], 20
    %1784 = vst.msk [vmem:[%s1783] sm:$0xf] %vm604, %v1775
    %v1785 = vld [vmem:[#allocation7] sm:$0xf]
    %v1786 = vld [vmem:[#allocation25] sm:$0xf]
    %v1787 = vld [vmem:[#allocation25 + $0x4] sm:$0xf]
    %v1788 = vld [vmem:[#allocation25 + $0x8] sm:$0xf]
    %v1789 = vld [vmem:[#allocation25 + $0xc] sm:$0xf]
    %s1790 = scalar_lea.vmem [#allocation5], 8
    %v1791 = vld [vmem:[%s1790] sm:$0xf]
    %v1792 = vunpack.c.l.bf16 %v1791
    %v1797 = vunpack.c.l.b16 %v1786
    %v1798 = vunpack.c.l.b16 %v1787
    %v1799 = vunpack.c.l.b16 %v1788
    %v1800 = vunpack.c.l.b16 %v1789
    %v1801 = vpack.c.b16 %v1798, %v1797
    %v1802 = vpack.c.b16 %v1800, %v1799
    %v1806 = vsel %vm606, %v1785, 0
    %1808 = vmatprep.subr.bf16.mxu0 0
    %1809 = vmatpush1.bf16.msra.mxu0 0
    %1810 = vmatprep.subr.bf16.mxu0 0
    %1811 = vmatpush1.bf16.msra.mxu0 0
    %1812 = vmatprep.subr.bf16.mxu0 0
    %1813 = vmatpush1.bf16.msra.mxu0 0
    %1814 = vmatprep.subr.bf16.mxu0 0
    %1815 = vmatpush1.bf16.msra.mxu0 0
    %1816 = vmatprep.subr.bf16.mxu0 0
    %1817 = vmatpush1.bf16.msra.mxu0 0
    %1818 = vmatprep.subr.bf16.mxu0 0
    %1819 = vmatpush1.bf16.msra.mxu0 0
    %1820 = vmatprep.subr.bf16.mxu0 0
    %1821 = vmatpush1.bf16.msra.mxu0 %v1802
    %1822 = vmatprep.subr.bf16.mxu0 0
    %1823 = vmatpush1.bf16.msra.mxu0 %v1801
    %1824 = vmatprep.subr.bf16.mxu0 0
    %1825 = vmatpush2.bf16.msra.mxu0 0
    %1826 = vmatprep.subr.bf16.mxu0 0
    %1827 = vmatpush2.bf16.msra.mxu0 0
    %1828 = vmatprep.subr.bf16.mxu0 0
    %1829 = vmatpush2.bf16.msra.mxu0 0
    %1830 = vmatprep.subr.bf16.mxu0 0
    %1831 = vmatpush2.bf16.msra.mxu0 0
    %1832 = vmatprep.subr.bf16.mxu0 0
    %1833 = vmatpush2.bf16.msra.mxu0 0
    %1834 = vmatprep.subr.bf16.mxu0 0
    %1835 = vmatpush2.bf16.msra.mxu0 0
    %1836 = vmatprep.subr.bf16.mxu0 0
    %1837 = vmatpush2.bf16.msra.mxu0 0
    %1838 = vmatprep.subr.bf16.mxu0 0
    %1839 = vmatpush2.bf16.msra.mxu0 0
    %1840 = vmatprep.mubr.bf16.mxu0 0
    %1841 = vmatmul.mubr.bf16.gmra.mxu0 %v1806
    %v1842 = vpop.f32.mrf.mxu0
    %v1843 = vadd.f32 %v1792, %v1842
    %v1844 = vpop.f32.mrf.mxu0
    %v1845 = vpop.f32.mrf.mxu0
    %v1846 = vpop.f32.mrf.mxu0
    %1847 = vdwg.mxu0
    %v1848 = vxor.u32 %v1843, 2147483648
    %v1849 = vmul.f32 %v1848, 1.442695
    %v1850 = vpow.pop %v1849
    %v1851 = vadd.f32 %v1850, 1.0
    %v1852 = vrcp.pop %v1851
    %v1853 = vmul.f32 1.0, %v1852
    %v1854 = vtanh.pop %v1843
    %v1855 = vld [vmem:[#allocation9] sm:$0xff]
    %1857 = vrot.lane.b32.xlu0 %v1855, 32
    %v1858 = vpop.permute.xlu0 %1857
    %v1860 = vmul.f32 %v1853, %v1858
    %1862 = vrot.lane.b32.xlu0 %v1854, 64
    %v1863 = vpop.permute.xlu0 %1862
    %v1865 = vmul.f32 %v1853, %v1863
    %1867 = vrot.lane.b32.xlu0 %v1865, 32
    %v1868 = vpop.permute.xlu0 %1867
    %v1870 = vadd.f32 %v1860, %v1868
    %v1871 = vtanh.pop %v1870
    %1873 = vrot.lane.b32.xlu0 %v1871, 64
    %v1874 = vpop.permute.xlu0 %1873
    %v1876 = vmul.f32 %v1853, %v1874
    %v1877 = vpack.c.bf16 %v1876, %v1876
    %v1879 = vunpack.c.l.b16 %v1877
    %v1880 = vpack.c.b16 %v1879, %v1879
    %1881 = vrot.lane.b32.xlu0 %v1880, 32
    %v1882 = vpop.permute.xlu0 %1881
    %1884 = vst.msk [vmem:[#allocation7] sm:$0xf] %vm604, %v1882
    %1886 = vrot.lane.b32.xlu0 %v1870, 96
    %v1887 = vpop.permute.xlu0 %1886
    %1889 = vst.msk [vmem:[#allocation9] sm:$0xff] %vm606, %v1887
    %s1890 = scalar_lea.vmem [#allocation3], 8
    %1891 = vst.msk [vmem:[%s1890] sm:$0xf] %vm604, %v1882
    %v1892 = vld [vmem:[#allocation6] sm:$0xf]
    %v1893 = vld [vmem:[%s9] sm:$0xf]
    %v1894 = vld [vmem:[%s9 + $0x4] sm:$0xf]
    %v1895 = vld [vmem:[%s9 + $0x8] sm:$0xf]
    %v1896 = vld [vmem:[%s9 + $0xc] sm:$0xf]
    %s1897 = scalar_lea.vmem [#allocation4], 24
    %v1898 = vld [vmem:[%s1897] sm:$0xf]
    %v1899 = vunpack.c.l.bf16 %v1898
    %v1904 = vunpack.c.l.b16 %v1893
    %v1905 = vunpack.c.l.b16 %v1894
    %v1906 = vunpack.c.l.b16 %v1895
    %v1907 = vunpack.c.l.b16 %v1896
    %v1908 = vpack.c.b16 %v1905, %v1904
    %v1909 = vpack.c.b16 %v1907, %v1906
    %v1913 = vsel %vm606, %v1892, 0
    %1915 = vmatprep.subr.bf16.mxu0 0
    %1916 = vmatpush1.bf16.msra.mxu0 0
    %1917 = vmatprep.subr.bf16.mxu0 0
    %1918 = vmatpush1.bf16.msra.mxu0 0
    %1919 = vmatprep.subr.bf16.mxu0 0
    %1920 = vmatpush1.bf16.msra.mxu0 0
    %1921 = vmatprep.subr.bf16.mxu0 0
    %1922 = vmatpush1.bf16.msra.mxu0 0
    %1923 = vmatprep.subr.bf16.mxu0 0
    %1924 = vmatpush1.bf16.msra.mxu0 0
    %1925 = vmatprep.subr.bf16.mxu0 0
    %1926 = vmatpush1.bf16.msra.mxu0 0
    %1927 = vmatprep.subr.bf16.mxu0 0
    %1928 = vmatpush1.bf16.msra.mxu0 %v1909
    %1929 = vmatprep.subr.bf16.mxu0 0
    %1930 = vmatpush1.bf16.msra.mxu0 %v1908
    %1931 = vmatprep.subr.bf16.mxu0 0
    %1932 = vmatpush2.bf16.msra.mxu0 0
    %1933 = vmatprep.subr.bf16.mxu0 0
    %1934 = vmatpush2.bf16.msra.mxu0 0
    %1935 = vmatprep.subr.bf16.mxu0 0
    %1936 = vmatpush2.bf16.msra.mxu0 0
    %1937 = vmatprep.subr.bf16.mxu0 0
    %1938 = vmatpush2.bf16.msra.mxu0 0
    %1939 = vmatprep.subr.bf16.mxu0 0
    %1940 = vmatpush2.bf16.msra.mxu0 0
    %1941 = vmatprep.subr.bf16.mxu0 0
    %1942 = vmatpush2.bf16.msra.mxu0 0
    %1943 = vmatprep.subr.bf16.mxu0 0
    %1944 = vmatpush2.bf16.msra.mxu0 0
    %1945 = vmatprep.subr.bf16.mxu0 0
    %1946 = vmatpush2.bf16.msra.mxu0 0
    %1947 = vmatprep.mubr.bf16.mxu0 0
    %1948 = vmatmul.mubr.bf16.gmra.mxu0 %v1913
    %v1949 = vpop.f32.mrf.mxu0
    %v1950 = vadd.f32 %v1899, %v1949
    %v1951 = vpop.f32.mrf.mxu0
    %v1952 = vpop.f32.mrf.mxu0
    %v1953 = vpop.f32.mrf.mxu0
    %1954 = vdwg.mxu0
    %v1955 = vxor.u32 %v1950, 2147483648
    %v1956 = vmul.f32 %v1955, 1.442695
    %v1957 = vpow.pop %v1956
    %v1958 = vadd.f32 %v1957, 1.0
    %v1959 = vrcp.pop %v1958
    %v1960 = vmul.f32 1.0, %v1959
    %v1961 = vtanh.pop %v1950
    %v1962 = vld [vmem:[#allocation8] sm:$0xff]
    %1964 = vrot.lane.b32.xlu0 %v1962, 32
    %v1965 = vpop.permute.xlu0 %1964
    %v1967 = vmul.f32 %v1960, %v1965
    %1969 = vrot.lane.b32.xlu0 %v1961, 64
    %v1970 = vpop.permute.xlu0 %1969
    %v1972 = vmul.f32 %v1960, %v1970
    %1974 = vrot.lane.b32.xlu0 %v1972, 32
    %v1975 = vpop.permute.xlu0 %1974
    %v1977 = vadd.f32 %v1967, %v1975
    %v1978 = vtanh.pop %v1977
    %1980 = vrot.lane.b32.xlu0 %v1978, 64
    %v1981 = vpop.permute.xlu0 %1980
    %v1983 = vmul.f32 %v1960, %v1981
    %v1984 = vpack.c.bf16 %v1983, %v1983
    %v1986 = vunpack.c.l.b16 %v1984
    %v1987 = vpack.c.b16 %v1986, %v1986
    %1988 = vrot.lane.b32.xlu0 %v1987, 32
    %v1989 = vpop.permute.xlu0 %1988
    %1991 = vst.msk [vmem:[#allocation6] sm:$0xf] %vm604, %v1989
    %1993 = vrot.lane.b32.xlu0 %v1977, 96
    %v1994 = vpop.permute.xlu0 %1993
    %1996 = vst.msk [vmem:[#allocation8] sm:$0xff] %vm606, %v1994
    %s1997 = scalar_lea.vmem [#allocation2], 24
    %1998 = vst.msk [vmem:[%s1997] sm:$0xf] %vm604, %v1989
    %v1999 = vld [vmem:[#allocation7] sm:$0xf]
    %v2000 = vld [vmem:[#allocation25] sm:$0xf]
    %v2001 = vld [vmem:[#allocation25 + $0x4] sm:$0xf]
    %v2002 = vld [vmem:[#allocation25 + $0x8] sm:$0xf]
    %v2003 = vld [vmem:[#allocation25 + $0xc] sm:$0xf]
    %s2004 = scalar_lea.vmem [#allocation5], 4
    %v2005 = vld [vmem:[%s2004] sm:$0xf]
    %v2006 = vunpack.c.l.bf16 %v2005
    %v2011 = vunpack.c.l.b16 %v2000
    %v2012 = vunpack.c.l.b16 %v2001
    %v2013 = vunpack.c.l.b16 %v2002
    %v2014 = vunpack.c.l.b16 %v2003
    %v2015 = vpack.c.b16 %v2012, %v2011
    %v2016 = vpack.c.b16 %v2014, %v2013
    %v2020 = vsel %vm606, %v1999, 0
    %2022 = vmatprep.subr.bf16.mxu0 0
    %2023 = vmatpush1.bf16.msra.mxu0 0
    %2024 = vmatprep.subr.bf16.mxu0 0
    %2025 = vmatpush1.bf16.msra.mxu0 0
    %2026 = vmatprep.subr.bf16.mxu0 0
    %2027 = vmatpush1.bf16.msra.mxu0 0
    %2028 = vmatprep.subr.bf16.mxu0 0
    %2029 = vmatpush1.bf16.msra.mxu0 0
    %2030 = vmatprep.subr.bf16.mxu0 0
    %2031 = vmatpush1.bf16.msra.mxu0 0
    %2032 = vmatprep.subr.bf16.mxu0 0
    %2033 = vmatpush1.bf16.msra.mxu0 0
    %2034 = vmatprep.subr.bf16.mxu0 0
    %2035 = vmatpush1.bf16.msra.mxu0 %v2016
    %2036 = vmatprep.subr.bf16.mxu0 0
    %2037 = vmatpush1.bf16.msra.mxu0 %v2015
    %2038 = vmatprep.subr.bf16.mxu0 0
    %2039 = vmatpush2.bf16.msra.mxu0 0
    %2040 = vmatprep.subr.bf16.mxu0 0
    %2041 = vmatpush2.bf16.msra.mxu0 0
    %2042 = vmatprep.subr.bf16.mxu0 0
    %2043 = vmatpush2.bf16.msra.mxu0 0
    %2044 = vmatprep.subr.bf16.mxu0 0
    %2045 = vmatpush2.bf16.msra.mxu0 0
    %2046 = vmatprep.subr.bf16.mxu0 0
    %2047 = vmatpush2.bf16.msra.mxu0 0
    %2048 = vmatprep.subr.bf16.mxu0 0
    %2049 = vmatpush2.bf16.msra.mxu0 0
    %2050 = vmatprep.subr.bf16.mxu0 0
    %2051 = vmatpush2.bf16.msra.mxu0 0
    %2052 = vmatprep.subr.bf16.mxu0 0
    %2053 = vmatpush2.bf16.msra.mxu0 0
    %2054 = vmatprep.mubr.bf16.mxu0 0
    %2055 = vmatmul.mubr.bf16.gmra.mxu0 %v2020
    %v2056 = vpop.f32.mrf.mxu0
    %v2057 = vadd.f32 %v2006, %v2056
    %v2058 = vpop.f32.mrf.mxu0
    %v2059 = vpop.f32.mrf.mxu0
    %v2060 = vpop.f32.mrf.mxu0
    %2061 = vdwg.mxu0
    %v2062 = vxor.u32 %v2057, 2147483648
    %v2063 = vmul.f32 %v2062, 1.442695
    %v2064 = vpow.pop %v2063
    %v2065 = vadd.f32 %v2064, 1.0
    %v2066 = vrcp.pop %v2065
    %v2067 = vmul.f32 1.0, %v2066
    %v2068 = vtanh.pop %v2057
    %v2069 = vld [vmem:[#allocation9] sm:$0xff]
    %2071 = vrot.lane.b32.xlu0 %v2069, 32
    %v2072 = vpop.permute.xlu0 %2071
    %v2074 = vmul.f32 %v2067, %v2072
    %2076 = vrot.lane.b32.xlu0 %v2068, 64
    %v2077 = vpop.permute.xlu0 %2076
    %v2079 = vmul.f32 %v2067, %v2077
    %2081 = vrot.lane.b32.xlu0 %v2079, 32
    %v2082 = vpop.permute.xlu0 %2081
    %v2084 = vadd.f32 %v2074, %v2082
    %v2085 = vtanh.pop %v2084
    %2087 = vrot.lane.b32.xlu0 %v2085, 64
    %v2088 = vpop.permute.xlu0 %2087
    %v2090 = vmul.f32 %v2067, %v2088
    %v2091 = vpack.c.bf16 %v2090, %v2090
    %v2093 = vunpack.c.l.b16 %v2091
    %v2094 = vpack.c.b16 %v2093, %v2093
    %2095 = vrot.lane.b32.xlu0 %v2094, 32
    %v2096 = vpop.permute.xlu0 %2095
    %2098 = vst.msk [vmem:[#allocation7] sm:$0xf] %vm604, %v2096
    %2100 = vrot.lane.b32.xlu0 %v2084, 96
    %v2101 = vpop.permute.xlu0 %2100
    %2103 = vst.msk [vmem:[#allocation9] sm:$0xff] %vm606, %v2101
    %s2104 = scalar_lea.vmem [#allocation3], 4
    %2105 = vst.msk [vmem:[%s2104] sm:$0xf] %vm604, %v2096
    %v2106 = vld [vmem:[#allocation6] sm:$0xf]
    %v2107 = vld [vmem:[%s9] sm:$0xf]
    %v2108 = vld [vmem:[%s9 + $0x4] sm:$0xf]
    %v2109 = vld [vmem:[%s9 + $0x8] sm:$0xf]
    %v2110 = vld [vmem:[%s9 + $0xc] sm:$0xf]
    %s2111 = scalar_lea.vmem [#allocation4], 28
    %v2112 = vld [vmem:[%s2111] sm:$0xf]
    %v2113 = vunpack.c.l.bf16 %v2112
    %v2118 = vunpack.c.l.b16 %v2107
    %v2119 = vunpack.c.l.b16 %v2108
    %v2120 = vunpack.c.l.b16 %v2109
    %v2121 = vunpack.c.l.b16 %v2110
    %v2122 = vpack.c.b16 %v2119, %v2118
    %v2123 = vpack.c.b16 %v2121, %v2120
    %v2127 = vsel %vm606, %v2106, 0
    %2129 = vmatprep.subr.bf16.mxu0 0
    %2130 = vmatpush1.bf16.msra.mxu0 0
    %2131 = vmatprep.subr.bf16.mxu0 0
    %2132 = vmatpush1.bf16.msra.mxu0 0
    %2133 = vmatprep.subr.bf16.mxu0 0
    %2134 = vmatpush1.bf16.msra.mxu0 0
    %2135 = vmatprep.subr.bf16.mxu0 0
    %2136 = vmatpush1.bf16.msra.mxu0 0
    %2137 = vmatprep.subr.bf16.mxu0 0
    %2138 = vmatpush1.bf16.msra.mxu0 0
    %2139 = vmatprep.subr.bf16.mxu0 0
    %2140 = vmatpush1.bf16.msra.mxu0 0
    %2141 = vmatprep.subr.bf16.mxu0 0
    %2142 = vmatpush1.bf16.msra.mxu0 %v2123
    %2143 = vmatprep.subr.bf16.mxu0 0
    %2144 = vmatpush1.bf16.msra.mxu0 %v2122
    %2145 = vmatprep.subr.bf16.mxu0 0
    %2146 = vmatpush2.bf16.msra.mxu0 0
    %2147 = vmatprep.subr.bf16.mxu0 0
    %2148 = vmatpush2.bf16.msra.mxu0 0
    %2149 = vmatprep.subr.bf16.mxu0 0
    %2150 = vmatpush2.bf16.msra.mxu0 0
    %2151 = vmatprep.subr.bf16.mxu0 0
    %2152 = vmatpush2.bf16.msra.mxu0 0
    %2153 = vmatprep.subr.bf16.mxu0 0
    %2154 = vmatpush2.bf16.msra.mxu0 0
    %2155 = vmatprep.subr.bf16.mxu0 0
    %2156 = vmatpush2.bf16.msra.mxu0 0
    %2157 = vmatprep.subr.bf16.mxu0 0
    %2158 = vmatpush2.bf16.msra.mxu0 0
    %2159 = vmatprep.subr.bf16.mxu0 0
    %2160 = vmatpush2.bf16.msra.mxu0 0
    %2161 = vmatprep.mubr.bf16.mxu0 0
    %2162 = vmatmul.mubr.bf16.gmra.mxu0 %v2127
    %v2163 = vpop.f32.mrf.mxu0
    %v2164 = vadd.f32 %v2113, %v2163
    %v2165 = vpop.f32.mrf.mxu0
    %v2166 = vpop.f32.mrf.mxu0
    %v2167 = vpop.f32.mrf.mxu0
    %2168 = vdwg.mxu0
    %v2169 = vxor.u32 %v2164, 2147483648
    %v2170 = vmul.f32 %v2169, 1.442695
    %v2171 = vpow.pop %v2170
    %v2172 = vadd.f32 %v2171, 1.0
    %v2173 = vrcp.pop %v2172
    %v2174 = vmul.f32 1.0, %v2173
    %v2175 = vtanh.pop %v2164
    %v2176 = vld [vmem:[#allocation8] sm:$0xff]
    %2178 = vrot.lane.b32.xlu0 %v2176, 32
    %v2179 = vpop.permute.xlu0 %2178
    %v2181 = vmul.f32 %v2174, %v2179
    %2183 = vrot.lane.b32.xlu0 %v2175, 64
    %v2184 = vpop.permute.xlu0 %2183
    %v2186 = vmul.f32 %v2174, %v2184
    %2188 = vrot.lane.b32.xlu0 %v2186, 32
    %v2189 = vpop.permute.xlu0 %2188
    %v2191 = vadd.f32 %v2181, %v2189
    %v2192 = vtanh.pop %v2191
    %2194 = vrot.lane.b32.xlu0 %v2192, 64
    %v2195 = vpop.permute.xlu0 %2194
    %v2197 = vmul.f32 %v2174, %v2195
    %v2198 = vpack.c.bf16 %v2197, %v2197
    %v2200 = vunpack.c.l.b16 %v2198
    %v2201 = vpack.c.b16 %v2200, %v2200
    %2202 = vrot.lane.b32.xlu0 %v2201, 32
    %v2203 = vpop.permute.xlu0 %2202
    %2205 = vst.msk [vmem:[#allocation6] sm:$0xf] %vm604, %v2203
    %2207 = vrot.lane.b32.xlu0 %v2191, 96
    %v2208 = vpop.permute.xlu0 %2207
    %2210 = vst.msk [vmem:[#allocation8] sm:$0xff] %vm606, %v2208
    %s2211 = scalar_lea.vmem [#allocation2], 28
    %2212 = vst.msk [vmem:[%s2211] sm:$0xf] %vm604, %v2203
    %v2213 = vld [vmem:[#allocation7] sm:$0xf]
    %v2214 = vld [vmem:[#allocation25] sm:$0xf]
    %v2215 = vld [vmem:[#allocation25 + $0x4] sm:$0xf]
    %v2216 = vld [vmem:[#allocation25 + $0x8] sm:$0xf]
    %v2217 = vld [vmem:[#allocation25 + $0xc] sm:$0xf]
    %v2218 = vld [vmem:[#allocation5] sm:$0xf]
    %v2219 = vunpack.c.l.bf16 %v2218
    %v2224 = vunpack.c.l.b16 %v2214
    %v2225 = vunpack.c.l.b16 %v2215
    %v2226 = vunpack.c.l.b16 %v2216
    %v2227 = vunpack.c.l.b16 %v2217
    %v2228 = vpack.c.b16 %v2225, %v2224
    %v2229 = vpack.c.b16 %v2227, %v2226
    %v2233 = vsel %vm606, %v2213, 0
    %2235 = vmatprep.subr.bf16.mxu0 0
    %2236 = vmatpush1.bf16.msra.mxu0 0
    %2237 = vmatprep.subr.bf16.mxu0 0
    %2238 = vmatpush1.bf16.msra.mxu0 0
    %2239 = vmatprep.subr.bf16.mxu0 0
    %2240 = vmatpush1.bf16.msra.mxu0 0
    %2241 = vmatprep.subr.bf16.mxu0 0
    %2242 = vmatpush1.bf16.msra.mxu0 0
    %2243 = vmatprep.subr.bf16.mxu0 0
    %2244 = vmatpush1.bf16.msra.mxu0 0
    %2245 = vmatprep.subr.bf16.mxu0 0
    %2246 = vmatpush1.bf16.msra.mxu0 0
    %2247 = vmatprep.subr.bf16.mxu0 0
    %2248 = vmatpush1.bf16.msra.mxu0 %v2229
    %2249 = vmatprep.subr.bf16.mxu0 0
    %2250 = vmatpush1.bf16.msra.mxu0 %v2228
    %2251 = vmatprep.subr.bf16.mxu0 0
    %2252 = vmatpush2.bf16.msra.mxu0 0
    %2253 = vmatprep.subr.bf16.mxu0 0
    %2254 = vmatpush2.bf16.msra.mxu0 0
    %2255 = vmatprep.subr.bf16.mxu0 0
    %2256 = vmatpush2.bf16.msra.mxu0 0
    %2257 = vmatprep.subr.bf16.mxu0 0
    %2258 = vmatpush2.bf16.msra.mxu0 0
    %2259 = vmatprep.subr.bf16.mxu0 0
    %2260 = vmatpush2.bf16.msra.mxu0 0
    %2261 = vmatprep.subr.bf16.mxu0 0
    %2262 = vmatpush2.bf16.msra.mxu0 0
    %2263 = vmatprep.subr.bf16.mxu0 0
    %2264 = vmatpush2.bf16.msra.mxu0 0
    %2265 = vmatprep.subr.bf16.mxu0 0
    %2266 = vmatpush2.bf16.msra.mxu0 0
    %2267 = vmatprep.mubr.bf16.mxu0 0
    %2268 = vmatmul.mubr.bf16.gmra.mxu0 %v2233
    %v2269 = vpop.f32.mrf.mxu0
    %v2270 = vadd.f32 %v2219, %v2269
    %v2271 = vpop.f32.mrf.mxu0
    %v2272 = vpop.f32.mrf.mxu0
    %v2273 = vpop.f32.mrf.mxu0
    %2274 = vdwg.mxu0
    %v2275 = vxor.u32 %v2270, 2147483648
    %v2276 = vmul.f32 %v2275, 1.442695
    %v2277 = vpow.pop %v2276
    %v2278 = vadd.f32 %v2277, 1.0
    %v2279 = vrcp.pop %v2278
    %v2280 = vmul.f32 1.0, %v2279
    %v2281 = vtanh.pop %v2270
    %v2282 = vld [vmem:[#allocation9] sm:$0xff]
    %2284 = vrot.lane.b32.xlu0 %v2282, 32
    %v2285 = vpop.permute.xlu0 %2284
    %v2287 = vmul.f32 %v2280, %v2285
    %2289 = vrot.lane.b32.xlu0 %v2281, 64
    %v2290 = vpop.permute.xlu0 %2289
    %v2292 = vmul.f32 %v2280, %v2290
    %2294 = vrot.lane.b32.xlu0 %v2292, 32
    %v2295 = vpop.permute.xlu0 %2294
    %v2297 = vadd.f32 %v2287, %v2295
    %v2298 = vtanh.pop %v2297
    %2300 = vrot.lane.b32.xlu0 %v2298, 64
    %v2301 = vpop.permute.xlu0 %2300
    %v2303 = vmul.f32 %v2280, %v2301
    %v2304 = vpack.c.bf16 %v2303, %v2303
    %v2306 = vunpack.c.l.b16 %v2304
    %v2307 = vpack.c.b16 %v2306, %v2306
    %2308 = vrot.lane.b32.xlu0 %v2307, 32
    %v2309 = vpop.permute.xlu0 %2308
    %2311 = vst.msk [vmem:[#allocation7] sm:$0xf] %vm604, %v2309
    %2313 = vrot.lane.b32.xlu0 %v2297, 96
    %v2314 = vpop.permute.xlu0 %2313
    %2316 = vst.msk [vmem:[#allocation9] sm:$0xff] %vm606, %v2314
    %2317 = vst.msk [vmem:[#allocation3] sm:$0xf] %vm604, %v2309
    %v2318 = vld [vmem:[#allocation2] sm:$0xf]
    %v2319 = vld [vmem:[#allocation2 + $0x4] sm:$0xf]
    %v2320 = vld [vmem:[#allocation2 + $0x8] sm:$0xf]
    %v2321 = vld [vmem:[#allocation2 + $0xc] sm:$0xf]
    %v2322 = vld [vmem:[#allocation2 + $0x10] sm:$0xf]
    %v2323 = vld [vmem:[#allocation2 + $0x14] sm:$0xf]
    %v2324 = vld [vmem:[#allocation2 + $0x18] sm:$0xf]
    %v2325 = vld [vmem:[#allocation2 + $0x1c] sm:$0xf]
    %v2326 = vld [vmem:[#allocation3] sm:$0xf]
    %v2327 = vld [vmem:[#allocation3 + $0x4] sm:$0xf]
    %v2328 = vld [vmem:[#allocation3 + $0x8] sm:$0xf]
    %v2329 = vld [vmem:[#allocation3 + $0xc] sm:$0xf]
    %v2330 = vld [vmem:[#allocation3 + $0x10] sm:$0xf]
    %v2331 = vld [vmem:[#allocation3 + $0x14] sm:$0xf]
    %v2332 = vld [vmem:[#allocation3 + $0x18] sm:$0xf]
    %v2333 = vld [vmem:[#allocation3 + $0x1c] sm:$0xf]
    %v2334 = vld [vmem:[#allocation16] sm:$0xf]
    %v2335 = vld [vmem:[#allocation16 + $0x4] sm:$0xf]
    %v2336 = vld [vmem:[#allocation16 + $0x8] sm:$0xf]
    %v2337 = vld [vmem:[#allocation16 + $0xc] sm:$0xf]
    %v2338 = vld [vmem:[#allocation16 + $0x10] sm:$0xf]
    %v2339 = vld [vmem:[#allocation16 + $0x14] sm:$0xf]
    %v2340 = vld [vmem:[#allocation16 + $0x18] sm:$0xf]
    %v2341 = vld [vmem:[#allocation16 + $0x1c] sm:$0xf]
    %v2350 = vunpack.c.l.b16 %v2326
    %v2351 = vunpack.c.l.b16 %v2327
    %v2352 = vunpack.c.l.b16 %v2328
    %v2353 = vunpack.c.l.b16 %v2329
    %v2354 = vunpack.c.l.b16 %v2330
    %v2355 = vunpack.c.l.b16 %v2331
    %v2356 = vunpack.c.l.b16 %v2332
    %v2357 = vunpack.c.l.b16 %v2333
    %v2358 = vpack.c.b16 %v2351, %v2350
    %v2359 = vpack.c.b16 %v2353, %v2352
    %v2360 = vpack.c.b16 %v2355, %v2354
    %v2361 = vpack.c.b16 %v2357, %v2356
    %v2366 = vunpack.c.l.b16 %v2338
    %v2367 = vunpack.c.l.b16 %v2339
    %v2368 = vunpack.c.l.b16 %v2340
    %v2369 = vunpack.c.l.b16 %v2341
    %v2370 = vpack.c.b16 %v2367, %v2366
    %v2371 = vpack.c.b16 %v2369, %v2368
    %v2375 = vsel %vm606, %v2358, 0
    %v2378 = vsel %vm606, %v2359, 0
    %v2381 = vsel %vm606, %v2360, 0
    %v2384 = vsel %vm606, %v2361, 0
    %2386 = vmatprep.subr.bf16.mxu0 0
    %2387 = vmatpush1.bf16.msra.mxu0 0
    %2388 = vmatprep.subr.bf16.mxu0 0
    %2389 = vmatpush1.bf16.msra.mxu0 0
    %2390 = vmatprep.subr.bf16.mxu0 0
    %2391 = vmatpush1.bf16.msra.mxu0 0
    %2392 = vmatprep.subr.bf16.mxu0 0
    %2393 = vmatpush1.bf16.msra.mxu0 0
    %2394 = vmatprep.subr.bf16.mxu0 0
    %2395 = vmatpush1.bf16.msra.mxu0 0
    %2396 = vmatprep.subr.bf16.mxu0 0
    %2397 = vmatpush1.bf16.msra.mxu0 0
    %2398 = vmatprep.subr.bf16.mxu0 0
    %2399 = vmatpush1.bf16.msra.mxu0 %v2371
    %2400 = vmatprep.subr.bf16.mxu0 0
    %2401 = vmatpush1.bf16.msra.mxu0 %v2370
    %2402 = vmatprep.subr.bf16.mxu0 0
    %2403 = vmatpush2.bf16.msra.mxu0 0
    %2404 = vmatprep.subr.bf16.mxu0 0
    %2405 = vmatpush2.bf16.msra.mxu0 0
    %2406 = vmatprep.subr.bf16.mxu0 0
    %2407 = vmatpush2.bf16.msra.mxu0 0
    %2408 = vmatprep.subr.bf16.mxu0 0
    %2409 = vmatpush2.bf16.msra.mxu0 0
    %2410 = vmatprep.subr.bf16.mxu0 0
    %2411 = vmatpush2.bf16.msra.mxu0 0
    %2412 = vmatprep.subr.bf16.mxu0 0
    %2413 = vmatpush2.bf16.msra.mxu0 0
    %2414 = vmatprep.subr.bf16.mxu0 0
    %2415 = vmatpush2.bf16.msra.mxu0 0
    %2416 = vmatprep.subr.bf16.mxu0 0
    %2417 = vmatpush2.bf16.msra.mxu0 0
    %2418 = vmatprep.mubr.bf16.mxu0 0
    %2419 = vmatmul.mubr.bf16.gmra.mxu0 %v2375
    %v2420 = vpop.f32.mrf.mxu0
    %v2421 = vadd.f32 0.0, %v2420
    %v2422 = vpop.f32.mrf.mxu0
    %v2423 = vpop.f32.mrf.mxu0
    %v2424 = vadd.f32 0.0, %v2423
    %v2425 = vpop.f32.mrf.mxu0
    %2426 = vmatprep.mubr.bf16.mxu0 0
    %2427 = vmatmul.mubr.bf16.gmra.mxu0 %v2378
    %v2428 = vpop.f32.mrf.mxu0
    %v2429 = vadd.f32 0.0, %v2428
    %v2430 = vpop.f32.mrf.mxu0
    %v2431 = vpop.f32.mrf.mxu0
    %v2432 = vadd.f32 0.0, %v2431
    %v2433 = vpop.f32.mrf.mxu0
    %2434 = vmatprep.mubr.bf16.mxu0 0
    %2435 = vmatmul.mubr.bf16.gmra.mxu0 %v2381
    %v2436 = vpop.f32.mrf.mxu0
    %v2437 = vadd.f32 0.0, %v2436
    %v2438 = vpop.f32.mrf.mxu0
    %v2439 = vpop.f32.mrf.mxu0
    %v2440 = vadd.f32 0.0, %v2439
    %v2441 = vpop.f32.mrf.mxu0
    %2442 = vmatprep.mubr.bf16.mxu0 0
    %2443 = vmatmul.mubr.bf16.gmra.mxu0 %v2384
    %v2444 = vpop.f32.mrf.mxu0
    %v2445 = vadd.f32 0.0, %v2444
    %v2446 = vpop.f32.mrf.mxu0
    %v2447 = vpop.f32.mrf.mxu0
    %v2448 = vadd.f32 0.0, %v2447
    %v2449 = vpop.f32.mrf.mxu0
    %2450 = vdwg.mxu0
    %v2459 = vunpack.c.l.b16 %v2318
    %v2460 = vunpack.c.l.b16 %v2319
    %v2461 = vunpack.c.l.b16 %v2320
    %v2462 = vunpack.c.l.b16 %v2321
    %v2463 = vunpack.c.l.b16 %v2322
    %v2464 = vunpack.c.l.b16 %v2323
    %v2465 = vunpack.c.l.b16 %v2324
    %v2466 = vunpack.c.l.b16 %v2325
    %v2467 = vpack.c.b16 %v2460, %v2459
    %v2468 = vpack.c.b16 %v2462, %v2461
    %v2469 = vpack.c.b16 %v2464, %v2463
    %v2470 = vpack.c.b16 %v2466, %v2465
    %v2475 = vunpack.c.l.b16 %v2334
    %v2476 = vunpack.c.l.b16 %v2335
    %v2477 = vunpack.c.l.b16 %v2336
    %v2478 = vunpack.c.l.b16 %v2337
    %v2479 = vpack.c.b16 %v2476, %v2475
    %v2480 = vpack.c.b16 %v2478, %v2477
    %v2484 = vsel %vm606, %v2467, 0
    %v2487 = vsel %vm606, %v2468, 0
    %v2490 = vsel %vm606, %v2469, 0
    %v2493 = vsel %vm606, %v2470, 0
    %2495 = vmatprep.subr.bf16.mxu0 0
    %2496 = vmatpush1.bf16.msra.mxu0 0
    %2497 = vmatprep.subr.bf16.mxu0 0
    %2498 = vmatpush1.bf16.msra.mxu0 0
    %2499 = vmatprep.subr.bf16.mxu0 0
    %2500 = vmatpush1.bf16.msra.mxu0 0
    %2501 = vmatprep.subr.bf16.mxu0 0
    %2502 = vmatpush1.bf16.msra.mxu0 0
    %2503 = vmatprep.subr.bf16.mxu0 0
    %2504 = vmatpush1.bf16.msra.mxu0 0
    %2505 = vmatprep.subr.bf16.mxu0 0
    %2506 = vmatpush1.bf16.msra.mxu0 0
    %2507 = vmatprep.subr.bf16.mxu0 0
    %2508 = vmatpush1.bf16.msra.mxu0 %v2480
    %2509 = vmatprep.subr.bf16.mxu0 0
    %2510 = vmatpush1.bf16.msra.mxu0 %v2479
    %2511 = vmatprep.subr.bf16.mxu0 0
    %2512 = vmatpush2.bf16.msra.mxu0 0
    %2513 = vmatprep.subr.bf16.mxu0 0
    %2514 = vmatpush2.bf16.msra.mxu0 0
    %2515 = vmatprep.subr.bf16.mxu0 0
    %2516 = vmatpush2.bf16.msra.mxu0 0
    %2517 = vmatprep.subr.bf16.mxu0 0
    %2518 = vmatpush2.bf16.msra.mxu0 0
    %2519 = vmatprep.subr.bf16.mxu0 0
    %2520 = vmatpush2.bf16.msra.mxu0 0
    %2521 = vmatprep.subr.bf16.mxu0 0
    %2522 = vmatpush2.bf16.msra.mxu0 0
    %2523 = vmatprep.subr.bf16.mxu0 0
    %2524 = vmatpush2.bf16.msra.mxu0 0
    %2525 = vmatprep.subr.bf16.mxu0 0
    %2526 = vmatpush2.bf16.msra.mxu0 0
    %2527 = vmatprep.mubr.bf16.mxu0 0
    %2528 = vmatmul.mubr.bf16.gmra.mxu0 %v2484
    %v2529 = vpop.f32.mrf.mxu0
    %v2530 = vadd.f32 %v2421, %v2529
    %v2531 = vpop.f32.mrf.mxu0
    %v2532 = vpop.f32.mrf.mxu0
    %v2533 = vadd.f32 %v2424, %v2532
    %v2534 = vpop.f32.mrf.mxu0
    %2535 = vmatprep.mubr.bf16.mxu0 0
    %2536 = vmatmul.mubr.bf16.gmra.mxu0 %v2487
    %v2537 = vpop.f32.mrf.mxu0
    %v2538 = vadd.f32 %v2429, %v2537
    %v2539 = vpop.f32.mrf.mxu0
    %v2540 = vpop.f32.mrf.mxu0
    %v2541 = vadd.f32 %v2432, %v2540
    %v2542 = vpop.f32.mrf.mxu0
    %2543 = vmatprep.mubr.bf16.mxu0 0
    %2544 = vmatmul.mubr.bf16.gmra.mxu0 %v2490
    %v2545 = vpop.f32.mrf.mxu0
    %v2546 = vadd.f32 %v2437, %v2545
    %v2547 = vpop.f32.mrf.mxu0
    %v2548 = vpop.f32.mrf.mxu0
    %v2549 = vadd.f32 %v2440, %v2548
    %v2550 = vpop.f32.mrf.mxu0
    %2551 = vmatprep.mubr.bf16.mxu0 0
    %2552 = vmatmul.mubr.bf16.gmra.mxu0 %v2493
    %v2553 = vpop.f32.mrf.mxu0
    %v2554 = vadd.f32 %v2445, %v2553
    %v2555 = vpop.f32.mrf.mxu0
    %v2556 = vpop.f32.mrf.mxu0
    %v2557 = vadd.f32 %v2448, %v2556
    %v2558 = vpop.f32.mrf.mxu0
    %2559 = vdwg.mxu0
    %v2560 = vld [vmem:[#allocation22] sm:$0x1]
    %v2562 = vlaneseq
    %v2563 = vshrl.u32 %v2562, 7
    %v2564 = vsub.s32 0, %v2563
    %v2565 = vrot.slane %v2560, %v2564
    %v2567 = vadd.f32 %v2530, %v2565
    %v2568 = vadd.f32 %v2533, %v2565
    %v2569 = vadd.f32 %v2538, %v2565
    %v2570 = vadd.f32 %v2541, %v2565
    %v2571 = vadd.f32 %v2546, %v2565
    %v2572 = vadd.f32 %v2549, %v2565
    %v2573 = vadd.f32 %v2554, %v2565
    %v2574 = vadd.f32 %v2557, %v2565
    %v2575 = vpack.c.bf16 %v2568, %v2567
    %v2576 = vpack.c.bf16 %v2570, %v2569
    %v2577 = vpack.c.bf16 %v2572, %v2571
    %v2578 = vpack.c.bf16 %v2574, %v2573
    %v2583 = vunpack.c.l.b16 %v2575
    %v2584 = vunpack.c.h.b16 %v2575
    %v2585 = vunpack.c.l.b16 %v2576
    %v2586 = vunpack.c.h.b16 %v2576
    %v2587 = vunpack.c.l.b16 %v2577
    %v2588 = vunpack.c.h.b16 %v2577
    %v2589 = vunpack.c.l.b16 %v2578
    %v2590 = vunpack.c.h.b16 %v2578
    %v2591 = vpack.c.b16 %v2583, %v2583
    %v2592 = vpack.c.b16 %v2584, %v2584
    %v2593 = vpack.c.b16 %v2585, %v2585
    %v2594 = vpack.c.b16 %v2586, %v2586
    %v2595 = vpack.c.b16 %v2587, %v2587
    %v2596 = vpack.c.b16 %v2588, %v2588
    %v2597 = vpack.c.b16 %v2589, %v2589
    %v2598 = vpack.c.b16 %v2590, %v2590
    %2607 = vst [vmem:[#allocation4] sm:$0xf] %v2591
    %2608 = vst [vmem:[#allocation4 + $0x4] sm:$0xf] %v2592
    %2609 = vst [vmem:[#allocation4 + $0x8] sm:$0xf] %v2593
    %2610 = vst [vmem:[#allocation4 + $0xc] sm:$0xf] %v2594
    %2611 = vst [vmem:[#allocation4 + $0x10] sm:$0xf] %v2595
    %2612 = vst [vmem:[#allocation4 + $0x14] sm:$0xf] %v2596
    %2613 = vst [vmem:[#allocation4 + $0x18] sm:$0xf] %v2597
    %2614 = vst [vmem:[#allocation4 + $0x1c] sm:$0xf] %v2598
    %v2615 = vld [vmem:[#allocation18] sm:$0xf]
    %v2616 = vld [vmem:[#allocation18 + $0x4] sm:$0xf]
    %v2617 = vld [vmem:[#allocation18 + $0x8] sm:$0xf]
    %v2618 = vld [vmem:[#allocation18 + $0xc] sm:$0xf]
    %v2619 = vld [vmem:[#allocation18 + $0x10] sm:$0xf]
    %v2620 = vld [vmem:[#allocation18 + $0x14] sm:$0xf]
    %v2621 = vld [vmem:[#allocation18 + $0x18] sm:$0xf]
    %v2622 = vld [vmem:[#allocation18 + $0x1c] sm:$0xf]
    %v2627 = vunpack.c.l.b16 %v2619
    %v2628 = vunpack.c.l.b16 %v2620
    %v2629 = vunpack.c.l.b16 %v2621
    %v2630 = vunpack.c.l.b16 %v2622
    %v2631 = vpack.c.b16 %v2628, %v2627
    %v2632 = vpack.c.b16 %v2630, %v2629
    %2635 = vmatprep.subr.bf16.mxu0 0
    %2636 = vmatpush1.bf16.msra.mxu0 0
    %2637 = vmatprep.subr.bf16.mxu0 0
    %2638 = vmatpush1.bf16.msra.mxu0 0
    %2639 = vmatprep.subr.bf16.mxu0 0
    %2640 = vmatpush1.bf16.msra.mxu0 0
    %2641 = vmatprep.subr.bf16.mxu0 0
    %2642 = vmatpush1.bf16.msra.mxu0 0
    %2643 = vmatprep.subr.bf16.mxu0 0
    %2644 = vmatpush1.bf16.msra.mxu0 0
    %2645 = vmatprep.subr.bf16.mxu0 0
    %2646 = vmatpush1.bf16.msra.mxu0 0
    %2647 = vmatprep.subr.bf16.mxu0 0
    %2648 = vmatpush1.bf16.msra.mxu0 %v2632
    %2649 = vmatprep.subr.bf16.mxu0 0
    %2650 = vmatpush1.bf16.msra.mxu0 %v2631
    %2651 = vmatprep.subr.bf16.mxu0 0
    %2652 = vmatpush2.bf16.msra.mxu0 0
    %2653 = vmatprep.subr.bf16.mxu0 0
    %2654 = vmatpush2.bf16.msra.mxu0 0
    %2655 = vmatprep.subr.bf16.mxu0 0
    %2656 = vmatpush2.bf16.msra.mxu0 0
    %2657 = vmatprep.subr.bf16.mxu0 0
    %2658 = vmatpush2.bf16.msra.mxu0 0
    %2659 = vmatprep.subr.bf16.mxu0 0
    %2660 = vmatpush2.bf16.msra.mxu0 0
    %2661 = vmatprep.subr.bf16.mxu0 0
    %2662 = vmatpush2.bf16.msra.mxu0 0
    %2663 = vmatprep.subr.bf16.mxu0 0
    %2664 = vmatpush2.bf16.msra.mxu0 0
    %2665 = vmatprep.subr.bf16.mxu0 0
    %2666 = vmatpush2.bf16.msra.mxu0 0
    %2667 = vmatprep.mubr.bf16.mxu0 0
    %2668 = vmatmul.mubr.bf16.gmra.mxu0 %v2375
    %v2669 = vpop.f32.mrf.mxu0
    %v2670 = vadd.f32 0.0, %v2669
    %v2671 = vpop.f32.mrf.mxu0
    %v2672 = vpop.f32.mrf.mxu0
    %v2673 = vadd.f32 0.0, %v2672
    %v2674 = vpop.f32.mrf.mxu0
    %2675 = vmatprep.mubr.bf16.mxu0 0
    %2676 = vmatmul.mubr.bf16.gmra.mxu0 %v2378
    %v2677 = vpop.f32.mrf.mxu0
    %v2678 = vadd.f32 0.0, %v2677
    %v2679 = vpop.f32.mrf.mxu0
    %v2680 = vpop.f32.mrf.mxu0
    %v2681 = vadd.f32 0.0, %v2680
    %v2682 = vpop.f32.mrf.mxu0
    %2683 = vmatprep.mubr.bf16.mxu0 0
    %2684 = vmatmul.mubr.bf16.gmra.mxu0 %v2381
    %v2685 = vpop.f32.mrf.mxu0
    %v2686 = vadd.f32 0.0, %v2685
    %v2687 = vpop.f32.mrf.mxu0
    %v2688 = vpop.f32.mrf.mxu0
    %v2689 = vadd.f32 0.0, %v2688
    %v2690 = vpop.f32.mrf.mxu0
    %2691 = vmatprep.mubr.bf16.mxu0 0
    %2692 = vmatmul.mubr.bf16.gmra.mxu0 %v2384
    %v2693 = vpop.f32.mrf.mxu0
    %v2694 = vadd.f32 0.0, %v2693
    %v2695 = vpop.f32.mrf.mxu0
    %v2696 = vpop.f32.mrf.mxu0
    %v2697 = vadd.f32 0.0, %v2696
    %v2698 = vpop.f32.mrf.mxu0
    %2699 = vdwg.mxu0
    %v2704 = vunpack.c.l.b16 %v2615
    %v2705 = vunpack.c.l.b16 %v2616
    %v2706 = vunpack.c.l.b16 %v2617
    %v2707 = vunpack.c.l.b16 %v2618
    %v2708 = vpack.c.b16 %v2705, %v2704
    %v2709 = vpack.c.b16 %v2707, %v2706
    %2712 = vmatprep.subr.bf16.mxu0 0
    %2713 = vmatpush1.bf16.msra.mxu0 0
    %2714 = vmatprep.subr.bf16.mxu0 0
    %2715 = vmatpush1.bf16.msra.mxu0 0
    %2716 = vmatprep.subr.bf16.mxu0 0
    %2717 = vmatpush1.bf16.msra.mxu0 0
    %2718 = vmatprep.subr.bf16.mxu0 0
    %2719 = vmatpush1.bf16.msra.mxu0 0
    %2720 = vmatprep.subr.bf16.mxu0 0
    %2721 = vmatpush1.bf16.msra.mxu0 0
    %2722 = vmatprep.subr.bf16.mxu0 0
    %2723 = vmatpush1.bf16.msra.mxu0 0
    %2724 = vmatprep.subr.bf16.mxu0 0
    %2725 = vmatpush1.bf16.msra.mxu0 %v2709
    %2726 = vmatprep.subr.bf16.mxu0 0
    %2727 = vmatpush1.bf16.msra.mxu0 %v2708
    %2728 = vmatprep.subr.bf16.mxu0 0
    %2729 = vmatpush2.bf16.msra.mxu0 0
    %2730 = vmatprep.subr.bf16.mxu0 0
    %2731 = vmatpush2.bf16.msra.mxu0 0
    %2732 = vmatprep.subr.bf16.mxu0 0
    %2733 = vmatpush2.bf16.msra.mxu0 0
    %2734 = vmatprep.subr.bf16.mxu0 0
    %2735 = vmatpush2.bf16.msra.mxu0 0
    %2736 = vmatprep.subr.bf16.mxu0 0
    %2737 = vmatpush2.bf16.msra.mxu0 0
    %2738 = vmatprep.subr.bf16.mxu0 0
    %2739 = vmatpush2.bf16.msra.mxu0 0
    %2740 = vmatprep.subr.bf16.mxu0 0
    %2741 = vmatpush2.bf16.msra.mxu0 0
    %2742 = vmatprep.subr.bf16.mxu0 0
    %2743 = vmatpush2.bf16.msra.mxu0 0
    %2744 = vmatprep.mubr.bf16.mxu0 0
    %2745 = vmatmul.mubr.bf16.gmra.mxu0 %v2484
    %v2746 = vpop.f32.mrf.mxu0
    %v2747 = vadd.f32 %v2670, %v2746
    %v2748 = vpop.f32.mrf.mxu0
    %v2749 = vpop.f32.mrf.mxu0
    %v2750 = vadd.f32 %v2673, %v2749
    %v2751 = vpop.f32.mrf.mxu0
    %2752 = vmatprep.mubr.bf16.mxu0 0
    %2753 = vmatmul.mubr.bf16.gmra.mxu0 %v2487
    %v2754 = vpop.f32.mrf.mxu0
    %v2755 = vadd.f32 %v2678, %v2754
    %v2756 = vpop.f32.mrf.mxu0
    %v2757 = vpop.f32.mrf.mxu0
    %v2758 = vadd.f32 %v2681, %v2757
    %v2759 = vpop.f32.mrf.mxu0
    %2760 = vmatprep.mubr.bf16.mxu0 0
    %2761 = vmatmul.mubr.bf16.gmra.mxu0 %v2490
    %v2762 = vpop.f32.mrf.mxu0
    %v2763 = vadd.f32 %v2686, %v2762
    %v2764 = vpop.f32.mrf.mxu0
    %v2765 = vpop.f32.mrf.mxu0
    %v2766 = vadd.f32 %v2689, %v2765
    %v2767 = vpop.f32.mrf.mxu0
    %2768 = vmatprep.mubr.bf16.mxu0 0
    %2769 = vmatmul.mubr.bf16.gmra.mxu0 %v2493
    %v2770 = vpop.f32.mrf.mxu0
    %v2771 = vadd.f32 %v2694, %v2770
    %v2772 = vpop.f32.mrf.mxu0
    %v2773 = vpop.f32.mrf.mxu0
    %v2774 = vadd.f32 %v2697, %v2773
    %v2775 = vpop.f32.mrf.mxu0
    %2776 = vdwg.mxu0
    %v2777 = vld [vmem:[#allocation24] sm:$0x1]
    %v2779 = vlaneseq
    %v2780 = vshrl.u32 %v2779, 7
    %v2781 = vsub.s32 0, %v2780
    %v2782 = vrot.slane %v2777, %v2781
    %v2784 = vadd.f32 %v2747, %v2782
    %v2785 = vadd.f32 %v2750, %v2782
    %v2786 = vadd.f32 %v2755, %v2782
    %v2787 = vadd.f32 %v2758, %v2782
    %v2788 = vadd.f32 %v2763, %v2782
    %v2789 = vadd.f32 %v2766, %v2782
    %v2790 = vadd.f32 %v2771, %v2782
    %v2791 = vadd.f32 %v2774, %v2782
    %v2792 = vpack.c.bf16 %v2785, %v2784
    %v2793 = vpack.c.bf16 %v2787, %v2786
    %v2794 = vpack.c.bf16 %v2789, %v2788
    %v2795 = vpack.c.bf16 %v2791, %v2790
    %v2800 = vunpack.c.l.b16 %v2792
    %v2801 = vunpack.c.h.b16 %v2792
    %v2802 = vunpack.c.l.b16 %v2793
    %v2803 = vunpack.c.h.b16 %v2793
    %v2804 = vunpack.c.l.b16 %v2794
    %v2805 = vunpack.c.h.b16 %v2794
    %v2806 = vunpack.c.l.b16 %v2795
    %v2807 = vunpack.c.h.b16 %v2795
    %v2808 = vpack.c.b16 %v2800, %v2800
    %v2809 = vpack.c.b16 %v2801, %v2801
    %v2810 = vpack.c.b16 %v2802, %v2802
    %v2811 = vpack.c.b16 %v2803, %v2803
    %v2812 = vpack.c.b16 %v2804, %v2804
    %v2813 = vpack.c.b16 %v2805, %v2805
    %v2814 = vpack.c.b16 %v2806, %v2806
    %v2815 = vpack.c.b16 %v2807, %v2807
    %2824 = vst [vmem:[#allocation5] sm:$0xf] %v2808
    %2825 = vst [vmem:[#allocation5 + $0x4] sm:$0xf] %v2809
    %2826 = vst [vmem:[#allocation5 + $0x8] sm:$0xf] %v2810
    %2827 = vst [vmem:[#allocation5 + $0xc] sm:$0xf] %v2811
    %2828 = vst [vmem:[#allocation5 + $0x10] sm:$0xf] %v2812
    %2829 = vst [vmem:[#allocation5 + $0x14] sm:$0xf] %v2813
    %2830 = vst [vmem:[#allocation5 + $0x18] sm:$0xf] %v2814
    %2831 = vst [vmem:[#allocation5 + $0x1c] sm:$0xf] %v2815
    %2832 = vst.msk [vmem:[#allocation6] sm:$0xf] %vm604, 0
    %2833 = vst.msk [vmem:[#allocation8] sm:$0xff] %vm606, 0.0
    %2834 = vst.msk [vmem:[#allocation7] sm:$0xf] %vm604, 0
    %2835 = vst.msk [vmem:[#allocation9] sm:$0xff] %vm606, 0.0
    %v2836 = vld [vmem:[#allocation6] sm:$0xf]
    %v2837 = vld [vmem:[#allocation27] sm:$0xf]
    %v2838 = vld [vmem:[#allocation27 + $0x4] sm:$0xf]
    %v2839 = vld [vmem:[#allocation27 + $0x8] sm:$0xf]
    %v2840 = vld [vmem:[#allocation27 + $0xc] sm:$0xf]
    %v2841 = vld [vmem:[#allocation4] sm:$0xf]
    %v2842 = vunpack.c.l.bf16 %v2841
    %v2847 = vunpack.c.l.b16 %v2837
    %v2848 = vunpack.c.l.b16 %v2838
    %v2849 = vunpack.c.l.b16 %v2839
    %v2850 = vunpack.c.l.b16 %v2840
    %v2851 = vpack.c.b16 %v2848, %v2847
    %v2852 = vpack.c.b16 %v2850, %v2849
    %v2856 = vsel %vm606, %v2836, 0
    %2858 = vmatprep.subr.bf16.mxu0 0
    %2859 = vmatpush1.bf16.msra.mxu0 0
    %2860 = vmatprep.subr.bf16.mxu0 0
    %2861 = vmatpush1.bf16.msra.mxu0 0
    %2862 = vmatprep.subr.bf16.mxu0 0
    %2863 = vmatpush1.bf16.msra.mxu0 0
    %2864 = vmatprep.subr.bf16.mxu0 0
    %2865 = vmatpush1.bf16.msra.mxu0 0
    %2866 = vmatprep.subr.bf16.mxu0 0
    %2867 = vmatpush1.bf16.msra.mxu0 0
    %2868 = vmatprep.subr.bf16.mxu0 0
    %2869 = vmatpush1.bf16.msra.mxu0 0
    %2870 = vmatprep.subr.bf16.mxu0 0
    %2871 = vmatpush1.bf16.msra.mxu0 %v2852
    %2872 = vmatprep.subr.bf16.mxu0 0
    %2873 = vmatpush1.bf16.msra.mxu0 %v2851
    %2874 = vmatprep.subr.bf16.mxu0 0
    %2875 = vmatpush2.bf16.msra.mxu0 0
    %2876 = vmatprep.subr.bf16.mxu0 0
    %2877 = vmatpush2.bf16.msra.mxu0 0
    %2878 = vmatprep.subr.bf16.mxu0 0
    %2879 = vmatpush2.bf16.msra.mxu0 0
    %2880 = vmatprep.subr.bf16.mxu0 0
    %2881 = vmatpush2.bf16.msra.mxu0 0
    %2882 = vmatprep.subr.bf16.mxu0 0
    %2883 = vmatpush2.bf16.msra.mxu0 0
    %2884 = vmatprep.subr.bf16.mxu0 0
    %2885 = vmatpush2.bf16.msra.mxu0 0
    %2886 = vmatprep.subr.bf16.mxu0 0
    %2887 = vmatpush2.bf16.msra.mxu0 0
    %2888 = vmatprep.subr.bf16.mxu0 0
    %2889 = vmatpush2.bf16.msra.mxu0 0
    %2890 = vmatprep.mubr.bf16.mxu0 0
    %2891 = vmatmul.mubr.bf16.gmra.mxu0 %v2856
    %v2892 = vpop.f32.mrf.mxu0
    %v2893 = vadd.f32 %v2842, %v2892
    %v2894 = vpop.f32.mrf.mxu0
    %v2895 = vpop.f32.mrf.mxu0
    %v2896 = vpop.f32.mrf.mxu0
    %2897 = vdwg.mxu0
    %v2898 = vxor.u32 %v2893, 2147483648
    %v2899 = vmul.f32 %v2898, 1.442695
    %v2900 = vpow.pop %v2899
    %v2901 = vadd.f32 %v2900, 1.0
    %v2902 = vrcp.pop %v2901
    %v2903 = vmul.f32 1.0, %v2902
    %v2904 = vtanh.pop %v2893
    %v2905 = vld [vmem:[#allocation8] sm:$0xff]
    %2907 = vrot.lane.b32.xlu0 %v2905, 32
    %v2908 = vpop.permute.xlu0 %2907
    %v2910 = vmul.f32 %v2903, %v2908
    %2912 = vrot.lane.b32.xlu0 %v2904, 64
    %v2913 = vpop.permute.xlu0 %2912
    %v2915 = vmul.f32 %v2903, %v2913
    %2917 = vrot.lane.b32.xlu0 %v2915, 32
    %v2918 = vpop.permute.xlu0 %2917
    %v2920 = vadd.f32 %v2910, %v2918
    %v2921 = vtanh.pop %v2920
    %2923 = vrot.lane.b32.xlu0 %v2921, 64
    %v2924 = vpop.permute.xlu0 %2923
    %v2926 = vmul.f32 %v2903, %v2924
    %v2927 = vpack.c.bf16 %v2926, %v2926
    %v2929 = vunpack.c.l.b16 %v2927
    %v2930 = vpack.c.b16 %v2929, %v2929
    %2931 = vrot.lane.b32.xlu0 %v2930, 32
    %v2932 = vpop.permute.xlu0 %2931
    %2934 = vst.msk [vmem:[#allocation6] sm:$0xf] %vm604, %v2932
    %2936 = vrot.lane.b32.xlu0 %v2920, 96
    %v2937 = vpop.permute.xlu0 %2936
    %2939 = vst.msk [vmem:[#allocation8] sm:$0xff] %vm606, %v2937
    %2940 = vst.msk [vmem:[#allocation2] sm:$0xf] %vm604, %v2932
    %v2941 = vld [vmem:[#allocation7] sm:$0xf]
    %v2942 = vld [vmem:[#allocation28] sm:$0xf]
    %v2943 = vld [vmem:[#allocation28 + $0x4] sm:$0xf]
    %v2944 = vld [vmem:[#allocation28 + $0x8] sm:$0xf]
    %v2945 = vld [vmem:[#allocation28 + $0xc] sm:$0xf]
    %v2946 = vld [vmem:[%s720] sm:$0xf]
    %v2947 = vunpack.c.l.bf16 %v2946
    %v2952 = vunpack.c.l.b16 %v2942
    %v2953 = vunpack.c.l.b16 %v2943
    %v2954 = vunpack.c.l.b16 %v2944
    %v2955 = vunpack.c.l.b16 %v2945
    %v2956 = vpack.c.b16 %v2953, %v2952
    %v2957 = vpack.c.b16 %v2955, %v2954
    %v2961 = vsel %vm606, %v2941, 0
    %2963 = vmatprep.subr.bf16.mxu0 0
    %2964 = vmatpush1.bf16.msra.mxu0 0
    %2965 = vmatprep.subr.bf16.mxu0 0
    %2966 = vmatpush1.bf16.msra.mxu0 0
    %2967 = vmatprep.subr.bf16.mxu0 0
    %2968 = vmatpush1.bf16.msra.mxu0 0
    %2969 = vmatprep.subr.bf16.mxu0 0
    %2970 = vmatpush1.bf16.msra.mxu0 0
    %2971 = vmatprep.subr.bf16.mxu0 0
    %2972 = vmatpush1.bf16.msra.mxu0 0
    %2973 = vmatprep.subr.bf16.mxu0 0
    %2974 = vmatpush1.bf16.msra.mxu0 0
    %2975 = vmatprep.subr.bf16.mxu0 0
    %2976 = vmatpush1.bf16.msra.mxu0 %v2957
    %2977 = vmatprep.subr.bf16.mxu0 0
    %2978 = vmatpush1.bf16.msra.mxu0 %v2956
    %2979 = vmatprep.subr.bf16.mxu0 0
    %2980 = vmatpush2.bf16.msra.mxu0 0
    %2981 = vmatprep.subr.bf16.mxu0 0
    %2982 = vmatpush2.bf16.msra.mxu0 0
    %2983 = vmatprep.subr.bf16.mxu0 0
    %2984 = vmatpush2.bf16.msra.mxu0 0
    %2985 = vmatprep.subr.bf16.mxu0 0
    %2986 = vmatpush2.bf16.msra.mxu0 0
    %2987 = vmatprep.subr.bf16.mxu0 0
    %2988 = vmatpush2.bf16.msra.mxu0 0
    %2989 = vmatprep.subr.bf16.mxu0 0
    %2990 = vmatpush2.bf16.msra.mxu0 0
    %2991 = vmatprep.subr.bf16.mxu0 0
    %2992 = vmatpush2.bf16.msra.mxu0 0
    %2993 = vmatprep.subr.bf16.mxu0 0
    %2994 = vmatpush2.bf16.msra.mxu0 0
    %2995 = vmatprep.mubr.bf16.mxu0 0
    %2996 = vmatmul.mubr.bf16.gmra.mxu0 %v2961
    %v2997 = vpop.f32.mrf.mxu0
    %v2998 = vadd.f32 %v2947, %v2997
    %v2999 = vpop.f32.mrf.mxu0
    %v3000 = vpop.f32.mrf.mxu0
    %v3001 = vpop.f32.mrf.mxu0
    %3002 = vdwg.mxu0
    %v3003 = vxor.u32 %v2998, 2147483648
    %v3004 = vmul.f32 %v3003, 1.442695
    %v3005 = vpow.pop %v3004
    %v3006 = vadd.f32 %v3005, 1.0
    %v3007 = vrcp.pop %v3006
    %v3008 = vmul.f32 1.0, %v3007
    %v3009 = vtanh.pop %v2998
    %v3010 = vld [vmem:[#allocation9] sm:$0xff]
    %3012 = vrot.lane.b32.xlu0 %v3010, 32
    %v3013 = vpop.permute.xlu0 %3012
    %v3015 = vmul.f32 %v3008, %v3013
    %3017 = vrot.lane.b32.xlu0 %v3009, 64
    %v3018 = vpop.permute.xlu0 %3017
    %v3020 = vmul.f32 %v3008, %v3018
    %3022 = vrot.lane.b32.xlu0 %v3020, 32
    %v3023 = vpop.permute.xlu0 %3022
    %v3025 = vadd.f32 %v3015, %v3023
    %v3026 = vtanh.pop %v3025
    %3028 = vrot.lane.b32.xlu0 %v3026, 64
    %v3029 = vpop.permute.xlu0 %3028
    %v3031 = vmul.f32 %v3008, %v3029
    %v3032 = vpack.c.bf16 %v3031, %v3031
    %v3034 = vunpack.c.l.b16 %v3032
    %v3035 = vpack.c.b16 %v3034, %v3034
    %3036 = vrot.lane.b32.xlu0 %v3035, 32
    %v3037 = vpop.permute.xlu0 %3036
    %3039 = vst.msk [vmem:[#allocation7] sm:$0xf] %vm604, %v3037
    %3041 = vrot.lane.b32.xlu0 %v3025, 96
    %v3042 = vpop.permute.xlu0 %3041
    %3044 = vst.msk [vmem:[#allocation9] sm:$0xff] %vm606, %v3042
    %3045 = vst.msk [vmem:[%s820] sm:$0xf] %vm604, %v3037
    %v3046 = vld [vmem:[#allocation6] sm:$0xf]
    %v3047 = vld [vmem:[#allocation27] sm:$0xf]
    %v3048 = vld [vmem:[#allocation27 + $0x4] sm:$0xf]
    %v3049 = vld [vmem:[#allocation27 + $0x8] sm:$0xf]
    %v3050 = vld [vmem:[#allocation27 + $0xc] sm:$0xf]
    %v3051 = vld [vmem:[%s827] sm:$0xf]
    %v3052 = vunpack.c.l.bf16 %v3051
    %v3057 = vunpack.c.l.b16 %v3047
    %v3058 = vunpack.c.l.b16 %v3048
    %v3059 = vunpack.c.l.b16 %v3049
    %v3060 = vunpack.c.l.b16 %v3050
    %v3061 = vpack.c.b16 %v3058, %v3057
    %v3062 = vpack.c.b16 %v3060, %v3059
    %v3066 = vsel %vm606, %v3046, 0
    %3068 = vmatprep.subr.bf16.mxu0 0
    %3069 = vmatpush1.bf16.msra.mxu0 0
    %3070 = vmatprep.subr.bf16.mxu0 0
    %3071 = vmatpush1.bf16.msra.mxu0 0
    %3072 = vmatprep.subr.bf16.mxu0 0
    %3073 = vmatpush1.bf16.msra.mxu0 0
    %3074 = vmatprep.subr.bf16.mxu0 0
    %3075 = vmatpush1.bf16.msra.mxu0 0
    %3076 = vmatprep.subr.bf16.mxu0 0
    %3077 = vmatpush1.bf16.msra.mxu0 0
    %3078 = vmatprep.subr.bf16.mxu0 0
    %3079 = vmatpush1.bf16.msra.mxu0 0
    %3080 = vmatprep.subr.bf16.mxu0 0
    %3081 = vmatpush1.bf16.msra.mxu0 %v3062
    %3082 = vmatprep.subr.bf16.mxu0 0
    %3083 = vmatpush1.bf16.msra.mxu0 %v3061
    %3084 = vmatprep.subr.bf16.mxu0 0
    %3085 = vmatpush2.bf16.msra.mxu0 0
    %3086 = vmatprep.subr.bf16.mxu0 0
    %3087 = vmatpush2.bf16.msra.mxu0 0
    %3088 = vmatprep.subr.bf16.mxu0 0
    %3089 = vmatpush2.bf16.msra.mxu0 0
    %3090 = vmatprep.subr.bf16.mxu0 0
    %3091 = vmatpush2.bf16.msra.mxu0 0
    %3092 = vmatprep.subr.bf16.mxu0 0
    %3093 = vmatpush2.bf16.msra.mxu0 0
    %3094 = vmatprep.subr.bf16.mxu0 0
    %3095 = vmatpush2.bf16.msra.mxu0 0
    %3096 = vmatprep.subr.bf16.mxu0 0
    %3097 = vmatpush2.bf16.msra.mxu0 0
    %3098 = vmatprep.subr.bf16.mxu0 0
    %3099 = vmatpush2.bf16.msra.mxu0 0
    %3100 = vmatprep.mubr.bf16.mxu0 0
    %3101 = vmatmul.mubr.bf16.gmra.mxu0 %v3066
    %v3102 = vpop.f32.mrf.mxu0
    %v3103 = vadd.f32 %v3052, %v3102
    %v3104 = vpop.f32.mrf.mxu0
    %v3105 = vpop.f32.mrf.mxu0
    %v3106 = vpop.f32.mrf.mxu0
    %3107 = vdwg.mxu0
    %v3108 = vxor.u32 %v3103, 2147483648
    %v3109 = vmul.f32 %v3108, 1.442695
    %v3110 = vpow.pop %v3109
    %v3111 = vadd.f32 %v3110, 1.0
    %v3112 = vrcp.pop %v3111
    %v3113 = vmul.f32 1.0, %v3112
    %v3114 = vtanh.pop %v3103
    %v3115 = vld [vmem:[#allocation8] sm:$0xff]
    %3117 = vrot.lane.b32.xlu0 %v3115, 32
    %v3118 = vpop.permute.xlu0 %3117
    %v3120 = vmul.f32 %v3113, %v3118
    %3122 = vrot.lane.b32.xlu0 %v3114, 64
    %v3123 = vpop.permute.xlu0 %3122
    %v3125 = vmul.f32 %v3113, %v3123
    %3127 = vrot.lane.b32.xlu0 %v3125, 32
    %v3128 = vpop.permute.xlu0 %3127
    %v3130 = vadd.f32 %v3120, %v3128
    %v3131 = vtanh.pop %v3130
    %3133 = vrot.lane.b32.xlu0 %v3131, 64
    %v3134 = vpop.permute.xlu0 %3133
    %v3136 = vmul.f32 %v3113, %v3134
    %v3137 = vpack.c.bf16 %v3136, %v3136
    %v3139 = vunpack.c.l.b16 %v3137
    %v3140 = vpack.c.b16 %v3139, %v3139
    %3141 = vrot.lane.b32.xlu0 %v3140, 32
    %v3142 = vpop.permute.xlu0 %3141
    %3144 = vst.msk [vmem:[#allocation6] sm:$0xf] %vm604, %v3142
    %3146 = vrot.lane.b32.xlu0 %v3130, 96
    %v3147 = vpop.permute.xlu0 %3146
    %3149 = vst.msk [vmem:[#allocation8] sm:$0xff] %vm606, %v3147
    %3150 = vst.msk [vmem:[%s927] sm:$0xf] %vm604, %v3142
    %v3151 = vld [vmem:[#allocation7] sm:$0xf]
    %v3152 = vld [vmem:[#allocation28] sm:$0xf]
    %v3153 = vld [vmem:[#allocation28 + $0x4] sm:$0xf]
    %v3154 = vld [vmem:[#allocation28 + $0x8] sm:$0xf]
    %v3155 = vld [vmem:[#allocation28 + $0xc] sm:$0xf]
    %v3156 = vld [vmem:[%s934] sm:$0xf]
    %v3157 = vunpack.c.l.bf16 %v3156
    %v3162 = vunpack.c.l.b16 %v3152
    %v3163 = vunpack.c.l.b16 %v3153
    %v3164 = vunpack.c.l.b16 %v3154
    %v3165 = vunpack.c.l.b16 %v3155
    %v3166 = vpack.c.b16 %v3163, %v3162
    %v3167 = vpack.c.b16 %v3165, %v3164
    %v3171 = vsel %vm606, %v3151, 0
    %3173 = vmatprep.subr.bf16.mxu0 0
    %3174 = vmatpush1.bf16.msra.mxu0 0
    %3175 = vmatprep.subr.bf16.mxu0 0
    %3176 = vmatpush1.bf16.msra.mxu0 0
    %3177 = vmatprep.subr.bf16.mxu0 0
    %3178 = vmatpush1.bf16.msra.mxu0 0
    %3179 = vmatprep.subr.bf16.mxu0 0
    %3180 = vmatpush1.bf16.msra.mxu0 0
    %3181 = vmatprep.subr.bf16.mxu0 0
    %3182 = vmatpush1.bf16.msra.mxu0 0
    %3183 = vmatprep.subr.bf16.mxu0 0
    %3184 = vmatpush1.bf16.msra.mxu0 0
    %3185 = vmatprep.subr.bf16.mxu0 0
    %3186 = vmatpush1.bf16.msra.mxu0 %v3167
    %3187 = vmatprep.subr.bf16.mxu0 0
    %3188 = vmatpush1.bf16.msra.mxu0 %v3166
    %3189 = vmatprep.subr.bf16.mxu0 0
    %3190 = vmatpush2.bf16.msra.mxu0 0
    %3191 = vmatprep.subr.bf16.mxu0 0
    %3192 = vmatpush2.bf16.msra.mxu0 0
    %3193 = vmatprep.subr.bf16.mxu0 0
    %3194 = vmatpush2.bf16.msra.mxu0 0
    %3195 = vmatprep.subr.bf16.mxu0 0
    %3196 = vmatpush2.bf16.msra.mxu0 0
    %3197 = vmatprep.subr.bf16.mxu0 0
    %3198 = vmatpush2.bf16.msra.mxu0 0
    %3199 = vmatprep.subr.bf16.mxu0 0
    %3200 = vmatpush2.bf16.msra.mxu0 0
    %3201 = vmatprep.subr.bf16.mxu0 0
    %3202 = vmatpush2.bf16.msra.mxu0 0
    %3203 = vmatprep.subr.bf16.mxu0 0
    %3204 = vmatpush2.bf16.msra.mxu0 0
    %3205 = vmatprep.mubr.bf16.mxu0 0
    %3206 = vmatmul.mubr.bf16.gmra.mxu0 %v3171
    %v3207 = vpop.f32.mrf.mxu0
    %v3208 = vadd.f32 %v3157, %v3207
    %v3209 = vpop.f32.mrf.mxu0
    %v3210 = vpop.f32.mrf.mxu0
    %v3211 = vpop.f32.mrf.mxu0
    %3212 = vdwg.mxu0
    %v3213 = vxor.u32 %v3208, 2147483648
    %v3214 = vmul.f32 %v3213, 1.442695
    %v3215 = vpow.pop %v3214
    %v3216 = vadd.f32 %v3215, 1.0
    %v3217 = vrcp.pop %v3216
    %v3218 = vmul.f32 1.0, %v3217
    %v3219 = vtanh.pop %v3208
    %v3220 = vld [vmem:[#allocation9] sm:$0xff]
    %3222 = vrot.lane.b32.xlu0 %v3220, 32
    %v3223 = vpop.permute.xlu0 %3222
    %v3225 = vmul.f32 %v3218, %v3223
    %3227 = vrot.lane.b32.xlu0 %v3219, 64
    %v3228 = vpop.permute.xlu0 %3227
    %v3230 = vmul.f32 %v3218, %v3228
    %3232 = vrot.lane.b32.xlu0 %v3230, 32
    %v3233 = vpop.permute.xlu0 %3232
    %v3235 = vadd.f32 %v3225, %v3233
    %v3236 = vtanh.pop %v3235
    %3238 = vrot.lane.b32.xlu0 %v3236, 64
    %v3239 = vpop.permute.xlu0 %3238
    %v3241 = vmul.f32 %v3218, %v3239
    %v3242 = vpack.c.bf16 %v3241, %v3241
    %v3244 = vunpack.c.l.b16 %v3242
    %v3245 = vpack.c.b16 %v3244, %v3244
    %3246 = vrot.lane.b32.xlu0 %v3245, 32
    %v3247 = vpop.permute.xlu0 %3246
    %3249 = vst.msk [vmem:[#allocation7] sm:$0xf] %vm604, %v3247
    %3251 = vrot.lane.b32.xlu0 %v3235, 96
    %v3252 = vpop.permute.xlu0 %3251
    %3254 = vst.msk [vmem:[#allocation9] sm:$0xff] %vm606, %v3252
    %3255 = vst.msk [vmem:[%s1034] sm:$0xf] %vm604, %v3247
    %v3256 = vld [vmem:[#allocation6] sm:$0xf]
    %v3257 = vld [vmem:[#allocation27] sm:$0xf]
    %v3258 = vld [vmem:[#allocation27 + $0x4] sm:$0xf]
    %v3259 = vld [vmem:[#allocation27 + $0x8] sm:$0xf]
    %v3260 = vld [vmem:[#allocation27 + $0xc] sm:$0xf]
    %v3261 = vld [vmem:[%s1041] sm:$0xf]
    %v3262 = vunpack.c.l.bf16 %v3261
    %v3267 = vunpack.c.l.b16 %v3257
    %v3268 = vunpack.c.l.b16 %v3258
    %v3269 = vunpack.c.l.b16 %v3259
    %v3270 = vunpack.c.l.b16 %v3260
    %v3271 = vpack.c.b16 %v3268, %v3267
    %v3272 = vpack.c.b16 %v3270, %v3269
    %v3276 = vsel %vm606, %v3256, 0
    %3278 = vmatprep.subr.bf16.mxu0 0
    %3279 = vmatpush1.bf16.msra.mxu0 0
    %3280 = vmatprep.subr.bf16.mxu0 0
    %3281 = vmatpush1.bf16.msra.mxu0 0
    %3282 = vmatprep.subr.bf16.mxu0 0
    %3283 = vmatpush1.bf16.msra.mxu0 0
    %3284 = vmatprep.subr.bf16.mxu0 0
    %3285 = vmatpush1.bf16.msra.mxu0 0
    %3286 = vmatprep.subr.bf16.mxu0 0
    %3287 = vmatpush1.bf16.msra.mxu0 0
    %3288 = vmatprep.subr.bf16.mxu0 0
    %3289 = vmatpush1.bf16.msra.mxu0 0
    %3290 = vmatprep.subr.bf16.mxu0 0
    %3291 = vmatpush1.bf16.msra.mxu0 %v3272
    %3292 = vmatprep.subr.bf16.mxu0 0
    %3293 = vmatpush1.bf16.msra.mxu0 %v3271
    %3294 = vmatprep.subr.bf16.mxu0 0
    %3295 = vmatpush2.bf16.msra.mxu0 0
    %3296 = vmatprep.subr.bf16.mxu0 0
    %3297 = vmatpush2.bf16.msra.mxu0 0
    %3298 = vmatprep.subr.bf16.mxu0 0
    %3299 = vmatpush2.bf16.msra.mxu0 0
    %3300 = vmatprep.subr.bf16.mxu0 0
    %3301 = vmatpush2.bf16.msra.mxu0 0
    %3302 = vmatprep.subr.bf16.mxu0 0
    %3303 = vmatpush2.bf16.msra.mxu0 0
    %3304 = vmatprep.subr.bf16.mxu0 0
    %3305 = vmatpush2.bf16.msra.mxu0 0
    %3306 = vmatprep.subr.bf16.mxu0 0
    %3307 = vmatpush2.bf16.msra.mxu0 0
    %3308 = vmatprep.subr.bf16.mxu0 0
    %3309 = vmatpush2.bf16.msra.mxu0 0
    %3310 = vmatprep.mubr.bf16.mxu0 0
    %3311 = vmatmul.mubr.bf16.gmra.mxu0 %v3276
    %v3312 = vpop.f32.mrf.mxu0
    %v3313 = vadd.f32 %v3262, %v3312
    %v3314 = vpop.f32.mrf.mxu0
    %v3315 = vpop.f32.mrf.mxu0
    %v3316 = vpop.f32.mrf.mxu0
    %3317 = vdwg.mxu0
    %v3318 = vxor.u32 %v3313, 2147483648
    %v3319 = vmul.f32 %v3318, 1.442695
    %v3320 = vpow.pop %v3319
    %v3321 = vadd.f32 %v3320, 1.0
    %v3322 = vrcp.pop %v3321
    %v3323 = vmul.f32 1.0, %v3322
    %v3324 = vtanh.pop %v3313
    %v3325 = vld [vmem:[#allocation8] sm:$0xff]
    %3327 = vrot.lane.b32.xlu0 %v3325, 32
    %v3328 = vpop.permute.xlu0 %3327
    %v3330 = vmul.f32 %v3323, %v3328
    %3332 = vrot.lane.b32.xlu0 %v3324, 64
    %v3333 = vpop.permute.xlu0 %3332
    %v3335 = vmul.f32 %v3323, %v3333
    %3337 = vrot.lane.b32.xlu0 %v3335, 32
    %v3338 = vpop.permute.xlu0 %3337
    %v3340 = vadd.f32 %v3330, %v3338
    %v3341 = vtanh.pop %v3340
    %3343 = vrot.lane.b32.xlu0 %v3341, 64
    %v3344 = vpop.permute.xlu0 %3343
    %v3346 = vmul.f32 %v3323, %v3344
    %v3347 = vpack.c.bf16 %v3346, %v3346
    %v3349 = vunpack.c.l.b16 %v3347
    %v3350 = vpack.c.b16 %v3349, %v3349
    %3351 = vrot.lane.b32.xlu0 %v3350, 32
    %v3352 = vpop.permute.xlu0 %3351
    %3354 = vst.msk [vmem:[#allocation6] sm:$0xf] %vm604, %v3352
    %3356 = vrot.lane.b32.xlu0 %v3340, 96
    %v3357 = vpop.permute.xlu0 %3356
    %3359 = vst.msk [vmem:[#allocation8] sm:$0xff] %vm606, %v3357
    %3360 = vst.msk [vmem:[%s1141] sm:$0xf] %vm604, %v3352
    %v3361 = vld [vmem:[#allocation7] sm:$0xf]
    %v3362 = vld [vmem:[#allocation28] sm:$0xf]
    %v3363 = vld [vmem:[#allocation28 + $0x4] sm:$0xf]
    %v3364 = vld [vmem:[#allocation28 + $0x8] sm:$0xf]
    %v3365 = vld [vmem:[#allocation28 + $0xc] sm:$0xf]
    %v3366 = vld [vmem:[%s1148] sm:$0xf]
    %v3367 = vunpack.c.l.bf16 %v3366
    %v3372 = vunpack.c.l.b16 %v3362
    %v3373 = vunpack.c.l.b16 %v3363
    %v3374 = vunpack.c.l.b16 %v3364
    %v3375 = vunpack.c.l.b16 %v3365
    %v3376 = vpack.c.b16 %v3373, %v3372
    %v3377 = vpack.c.b16 %v3375, %v3374
    %v3381 = vsel %vm606, %v3361, 0
    %3383 = vmatprep.subr.bf16.mxu0 0
    %3384 = vmatpush1.bf16.msra.mxu0 0
    %3385 = vmatprep.subr.bf16.mxu0 0
    %3386 = vmatpush1.bf16.msra.mxu0 0
    %3387 = vmatprep.subr.bf16.mxu0 0
    %3388 = vmatpush1.bf16.msra.mxu0 0
    %3389 = vmatprep.subr.bf16.mxu0 0
    %3390 = vmatpush1.bf16.msra.mxu0 0
    %3391 = vmatprep.subr.bf16.mxu0 0
    %3392 = vmatpush1.bf16.msra.mxu0 0
    %3393 = vmatprep.subr.bf16.mxu0 0
    %3394 = vmatpush1.bf16.msra.mxu0 0
    %3395 = vmatprep.subr.bf16.mxu0 0
    %3396 = vmatpush1.bf16.msra.mxu0 %v3377
    %3397 = vmatprep.subr.bf16.mxu0 0
    %3398 = vmatpush1.bf16.msra.mxu0 %v3376
    %3399 = vmatprep.subr.bf16.mxu0 0
    %3400 = vmatpush2.bf16.msra.mxu0 0
    %3401 = vmatprep.subr.bf16.mxu0 0
    %3402 = vmatpush2.bf16.msra.mxu0 0
    %3403 = vmatprep.subr.bf16.mxu0 0
    %3404 = vmatpush2.bf16.msra.mxu0 0
    %3405 = vmatprep.subr.bf16.mxu0 0
    %3406 = vmatpush2.bf16.msra.mxu0 0
    %3407 = vmatprep.subr.bf16.mxu0 0
    %3408 = vmatpush2.bf16.msra.mxu0 0
    %3409 = vmatprep.subr.bf16.mxu0 0
    %3410 = vmatpush2.bf16.msra.mxu0 0
    %3411 = vmatprep.subr.bf16.mxu0 0
    %3412 = vmatpush2.bf16.msra.mxu0 0
    %3413 = vmatprep.subr.bf16.mxu0 0
    %3414 = vmatpush2.bf16.msra.mxu0 0
    %3415 = vmatprep.mubr.bf16.mxu0 0
    %3416 = vmatmul.mubr.bf16.gmra.mxu0 %v3381
    %v3417 = vpop.f32.mrf.mxu0
    %v3418 = vadd.f32 %v3367, %v3417
    %v3419 = vpop.f32.mrf.mxu0
    %v3420 = vpop.f32.mrf.mxu0
    %v3421 = vpop.f32.mrf.mxu0
    %3422 = vdwg.mxu0
    %v3423 = vxor.u32 %v3418, 2147483648
    %v3424 = vmul.f32 %v3423, 1.442695
    %v3425 = vpow.pop %v3424
    %v3426 = vadd.f32 %v3425, 1.0
    %v3427 = vrcp.pop %v3426
    %v3428 = vmul.f32 1.0, %v3427
    %v3429 = vtanh.pop %v3418
    %v3430 = vld [vmem:[#allocation9] sm:$0xff]
    %3432 = vrot.lane.b32.xlu0 %v3430, 32
    %v3433 = vpop.permute.xlu0 %3432
    %v3435 = vmul.f32 %v3428, %v3433
    %3437 = vrot.lane.b32.xlu0 %v3429, 64
    %v3438 = vpop.permute.xlu0 %3437
    %v3440 = vmul.f32 %v3428, %v3438
    %3442 = vrot.lane.b32.xlu0 %v3440, 32
    %v3443 = vpop.permute.xlu0 %3442
    %v3445 = vadd.f32 %v3435, %v3443
    %v3446 = vtanh.pop %v3445
    %3448 = vrot.lane.b32.xlu0 %v3446, 64
    %v3449 = vpop.permute.xlu0 %3448
    %v3451 = vmul.f32 %v3428, %v3449
    %v3452 = vpack.c.bf16 %v3451, %v3451
    %v3454 = vunpack.c.l.b16 %v3452
    %v3455 = vpack.c.b16 %v3454, %v3454
    %3456 = vrot.lane.b32.xlu0 %v3455, 32
    %v3457 = vpop.permute.xlu0 %3456
    %3459 = vst.msk [vmem:[#allocation7] sm:$0xf] %vm604, %v3457
    %3461 = vrot.lane.b32.xlu0 %v3445, 96
    %v3462 = vpop.permute.xlu0 %3461
    %3464 = vst.msk [vmem:[#allocation9] sm:$0xff] %vm606, %v3462
    %3465 = vst.msk [vmem:[%s1248] sm:$0xf] %vm604, %v3457
    %v3466 = vld [vmem:[#allocation6] sm:$0xf]
    %v3467 = vld [vmem:[#allocation27] sm:$0xf]
    %v3468 = vld [vmem:[#allocation27 + $0x4] sm:$0xf]
    %v3469 = vld [vmem:[#allocation27 + $0x8] sm:$0xf]
    %v3470 = vld [vmem:[#allocation27 + $0xc] sm:$0xf]
    %v3471 = vld [vmem:[%s1255] sm:$0xf]
    %v3472 = vunpack.c.l.bf16 %v3471
    %v3477 = vunpack.c.l.b16 %v3467
    %v3478 = vunpack.c.l.b16 %v3468
    %v3479 = vunpack.c.l.b16 %v3469
    %v3480 = vunpack.c.l.b16 %v3470
    %v3481 = vpack.c.b16 %v3478, %v3477
    %v3482 = vpack.c.b16 %v3480, %v3479
    %v3486 = vsel %vm606, %v3466, 0
    %3488 = vmatprep.subr.bf16.mxu0 0
    %3489 = vmatpush1.bf16.msra.mxu0 0
    %3490 = vmatprep.subr.bf16.mxu0 0
    %3491 = vmatpush1.bf16.msra.mxu0 0
    %3492 = vmatprep.subr.bf16.mxu0 0
    %3493 = vmatpush1.bf16.msra.mxu0 0
    %3494 = vmatprep.subr.bf16.mxu0 0
    %3495 = vmatpush1.bf16.msra.mxu0 0
    %3496 = vmatprep.subr.bf16.mxu0 0
    %3497 = vmatpush1.bf16.msra.mxu0 0
    %3498 = vmatprep.subr.bf16.mxu0 0
    %3499 = vmatpush1.bf16.msra.mxu0 0
    %3500 = vmatprep.subr.bf16.mxu0 0
    %3501 = vmatpush1.bf16.msra.mxu0 %v3482
    %3502 = vmatprep.subr.bf16.mxu0 0
    %3503 = vmatpush1.bf16.msra.mxu0 %v3481
    %3504 = vmatprep.subr.bf16.mxu0 0
    %3505 = vmatpush2.bf16.msra.mxu0 0
    %3506 = vmatprep.subr.bf16.mxu0 0
    %3507 = vmatpush2.bf16.msra.mxu0 0
    %3508 = vmatprep.subr.bf16.mxu0 0
    %3509 = vmatpush2.bf16.msra.mxu0 0
    %3510 = vmatprep.subr.bf16.mxu0 0
    %3511 = vmatpush2.bf16.msra.mxu0 0
    %3512 = vmatprep.subr.bf16.mxu0 0
    %3513 = vmatpush2.bf16.msra.mxu0 0
    %3514 = vmatprep.subr.bf16.mxu0 0
    %3515 = vmatpush2.bf16.msra.mxu0 0
    %3516 = vmatprep.subr.bf16.mxu0 0
    %3517 = vmatpush2.bf16.msra.mxu0 0
    %3518 = vmatprep.subr.bf16.mxu0 0
    %3519 = vmatpush2.bf16.msra.mxu0 0
    %3520 = vmatprep.mubr.bf16.mxu0 0
    %3521 = vmatmul.mubr.bf16.gmra.mxu0 %v3486
    %v3522 = vpop.f32.mrf.mxu0
    %v3523 = vadd.f32 %v3472, %v3522
    %v3524 = vpop.f32.mrf.mxu0
    %v3525 = vpop.f32.mrf.mxu0
    %v3526 = vpop.f32.mrf.mxu0
    %3527 = vdwg.mxu0
    %v3528 = vxor.u32 %v3523, 2147483648
    %v3529 = vmul.f32 %v3528, 1.442695
    %v3530 = vpow.pop %v3529
    %v3531 = vadd.f32 %v3530, 1.0
    %v3532 = vrcp.pop %v3531
    %v3533 = vmul.f32 1.0, %v3532
    %v3534 = vtanh.pop %v3523
    %v3535 = vld [vmem:[#allocation8] sm:$0xff]
    %3537 = vrot.lane.b32.xlu0 %v3535, 32
    %v3538 = vpop.permute.xlu0 %3537
    %v3540 = vmul.f32 %v3533, %v3538
    %3542 = vrot.lane.b32.xlu0 %v3534, 64
    %v3543 = vpop.permute.xlu0 %3542
    %v3545 = vmul.f32 %v3533, %v3543
    %3547 = vrot.lane.b32.xlu0 %v3545, 32
    %v3548 = vpop.permute.xlu0 %3547
    %v3550 = vadd.f32 %v3540, %v3548
    %v3551 = vtanh.pop %v3550
    %3553 = vrot.lane.b32.xlu0 %v3551, 64
    %v3554 = vpop.permute.xlu0 %3553
    %v3556 = vmul.f32 %v3533, %v3554
    %v3557 = vpack.c.bf16 %v3556, %v3556
    %v3559 = vunpack.c.l.b16 %v3557
    %v3560 = vpack.c.b16 %v3559, %v3559
    %3561 = vrot.lane.b32.xlu0 %v3560, 32
    %v3562 = vpop.permute.xlu0 %3561
    %3564 = vst.msk [vmem:[#allocation6] sm:$0xf] %vm604, %v3562
    %3566 = vrot.lane.b32.xlu0 %v3550, 96
    %v3567 = vpop.permute.xlu0 %3566
    %3569 = vst.msk [vmem:[#allocation8] sm:$0xff] %vm606, %v3567
    %3570 = vst.msk [vmem:[%s1355] sm:$0xf] %vm604, %v3562
    %v3571 = vld [vmem:[#allocation7] sm:$0xf]
    %v3572 = vld [vmem:[#allocation28] sm:$0xf]
    %v3573 = vld [vmem:[#allocation28 + $0x4] sm:$0xf]
    %v3574 = vld [vmem:[#allocation28 + $0x8] sm:$0xf]
    %v3575 = vld [vmem:[#allocation28 + $0xc] sm:$0xf]
    %v3576 = vld [vmem:[%s1362] sm:$0xf]
    %v3577 = vunpack.c.l.bf16 %v3576
    %v3582 = vunpack.c.l.b16 %v3572
    %v3583 = vunpack.c.l.b16 %v3573
    %v3584 = vunpack.c.l.b16 %v3574
    %v3585 = vunpack.c.l.b16 %v3575
    %v3586 = vpack.c.b16 %v3583, %v3582
    %v3587 = vpack.c.b16 %v3585, %v3584
    %v3591 = vsel %vm606, %v3571, 0
    %3593 = vmatprep.subr.bf16.mxu0 0
    %3594 = vmatpush1.bf16.msra.mxu0 0
    %3595 = vmatprep.subr.bf16.mxu0 0
    %3596 = vmatpush1.bf16.msra.mxu0 0
    %3597 = vmatprep.subr.bf16.mxu0 0
    %3598 = vmatpush1.bf16.msra.mxu0 0
    %3599 = vmatprep.subr.bf16.mxu0 0
    %3600 = vmatpush1.bf16.msra.mxu0 0
    %3601 = vmatprep.subr.bf16.mxu0 0
    %3602 = vmatpush1.bf16.msra.mxu0 0
    %3603 = vmatprep.subr.bf16.mxu0 0
    %3604 = vmatpush1.bf16.msra.mxu0 0
    %3605 = vmatprep.subr.bf16.mxu0 0
    %3606 = vmatpush1.bf16.msra.mxu0 %v3587
    %3607 = vmatprep.subr.bf16.mxu0 0
    %3608 = vmatpush1.bf16.msra.mxu0 %v3586
    %3609 = vmatprep.subr.bf16.mxu0 0
    %3610 = vmatpush2.bf16.msra.mxu0 0
    %3611 = vmatprep.subr.bf16.mxu0 0
    %3612 = vmatpush2.bf16.msra.mxu0 0
    %3613 = vmatprep.subr.bf16.mxu0 0
    %3614 = vmatpush2.bf16.msra.mxu0 0
    %3615 = vmatprep.subr.bf16.mxu0 0
    %3616 = vmatpush2.bf16.msra.mxu0 0
    %3617 = vmatprep.subr.bf16.mxu0 0
    %3618 = vmatpush2.bf16.msra.mxu0 0
    %3619 = vmatprep.subr.bf16.mxu0 0
    %3620 = vmatpush2.bf16.msra.mxu0 0
    %3621 = vmatprep.subr.bf16.mxu0 0
    %3622 = vmatpush2.bf16.msra.mxu0 0
    %3623 = vmatprep.subr.bf16.mxu0 0
    %3624 = vmatpush2.bf16.msra.mxu0 0
    %3625 = vmatprep.mubr.bf16.mxu0 0
    %3626 = vmatmul.mubr.bf16.gmra.mxu0 %v3591
    %v3627 = vpop.f32.mrf.mxu0
    %v3628 = vadd.f32 %v3577, %v3627
    %v3629 = vpop.f32.mrf.mxu0
    %v3630 = vpop.f32.mrf.mxu0
    %v3631 = vpop.f32.mrf.mxu0
    %3632 = vdwg.mxu0
    %v3633 = vxor.u32 %v3628, 2147483648
    %v3634 = vmul.f32 %v3633, 1.442695
    %v3635 = vpow.pop %v3634
    %v3636 = vadd.f32 %v3635, 1.0
    %v3637 = vrcp.pop %v3636
    %v3638 = vmul.f32 1.0, %v3637
    %v3639 = vtanh.pop %v3628
    %v3640 = vld [vmem:[#allocation9] sm:$0xff]
    %3642 = vrot.lane.b32.xlu0 %v3640, 32
    %v3643 = vpop.permute.xlu0 %3642
    %v3645 = vmul.f32 %v3638, %v3643
    %3647 = vrot.lane.b32.xlu0 %v3639, 64
    %v3648 = vpop.permute.xlu0 %3647
    %v3650 = vmul.f32 %v3638, %v3648
    %3652 = vrot.lane.b32.xlu0 %v3650, 32
    %v3653 = vpop.permute.xlu0 %3652
    %v3655 = vadd.f32 %v3645, %v3653
    %v3656 = vtanh.pop %v3655
    %3658 = vrot.lane.b32.xlu0 %v3656, 64
    %v3659 = vpop.permute.xlu0 %3658
    %v3661 = vmul.f32 %v3638, %v3659
    %v3662 = vpack.c.bf16 %v3661, %v3661
    %v3664 = vunpack.c.l.b16 %v3662
    %v3665 = vpack.c.b16 %v3664, %v3664
    %3666 = vrot.lane.b32.xlu0 %v3665, 32
    %v3667 = vpop.permute.xlu0 %3666
    %3669 = vst.msk [vmem:[#allocation7] sm:$0xf] %vm604, %v3667
    %3671 = vrot.lane.b32.xlu0 %v3655, 96
    %v3672 = vpop.permute.xlu0 %3671
    %3674 = vst.msk [vmem:[#allocation9] sm:$0xff] %vm606, %v3672
    %3675 = vst.msk [vmem:[%s1462] sm:$0xf] %vm604, %v3667
    %v3676 = vld [vmem:[#allocation6] sm:$0xf]
    %v3677 = vld [vmem:[#allocation27] sm:$0xf]
    %v3678 = vld [vmem:[#allocation27 + $0x4] sm:$0xf]
    %v3679 = vld [vmem:[#allocation27 + $0x8] sm:$0xf]
    %v3680 = vld [vmem:[#allocation27 + $0xc] sm:$0xf]
    %v3681 = vld [vmem:[%s1469] sm:$0xf]
    %v3682 = vunpack.c.l.bf16 %v3681
    %v3687 = vunpack.c.l.b16 %v3677
    %v3688 = vunpack.c.l.b16 %v3678
    %v3689 = vunpack.c.l.b16 %v3679
    %v3690 = vunpack.c.l.b16 %v3680
    %v3691 = vpack.c.b16 %v3688, %v3687
    %v3692 = vpack.c.b16 %v3690, %v3689
    %v3696 = vsel %vm606, %v3676, 0
    %3698 = vmatprep.subr.bf16.mxu0 0
    %3699 = vmatpush1.bf16.msra.mxu0 0
    %3700 = vmatprep.subr.bf16.mxu0 0
    %3701 = vmatpush1.bf16.msra.mxu0 0
    %3702 = vmatprep.subr.bf16.mxu0 0
    %3703 = vmatpush1.bf16.msra.mxu0 0
    %3704 = vmatprep.subr.bf16.mxu0 0
    %3705 = vmatpush1.bf16.msra.mxu0 0
    %3706 = vmatprep.subr.bf16.mxu0 0
    %3707 = vmatpush1.bf16.msra.mxu0 0
    %3708 = vmatprep.subr.bf16.mxu0 0
    %3709 = vmatpush1.bf16.msra.mxu0 0
    %3710 = vmatprep.subr.bf16.mxu0 0
    %3711 = vmatpush1.bf16.msra.mxu0 %v3692
    %3712 = vmatprep.subr.bf16.mxu0 0
    %3713 = vmatpush1.bf16.msra.mxu0 %v3691
    %3714 = vmatprep.subr.bf16.mxu0 0
    %3715 = vmatpush2.bf16.msra.mxu0 0
    %3716 = vmatprep.subr.bf16.mxu0 0
    %3717 = vmatpush2.bf16.msra.mxu0 0
    %3718 = vmatprep.subr.bf16.mxu0 0
    %3719 = vmatpush2.bf16.msra.mxu0 0
    %3720 = vmatprep.subr.bf16.mxu0 0
    %3721 = vmatpush2.bf16.msra.mxu0 0
    %3722 = vmatprep.subr.bf16.mxu0 0
    %3723 = vmatpush2.bf16.msra.mxu0 0
    %3724 = vmatprep.subr.bf16.mxu0 0
    %3725 = vmatpush2.bf16.msra.mxu0 0
    %3726 = vmatprep.subr.bf16.mxu0 0
    %3727 = vmatpush2.bf16.msra.mxu0 0
    %3728 = vmatprep.subr.bf16.mxu0 0
    %3729 = vmatpush2.bf16.msra.mxu0 0
    %3730 = vmatprep.mubr.bf16.mxu0 0
    %3731 = vmatmul.mubr.bf16.gmra.mxu0 %v3696
    %v3732 = vpop.f32.mrf.mxu0
    %v3733 = vadd.f32 %v3682, %v3732
    %v3734 = vpop.f32.mrf.mxu0
    %v3735 = vpop.f32.mrf.mxu0
    %v3736 = vpop.f32.mrf.mxu0
    %3737 = vdwg.mxu0
    %v3738 = vxor.u32 %v3733, 2147483648
    %v3739 = vmul.f32 %v3738, 1.442695
    %v3740 = vpow.pop %v3739
    %v3741 = vadd.f32 %v3740, 1.0
    %v3742 = vrcp.pop %v3741
    %v3743 = vmul.f32 1.0, %v3742
    %v3744 = vtanh.pop %v3733
    %v3745 = vld [vmem:[#allocation8] sm:$0xff]
    %3747 = vrot.lane.b32.xlu0 %v3745, 32
    %v3748 = vpop.permute.xlu0 %3747
    %v3750 = vmul.f32 %v3743, %v3748
    %3752 = vrot.lane.b32.xlu0 %v3744, 64
    %v3753 = vpop.permute.xlu0 %3752
    %v3755 = vmul.f32 %v3743, %v3753
    %3757 = vrot.lane.b32.xlu0 %v3755, 32
    %v3758 = vpop.permute.xlu0 %3757
    %v3760 = vadd.f32 %v3750, %v3758
    %v3761 = vtanh.pop %v3760
    %3763 = vrot.lane.b32.xlu0 %v3761, 64
    %v3764 = vpop.permute.xlu0 %3763
    %v3766 = vmul.f32 %v3743, %v3764
    %v3767 = vpack.c.bf16 %v3766, %v3766
    %v3769 = vunpack.c.l.b16 %v3767
    %v3770 = vpack.c.b16 %v3769, %v3769
    %3771 = vrot.lane.b32.xlu0 %v3770, 32
    %v3772 = vpop.permute.xlu0 %3771
    %3774 = vst.msk [vmem:[#allocation6] sm:$0xf] %vm604, %v3772
    %3776 = vrot.lane.b32.xlu0 %v3760, 96
    %v3777 = vpop.permute.xlu0 %3776
    %3779 = vst.msk [vmem:[#allocation8] sm:$0xff] %vm606, %v3777
    %3780 = vst.msk [vmem:[%s1569] sm:$0xf] %vm604, %v3772
    %v3781 = vld [vmem:[#allocation7] sm:$0xf]
    %v3782 = vld [vmem:[#allocation28] sm:$0xf]
    %v3783 = vld [vmem:[#allocation28 + $0x4] sm:$0xf]
    %v3784 = vld [vmem:[#allocation28 + $0x8] sm:$0xf]
    %v3785 = vld [vmem:[#allocation28 + $0xc] sm:$0xf]
    %v3786 = vld [vmem:[%s1576] sm:$0xf]
    %v3787 = vunpack.c.l.bf16 %v3786
    %v3792 = vunpack.c.l.b16 %v3782
    %v3793 = vunpack.c.l.b16 %v3783
    %v3794 = vunpack.c.l.b16 %v3784
    %v3795 = vunpack.c.l.b16 %v3785
    %v3796 = vpack.c.b16 %v3793, %v3792
    %v3797 = vpack.c.b16 %v3795, %v3794
    %v3801 = vsel %vm606, %v3781, 0
    %3803 = vmatprep.subr.bf16.mxu0 0
    %3804 = vmatpush1.bf16.msra.mxu0 0
    %3805 = vmatprep.subr.bf16.mxu0 0
    %3806 = vmatpush1.bf16.msra.mxu0 0
    %3807 = vmatprep.subr.bf16.mxu0 0
    %3808 = vmatpush1.bf16.msra.mxu0 0
    %3809 = vmatprep.subr.bf16.mxu0 0
    %3810 = vmatpush1.bf16.msra.mxu0 0
    %3811 = vmatprep.subr.bf16.mxu0 0
    %3812 = vmatpush1.bf16.msra.mxu0 0
    %3813 = vmatprep.subr.bf16.mxu0 0
    %3814 = vmatpush1.bf16.msra.mxu0 0
    %3815 = vmatprep.subr.bf16.mxu0 0
    %3816 = vmatpush1.bf16.msra.mxu0 %v3797
    %3817 = vmatprep.subr.bf16.mxu0 0
    %3818 = vmatpush1.bf16.msra.mxu0 %v3796
    %3819 = vmatprep.subr.bf16.mxu0 0
    %3820 = vmatpush2.bf16.msra.mxu0 0
    %3821 = vmatprep.subr.bf16.mxu0 0
    %3822 = vmatpush2.bf16.msra.mxu0 0
    %3823 = vmatprep.subr.bf16.mxu0 0
    %3824 = vmatpush2.bf16.msra.mxu0 0
    %3825 = vmatprep.subr.bf16.mxu0 0
    %3826 = vmatpush2.bf16.msra.mxu0 0
    %3827 = vmatprep.subr.bf16.mxu0 0
    %3828 = vmatpush2.bf16.msra.mxu0 0
    %3829 = vmatprep.subr.bf16.mxu0 0
    %3830 = vmatpush2.bf16.msra.mxu0 0
    %3831 = vmatprep.subr.bf16.mxu0 0
    %3832 = vmatpush2.bf16.msra.mxu0 0
    %3833 = vmatprep.subr.bf16.mxu0 0
    %3834 = vmatpush2.bf16.msra.mxu0 0
    %3835 = vmatprep.mubr.bf16.mxu0 0
    %3836 = vmatmul.mubr.bf16.gmra.mxu0 %v3801
    %v3837 = vpop.f32.mrf.mxu0
    %v3838 = vadd.f32 %v3787, %v3837
    %v3839 = vpop.f32.mrf.mxu0
    %v3840 = vpop.f32.mrf.mxu0
    %v3841 = vpop.f32.mrf.mxu0
    %3842 = vdwg.mxu0
    %v3843 = vxor.u32 %v3838, 2147483648
    %v3844 = vmul.f32 %v3843, 1.442695
    %v3845 = vpow.pop %v3844
    %v3846 = vadd.f32 %v3845, 1.0
    %v3847 = vrcp.pop %v3846
    %v3848 = vmul.f32 1.0, %v3847
    %v3849 = vtanh.pop %v3838
    %v3850 = vld [vmem:[#allocation9] sm:$0xff]
    %3852 = vrot.lane.b32.xlu0 %v3850, 32
    %v3853 = vpop.permute.xlu0 %3852
    %v3855 = vmul.f32 %v3848, %v3853
    %3857 = vrot.lane.b32.xlu0 %v3849, 64
    %v3858 = vpop.permute.xlu0 %3857
    %v3860 = vmul.f32 %v3848, %v3858
    %3862 = vrot.lane.b32.xlu0 %v3860, 32
    %v3863 = vpop.permute.xlu0 %3862
    %v3865 = vadd.f32 %v3855, %v3863
    %v3866 = vtanh.pop %v3865
    %3868 = vrot.lane.b32.xlu0 %v3866, 64
    %v3869 = vpop.permute.xlu0 %3868
    %v3871 = vmul.f32 %v3848, %v3869
    %v3872 = vpack.c.bf16 %v3871, %v3871
    %v3874 = vunpack.c.l.b16 %v3872
    %v3875 = vpack.c.b16 %v3874, %v3874
    %3876 = vrot.lane.b32.xlu0 %v3875, 32
    %v3877 = vpop.permute.xlu0 %3876
    %3879 = vst.msk [vmem:[#allocation7] sm:$0xf] %vm604, %v3877
    %3881 = vrot.lane.b32.xlu0 %v3865, 96
    %v3882 = vpop.permute.xlu0 %3881
    %3884 = vst.msk [vmem:[#allocation9] sm:$0xff] %vm606, %v3882
    %3885 = vst.msk [vmem:[%s1676] sm:$0xf] %vm604, %v3877
    %v3886 = vld [vmem:[#allocation6] sm:$0xf]
    %v3887 = vld [vmem:[#allocation27] sm:$0xf]
    %v3888 = vld [vmem:[#allocation27 + $0x4] sm:$0xf]
    %v3889 = vld [vmem:[#allocation27 + $0x8] sm:$0xf]
    %v3890 = vld [vmem:[#allocation27 + $0xc] sm:$0xf]
    %v3891 = vld [vmem:[%s1683] sm:$0xf]
    %v3892 = vunpack.c.l.bf16 %v3891
    %v3897 = vunpack.c.l.b16 %v3887
    %v3898 = vunpack.c.l.b16 %v3888
    %v3899 = vunpack.c.l.b16 %v3889
    %v3900 = vunpack.c.l.b16 %v3890
    %v3901 = vpack.c.b16 %v3898, %v3897
    %v3902 = vpack.c.b16 %v3900, %v3899
    %v3906 = vsel %vm606, %v3886, 0
    %3908 = vmatprep.subr.bf16.mxu0 0
    %3909 = vmatpush1.bf16.msra.mxu0 0
    %3910 = vmatprep.subr.bf16.mxu0 0
    %3911 = vmatpush1.bf16.msra.mxu0 0
    %3912 = vmatprep.subr.bf16.mxu0 0
    %3913 = vmatpush1.bf16.msra.mxu0 0
    %3914 = vmatprep.subr.bf16.mxu0 0
    %3915 = vmatpush1.bf16.msra.mxu0 0
    %3916 = vmatprep.subr.bf16.mxu0 0
    %3917 = vmatpush1.bf16.msra.mxu0 0
    %3918 = vmatprep.subr.bf16.mxu0 0
    %3919 = vmatpush1.bf16.msra.mxu0 0
    %3920 = vmatprep.subr.bf16.mxu0 0
    %3921 = vmatpush1.bf16.msra.mxu0 %v3902
    %3922 = vmatprep.subr.bf16.mxu0 0
    %3923 = vmatpush1.bf16.msra.mxu0 %v3901
    %3924 = vmatprep.subr.bf16.mxu0 0
    %3925 = vmatpush2.bf16.msra.mxu0 0
    %3926 = vmatprep.subr.bf16.mxu0 0
    %3927 = vmatpush2.bf16.msra.mxu0 0
    %3928 = vmatprep.subr.bf16.mxu0 0
    %3929 = vmatpush2.bf16.msra.mxu0 0
    %3930 = vmatprep.subr.bf16.mxu0 0
    %3931 = vmatpush2.bf16.msra.mxu0 0
    %3932 = vmatprep.subr.bf16.mxu0 0
    %3933 = vmatpush2.bf16.msra.mxu0 0
    %3934 = vmatprep.subr.bf16.mxu0 0
    %3935 = vmatpush2.bf16.msra.mxu0 0
    %3936 = vmatprep.subr.bf16.mxu0 0
    %3937 = vmatpush2.bf16.msra.mxu0 0
    %3938 = vmatprep.subr.bf16.mxu0 0
    %3939 = vmatpush2.bf16.msra.mxu0 0
    %3940 = vmatprep.mubr.bf16.mxu0 0
    %3941 = vmatmul.mubr.bf16.gmra.mxu0 %v3906
    %v3942 = vpop.f32.mrf.mxu0
    %v3943 = vadd.f32 %v3892, %v3942
    %v3944 = vpop.f32.mrf.mxu0
    %v3945 = vpop.f32.mrf.mxu0
    %v3946 = vpop.f32.mrf.mxu0
    %3947 = vdwg.mxu0
    %v3948 = vxor.u32 %v3943, 2147483648
    %v3949 = vmul.f32 %v3948, 1.442695
    %v3950 = vpow.pop %v3949
    %v3951 = vadd.f32 %v3950, 1.0
    %v3952 = vrcp.pop %v3951
    %v3953 = vmul.f32 1.0, %v3952
    %v3954 = vtanh.pop %v3943
    %v3955 = vld [vmem:[#allocation8] sm:$0xff]
    %3957 = vrot.lane.b32.xlu0 %v3955, 32
    %v3958 = vpop.permute.xlu0 %3957
    %v3960 = vmul.f32 %v3953, %v3958
    %3962 = vrot.lane.b32.xlu0 %v3954, 64
    %v3963 = vpop.permute.xlu0 %3962
    %v3965 = vmul.f32 %v3953, %v3963
    %3967 = vrot.lane.b32.xlu0 %v3965, 32
    %v3968 = vpop.permute.xlu0 %3967
    %v3970 = vadd.f32 %v3960, %v3968
    %v3971 = vtanh.pop %v3970
    %3973 = vrot.lane.b32.xlu0 %v3971, 64
    %v3974 = vpop.permute.xlu0 %3973
    %v3976 = vmul.f32 %v3953, %v3974
    %v3977 = vpack.c.bf16 %v3976, %v3976
    %v3979 = vunpack.c.l.b16 %v3977
    %v3980 = vpack.c.b16 %v3979, %v3979
    %3981 = vrot.lane.b32.xlu0 %v3980, 32
    %v3982 = vpop.permute.xlu0 %3981
    %3984 = vst.msk [vmem:[#allocation6] sm:$0xf] %vm604, %v3982
    %3986 = vrot.lane.b32.xlu0 %v3970, 96
    %v3987 = vpop.permute.xlu0 %3986
    %3989 = vst.msk [vmem:[#allocation8] sm:$0xff] %vm606, %v3987
    %3990 = vst.msk [vmem:[%s1783] sm:$0xf] %vm604, %v3982
    %v3991 = vld [vmem:[#allocation7] sm:$0xf]
    %v3992 = vld [vmem:[#allocation28] sm:$0xf]
    %v3993 = vld [vmem:[#allocation28 + $0x4] sm:$0xf]
    %v3994 = vld [vmem:[#allocation28 + $0x8] sm:$0xf]
    %v3995 = vld [vmem:[#allocation28 + $0xc] sm:$0xf]
    %v3996 = vld [vmem:[%s1790] sm:$0xf]
    %v3997 = vunpack.c.l.bf16 %v3996
    %v4002 = vunpack.c.l.b16 %v3992
    %v4003 = vunpack.c.l.b16 %v3993
    %v4004 = vunpack.c.l.b16 %v3994
    %v4005 = vunpack.c.l.b16 %v3995
    %v4006 = vpack.c.b16 %v4003, %v4002
    %v4007 = vpack.c.b16 %v4005, %v4004
    %v4011 = vsel %vm606, %v3991, 0
    %4013 = vmatprep.subr.bf16.mxu0 0
    %4014 = vmatpush1.bf16.msra.mxu0 0
    %4015 = vmatprep.subr.bf16.mxu0 0
    %4016 = vmatpush1.bf16.msra.mxu0 0
    %4017 = vmatprep.subr.bf16.mxu0 0
    %4018 = vmatpush1.bf16.msra.mxu0 0
    %4019 = vmatprep.subr.bf16.mxu0 0
    %4020 = vmatpush1.bf16.msra.mxu0 0
    %4021 = vmatprep.subr.bf16.mxu0 0
    %4022 = vmatpush1.bf16.msra.mxu0 0
    %4023 = vmatprep.subr.bf16.mxu0 0
    %4024 = vmatpush1.bf16.msra.mxu0 0
    %4025 = vmatprep.subr.bf16.mxu0 0
    %4026 = vmatpush1.bf16.msra.mxu0 %v4007
    %4027 = vmatprep.subr.bf16.mxu0 0
    %4028 = vmatpush1.bf16.msra.mxu0 %v4006
    %4029 = vmatprep.subr.bf16.mxu0 0
    %4030 = vmatpush2.bf16.msra.mxu0 0
    %4031 = vmatprep.subr.bf16.mxu0 0
    %4032 = vmatpush2.bf16.msra.mxu0 0
    %4033 = vmatprep.subr.bf16.mxu0 0
    %4034 = vmatpush2.bf16.msra.mxu0 0
    %4035 = vmatprep.subr.bf16.mxu0 0
    %4036 = vmatpush2.bf16.msra.mxu0 0
    %4037 = vmatprep.subr.bf16.mxu0 0
    %4038 = vmatpush2.bf16.msra.mxu0 0
    %4039 = vmatprep.subr.bf16.mxu0 0
    %4040 = vmatpush2.bf16.msra.mxu0 0
    %4041 = vmatprep.subr.bf16.mxu0 0
    %4042 = vmatpush2.bf16.msra.mxu0 0
    %4043 = vmatprep.subr.bf16.mxu0 0
    %4044 = vmatpush2.bf16.msra.mxu0 0
    %4045 = vmatprep.mubr.bf16.mxu0 0
    %4046 = vmatmul.mubr.bf16.gmra.mxu0 %v4011
    %v4047 = vpop.f32.mrf.mxu0
    %v4048 = vadd.f32 %v3997, %v4047
    %v4049 = vpop.f32.mrf.mxu0
    %v4050 = vpop.f32.mrf.mxu0
    %v4051 = vpop.f32.mrf.mxu0
    %4052 = vdwg.mxu0
    %v4053 = vxor.u32 %v4048, 2147483648
    %v4054 = vmul.f32 %v4053, 1.442695
    %v4055 = vpow.pop %v4054
    %v4056 = vadd.f32 %v4055, 1.0
    %v4057 = vrcp.pop %v4056
    %v4058 = vmul.f32 1.0, %v4057
    %v4059 = vtanh.pop %v4048
    %v4060 = vld [vmem:[#allocation9] sm:$0xff]
    %4062 = vrot.lane.b32.xlu0 %v4060, 32
    %v4063 = vpop.permute.xlu0 %4062
    %v4065 = vmul.f32 %v4058, %v4063
    %4067 = vrot.lane.b32.xlu0 %v4059, 64
    %v4068 = vpop.permute.xlu0 %4067
    %v4070 = vmul.f32 %v4058, %v4068
    %4072 = vrot.lane.b32.xlu0 %v4070, 32
    %v4073 = vpop.permute.xlu0 %4072
    %v4075 = vadd.f32 %v4065, %v4073
    %v4076 = vtanh.pop %v4075
    %4078 = vrot.lane.b32.xlu0 %v4076, 64
    %v4079 = vpop.permute.xlu0 %4078
    %v4081 = vmul.f32 %v4058, %v4079
    %v4082 = vpack.c.bf16 %v4081, %v4081
    %v4084 = vunpack.c.l.b16 %v4082
    %v4085 = vpack.c.b16 %v4084, %v4084
    %4086 = vrot.lane.b32.xlu0 %v4085, 32
    %v4087 = vpop.permute.xlu0 %4086
    %4089 = vst.msk [vmem:[#allocation7] sm:$0xf] %vm604, %v4087
    %4091 = vrot.lane.b32.xlu0 %v4075, 96
    %v4092 = vpop.permute.xlu0 %4091
    %4094 = vst.msk [vmem:[#allocation9] sm:$0xff] %vm606, %v4092
    %4095 = vst.msk [vmem:[%s1890] sm:$0xf] %vm604, %v4087
    %v4096 = vld [vmem:[#allocation6] sm:$0xf]
    %v4097 = vld [vmem:[#allocation27] sm:$0xf]
    %v4098 = vld [vmem:[#allocation27 + $0x4] sm:$0xf]
    %v4099 = vld [vmem:[#allocation27 + $0x8] sm:$0xf]
    %v4100 = vld [vmem:[#allocation27 + $0xc] sm:$0xf]
    %v4101 = vld [vmem:[%s1897] sm:$0xf]
    %v4102 = vunpack.c.l.bf16 %v4101
    %v4107 = vunpack.c.l.b16 %v4097
    %v4108 = vunpack.c.l.b16 %v4098
    %v4109 = vunpack.c.l.b16 %v4099
    %v4110 = vunpack.c.l.b16 %v4100
    %v4111 = vpack.c.b16 %v4108, %v4107
    %v4112 = vpack.c.b16 %v4110, %v4109
    %v4116 = vsel %vm606, %v4096, 0
    %4118 = vmatprep.subr.bf16.mxu0 0
    %4119 = vmatpush1.bf16.msra.mxu0 0
    %4120 = vmatprep.subr.bf16.mxu0 0
    %4121 = vmatpush1.bf16.msra.mxu0 0
    %4122 = vmatprep.subr.bf16.mxu0 0
    %4123 = vmatpush1.bf16.msra.mxu0 0
    %4124 = vmatprep.subr.bf16.mxu0 0
    %4125 = vmatpush1.bf16.msra.mxu0 0
    %4126 = vmatprep.subr.bf16.mxu0 0
    %4127 = vmatpush1.bf16.msra.mxu0 0
    %4128 = vmatprep.subr.bf16.mxu0 0
    %4129 = vmatpush1.bf16.msra.mxu0 0
    %4130 = vmatprep.subr.bf16.mxu0 0
    %4131 = vmatpush1.bf16.msra.mxu0 %v4112
    %4132 = vmatprep.subr.bf16.mxu0 0
    %4133 = vmatpush1.bf16.msra.mxu0 %v4111
    %4134 = vmatprep.subr.bf16.mxu0 0
    %4135 = vmatpush2.bf16.msra.mxu0 0
    %4136 = vmatprep.subr.bf16.mxu0 0
    %4137 = vmatpush2.bf16.msra.mxu0 0
    %4138 = vmatprep.subr.bf16.mxu0 0
    %4139 = vmatpush2.bf16.msra.mxu0 0
    %4140 = vmatprep.subr.bf16.mxu0 0
    %4141 = vmatpush2.bf16.msra.mxu0 0
    %4142 = vmatprep.subr.bf16.mxu0 0
    %4143 = vmatpush2.bf16.msra.mxu0 0
    %4144 = vmatprep.subr.bf16.mxu0 0
    %4145 = vmatpush2.bf16.msra.mxu0 0
    %4146 = vmatprep.subr.bf16.mxu0 0
    %4147 = vmatpush2.bf16.msra.mxu0 0
    %4148 = vmatprep.subr.bf16.mxu0 0
    %4149 = vmatpush2.bf16.msra.mxu0 0
    %4150 = vmatprep.mubr.bf16.mxu0 0
    %4151 = vmatmul.mubr.bf16.gmra.mxu0 %v4116
    %v4152 = vpop.f32.mrf.mxu0
    %v4153 = vadd.f32 %v4102, %v4152
    %v4154 = vpop.f32.mrf.mxu0
    %v4155 = vpop.f32.mrf.mxu0
    %v4156 = vpop.f32.mrf.mxu0
    %4157 = vdwg.mxu0
    %v4158 = vxor.u32 %v4153, 2147483648
    %v4159 = vmul.f32 %v4158, 1.442695
    %v4160 = vpow.pop %v4159
    %v4161 = vadd.f32 %v4160, 1.0
    %v4162 = vrcp.pop %v4161
    %v4163 = vmul.f32 1.0, %v4162
    %v4164 = vtanh.pop %v4153
    %v4165 = vld [vmem:[#allocation8] sm:$0xff]
    %4167 = vrot.lane.b32.xlu0 %v4165, 32
    %v4168 = vpop.permute.xlu0 %4167
    %v4170 = vmul.f32 %v4163, %v4168
    %4172 = vrot.lane.b32.xlu0 %v4164, 64
    %v4173 = vpop.permute.xlu0 %4172
    %v4175 = vmul.f32 %v4163, %v4173
    %4177 = vrot.lane.b32.xlu0 %v4175, 32
    %v4178 = vpop.permute.xlu0 %4177
    %v4180 = vadd.f32 %v4170, %v4178
    %v4181 = vtanh.pop %v4180
    %4183 = vrot.lane.b32.xlu0 %v4181, 64
    %v4184 = vpop.permute.xlu0 %4183
    %v4186 = vmul.f32 %v4163, %v4184
    %v4187 = vpack.c.bf16 %v4186, %v4186
    %v4189 = vunpack.c.l.b16 %v4187
    %v4190 = vpack.c.b16 %v4189, %v4189
    %4191 = vrot.lane.b32.xlu0 %v4190, 32
    %v4192 = vpop.permute.xlu0 %4191
    %4194 = vst.msk [vmem:[#allocation6] sm:$0xf] %vm604, %v4192
    %4196 = vrot.lane.b32.xlu0 %v4180, 96
    %v4197 = vpop.permute.xlu0 %4196
    %4199 = vst.msk [vmem:[#allocation8] sm:$0xff] %vm606, %v4197
    %4200 = vst.msk [vmem:[%s1997] sm:$0xf] %vm604, %v4192
    %v4201 = vld [vmem:[#allocation7] sm:$0xf]
    %v4202 = vld [vmem:[#allocation28] sm:$0xf]
    %v4203 = vld [vmem:[#allocation28 + $0x4] sm:$0xf]
    %v4204 = vld [vmem:[#allocation28 + $0x8] sm:$0xf]
    %v4205 = vld [vmem:[#allocation28 + $0xc] sm:$0xf]
    %v4206 = vld [vmem:[%s2004] sm:$0xf]
    %v4207 = vunpack.c.l.bf16 %v4206
    %v4212 = vunpack.c.l.b16 %v4202
    %v4213 = vunpack.c.l.b16 %v4203
    %v4214 = vunpack.c.l.b16 %v4204
    %v4215 = vunpack.c.l.b16 %v4205
    %v4216 = vpack.c.b16 %v4213, %v4212
    %v4217 = vpack.c.b16 %v4215, %v4214
    %v4221 = vsel %vm606, %v4201, 0
    %4223 = vmatprep.subr.bf16.mxu0 0
    %4224 = vmatpush1.bf16.msra.mxu0 0
    %4225 = vmatprep.subr.bf16.mxu0 0
    %4226 = vmatpush1.bf16.msra.mxu0 0
    %4227 = vmatprep.subr.bf16.mxu0 0
    %4228 = vmatpush1.bf16.msra.mxu0 0
    %4229 = vmatprep.subr.bf16.mxu0 0
    %4230 = vmatpush1.bf16.msra.mxu0 0
    %4231 = vmatprep.subr.bf16.mxu0 0
    %4232 = vmatpush1.bf16.msra.mxu0 0
    %4233 = vmatprep.subr.bf16.mxu0 0
    %4234 = vmatpush1.bf16.msra.mxu0 0
    %4235 = vmatprep.subr.bf16.mxu0 0
    %4236 = vmatpush1.bf16.msra.mxu0 %v4217
    %4237 = vmatprep.subr.bf16.mxu0 0
    %4238 = vmatpush1.bf16.msra.mxu0 %v4216
    %4239 = vmatprep.subr.bf16.mxu0 0
    %4240 = vmatpush2.bf16.msra.mxu0 0
    %4241 = vmatprep.subr.bf16.mxu0 0
    %4242 = vmatpush2.bf16.msra.mxu0 0
    %4243 = vmatprep.subr.bf16.mxu0 0
    %4244 = vmatpush2.bf16.msra.mxu0 0
    %4245 = vmatprep.subr.bf16.mxu0 0
    %4246 = vmatpush2.bf16.msra.mxu0 0
    %4247 = vmatprep.subr.bf16.mxu0 0
    %4248 = vmatpush2.bf16.msra.mxu0 0
    %4249 = vmatprep.subr.bf16.mxu0 0
    %4250 = vmatpush2.bf16.msra.mxu0 0
    %4251 = vmatprep.subr.bf16.mxu0 0
    %4252 = vmatpush2.bf16.msra.mxu0 0
    %4253 = vmatprep.subr.bf16.mxu0 0
    %4254 = vmatpush2.bf16.msra.mxu0 0
    %4255 = vmatprep.mubr.bf16.mxu0 0
    %4256 = vmatmul.mubr.bf16.gmra.mxu0 %v4221
    %v4257 = vpop.f32.mrf.mxu0
    %v4258 = vadd.f32 %v4207, %v4257
    %v4259 = vpop.f32.mrf.mxu0
    %v4260 = vpop.f32.mrf.mxu0
    %v4261 = vpop.f32.mrf.mxu0
    %4262 = vdwg.mxu0
    %v4263 = vxor.u32 %v4258, 2147483648
    %v4264 = vmul.f32 %v4263, 1.442695
    %v4265 = vpow.pop %v4264
    %v4266 = vadd.f32 %v4265, 1.0
    %v4267 = vrcp.pop %v4266
    %v4268 = vmul.f32 1.0, %v4267
    %v4269 = vtanh.pop %v4258
    %v4270 = vld [vmem:[#allocation9] sm:$0xff]
    %4272 = vrot.lane.b32.xlu0 %v4270, 32
    %v4273 = vpop.permute.xlu0 %4272
    %v4275 = vmul.f32 %v4268, %v4273
    %4277 = vrot.lane.b32.xlu0 %v4269, 64
    %v4278 = vpop.permute.xlu0 %4277
    %v4280 = vmul.f32 %v4268, %v4278
    %4282 = vrot.lane.b32.xlu0 %v4280, 32
    %v4283 = vpop.permute.xlu0 %4282
    %v4285 = vadd.f32 %v4275, %v4283
    %v4286 = vtanh.pop %v4285
    %4288 = vrot.lane.b32.xlu0 %v4286, 64
    %v4289 = vpop.permute.xlu0 %4288
    %v4291 = vmul.f32 %v4268, %v4289
    %v4292 = vpack.c.bf16 %v4291, %v4291
    %v4294 = vunpack.c.l.b16 %v4292
    %v4295 = vpack.c.b16 %v4294, %v4294
    %4296 = vrot.lane.b32.xlu0 %v4295, 32
    %v4297 = vpop.permute.xlu0 %4296
    %4299 = vst.msk [vmem:[#allocation7] sm:$0xf] %vm604, %v4297
    %4301 = vrot.lane.b32.xlu0 %v4285, 96
    %v4302 = vpop.permute.xlu0 %4301
    %4304 = vst.msk [vmem:[#allocation9] sm:$0xff] %vm606, %v4302
    %4305 = vst.msk [vmem:[%s2104] sm:$0xf] %vm604, %v4297
    %v4306 = vld [vmem:[#allocation6] sm:$0xf]
    %v4307 = vld [vmem:[#allocation27] sm:$0xf]
    %v4308 = vld [vmem:[#allocation27 + $0x4] sm:$0xf]
    %v4309 = vld [vmem:[#allocation27 + $0x8] sm:$0xf]
    %v4310 = vld [vmem:[#allocation27 + $0xc] sm:$0xf]
    %v4311 = vld [vmem:[%s2111] sm:$0xf]
    %v4312 = vunpack.c.l.bf16 %v4311
    %v4317 = vunpack.c.l.b16 %v4307
    %v4318 = vunpack.c.l.b16 %v4308
    %v4319 = vunpack.c.l.b16 %v4309
    %v4320 = vunpack.c.l.b16 %v4310
    %v4321 = vpack.c.b16 %v4318, %v4317
    %v4322 = vpack.c.b16 %v4320, %v4319
    %v4326 = vsel %vm606, %v4306, 0
    %4328 = vmatprep.subr.bf16.mxu0 0
    %4329 = vmatpush1.bf16.msra.mxu0 0
    %4330 = vmatprep.subr.bf16.mxu0 0
    %4331 = vmatpush1.bf16.msra.mxu0 0
    %4332 = vmatprep.subr.bf16.mxu0 0
    %4333 = vmatpush1.bf16.msra.mxu0 0
    %4334 = vmatprep.subr.bf16.mxu0 0
    %4335 = vmatpush1.bf16.msra.mxu0 0
    %4336 = vmatprep.subr.bf16.mxu0 0
    %4337 = vmatpush1.bf16.msra.mxu0 0
    %4338 = vmatprep.subr.bf16.mxu0 0
    %4339 = vmatpush1.bf16.msra.mxu0 0
    %4340 = vmatprep.subr.bf16.mxu0 0
    %4341 = vmatpush1.bf16.msra.mxu0 %v4322
    %4342 = vmatprep.subr.bf16.mxu0 0
    %4343 = vmatpush1.bf16.msra.mxu0 %v4321
    %4344 = vmatprep.subr.bf16.mxu0 0
    %4345 = vmatpush2.bf16.msra.mxu0 0
    %4346 = vmatprep.subr.bf16.mxu0 0
    %4347 = vmatpush2.bf16.msra.mxu0 0
    %4348 = vmatprep.subr.bf16.mxu0 0
    %4349 = vmatpush2.bf16.msra.mxu0 0
    %4350 = vmatprep.subr.bf16.mxu0 0
    %4351 = vmatpush2.bf16.msra.mxu0 0
    %4352 = vmatprep.subr.bf16.mxu0 0
    %4353 = vmatpush2.bf16.msra.mxu0 0
    %4354 = vmatprep.subr.bf16.mxu0 0
    %4355 = vmatpush2.bf16.msra.mxu0 0
    %4356 = vmatprep.subr.bf16.mxu0 0
    %4357 = vmatpush2.bf16.msra.mxu0 0
    %4358 = vmatprep.subr.bf16.mxu0 0
    %4359 = vmatpush2.bf16.msra.mxu0 0
    %4360 = vmatprep.mubr.bf16.mxu0 0
    %4361 = vmatmul.mubr.bf16.gmra.mxu0 %v4326
    %v4362 = vpop.f32.mrf.mxu0
    %v4363 = vadd.f32 %v4312, %v4362
    %v4364 = vpop.f32.mrf.mxu0
    %v4365 = vpop.f32.mrf.mxu0
    %v4366 = vpop.f32.mrf.mxu0
    %4367 = vdwg.mxu0
    %v4368 = vxor.u32 %v4363, 2147483648
    %v4369 = vmul.f32 %v4368, 1.442695
    %v4370 = vpow.pop %v4369
    %v4371 = vadd.f32 %v4370, 1.0
    %v4372 = vrcp.pop %v4371
    %v4373 = vmul.f32 1.0, %v4372
    %v4374 = vtanh.pop %v4363
    %v4375 = vld [vmem:[#allocation8] sm:$0xff]
    %4377 = vrot.lane.b32.xlu0 %v4375, 32
    %v4378 = vpop.permute.xlu0 %4377
    %v4380 = vmul.f32 %v4373, %v4378
    %4382 = vrot.lane.b32.xlu0 %v4374, 64
    %v4383 = vpop.permute.xlu0 %4382
    %v4385 = vmul.f32 %v4373, %v4383
    %4387 = vrot.lane.b32.xlu0 %v4385, 32
    %v4388 = vpop.permute.xlu0 %4387
    %v4390 = vadd.f32 %v4380, %v4388
    %v4391 = vtanh.pop %v4390
    %4393 = vrot.lane.b32.xlu0 %v4391, 64
    %v4394 = vpop.permute.xlu0 %4393
    %v4396 = vmul.f32 %v4373, %v4394
    %v4397 = vpack.c.bf16 %v4396, %v4396
    %v4399 = vunpack.c.l.b16 %v4397
    %v4400 = vpack.c.b16 %v4399, %v4399
    %4401 = vrot.lane.b32.xlu0 %v4400, 32
    %v4402 = vpop.permute.xlu0 %4401
    %4404 = vst.msk [vmem:[#allocation6] sm:$0xf] %vm604, %v4402
    %4406 = vrot.lane.b32.xlu0 %v4390, 96
    %v4407 = vpop.permute.xlu0 %4406
    %4409 = vst.msk [vmem:[#allocation8] sm:$0xff] %vm606, %v4407
    %4410 = vst.msk [vmem:[%s2211] sm:$0xf] %vm604, %v4402
    %v4411 = vld [vmem:[#allocation7] sm:$0xf]
    %v4412 = vld [vmem:[#allocation28] sm:$0xf]
    %v4413 = vld [vmem:[#allocation28 + $0x4] sm:$0xf]
    %v4414 = vld [vmem:[#allocation28 + $0x8] sm:$0xf]
    %v4415 = vld [vmem:[#allocation28 + $0xc] sm:$0xf]
    %v4416 = vld [vmem:[#allocation5] sm:$0xf]
    %v4417 = vunpack.c.l.bf16 %v4416
    %v4422 = vunpack.c.l.b16 %v4412
    %v4423 = vunpack.c.l.b16 %v4413
    %v4424 = vunpack.c.l.b16 %v4414
    %v4425 = vunpack.c.l.b16 %v4415
    %v4426 = vpack.c.b16 %v4423, %v4422
    %v4427 = vpack.c.b16 %v4425, %v4424
    %v4431 = vsel %vm606, %v4411, 0
    %4433 = vmatprep.subr.bf16.mxu0 0
    %4434 = vmatpush1.bf16.msra.mxu0 0
    %4435 = vmatprep.subr.bf16.mxu0 0
    %4436 = vmatpush1.bf16.msra.mxu0 0
    %4437 = vmatprep.subr.bf16.mxu0 0
    %4438 = vmatpush1.bf16.msra.mxu0 0
    %4439 = vmatprep.subr.bf16.mxu0 0
    %4440 = vmatpush1.bf16.msra.mxu0 0
    %4441 = vmatprep.subr.bf16.mxu0 0
    %4442 = vmatpush1.bf16.msra.mxu0 0
    %4443 = vmatprep.subr.bf16.mxu0 0
    %4444 = vmatpush1.bf16.msra.mxu0 0
    %4445 = vmatprep.subr.bf16.mxu0 0
    %4446 = vmatpush1.bf16.msra.mxu0 %v4427
    %4447 = vmatprep.subr.bf16.mxu0 0
    %4448 = vmatpush1.bf16.msra.mxu0 %v4426
    %4449 = vmatprep.subr.bf16.mxu0 0
    %4450 = vmatpush2.bf16.msra.mxu0 0
    %4451 = vmatprep.subr.bf16.mxu0 0
    %4452 = vmatpush2.bf16.msra.mxu0 0
    %4453 = vmatprep.subr.bf16.mxu0 0
    %4454 = vmatpush2.bf16.msra.mxu0 0
    %4455 = vmatprep.subr.bf16.mxu0 0
    %4456 = vmatpush2.bf16.msra.mxu0 0
    %4457 = vmatprep.subr.bf16.mxu0 0
    %4458 = vmatpush2.bf16.msra.mxu0 0
    %4459 = vmatprep.subr.bf16.mxu0 0
    %4460 = vmatpush2.bf16.msra.mxu0 0
    %4461 = vmatprep.subr.bf16.mxu0 0
    %4462 = vmatpush2.bf16.msra.mxu0 0
    %4463 = vmatprep.subr.bf16.mxu0 0
    %4464 = vmatpush2.bf16.msra.mxu0 0
    %4465 = vmatprep.mubr.bf16.mxu0 0
    %4466 = vmatmul.mubr.bf16.gmra.mxu0 %v4431
    %v4467 = vpop.f32.mrf.mxu0
    %v4468 = vadd.f32 %v4417, %v4467
    %v4469 = vpop.f32.mrf.mxu0
    %v4470 = vpop.f32.mrf.mxu0
    %v4471 = vpop.f32.mrf.mxu0
    %4472 = vdwg.mxu0
    %v4473 = vxor.u32 %v4468, 2147483648
    %v4474 = vmul.f32 %v4473, 1.442695
    %v4475 = vpow.pop %v4474
    %v4476 = vadd.f32 %v4475, 1.0
    %v4477 = vrcp.pop %v4476
    %v4478 = vmul.f32 1.0, %v4477
    %v4479 = vtanh.pop %v4468
    %v4480 = vld [vmem:[#allocation9] sm:$0xff]
    %4482 = vrot.lane.b32.xlu0 %v4480, 32
    %v4483 = vpop.permute.xlu0 %4482
    %v4485 = vmul.f32 %v4478, %v4483
    %4487 = vrot.lane.b32.xlu0 %v4479, 64
    %v4488 = vpop.permute.xlu0 %4487
    %v4490 = vmul.f32 %v4478, %v4488
    %4492 = vrot.lane.b32.xlu0 %v4490, 32
    %v4493 = vpop.permute.xlu0 %4492
    %v4495 = vadd.f32 %v4485, %v4493
    %v4496 = vtanh.pop %v4495
    %4498 = vrot.lane.b32.xlu0 %v4496, 64
    %v4499 = vpop.permute.xlu0 %4498
    %v4501 = vmul.f32 %v4478, %v4499
    %v4502 = vpack.c.bf16 %v4501, %v4501
    %v4504 = vunpack.c.l.b16 %v4502
    %v4505 = vpack.c.b16 %v4504, %v4504
    %4506 = vrot.lane.b32.xlu0 %v4505, 32
    %v4507 = vpop.permute.xlu0 %4506
    %4509 = vst.msk [vmem:[#allocation7] sm:$0xf] %vm604, %v4507
    %4511 = vrot.lane.b32.xlu0 %v4495, 96
    %v4512 = vpop.permute.xlu0 %4511
    %4514 = vst.msk [vmem:[#allocation9] sm:$0xff] %vm606, %v4512
    %4515 = vst.msk [vmem:[#allocation3] sm:$0xf] %vm604, %v4507
    %v4516 = vld [vmem:[#allocation30] sm:$0xf]
    %v4517 = vld [vmem:[#allocation30 + $0x4] sm:$0xf]
    %v4518 = vld [vmem:[#allocation30 + $0x8] sm:$0xf]
    %v4519 = vld [vmem:[#allocation30 + $0xc] sm:$0xf]
    %v4520 = vld [vmem:[#allocation30 + $0x10] sm:$0xf]
    %v4521 = vld [vmem:[#allocation30 + $0x14] sm:$0xf]
    %v4522 = vld [vmem:[#allocation30 + $0x18] sm:$0xf]
    %v4523 = vld [vmem:[#allocation30 + $0x1c] sm:$0xf]
    %v4524 = vld [vmem:[#allocation2] sm:$0xf]
    %v4525 = vld [vmem:[#allocation2 + $0x4] sm:$0xf]
    %v4526 = vld [vmem:[#allocation2 + $0x8] sm:$0xf]
    %v4527 = vld [vmem:[#allocation2 + $0xc] sm:$0xf]
    %v4528 = vld [vmem:[#allocation2 + $0x10] sm:$0xf]
    %v4529 = vld [vmem:[#allocation2 + $0x14] sm:$0xf]
    %v4530 = vld [vmem:[#allocation2 + $0x18] sm:$0xf]
    %v4531 = vld [vmem:[#allocation2 + $0x1c] sm:$0xf]
    %v4532 = vld [vmem:[#allocation3] sm:$0xf]
    %v4533 = vld [vmem:[#allocation3 + $0x4] sm:$0xf]
    %v4534 = vld [vmem:[#allocation3 + $0x8] sm:$0xf]
    %v4535 = vld [vmem:[#allocation3 + $0xc] sm:$0xf]
    %v4536 = vld [vmem:[#allocation3 + $0x10] sm:$0xf]
    %v4537 = vld [vmem:[#allocation3 + $0x14] sm:$0xf]
    %v4538 = vld [vmem:[#allocation3 + $0x18] sm:$0xf]
    %v4539 = vld [vmem:[#allocation3 + $0x1c] sm:$0xf]
    %v4548 = vunpack.c.l.b16 %v4532
    %v4549 = vunpack.c.l.b16 %v4533
    %v4550 = vunpack.c.l.b16 %v4534
    %v4551 = vunpack.c.l.b16 %v4535
    %v4552 = vunpack.c.l.b16 %v4536
    %v4553 = vunpack.c.l.b16 %v4537
    %v4554 = vunpack.c.l.b16 %v4538
    %v4555 = vunpack.c.l.b16 %v4539
    %v4556 = vpack.c.b16 %v4549, %v4548
    %v4557 = vpack.c.b16 %v4551, %v4550
    %v4558 = vpack.c.b16 %v4553, %v4552
    %v4559 = vpack.c.b16 %v4555, %v4554
    %v4564 = vunpack.c.l.b16 %v4520
    %v4565 = vunpack.c.l.b16 %v4521
    %v4566 = vunpack.c.l.b16 %v4522
    %v4567 = vunpack.c.l.b16 %v4523
    %v4568 = vpack.c.b16 %v4565, %v4564
    %v4569 = vpack.c.b16 %v4567, %v4566
    %v4573 = vsel %vm606, %v4556, 0
    %v4576 = vsel %vm606, %v4557, 0
    %v4579 = vsel %vm606, %v4558, 0
    %v4582 = vsel %vm606, %v4559, 0
    %4584 = vmatprep.subr.bf16.mxu0 0
    %4585 = vmatpush1.bf16.msra.mxu0 0
    %4586 = vmatprep.subr.bf16.mxu0 0
    %4587 = vmatpush1.bf16.msra.mxu0 0
    %4588 = vmatprep.subr.bf16.mxu0 0
    %4589 = vmatpush1.bf16.msra.mxu0 0
    %4590 = vmatprep.subr.bf16.mxu0 0
    %4591 = vmatpush1.bf16.msra.mxu0 0
    %4592 = vmatprep.subr.bf16.mxu0 0
    %4593 = vmatpush1.bf16.msra.mxu0 0
    %4594 = vmatprep.subr.bf16.mxu0 0
    %4595 = vmatpush1.bf16.msra.mxu0 0
    %4596 = vmatprep.subr.bf16.mxu0 0
    %4597 = vmatpush1.bf16.msra.mxu0 %v4569
    %4598 = vmatprep.subr.bf16.mxu0 0
    %4599 = vmatpush1.bf16.msra.mxu0 %v4568
    %4600 = vmatprep.subr.bf16.mxu0 0
    %4601 = vmatpush2.bf16.msra.mxu0 0
    %4602 = vmatprep.subr.bf16.mxu0 0
    %4603 = vmatpush2.bf16.msra.mxu0 0
    %4604 = vmatprep.subr.bf16.mxu0 0
    %4605 = vmatpush2.bf16.msra.mxu0 0
    %4606 = vmatprep.subr.bf16.mxu0 0
    %4607 = vmatpush2.bf16.msra.mxu0 0
    %4608 = vmatprep.subr.bf16.mxu0 0
    %4609 = vmatpush2.bf16.msra.mxu0 0
    %4610 = vmatprep.subr.bf16.mxu0 0
    %4611 = vmatpush2.bf16.msra.mxu0 0
    %4612 = vmatprep.subr.bf16.mxu0 0
    %4613 = vmatpush2.bf16.msra.mxu0 0
    %4614 = vmatprep.subr.bf16.mxu0 0
    %4615 = vmatpush2.bf16.msra.mxu0 0
    %4616 = vmatprep.mubr.bf16.mxu0 0
    %4617 = vmatmul.mubr.bf16.gmra.mxu0 %v4573
    %v4618 = vpop.f32.mrf.mxu0
    %v4619 = vadd.f32 0.0, %v4618
    %v4620 = vpop.f32.mrf.mxu0
    %v4621 = vpop.f32.mrf.mxu0
    %v4622 = vadd.f32 0.0, %v4621
    %v4623 = vpop.f32.mrf.mxu0
    %4624 = vmatprep.mubr.bf16.mxu0 0
    %4625 = vmatmul.mubr.bf16.gmra.mxu0 %v4576
    %v4626 = vpop.f32.mrf.mxu0
    %v4627 = vadd.f32 0.0, %v4626
    %v4628 = vpop.f32.mrf.mxu0
    %v4629 = vpop.f32.mrf.mxu0
    %v4630 = vadd.f32 0.0, %v4629
    %v4631 = vpop.f32.mrf.mxu0
    %4632 = vmatprep.mubr.bf16.mxu0 0
    %4633 = vmatmul.mubr.bf16.gmra.mxu0 %v4579
    %v4634 = vpop.f32.mrf.mxu0
    %v4635 = vadd.f32 0.0, %v4634
    %v4636 = vpop.f32.mrf.mxu0
    %v4637 = vpop.f32.mrf.mxu0
    %v4638 = vadd.f32 0.0, %v4637
    %v4639 = vpop.f32.mrf.mxu0
    %4640 = vmatprep.mubr.bf16.mxu0 0
    %4641 = vmatmul.mubr.bf16.gmra.mxu0 %v4582
    %v4642 = vpop.f32.mrf.mxu0
    %v4643 = vadd.f32 0.0, %v4642
    %v4644 = vpop.f32.mrf.mxu0
    %v4645 = vpop.f32.mrf.mxu0
    %v4646 = vadd.f32 0.0, %v4645
    %v4647 = vpop.f32.mrf.mxu0
    %4648 = vdwg.mxu0
    %v4657 = vunpack.c.l.b16 %v4524
    %v4658 = vunpack.c.l.b16 %v4525
    %v4659 = vunpack.c.l.b16 %v4526
    %v4660 = vunpack.c.l.b16 %v4527
    %v4661 = vunpack.c.l.b16 %v4528
    %v4662 = vunpack.c.l.b16 %v4529
    %v4663 = vunpack.c.l.b16 %v4530
    %v4664 = vunpack.c.l.b16 %v4531
    %v4665 = vpack.c.b16 %v4658, %v4657
    %v4666 = vpack.c.b16 %v4660, %v4659
    %v4667 = vpack.c.b16 %v4662, %v4661
    %v4668 = vpack.c.b16 %v4664, %v4663
    %v4673 = vunpack.c.l.b16 %v4516
    %v4674 = vunpack.c.l.b16 %v4517
    %v4675 = vunpack.c.l.b16 %v4518
    %v4676 = vunpack.c.l.b16 %v4519
    %v4677 = vpack.c.b16 %v4674, %v4673
    %v4678 = vpack.c.b16 %v4676, %v4675
    %v4682 = vsel %vm606, %v4665, 0
    %v4685 = vsel %vm606, %v4666, 0
    %v4688 = vsel %vm606, %v4667, 0
    %v4691 = vsel %vm606, %v4668, 0
    %4693 = vmatprep.subr.bf16.mxu0 0
    %4694 = vmatpush1.bf16.msra.mxu0 0
    %4695 = vmatprep.subr.bf16.mxu0 0
    %4696 = vmatpush1.bf16.msra.mxu0 0
    %4697 = vmatprep.subr.bf16.mxu0 0
    %4698 = vmatpush1.bf16.msra.mxu0 0
    %4699 = vmatprep.subr.bf16.mxu0 0
    %4700 = vmatpush1.bf16.msra.mxu0 0
    %4701 = vmatprep.subr.bf16.mxu0 0
    %4702 = vmatpush1.bf16.msra.mxu0 0
    %4703 = vmatprep.subr.bf16.mxu0 0
    %4704 = vmatpush1.bf16.msra.mxu0 0
    %4705 = vmatprep.subr.bf16.mxu0 0
    %4706 = vmatpush1.bf16.msra.mxu0 %v4678
    %4707 = vmatprep.subr.bf16.mxu0 0
    %4708 = vmatpush1.bf16.msra.mxu0 %v4677
    %4709 = vmatprep.subr.bf16.mxu0 0
    %4710 = vmatpush2.bf16.msra.mxu0 0
    %4711 = vmatprep.subr.bf16.mxu0 0
    %4712 = vmatpush2.bf16.msra.mxu0 0
    %4713 = vmatprep.subr.bf16.mxu0 0
    %4714 = vmatpush2.bf16.msra.mxu0 0
    %4715 = vmatprep.subr.bf16.mxu0 0
    %4716 = vmatpush2.bf16.msra.mxu0 0
    %4717 = vmatprep.subr.bf16.mxu0 0
    %4718 = vmatpush2.bf16.msra.mxu0 0
    %4719 = vmatprep.subr.bf16.mxu0 0
    %4720 = vmatpush2.bf16.msra.mxu0 0
    %4721 = vmatprep.subr.bf16.mxu0 0
    %4722 = vmatpush2.bf16.msra.mxu0 0
    %4723 = vmatprep.subr.bf16.mxu0 0
    %4724 = vmatpush2.bf16.msra.mxu0 0
    %4725 = vmatprep.mubr.bf16.mxu0 0
    %4726 = vmatmul.mubr.bf16.gmra.mxu0 %v4682
    %v4727 = vpop.f32.mrf.mxu0
    %v4728 = vadd.f32 %v4619, %v4727
    %v4729 = vpop.f32.mrf.mxu0
    %v4730 = vpop.f32.mrf.mxu0
    %v4731 = vadd.f32 %v4622, %v4730
    %v4732 = vpop.f32.mrf.mxu0
    %4733 = vmatprep.mubr.bf16.mxu0 0
    %4734 = vmatmul.mubr.bf16.gmra.mxu0 %v4685
    %v4735 = vpop.f32.mrf.mxu0
    %v4736 = vadd.f32 %v4627, %v4735
    %v4737 = vpop.f32.mrf.mxu0
    %v4738 = vpop.f32.mrf.mxu0
    %v4739 = vadd.f32 %v4630, %v4738
    %v4740 = vpop.f32.mrf.mxu0
    %4741 = vmatprep.mubr.bf16.mxu0 0
    %4742 = vmatmul.mubr.bf16.gmra.mxu0 %v4688
    %v4743 = vpop.f32.mrf.mxu0
    %v4744 = vadd.f32 %v4635, %v4743
    %v4745 = vpop.f32.mrf.mxu0
    %v4746 = vpop.f32.mrf.mxu0
    %v4747 = vadd.f32 %v4638, %v4746
    %v4748 = vpop.f32.mrf.mxu0
    %4749 = vmatprep.mubr.bf16.mxu0 0
    %4750 = vmatmul.mubr.bf16.gmra.mxu0 %v4691
    %v4751 = vpop.f32.mrf.mxu0
    %v4752 = vadd.f32 %v4643, %v4751
    %v4753 = vpop.f32.mrf.mxu0
    %v4754 = vpop.f32.mrf.mxu0
    %v4755 = vadd.f32 %v4646, %v4754
    %v4756 = vpop.f32.mrf.mxu0
    %4757 = vdwg.mxu0
    %v4758 = vld [vmem:[%s14] sm:$0x1]
    %v4760 = vlaneseq
    %v4761 = vshrl.u32 %v4760, 7
    %v4762 = vsub.s32 0, %v4761
    %v4763 = vrot.slane %v4758, %v4762
    %v4765 = vadd.f32 %v4728, %v4763
    %v4766 = vadd.f32 %v4731, %v4763
    %v4767 = vadd.f32 %v4736, %v4763
    %v4768 = vadd.f32 %v4739, %v4763
    %v4769 = vadd.f32 %v4744, %v4763
    %v4770 = vadd.f32 %v4747, %v4763
    %v4771 = vadd.f32 %v4752, %v4763
    %v4772 = vadd.f32 %v4755, %v4763
    %v4773 = vpack.c.bf16 %v4766, %v4765
    %v4774 = vpack.c.bf16 %v4768, %v4767
    %v4775 = vpack.c.bf16 %v4770, %v4769
    %v4776 = vpack.c.bf16 %v4772, %v4771
    %v4781 = vunpack.c.l.b16 %v4773
    %v4782 = vunpack.c.h.b16 %v4773
    %v4783 = vunpack.c.l.b16 %v4774
    %v4784 = vunpack.c.h.b16 %v4774
    %v4785 = vunpack.c.l.b16 %v4775
    %v4786 = vunpack.c.h.b16 %v4775
    %v4787 = vunpack.c.l.b16 %v4776
    %v4788 = vunpack.c.h.b16 %v4776
    %v4789 = vpack.c.b16 %v4781, %v4781
    %v4790 = vpack.c.b16 %v4782, %v4782
    %v4791 = vpack.c.b16 %v4783, %v4783
    %v4792 = vpack.c.b16 %v4784, %v4784
    %v4793 = vpack.c.b16 %v4785, %v4785
    %v4794 = vpack.c.b16 %v4786, %v4786
    %v4795 = vpack.c.b16 %v4787, %v4787
    %v4796 = vpack.c.b16 %v4788, %v4788
    %4805 = vst [vmem:[#allocation31] sm:$0xf] %v4789
    %4806 = vst [vmem:[#allocation31 + $0x4] sm:$0xf] %v4790
    %4807 = vst [vmem:[#allocation31 + $0x8] sm:$0xf] %v4791
    %4808 = vst [vmem:[#allocation31 + $0xc] sm:$0xf] %v4792
    %4809 = vst [vmem:[#allocation31 + $0x10] sm:$0xf] %v4793
    %4810 = vst [vmem:[#allocation31 + $0x14] sm:$0xf] %v4794
    %4811 = vst [vmem:[#allocation31 + $0x18] sm:$0xf] %v4795
    %4812 = vst [vmem:[#allocation31 + $0x1c] sm:$0xf] %v4796
    // Predicated region
    $region114: #{tpu_custom_call.1} parent=1 // pred_check
      _
    $region115: #{tpu_custom_call.1} parent=1 // pred_check_branch
      %4814 = sbr.rel (0) target = $region117
    $region116: #{tpu_custom_call.1} parent=1 // pred_region
      %s4816 = ssub.s32 512, 512
      %4817 = vsyncadd [#allocation12], %s4816
      %s4818 = sshll.u32 [#allocation31], 4
      %s4819 = int_to_ptr.vmem [resolvable:$true] %s4818
      %4824 = dma.vmem_to_hbm [thread:$0]  %s4819, 512, %s15, [#allocation12], 64, 64, 4
    $region117: #{tpu_custom_call.1} parent=1 // pred_fallthru
      _
    // Predicated region
    $region118: #{tpu_custom_call.1} parent=1 // pred_check
      _
    $region119: #{tpu_custom_call.1} parent=1 // pred_check_branch
      %4826 = sbr.rel (0) target = $region121
    $region120: #{tpu_custom_call.1} parent=1 // pred_region
      %4827 = dma.done [#allocation12], 512
    $region121: #{tpu_custom_call.1} parent=1 // pred_fallthru
      _
    %4828 = vsyncpa [#allocation11], 1
    %4829 = vsyncpa [#allocation14], 1
    %4830 = vsyncpa [#allocation17], 1
    %4831 = vsyncpa [#allocation20], 1
    %4832 = vsyncpa [#allocation23], 1
    %4833 = vsyncpa [#allocation26], 1
    %4834 = vsyncpa [#allocation29], 1
    %4835 = vsyncpa [#allocation12], 1

</llo_original>
